<compile_context>
chip_gen: v7x
topology: tpu7x:2x2x1
jax: 0.10.0
libtpu: 0.0.40
codegen_flags: <defaults>
</compile_context>

<pallas_src>
import functools
import math

import jax
import jax.numpy as jnp
import numpy as np
from jax.experimental import pallas as pl
from jax.experimental.pallas import tpu as pltpu


_CONV_TILE_TARGET = 2048      # lanes per conv grid step (always a multiple of 128)
_NEG_INF = -1e30              # additive mask value for the fused max-pool

_PARAMS = pltpu.CompilerParams(
    dimension_semantics=("parallel",),
    vmem_limit_bytes=40 * 1024 * 1024,   # fits v7x (64 MiB) and v5e/v6e (128 MiB)
)


# --------------------------------- helpers ----------------------------------

def _pick_images_per_tile(n_imgs, hw, target):
    """Images per conv tile `m` (m | n_imgs).  tile = m*hw must be a multiple of
    128 (lane-dense + legal BlockSpec) unless it covers the whole P axis; prefer
    tiles <= target and >= 2 grid steps (v7x megacore), then the largest tile."""
    best_m, best_key = n_imgs, None
    for m in range(1, n_imgs + 1):
        if n_imgs % m:
            continue
        tile = m * hw
        if tile % 128 != 0 and m != n_imgs:
            continue                      # would violate the lane-dim rule
        fits = tile <= target
        key = (tile % 128 == 0, fits, n_imgs // m >= 2, tile if fits else -tile)
        if best_key is None or key > best_key:
            best_m, best_key = m, key
    return best_m


@functools.lru_cache(maxsize=None)
def _boundary_masks(h, w, tile):
    """Per-tap masks over a tile of whole (h*w) images.
    Returns (conv_mask[9,1,tile] in {1,0}, pool_mask[9,1,tile] in {0,-1e30})."""
    q = np.arange(tile)
    p = q % (h * w)
    hh, ww = p // w, p % w
    cm = np.empty((9, 1, tile), np.float32)
    pm = np.empty((9, 1, tile), np.float32)
    t = 0
    for dh in (-1, 0, 1):
        for dw in (-1, 0, 1):
            ok = (hh + dh >= 0) & (hh + dh < h) & (ww + dw >= 0) & (ww + dw < w)
            cm[t, 0] = ok.astype(np.float32)
            pm[t, 0] = np.where(ok, 0.0, _NEG_INF).astype(np.float32)
            t += 1
    return jnp.asarray(cm), jnp.asarray(pm)


# ------------------------------ Pallas kernels -------------------------------

def _make_conv_kernel(shifts, tile, with_residual, with_pool):
    """conv3x3(+bias,+ReLU)[+residual][+stride-1 3x3 maxpool], all in-kernel.

    Taps are produced in VMEM by rolling the activation tile along the lane (P)
    axis and masking image boundaries — no im2col in HBM.  9 small MXU matmuls
    accumulate into f32; the optional pool reuses the f32 result with -inf
    additive masks (PyTorch max_pool2d padding semantics)."""

    def kernel(*refs):
        it = iter(refs)
        x_ref, w_ref, b_ref, cm_ref = next(it), next(it), next(it), next(it)
        pm_ref = next(it) if with_pool else None
        r_ref = next(it) if with_residual else None
        o_ref = next(it)

        x = x_ref[...].astype(jnp.float32)                       # (Cin, TP)
        y = None
        for t, d in enumerate(shifts):
            src = x if d == 0 else pltpu.roll(x, shift=(-d) % tile, axis=1)
            tap = (src * cm_ref[t]).astype(jnp.bfloat16)         # zero padding
            part = jnp.dot(w_ref[t], tap, preferred_element_type=jnp.float32)
            y = part if y is None else y + part                  # f32 accumulate
        y = jnp.maximum(y + b_ref[...], 0.0)                     # bias + ReLU

        if with_residual:
            y = y + r_ref[...].astype(jnp.float32)

        if with_pool:                                            # stride-1 3x3 max
            p = y                                                # centre tap
            for t, d in enumerate(shifts):
                if d == 0:
                    continue
                cand = pltpu.roll(y, shift=(-d) % tile, axis=1) + pm_ref[t]
                p = jnp.maximum(p, cand)
            y = p

        o_ref[...] = y.astype(o_ref.dtype)

    return kernel


def _dense2_kernel(x_ref, w1_ref, b1_ref, w2_ref, b2_ref, o_ref):
    # Fused: relu(relu(x @ W1 + b1) @ W2 + b2); intermediate stays on-chip.
    h = jnp.dot(x_ref[...], w1_ref[...], preferred_element_type=jnp.float32)
    h = jnp.maximum(h + b1_ref[...], 0.0).astype(jnp.bfloat16)
    y = jnp.dot(h, w2_ref[...], preferred_element_type=jnp.float32)
    o_ref[...] = jnp.maximum(y + b2_ref[...], 0.0)


# --------------------------- pallas_call wrappers ----------------------------

def conv3x3_cm(x, w_pk, b_col, *, residual=None, pool=False):
    """relu(conv3x3(x, pad=1) + b) [+ residual] [then stride-1 3x3 max], bf16 out.

    x: (Cin, N, H, W) bf16 channel-major; w_pk: (9, Cout, Cin) bf16;
    b_col: (Cout, 1) f32; residual: (Cout, N, H, W) bf16 or None.
    Returns (Cout, N, H, W) bf16.
    """
    Cin, N, H, W = map(int, x.shape)
    Cout = int(w_pk.shape[1])
    HW, P = H * W, N * H * W

    m = _pick_images_per_tile(N, HW, _CONV_TILE_TARGET)
    tile = m * HW
    grid = (P // tile,)
    shifts = tuple(dh * W + dw for dh in (-1, 0, 1) for dw in (-1, 0, 1))
    cmask, pmask = _boundary_masks(H, W, tile)

    in_specs = [pl.BlockSpec((Cin, tile), lambda i: (0, i)),        # activations
                pl.BlockSpec((9, Cout, Cin), lambda i: (0, 0, 0)),  # weights (grid-invariant)
                pl.BlockSpec((Cout, 1), lambda i: (0, 0)),          # bias
                pl.BlockSpec((9, 1, tile), lambda i: (0, 0, 0))]    # conv masks
    args = [x.reshape(Cin, P), w_pk, b_col, cmask]
    if pool:
        in_specs.append(pl.BlockSpec((9, 1, tile), lambda i: (0, 0, 0)))
        args.append(pmask)
    if residual is not None:
        in_specs.append(pl.BlockSpec((Cout, tile), lambda i: (0, i)))
        args.append(residual.reshape(Cout, P))

    bytes_accessed = (2 * Cin * P + 2 * Cout * P + 2 * 9 * Cout * Cin + 4 * Cout
                      + 4 * 9 * tile * (2 if pool else 1)
                      + (2 * Cout * P if residual is not None else 0))
    out = pl.pallas_call(
        _make_conv_kernel(shifts, tile, residual is not None, pool),
        grid=grid, in_specs=in_specs,
        out_specs=pl.BlockSpec((Cout, tile), lambda i: (0, i)),     # lane-dense
        out_shape=jax.ShapeDtypeStruct((Cout, P), jnp.bfloat16),
        compiler_params=_PARAMS,
        cost_estimate=pl.CostEstimate(flops=2 * 9 * Cout * Cin * P,
                                      transcendentals=0,
                                      bytes_accessed=bytes_accessed),
    )(*args)
    return out.reshape(Cout, N, H, W)


def dense2_relu(x, w1, b1, w2, b2):
    """relu(relu(x @ W1 + b1) @ W2 + b2), one fused kernel, bf16 MXU operands.
    x: (M, K1) bf16; W1/W2 bf16 (grid-invariant); b1/b2 f32 rows.  -> (M, D2) f32."""
    M, K1 = map(int, x.shape)
    D1, D2 = int(w1.shape[1]), int(w2.shape[1])
    tile_m = M
    for cand in (512, 256, 128, 64, 32, 16, 8):   # >=2 steps when M is large
        if M % cand == 0 and M // cand >= 2:
            tile_m = cand
            break
    grid = (M // tile_m,)
    return pl.pallas_call(
        _dense2_kernel, grid=grid,
        in_specs=[pl.BlockSpec((tile_m, K1), lambda i: (i, 0)),
                  pl.BlockSpec((K1, D1), lambda i: (0, 0)),
                  pl.BlockSpec((1, D1), lambda i: (0, 0)),
                  pl.BlockSpec((D1, D2), lambda i: (0, 0)),
                  pl.BlockSpec((1, D2), lambda i: (0, 0))],
        out_specs=pl.BlockSpec((tile_m, D2), lambda i: (i, 0)),
        out_shape=jax.ShapeDtypeStruct((M, D2), jnp.float32),
        compiler_params=_PARAMS,
        cost_estimate=pl.CostEstimate(
            flops=2 * M * (K1 * D1 + D1 * D2), transcendentals=0,
            bytes_accessed=(2 * M * K1 + 2 * K1 * D1 + 2 * D1 * D2
                            + 4 * (D1 + D2) + 4 * M * D2)),
    )(x, w1, b1, w2, b2)


# ------------------------------- model forward -------------------------------

def img_obs_process(img, packed):
    """ImgObsProcess.forward: linear(ImpalaCNN(img)).  img: (B, T, C, H, W) f32."""
    B, T, C, H, W = map(int, img.shape)
    # one cheap transpose into channel-major bf16 (C, N, H, W); stays that way.
    x = jnp.transpose(img.reshape(B * T, C, H, W), (1, 0, 2, 3)).astype(jnp.bfloat16)
    for st in packed["stacks"]:
        # firstconv + ReLU + fused stride-1 3x3 max ...
        x = conv3x3_cm(x, st["fc_w"], st["fc_b"], pool=True)
        # ... then the stride-2 subsample (cheap XLA slice) == max_pool2d(3,2,1).
        x = x[:, :, ::2, ::2]
        for blk in st["blocks"]:                                 # CnnBasicBlock(s)
            h = conv3x3_cm(x, blk["w0"], blk["b0"])
            x = conv3x3_cm(h, blk["w1"], blk["b1"], residual=x)
    Cc, N, Hc, Wc = map(int, x.shape)
    # back to torch's (N, C*H*W) flatten order (tiny array by now).
    feat = jnp.transpose(x, (1, 0, 2, 3)).reshape(N, Cc * Hc * Wc)
    out = dense2_relu(feat, packed["dense_w"], packed["dense_b"],
                      packed["final_w"], packed["final_b"])
    return out.reshape(B, T, -1)


# --------------------------- parameter construction --------------------------

def _fanin(key, shape, scale):
    # FanInInitReLULayer init: normalize each output row to L2 norm `scale`.
    w = jax.random.normal(key, shape, dtype=jnp.float32)
    norm = jnp.sqrt(jnp.sum(w * w, axis=tuple(range(1, w.ndim)), keepdims=True))
    return w * (scale / norm)


def init_params(key, in_ch, chans, nblock, cnn_outsize, output_size, hw):
    keys = iter(jax.random.split(key, 64))
    stacks = []
    cur_c, cur_h, cur_w = in_ch, hw, hw
    stack_scale = math.sqrt(len(chans))
    for outchan in chans:
        fc_w = _fanin(next(keys), (outchan, cur_c, 3, 3), 1.0)
        fc_b = jnp.zeros((outchan,), jnp.float32)
        s = math.sqrt(stack_scale / math.sqrt(nblock))
        blocks = [dict(w0=_fanin(next(keys), (outchan, outchan, 3, 3), s),
                       b0=jnp.zeros((outchan,), jnp.float32),
                       w1=_fanin(next(keys), (outchan, outchan, 3, 3), s),
                       b1=jnp.zeros((outchan,), jnp.float32))
                  for _ in range(nblock)]
        stacks.append(dict(fc_w=fc_w, fc_b=fc_b, blocks=blocks))
        cur_c, cur_h, cur_w = outchan, (cur_h + 1) // 2, (cur_w + 1) // 2
    flat = cur_c * cur_h * cur_w
    return dict(
        stacks=stacks,
        dense_w=_fanin(next(keys), (cnn_outsize, flat), 1.4),
        dense_b=jnp.zeros((cnn_outsize,), jnp.float32),
        final_w=_fanin(next(keys), (output_size, cnn_outsize), 1.0),
        final_b=jnp.zeros((output_size,), jnp.float32),
    )


def _pack_conv_w(w_oihw):
    # (Cout, Cin, 3, 3) -> (9, Cout, Cin) bf16; tap t = kh*3 + kw matches the
    # (dh, dw) loop order of the kernel shifts and boundary masks.
    o, i = int(w_oihw.shape[0]), int(w_oihw.shape[1])
    return jnp.transpose(w_oihw, (2, 3, 0, 1)).reshape(9, o, i).astype(jnp.bfloat16)


def pack_params(params):
    """One-time repack of torch-layout params into kernel-ready (bf16) layout."""
    stacks = []
    for st in params["stacks"]:
        blocks = [dict(w0=_pack_conv_w(blk["w0"]), b0=blk["b0"].reshape(-1, 1),
                       w1=_pack_conv_w(blk["w1"]), b1=blk["b1"].reshape(-1, 1))
                  for blk in st["blocks"]]
        stacks.append(dict(fc_w=_pack_conv_w(st["fc_w"]),
                           fc_b=st["fc_b"].reshape(-1, 1),
                           blocks=blocks))
    return dict(
        stacks=stacks,
        dense_w=jnp.transpose(params["dense_w"]).astype(jnp.bfloat16),
        dense_b=params["dense_b"].reshape(1, -1),
        final_w=jnp.transpose(params["final_w"]).astype(jnp.bfloat16),
        final_b=params["final_b"].reshape(1, -1),
    )


# ------------------------------ pure-JAX reference ---------------------------

def _ref_conv_relu(x, w, b):
    y = jax.lax.conv_general_dilated(
        x, w, window_strides=(1, 1), padding=((1, 1), (1, 1)),
        dimension_numbers=("NCHW", "OIHW", "NCHW"),
        precision=jax.lax.Precision.HIGHEST)
    return jax.nn.relu(y + b[None, :, None, None])


def _ref_maxpool(x):
    return jax.lax.reduce_window(
        x, jnp.float32(-jnp.inf), jax.lax.max,
        window_dimensions=(1, 1, 3, 3), window_strides=(1, 1, 2, 2),
        padding=((0, 0), (0, 0), (1, 1), (1, 1)))


def _ref_forward(img, params):
    B, T, C, H, W = map(int, img.shape)
    x = img.reshape(B * T, C, H, W)
    for st in params["stacks"]:
        x = _ref_conv_relu(x, st["fc_w"], st["fc_b"])
        x = _ref_maxpool(x)
        for blk in st["blocks"]:
            h = _ref_conv_relu(x, blk["w0"], blk["b0"])
            x = x + _ref_conv_relu(h, blk["w1"], blk["b1"])
    x = x.reshape(B * T, -1)
    hi = jax.lax.Precision.HIGHEST
    x = jax.nn.relu(jnp.dot(x, params["dense_w"].T, precision=hi) + params["dense_b"])
    x = jax.nn.relu(jnp.dot(x, params["final_w"].T, precision=hi) + params["final_b"])
    return x.reshape(B, T, -1)


# ----------------------------------- main -------------------------------------

if __name__ == "__main__":
    B, T, C, H, W = 2, 2, 3, 16, 16
    chans, nblock = (8, 16), 1
    cnn_outsize, output_size = 64, 32

    key = jax.random.PRNGKey(0)
    k_img, k_par = jax.random.split(key)
    img = jax.random.normal(k_img, (B, T, C, H, W), dtype=jnp.float32)
    params = init_params(k_par, C, chans, nblock, cnn_outsize, output_size, H)
    packed = pack_params(params)                 # one-time bf16 weight repack

    fwd = jax.jit(img_obs_process)
    out = jax.block_until_ready(fwd(img, packed))
    assert out.shape == (B, T, output_size), out.shape
    assert bool(jnp.all(jnp.isfinite(out)))

    ref = jax.block_until_ready(_ref_forward(img, params))
    max_err = float(jnp.max(jnp.abs(out - ref)))
    # bf16 activations + bf16 weights everywhere (deliberate perf choice) ->
    # slightly looser tolerance than a pure-f32 pipeline.
    assert jnp.allclose(out, ref, atol=1.5e-1, rtol=1e-1), max_err

    print("KERNEL_OK")
</pallas_src>

<mosaic_0001>
module attributes {stable_mosaic.version = 11 : i64} {
  func.func @kernel(%arg0: i32, %arg1: memref<3x512xbf16, #tpu.memory_space<vmem>>, %arg2: memref<9x8x3xbf16, #tpu.memory_space<vmem>>, %arg3: memref<8x1xf32, #tpu.memory_space<vmem>>, %arg4: memref<9x1x512xf32, #tpu.memory_space<vmem>>, %arg5: memref<9x1x512xf32, #tpu.memory_space<vmem>>, %arg6: memref<8x512xbf16, #tpu.memory_space<vmem>>) attributes {dimension_semantics = [#tpu.dimension_semantics<parallel>], iteration_bounds = array<i64: 2>, scalar_prefetch = 0 : i64, scratch_operands = 0 : i64, tpu.core_type = #tpu.core_type<tc>, window_params = [{transform_indices = @transform_0, window_bounds = array<i64: 3, 512>}, {pipeline_mode = #tpu.pipeline_mode<synchronous>, transform_indices = @transform_1, window_bounds = array<i64: 9, 8, 3>}, {pipeline_mode = #tpu.pipeline_mode<synchronous>, transform_indices = @transform_2, window_bounds = array<i64: 8, 1>}, {pipeline_mode = #tpu.pipeline_mode<synchronous>, transform_indices = @transform_3, window_bounds = array<i64: 9, 1, 512>}, {pipeline_mode = #tpu.pipeline_mode<synchronous>, transform_indices = @transform_4, window_bounds = array<i64: 9, 1, 512>}, {transform_indices = @transform_5, window_bounds = array<i64: 8, 512>}]} {
    %c0 = arith.constant 0 : index
    %c0_0 = arith.constant 0 : index
    %0 = vector.load %arg1[%c0, %c0_0] : memref<3x512xbf16, #tpu.memory_space<vmem>>, vector<3x512xbf16>
    %1 = arith.extf %0 : vector<3x512xbf16> to vector<3x512xf32>
    %c17_i32 = arith.constant 17 : i32
    %2 = tpu.dynamic_rotate %1 by %c17_i32 dim 1 : vector<3x512xf32>, i32 -> vector<3x512xf32>
    %c0_1 = arith.constant 0 : index
    %c0_2 = arith.constant 0 : index
    %c0_3 = arith.constant 0 : index
    %3 = vector.load %arg4[%c0_1, %c0_2, %c0_3] : memref<9x1x512xf32, #tpu.memory_space<vmem>>, vector<1x1x512xf32>
    %4 = vector.shape_cast %3 : vector<1x1x512xf32> to vector<1x512xf32>
    %5 = vector.broadcast %4 : vector<1x512xf32> to vector<3x512xf32>
    %6 = arith.mulf %2, %5 : vector<3x512xf32>
    %7 = arith.truncf %6 : vector<3x512xf32> to vector<3x512xbf16>
    %c0_4 = arith.constant 0 : index
    %c0_5 = arith.constant 0 : index
    %c0_6 = arith.constant 0 : index
    %8 = vector.load %arg2[%c0_4, %c0_5, %c0_6] : memref<9x8x3xbf16, #tpu.memory_space<vmem>>, vector<1x8x3xbf16>
    %9 = vector.shape_cast %8 : vector<1x8x3xbf16> to vector<8x3xbf16>
    %cst = arith.constant dense<0.000000e+00> : vector<8x512xf32>
    %10 = tpu.matmul %9, %7, %cst {dimension_numbers = #tpu.dot_dimension_numbers<[1], [0], [0], [1], [0, 0, 1, 1], [], []>} : vector<8x3xbf16>, vector<3x512xbf16>, vector<8x512xf32> -> vector<8x512xf32>
    %c16_i32 = arith.constant 16 : i32
    %11 = tpu.dynamic_rotate %1 by %c16_i32 dim 1 : vector<3x512xf32>, i32 -> vector<3x512xf32>
    %c1 = arith.constant 1 : index
    %c0_7 = arith.constant 0 : index
    %c0_8 = arith.constant 0 : index
    %12 = vector.load %arg4[%c1, %c0_7, %c0_8] : memref<9x1x512xf32, #tpu.memory_space<vmem>>, vector<1x1x512xf32>
    %13 = vector.shape_cast %12 : vector<1x1x512xf32> to vector<1x512xf32>
    %14 = vector.broadcast %13 : vector<1x512xf32> to vector<3x512xf32>
    %15 = arith.mulf %11, %14 : vector<3x512xf32>
    %16 = arith.truncf %15 : vector<3x512xf32> to vector<3x512xbf16>
    %c1_9 = arith.constant 1 : index
    %c0_10 = arith.constant 0 : index
    %c0_11 = arith.constant 0 : index
    %17 = vector.load %arg2[%c1_9, %c0_10, %c0_11] : memref<9x8x3xbf16, #tpu.memory_space<vmem>>, vector<1x8x3xbf16>
    %18 = vector.shape_cast %17 : vector<1x8x3xbf16> to vector<8x3xbf16>
    %cst_12 = arith.constant dense<0.000000e+00> : vector<8x512xf32>
    %19 = tpu.matmul %18, %16, %cst_12 {dimension_numbers = #tpu.dot_dimension_numbers<[1], [0], [0], [1], [0, 0, 1, 1], [], []>} : vector<8x3xbf16>, vector<3x512xbf16>, vector<8x512xf32> -> vector<8x512xf32>
    %20 = arith.addf %10, %19 : vector<8x512xf32>
    %c15_i32 = arith.constant 15 : i32
    %21 = tpu.dynamic_rotate %1 by %c15_i32 dim 1 : vector<3x512xf32>, i32 -> vector<3x512xf32>
    %c2 = arith.constant 2 : index
    %c0_13 = arith.constant 0 : index
    %c0_14 = arith.constant 0 : index
    %22 = vector.load %arg4[%c2, %c0_13, %c0_14] : memref<9x1x512xf32, #tpu.memory_space<vmem>>, vector<1x1x512xf32>
    %23 = vector.shape_cast %22 : vector<1x1x512xf32> to vector<1x512xf32>
    %24 = vector.broadcast %23 : vector<1x512xf32> to vector<3x512xf32>
    %25 = arith.mulf %21, %24 : vector<3x512xf32>
    %26 = arith.truncf %25 : vector<3x512xf32> to vector<3x512xbf16>
    %c2_15 = arith.constant 2 : index
    %c0_16 = arith.constant 0 : index
    %c0_17 = arith.constant 0 : index
    %27 = vector.load %arg2[%c2_15, %c0_16, %c0_17] : memref<9x8x3xbf16, #tpu.memory_space<vmem>>, vector<1x8x3xbf16>
    %28 = vector.shape_cast %27 : vector<1x8x3xbf16> to vector<8x3xbf16>
    %cst_18 = arith.constant dense<0.000000e+00> : vector<8x512xf32>
    %29 = tpu.matmul %28, %26, %cst_18 {dimension_numbers = #tpu.dot_dimension_numbers<[1], [0], [0], [1], [0, 0, 1, 1], [], []>} : vector<8x3xbf16>, vector<3x512xbf16>, vector<8x512xf32> -> vector<8x512xf32>
    %30 = arith.addf %20, %29 : vector<8x512xf32>
    %c1_i32 = arith.constant 1 : i32
    %31 = tpu.dynamic_rotate %1 by %c1_i32 dim 1 : vector<3x512xf32>, i32 -> vector<3x512xf32>
    %c3 = arith.constant 3 : index
    %c0_19 = arith.constant 0 : index
    %c0_20 = arith.constant 0 : index
    %32 = vector.load %arg4[%c3, %c0_19, %c0_20] : memref<9x1x512xf32, #tpu.memory_space<vmem>>, vector<1x1x512xf32>
    %33 = vector.shape_cast %32 : vector<1x1x512xf32> to vector<1x512xf32>
    %34 = vector.broadcast %33 : vector<1x512xf32> to vector<3x512xf32>
    %35 = arith.mulf %31, %34 : vector<3x512xf32>
    %36 = arith.truncf %35 : vector<3x512xf32> to vector<3x512xbf16>
    %c3_21 = arith.constant 3 : index
    %c0_22 = arith.constant 0 : index
    %c0_23 = arith.constant 0 : index
    %37 = vector.load %arg2[%c3_21, %c0_22, %c0_23] : memref<9x8x3xbf16, #tpu.memory_space<vmem>>, vector<1x8x3xbf16>
    %38 = vector.shape_cast %37 : vector<1x8x3xbf16> to vector<8x3xbf16>
    %cst_24 = arith.constant dense<0.000000e+00> : vector<8x512xf32>
    %39 = tpu.matmul %38, %36, %cst_24 {dimension_numbers = #tpu.dot_dimension_numbers<[1], [0], [0], [1], [0, 0, 1, 1], [], []>} : vector<8x3xbf16>, vector<3x512xbf16>, vector<8x512xf32> -> vector<8x512xf32>
    %40 = arith.addf %30, %39 : vector<8x512xf32>
    %c4 = arith.constant 4 : index
    %c0_25 = arith.constant 0 : index
    %c0_26 = arith.constant 0 : index
    %41 = vector.load %arg4[%c4, %c0_25, %c0_26] : memref<9x1x512xf32, #tpu.memory_space<vmem>>, vector<1x1x512xf32>
    %42 = vector.shape_cast %41 : vector<1x1x512xf32> to vector<1x512xf32>
    %43 = vector.broadcast %42 : vector<1x512xf32> to vector<3x512xf32>
    %44 = arith.mulf %1, %43 : vector<3x512xf32>
    %45 = arith.truncf %44 : vector<3x512xf32> to vector<3x512xbf16>
    %c4_27 = arith.constant 4 : index
    %c0_28 = arith.constant 0 : index
    %c0_29 = arith.constant 0 : index
    %46 = vector.load %arg2[%c4_27, %c0_28, %c0_29] : memref<9x8x3xbf16, #tpu.memory_space<vmem>>, vector<1x8x3xbf16>
    %47 = vector.shape_cast %46 : vector<1x8x3xbf16> to vector<8x3xbf16>
    %cst_30 = arith.constant dense<0.000000e+00> : vector<8x512xf32>
    %48 = tpu.matmul %47, %45, %cst_30 {dimension_numbers = #tpu.dot_dimension_numbers<[1], [0], [0], [1], [0, 0, 1, 1], [], []>} : vector<8x3xbf16>, vector<3x512xbf16>, vector<8x512xf32> -> vector<8x512xf32>
    %49 = arith.addf %40, %48 : vector<8x512xf32>
    %c511_i32 = arith.constant 511 : i32
    %50 = tpu.dynamic_rotate %1 by %c511_i32 dim 1 : vector<3x512xf32>, i32 -> vector<3x512xf32>
    %c5 = arith.constant 5 : index
    %c0_31 = arith.constant 0 : index
    %c0_32 = arith.constant 0 : index
    %51 = vector.load %arg4[%c5, %c0_31, %c0_32] : memref<9x1x512xf32, #tpu.memory_space<vmem>>, vector<1x1x512xf32>
    %52 = vector.shape_cast %51 : vector<1x1x512xf32> to vector<1x512xf32>
    %53 = vector.broadcast %52 : vector<1x512xf32> to vector<3x512xf32>
    %54 = arith.mulf %50, %53 : vector<3x512xf32>
    %55 = arith.truncf %54 : vector<3x512xf32> to vector<3x512xbf16>
    %c5_33 = arith.constant 5 : index
    %c0_34 = arith.constant 0 : index
    %c0_35 = arith.constant 0 : index
    %56 = vector.load %arg2[%c5_33, %c0_34, %c0_35] : memref<9x8x3xbf16, #tpu.memory_space<vmem>>, vector<1x8x3xbf16>
    %57 = vector.shape_cast %56 : vector<1x8x3xbf16> to vector<8x3xbf16>
    %cst_36 = arith.constant dense<0.000000e+00> : vector<8x512xf32>
    %58 = tpu.matmul %57, %55, %cst_36 {dimension_numbers = #tpu.dot_dimension_numbers<[1], [0], [0], [1], [0, 0, 1, 1], [], []>} : vector<8x3xbf16>, vector<3x512xbf16>, vector<8x512xf32> -> vector<8x512xf32>
    %59 = arith.addf %49, %58 : vector<8x512xf32>
    %c497_i32 = arith.constant 497 : i32
    %60 = tpu.dynamic_rotate %1 by %c497_i32 dim 1 : vector<3x512xf32>, i32 -> vector<3x512xf32>
    %c6 = arith.constant 6 : index
    %c0_37 = arith.constant 0 : index
    %c0_38 = arith.constant 0 : index
    %61 = vector.load %arg4[%c6, %c0_37, %c0_38] : memref<9x1x512xf32, #tpu.memory_space<vmem>>, vector<1x1x512xf32>
    %62 = vector.shape_cast %61 : vector<1x1x512xf32> to vector<1x512xf32>
    %63 = vector.broadcast %62 : vector<1x512xf32> to vector<3x512xf32>
    %64 = arith.mulf %60, %63 : vector<3x512xf32>
    %65 = arith.truncf %64 : vector<3x512xf32> to vector<3x512xbf16>
    %c6_39 = arith.constant 6 : index
    %c0_40 = arith.constant 0 : index
    %c0_41 = arith.constant 0 : index
    %66 = vector.load %arg2[%c6_39, %c0_40, %c0_41] : memref<9x8x3xbf16, #tpu.memory_space<vmem>>, vector<1x8x3xbf16>
    %67 = vector.shape_cast %66 : vector<1x8x3xbf16> to vector<8x3xbf16>
    %cst_42 = arith.constant dense<0.000000e+00> : vector<8x512xf32>
    %68 = tpu.matmul %67, %65, %cst_42 {dimension_numbers = #tpu.dot_dimension_numbers<[1], [0], [0], [1], [0, 0, 1, 1], [], []>} : vector<8x3xbf16>, vector<3x512xbf16>, vector<8x512xf32> -> vector<8x512xf32>
    %69 = arith.addf %59, %68 : vector<8x512xf32>
    %c496_i32 = arith.constant 496 : i32
    %70 = tpu.dynamic_rotate %1 by %c496_i32 dim 1 : vector<3x512xf32>, i32 -> vector<3x512xf32>
    %c7 = arith.constant 7 : index
    %c0_43 = arith.constant 0 : index
    %c0_44 = arith.constant 0 : index
    %71 = vector.load %arg4[%c7, %c0_43, %c0_44] : memref<9x1x512xf32, #tpu.memory_space<vmem>>, vector<1x1x512xf32>
    %72 = vector.shape_cast %71 : vector<1x1x512xf32> to vector<1x512xf32>
    %73 = vector.broadcast %72 : vector<1x512xf32> to vector<3x512xf32>
    %74 = arith.mulf %70, %73 : vector<3x512xf32>
    %75 = arith.truncf %74 : vector<3x512xf32> to vector<3x512xbf16>
    %c7_45 = arith.constant 7 : index
    %c0_46 = arith.constant 0 : index
    %c0_47 = arith.constant 0 : index
    %76 = vector.load %arg2[%c7_45, %c0_46, %c0_47] : memref<9x8x3xbf16, #tpu.memory_space<vmem>>, vector<1x8x3xbf16>
    %77 = vector.shape_cast %76 : vector<1x8x3xbf16> to vector<8x3xbf16>
    %cst_48 = arith.constant dense<0.000000e+00> : vector<8x512xf32>
    %78 = tpu.matmul %77, %75, %cst_48 {dimension_numbers = #tpu.dot_dimension_numbers<[1], [0], [0], [1], [0, 0, 1, 1], [], []>} : vector<8x3xbf16>, vector<3x512xbf16>, vector<8x512xf32> -> vector<8x512xf32>
    %79 = arith.addf %69, %78 : vector<8x512xf32>
    %c495_i32 = arith.constant 495 : i32
    %80 = tpu.dynamic_rotate %1 by %c495_i32 dim 1 : vector<3x512xf32>, i32 -> vector<3x512xf32>
    %c8 = arith.constant 8 : index
    %c0_49 = arith.constant 0 : index
    %c0_50 = arith.constant 0 : index
    %81 = vector.load %arg4[%c8, %c0_49, %c0_50] : memref<9x1x512xf32, #tpu.memory_space<vmem>>, vector<1x1x512xf32>
    %82 = vector.shape_cast %81 : vector<1x1x512xf32> to vector<1x512xf32>
    %83 = vector.broadcast %82 : vector<1x512xf32> to vector<3x512xf32>
    %84 = arith.mulf %80, %83 : vector<3x512xf32>
    %85 = arith.truncf %84 : vector<3x512xf32> to vector<3x512xbf16>
    %c8_51 = arith.constant 8 : index
    %c0_52 = arith.constant 0 : index
    %c0_53 = arith.constant 0 : index
    %86 = vector.load %arg2[%c8_51, %c0_52, %c0_53] : memref<9x8x3xbf16, #tpu.memory_space<vmem>>, vector<1x8x3xbf16>
    %87 = vector.shape_cast %86 : vector<1x8x3xbf16> to vector<8x3xbf16>
    %cst_54 = arith.constant dense<0.000000e+00> : vector<8x512xf32>
    %88 = tpu.matmul %87, %85, %cst_54 {dimension_numbers = #tpu.dot_dimension_numbers<[1], [0], [0], [1], [0, 0, 1, 1], [], []>} : vector<8x3xbf16>, vector<3x512xbf16>, vector<8x512xf32> -> vector<8x512xf32>
    %89 = arith.addf %79, %88 : vector<8x512xf32>
    %c0_55 = arith.constant 0 : index
    %c0_56 = arith.constant 0 : index
    %90 = vector.load %arg3[%c0_55, %c0_56] : memref<8x1xf32, #tpu.memory_space<vmem>>, vector<8x1xf32>
    %91 = vector.broadcast %90 : vector<8x1xf32> to vector<8x512xf32>
    %92 = arith.addf %89, %91 : vector<8x512xf32>
    %cst_57 = arith.constant 0.000000e+00 : f32
    %93 = vector.broadcast %cst_57 : f32 to vector<8x512xf32>
    %94 = arith.maximumf %92, %93 : vector<8x512xf32>
    %c17_i32_58 = arith.constant 17 : i32
    %95 = tpu.dynamic_rotate %94 by %c17_i32_58 dim 1 : vector<8x512xf32>, i32 -> vector<8x512xf32>
    %c0_59 = arith.constant 0 : index
    %c0_60 = arith.constant 0 : index
    %c0_61 = arith.constant 0 : index
    %96 = vector.load %arg5[%c0_59, %c0_60, %c0_61] : memref<9x1x512xf32, #tpu.memory_space<vmem>>, vector<1x1x512xf32>
    %97 = vector.shape_cast %96 : vector<1x1x512xf32> to vector<1x512xf32>
    %98 = vector.broadcast %97 : vector<1x512xf32> to vector<8x512xf32>
    %99 = arith.addf %95, %98 : vector<8x512xf32>
    %100 = arith.maximumf %94, %99 : vector<8x512xf32>
    %c16_i32_62 = arith.constant 16 : i32
    %101 = tpu.dynamic_rotate %94 by %c16_i32_62 dim 1 : vector<8x512xf32>, i32 -> vector<8x512xf32>
    %c1_63 = arith.constant 1 : index
    %c0_64 = arith.constant 0 : index
    %c0_65 = arith.constant 0 : index
    %102 = vector.load %arg5[%c1_63, %c0_64, %c0_65] : memref<9x1x512xf32, #tpu.memory_space<vmem>>, vector<1x1x512xf32>
    %103 = vector.shape_cast %102 : vector<1x1x512xf32> to vector<1x512xf32>
    %104 = vector.broadcast %103 : vector<1x512xf32> to vector<8x512xf32>
    %105 = arith.addf %101, %104 : vector<8x512xf32>
    %106 = arith.maximumf %100, %105 : vector<8x512xf32>
    %c15_i32_66 = arith.constant 15 : i32
    %107 = tpu.dynamic_rotate %94 by %c15_i32_66 dim 1 : vector<8x512xf32>, i32 -> vector<8x512xf32>
    %c2_67 = arith.constant 2 : index
    %c0_68 = arith.constant 0 : index
    %c0_69 = arith.constant 0 : index
    %108 = vector.load %arg5[%c2_67, %c0_68, %c0_69] : memref<9x1x512xf32, #tpu.memory_space<vmem>>, vector<1x1x512xf32>
    %109 = vector.shape_cast %108 : vector<1x1x512xf32> to vector<1x512xf32>
    %110 = vector.broadcast %109 : vector<1x512xf32> to vector<8x512xf32>
    %111 = arith.addf %107, %110 : vector<8x512xf32>
    %112 = arith.maximumf %106, %111 : vector<8x512xf32>
    %c1_i32_70 = arith.constant 1 : i32
    %113 = tpu.dynamic_rotate %94 by %c1_i32_70 dim 1 : vector<8x512xf32>, i32 -> vector<8x512xf32>
    %c3_71 = arith.constant 3 : index
    %c0_72 = arith.constant 0 : index
    %c0_73 = arith.constant 0 : index
    %114 = vector.load %arg5[%c3_71, %c0_72, %c0_73] : memref<9x1x512xf32, #tpu.memory_space<vmem>>, vector<1x1x512xf32>
    %115 = vector.shape_cast %114 : vector<1x1x512xf32> to vector<1x512xf32>
    %116 = vector.broadcast %115 : vector<1x512xf32> to vector<8x512xf32>
    %117 = arith.addf %113, %116 : vector<8x512xf32>
    %118 = arith.maximumf %112, %117 : vector<8x512xf32>
    %c511_i32_74 = arith.constant 511 : i32
    %119 = tpu.dynamic_rotate %94 by %c511_i32_74 dim 1 : vector<8x512xf32>, i32 -> vector<8x512xf32>
    %c5_75 = arith.constant 5 : index
    %c0_76 = arith.constant 0 : index
    %c0_77 = arith.constant 0 : index
    %120 = vector.load %arg5[%c5_75, %c0_76, %c0_77] : memref<9x1x512xf32, #tpu.memory_space<vmem>>, vector<1x1x512xf32>
    %121 = vector.shape_cast %120 : vector<1x1x512xf32> to vector<1x512xf32>
    %122 = vector.broadcast %121 : vector<1x512xf32> to vector<8x512xf32>
    %123 = arith.addf %119, %122 : vector<8x512xf32>
    %124 = arith.maximumf %118, %123 : vector<8x512xf32>
    %c497_i32_78 = arith.constant 497 : i32
    %125 = tpu.dynamic_rotate %94 by %c497_i32_78 dim 1 : vector<8x512xf32>, i32 -> vector<8x512xf32>
    %c6_79 = arith.constant 6 : index
    %c0_80 = arith.constant 0 : index
    %c0_81 = arith.constant 0 : index
    %126 = vector.load %arg5[%c6_79, %c0_80, %c0_81] : memref<9x1x512xf32, #tpu.memory_space<vmem>>, vector<1x1x512xf32>
    %127 = vector.shape_cast %126 : vector<1x1x512xf32> to vector<1x512xf32>
    %128 = vector.broadcast %127 : vector<1x512xf32> to vector<8x512xf32>
    %129 = arith.addf %125, %128 : vector<8x512xf32>
    %130 = arith.maximumf %124, %129 : vector<8x512xf32>
    %c496_i32_82 = arith.constant 496 : i32
    %131 = tpu.dynamic_rotate %94 by %c496_i32_82 dim 1 : vector<8x512xf32>, i32 -> vector<8x512xf32>
    %c7_83 = arith.constant 7 : index
    %c0_84 = arith.constant 0 : index
    %c0_85 = arith.constant 0 : index
    %132 = vector.load %arg5[%c7_83, %c0_84, %c0_85] : memref<9x1x512xf32, #tpu.memory_space<vmem>>, vector<1x1x512xf32>
    %133 = vector.shape_cast %132 : vector<1x1x512xf32> to vector<1x512xf32>
    %134 = vector.broadcast %133 : vector<1x512xf32> to vector<8x512xf32>
    %135 = arith.addf %131, %134 : vector<8x512xf32>
    %136 = arith.maximumf %130, %135 : vector<8x512xf32>
    %c495_i32_86 = arith.constant 495 : i32
    %137 = tpu.dynamic_rotate %94 by %c495_i32_86 dim 1 : vector<8x512xf32>, i32 -> vector<8x512xf32>
    %c8_87 = arith.constant 8 : index
    %c0_88 = arith.constant 0 : index
    %c0_89 = arith.constant 0 : index
    %138 = vector.load %arg5[%c8_87, %c0_88, %c0_89] : memref<9x1x512xf32, #tpu.memory_space<vmem>>, vector<1x1x512xf32>
    %139 = vector.shape_cast %138 : vector<1x1x512xf32> to vector<1x512xf32>
    %140 = vector.broadcast %139 : vector<1x512xf32> to vector<8x512xf32>
    %141 = arith.addf %137, %140 : vector<8x512xf32>
    %142 = arith.maximumf %136, %141 : vector<8x512xf32>
    %143 = arith.truncf %142 : vector<8x512xf32> to vector<8x512xbf16>
    %c0_90 = arith.constant 0 : index
    %c0_91 = arith.constant 0 : index
    %144 = vector.load %arg6[%c0_90, %c0_91] : memref<8x512xbf16, #tpu.memory_space<vmem>>, vector<8x512xbf16>
    tpu.vector_store %arg6[%c0_90, %c0_91], %143 {strides = array<i32>} : memref<8x512xbf16, #tpu.memory_space<vmem>>, vector<8x512xbf16>,
    return
  }
  func.func @transform_0(%arg0: i32) -> (i32, i32) {
    %c0_i32 = arith.constant 0 : i32
    %c0_i32_0 = arith.constant 0 : i32
    return %c0_i32, %arg0 : i32, i32
  }
  func.func @transform_1(%arg0: i32) -> (i32, i32, i32) {
    %c0_i32 = arith.constant 0 : i32
    %c0_i32_0 = arith.constant 0 : i32
    %c0_i32_1 = arith.constant 0 : i32
    %c0_i32_2 = arith.constant 0 : i32
    return %c0_i32, %c0_i32_0, %c0_i32_1 : i32, i32, i32
  }
  func.func @transform_2(%arg0: i32) -> (i32, i32) {
    %c0_i32 = arith.constant 0 : i32
    %c0_i32_0 = arith.constant 0 : i32
    %c0_i32_1 = arith.constant 0 : i32
    return %c0_i32, %c0_i32_0 : i32, i32
  }
  func.func @transform_3(%arg0: i32) -> (i32, i32, i32) {
    %c0_i32 = arith.constant 0 : i32
    %c0_i32_0 = arith.constant 0 : i32
    %c0_i32_1 = arith.constant 0 : i32
    %c0_i32_2 = arith.constant 0 : i32
    return %c0_i32, %c0_i32_0, %c0_i32_1 : i32, i32, i32
  }
  func.func @transform_4(%arg0: i32) -> (i32, i32, i32) {
    %c0_i32 = arith.constant 0 : i32
    %c0_i32_0 = arith.constant 0 : i32
    %c0_i32_1 = arith.constant 0 : i32
    %c0_i32_2 = arith.constant 0 : i32
    return %c0_i32, %c0_i32_0, %c0_i32_1 : i32, i32, i32
  }
  func.func @transform_5(%arg0: i32) -> (i32, i32) {
    %c0_i32 = arith.constant 0 : i32
    %c0_i32_0 = arith.constant 0 : i32
    return %c0_i32, %arg0 : i32, i32
  }
}

module attributes {stable_mosaic.version = 11 : i64} {
  func.func @kernel(%arg0: i32, %arg1: memref<8x128xbf16, #tpu.memory_space<vmem>>, %arg2: memref<9x8x8xbf16, #tpu.memory_space<vmem>>, %arg3: memref<8x1xf32, #tpu.memory_space<vmem>>, %arg4: memref<9x1x128xf32, #tpu.memory_space<vmem>>, %arg5: memref<8x128xbf16, #tpu.memory_space<vmem>>) attributes {dimension_semantics = [#tpu.dimension_semantics<parallel>], iteration_bounds = array<i64: 2>, scalar_prefetch = 0 : i64, scratch_operands = 0 : i64, tpu.core_type = #tpu.core_type<tc>, window_params = [{transform_indices = @transform_0, window_bounds = array<i64: 8, 128>}, {pipeline_mode = #tpu.pipeline_mode<synchronous>, transform_indices = @transform_1, window_bounds = array<i64: 9, 8, 8>}, {pipeline_mode = #tpu.pipeline_mode<synchronous>, transform_indices = @transform_2, window_bounds = array<i64: 8, 1>}, {pipeline_mode = #tpu.pipeline_mode<synchronous>, transform_indices = @transform_3, window_bounds = array<i64: 9, 1, 128>}, {transform_indices = @transform_4, window_bounds = array<i64: 8, 128>}]} {
    %c0 = arith.constant 0 : index
    %c0_0 = arith.constant 0 : index
    %0 = vector.load %arg1[%c0, %c0_0] : memref<8x128xbf16, #tpu.memory_space<vmem>>, vector<8x128xbf16>
    %1 = arith.extf %0 : vector<8x128xbf16> to vector<8x128xf32>
    %c9_i32 = arith.constant 9 : i32
    %2 = tpu.dynamic_rotate %1 by %c9_i32 dim 1 : vector<8x128xf32>, i32 -> vector<8x128xf32>
    %c0_1 = arith.constant 0 : index
    %c0_2 = arith.constant 0 : index
    %c0_3 = arith.constant 0 : index
    %3 = vector.load %arg4[%c0_1, %c0_2, %c0_3] : memref<9x1x128xf32, #tpu.memory_space<vmem>>, vector<1x1x128xf32>
    %4 = vector.shape_cast %3 : vector<1x1x128xf32> to vector<1x128xf32>
    %5 = vector.broadcast %4 : vector<1x128xf32> to vector<8x128xf32>
    %6 = arith.mulf %2, %5 : vector<8x128xf32>
    %7 = arith.truncf %6 : vector<8x128xf32> to vector<8x128xbf16>
    %c0_4 = arith.constant 0 : index
    %c0_5 = arith.constant 0 : index
    %c0_6 = arith.constant 0 : index
    %8 = vector.load %arg2[%c0_4, %c0_5, %c0_6] : memref<9x8x8xbf16, #tpu.memory_space<vmem>>, vector<1x8x8xbf16>
    %9 = vector.shape_cast %8 : vector<1x8x8xbf16> to vector<8x8xbf16>
    %cst = arith.constant dense<0.000000e+00> : vector<8x128xf32>
    %10 = tpu.matmul %9, %7, %cst {dimension_numbers = #tpu.dot_dimension_numbers<[1], [0], [0], [1], [0, 0, 1, 1], [], []>} : vector<8x8xbf16>, vector<8x128xbf16>, vector<8x128xf32> -> vector<8x128xf32>
    %c8_i32 = arith.constant 8 : i32
    %11 = tpu.dynamic_rotate %1 by %c8_i32 dim 1 : vector<8x128xf32>, i32 -> vector<8x128xf32>
    %c1 = arith.constant 1 : index
    %c0_7 = arith.constant 0 : index
    %c0_8 = arith.constant 0 : index
    %12 = vector.load %arg4[%c1, %c0_7, %c0_8] : memref<9x1x128xf32, #tpu.memory_space<vmem>>, vector<1x1x128xf32>
    %13 = vector.shape_cast %12 : vector<1x1x128xf32> to vector<1x128xf32>
    %14 = vector.broadcast %13 : vector<1x128xf32> to vector<8x128xf32>
    %15 = arith.mulf %11, %14 : vector<8x128xf32>
    %16 = arith.truncf %15 : vector<8x128xf32> to vector<8x128xbf16>
    %c1_9 = arith.constant 1 : index
    %c0_10 = arith.constant 0 : index
    %c0_11 = arith.constant 0 : index
    %17 = vector.load %arg2[%c1_9, %c0_10, %c0_11] : memref<9x8x8xbf16, #tpu.memory_space<vmem>>, vector<1x8x8xbf16>
    %18 = vector.shape_cast %17 : vector<1x8x8xbf16> to vector<8x8xbf16>
    %cst_12 = arith.constant dense<0.000000e+00> : vector<8x128xf32>
    %19 = tpu.matmul %18, %16, %cst_12 {dimension_numbers = #tpu.dot_dimension_numbers<[1], [0], [0], [1], [0, 0, 1, 1], [], []>} : vector<8x8xbf16>, vector<8x128xbf16>, vector<8x128xf32> -> vector<8x128xf32>
    %20 = arith.addf %10, %19 : vector<8x128xf32>
    %c7_i32 = arith.constant 7 : i32
    %21 = tpu.dynamic_rotate %1 by %c7_i32 dim 1 : vector<8x128xf32>, i32 -> vector<8x128xf32>
    %c2 = arith.constant 2 : index
    %c0_13 = arith.constant 0 : index
    %c0_14 = arith.constant 0 : index
    %22 = vector.load %arg4[%c2, %c0_13, %c0_14] : memref<9x1x128xf32, #tpu.memory_space<vmem>>, vector<1x1x128xf32>
    %23 = vector.shape_cast %22 : vector<1x1x128xf32> to vector<1x128xf32>
    %24 = vector.broadcast %23 : vector<1x128xf32> to vector<8x128xf32>
    %25 = arith.mulf %21, %24 : vector<8x128xf32>
    %26 = arith.truncf %25 : vector<8x128xf32> to vector<8x128xbf16>
    %c2_15 = arith.constant 2 : index
    %c0_16 = arith.constant 0 : index
    %c0_17 = arith.constant 0 : index
    %27 = vector.load %arg2[%c2_15, %c0_16, %c0_17] : memref<9x8x8xbf16, #tpu.memory_space<vmem>>, vector<1x8x8xbf16>
    %28 = vector.shape_cast %27 : vector<1x8x8xbf16> to vector<8x8xbf16>
    %cst_18 = arith.constant dense<0.000000e+00> : vector<8x128xf32>
    %29 = tpu.matmul %28, %26, %cst_18 {dimension_numbers = #tpu.dot_dimension_numbers<[1], [0], [0], [1], [0, 0, 1, 1], [], []>} : vector<8x8xbf16>, vector<8x128xbf16>, vector<8x128xf32> -> vector<8x128xf32>
    %30 = arith.addf %20, %29 : vector<8x128xf32>
    %c1_i32 = arith.constant 1 : i32
    %31 = tpu.dynamic_rotate %1 by %c1_i32 dim 1 : vector<8x128xf32>, i32 -> vector<8x128xf32>
    %c3 = arith.constant 3 : index
    %c0_19 = arith.constant 0 : index
    %c0_20 = arith.constant 0 : index
    %32 = vector.load %arg4[%c3, %c0_19, %c0_20] : memref<9x1x128xf32, #tpu.memory_space<vmem>>, vector<1x1x128xf32>
    %33 = vector.shape_cast %32 : vector<1x1x128xf32> to vector<1x128xf32>
    %34 = vector.broadcast %33 : vector<1x128xf32> to vector<8x128xf32>
    %35 = arith.mulf %31, %34 : vector<8x128xf32>
    %36 = arith.truncf %35 : vector<8x128xf32> to vector<8x128xbf16>
    %c3_21 = arith.constant 3 : index
    %c0_22 = arith.constant 0 : index
    %c0_23 = arith.constant 0 : index
    %37 = vector.load %arg2[%c3_21, %c0_22, %c0_23] : memref<9x8x8xbf16, #tpu.memory_space<vmem>>, vector<1x8x8xbf16>
    %38 = vector.shape_cast %37 : vector<1x8x8xbf16> to vector<8x8xbf16>
    %cst_24 = arith.constant dense<0.000000e+00> : vector<8x128xf32>
    %39 = tpu.matmul %38, %36, %cst_24 {dimension_numbers = #tpu.dot_dimension_numbers<[1], [0], [0], [1], [0, 0, 1, 1], [], []>} : vector<8x8xbf16>, vector<8x128xbf16>, vector<8x128xf32> -> vector<8x128xf32>
    %40 = arith.addf %30, %39 : vector<8x128xf32>
    %c4 = arith.constant 4 : index
    %c0_25 = arith.constant 0 : index
    %c0_26 = arith.constant 0 : index
    %41 = vector.load %arg4[%c4, %c0_25, %c0_26] : memref<9x1x128xf32, #tpu.memory_space<vmem>>, vector<1x1x128xf32>
    %42 = vector.shape_cast %41 : vector<1x1x128xf32> to vector<1x128xf32>
    %43 = vector.broadcast %42 : vector<1x128xf32> to vector<8x128xf32>
    %44 = arith.mulf %1, %43 : vector<8x128xf32>
    %45 = arith.truncf %44 : vector<8x128xf32> to vector<8x128xbf16>
    %c4_27 = arith.constant 4 : index
    %c0_28 = arith.constant 0 : index
    %c0_29 = arith.constant 0 : index
    %46 = vector.load %arg2[%c4_27, %c0_28, %c0_29] : memref<9x8x8xbf16, #tpu.memory_space<vmem>>, vector<1x8x8xbf16>
    %47 = vector.shape_cast %46 : vector<1x8x8xbf16> to vector<8x8xbf16>
    %cst_30 = arith.constant dense<0.000000e+00> : vector<8x128xf32>
    %48 = tpu.matmul %47, %45, %cst_30 {dimension_numbers = #tpu.dot_dimension_numbers<[1], [0], [0], [1], [0, 0, 1, 1], [], []>} : vector<8x8xbf16>, vector<8x128xbf16>, vector<8x128xf32> -> vector<8x128xf32>
    %49 = arith.addf %40, %48 : vector<8x128xf32>
    %c127_i32 = arith.constant 127 : i32
    %50 = tpu.dynamic_rotate %1 by %c127_i32 dim 1 : vector<8x128xf32>, i32 -> vector<8x128xf32>
    %c5 = arith.constant 5 : index
    %c0_31 = arith.constant 0 : index
    %c0_32 = arith.constant 0 : index
    %51 = vector.load %arg4[%c5, %c0_31, %c0_32] : memref<9x1x128xf32, #tpu.memory_space<vmem>>, vector<1x1x128xf32>
    %52 = vector.shape_cast %51 : vector<1x1x128xf32> to vector<1x128xf32>
    %53 = vector.broadcast %52 : vector<1x128xf32> to vector<8x128xf32>
    %54 = arith.mulf %50, %53 : vector<8x128xf32>
    %55 = arith.truncf %54 : vector<8x128xf32> to vector<8x128xbf16>
    %c5_33 = arith.constant 5 : index
    %c0_34 = arith.constant 0 : index
    %c0_35 = arith.constant 0 : index
    %56 = vector.load %arg2[%c5_33, %c0_34, %c0_35] : memref<9x8x8xbf16, #tpu.memory_space<vmem>>, vector<1x8x8xbf16>
    %57 = vector.shape_cast %56 : vector<1x8x8xbf16> to vector<8x8xbf16>
    %cst_36 = arith.constant dense<0.000000e+00> : vector<8x128xf32>
    %58 = tpu.matmul %57, %55, %cst_36 {dimension_numbers = #tpu.dot_dimension_numbers<[1], [0], [0], [1], [0, 0, 1, 1], [], []>} : vector<8x8xbf16>, vector<8x128xbf16>, vector<8x128xf32> -> vector<8x128xf32>
    %59 = arith.addf %49, %58 : vector<8x128xf32>
    %c121_i32 = arith.constant 121 : i32
    %60 = tpu.dynamic_rotate %1 by %c121_i32 dim 1 : vector<8x128xf32>, i32 -> vector<8x128xf32>
    %c6 = arith.constant 6 : index
    %c0_37 = arith.constant 0 : index
    %c0_38 = arith.constant 0 : index
    %61 = vector.load %arg4[%c6, %c0_37, %c0_38] : memref<9x1x128xf32, #tpu.memory_space<vmem>>, vector<1x1x128xf32>
    %62 = vector.shape_cast %61 : vector<1x1x128xf32> to vector<1x128xf32>
    %63 = vector.broadcast %62 : vector<1x128xf32> to vector<8x128xf32>
    %64 = arith.mulf %60, %63 : vector<8x128xf32>
    %65 = arith.truncf %64 : vector<8x128xf32> to vector<8x128xbf16>
    %c6_39 = arith.constant 6 : index
    %c0_40 = arith.constant 0 : index
    %c0_41 = arith.constant 0 : index
    %66 = vector.load %arg2[%c6_39, %c0_40, %c0_41] : memref<9x8x8xbf16, #tpu.memory_space<vmem>>, vector<1x8x8xbf16>
    %67 = vector.shape_cast %66 : vector<1x8x8xbf16> to vector<8x8xbf16>
    %cst_42 = arith.constant dense<0.000000e+00> : vector<8x128xf32>
    %68 = tpu.matmul %67, %65, %cst_42 {dimension_numbers = #tpu.dot_dimension_numbers<[1], [0], [0], [1], [0, 0, 1, 1], [], []>} : vector<8x8xbf16>, vector<8x128xbf16>, vector<8x128xf32> -> vector<8x128xf32>
    %69 = arith.addf %59, %68 : vector<8x128xf32>
    %c120_i32 = arith.constant 120 : i32
    %70 = tpu.dynamic_rotate %1 by %c120_i32 dim 1 : vector<8x128xf32>, i32 -> vector<8x128xf32>
    %c7 = arith.constant 7 : index
    %c0_43 = arith.constant 0 : index
    %c0_44 = arith.constant 0 : index
    %71 = vector.load %arg4[%c7, %c0_43, %c0_44] : memref<9x1x128xf32, #tpu.memory_space<vmem>>, vector<1x1x128xf32>
    %72 = vector.shape_cast %71 : vector<1x1x128xf32> to vector<1x128xf32>
    %73 = vector.broadcast %72 : vector<1x128xf32> to vector<8x128xf32>
    %74 = arith.mulf %70, %73 : vector<8x128xf32>
    %75 = arith.truncf %74 : vector<8x128xf32> to vector<8x128xbf16>
    %c7_45 = arith.constant 7 : index
    %c0_46 = arith.constant 0 : index
    %c0_47 = arith.constant 0 : index
    %76 = vector.load %arg2[%c7_45, %c0_46, %c0_47] : memref<9x8x8xbf16, #tpu.memory_space<vmem>>, vector<1x8x8xbf16>
    %77 = vector.shape_cast %76 : vector<1x8x8xbf16> to vector<8x8xbf16>
    %cst_48 = arith.constant dense<0.000000e+00> : vector<8x128xf32>
    %78 = tpu.matmul %77, %75, %cst_48 {dimension_numbers = #tpu.dot_dimension_numbers<[1], [0], [0], [1], [0, 0, 1, 1], [], []>} : vector<8x8xbf16>, vector<8x128xbf16>, vector<8x128xf32> -> vector<8x128xf32>
    %79 = arith.addf %69, %78 : vector<8x128xf32>
    %c119_i32 = arith.constant 119 : i32
    %80 = tpu.dynamic_rotate %1 by %c119_i32 dim 1 : vector<8x128xf32>, i32 -> vector<8x128xf32>
    %c8 = arith.constant 8 : index
    %c0_49 = arith.constant 0 : index
    %c0_50 = arith.constant 0 : index
    %81 = vector.load %arg4[%c8, %c0_49, %c0_50] : memref<9x1x128xf32, #tpu.memory_space<vmem>>, vector<1x1x128xf32>
    %82 = vector.shape_cast %81 : vector<1x1x128xf32> to vector<1x128xf32>
    %83 = vector.broadcast %82 : vector<1x128xf32> to vector<8x128xf32>
    %84 = arith.mulf %80, %83 : vector<8x128xf32>
    %85 = arith.truncf %84 : vector<8x128xf32> to vector<8x128xbf16>
    %c8_51 = arith.constant 8 : index
    %c0_52 = arith.constant 0 : index
    %c0_53 = arith.constant 0 : index
    %86 = vector.load %arg2[%c8_51, %c0_52, %c0_53] : memref<9x8x8xbf16, #tpu.memory_space<vmem>>, vector<1x8x8xbf16>
    %87 = vector.shape_cast %86 : vector<1x8x8xbf16> to vector<8x8xbf16>
    %cst_54 = arith.constant dense<0.000000e+00> : vector<8x128xf32>
    %88 = tpu.matmul %87, %85, %cst_54 {dimension_numbers = #tpu.dot_dimension_numbers<[1], [0], [0], [1], [0, 0, 1, 1], [], []>} : vector<8x8xbf16>, vector<8x128xbf16>, vector<8x128xf32> -> vector<8x128xf32>
    %89 = arith.addf %79, %88 : vector<8x128xf32>
    %c0_55 = arith.constant 0 : index
    %c0_56 = arith.constant 0 : index
    %90 = vector.load %arg3[%c0_55, %c0_56] : memref<8x1xf32, #tpu.memory_space<vmem>>, vector<8x1xf32>
    %91 = vector.broadcast %90 : vector<8x1xf32> to vector<8x128xf32>
    %92 = arith.addf %89, %91 : vector<8x128xf32>
    %cst_57 = arith.constant 0.000000e+00 : f32
    %93 = vector.broadcast %cst_57 : f32 to vector<8x128xf32>
    %94 = arith.maximumf %92, %93 : vector<8x128xf32>
    %95 = arith.truncf %94 : vector<8x128xf32> to vector<8x128xbf16>
    %c0_58 = arith.constant 0 : index
    %c0_59 = arith.constant 0 : index
    %96 = vector.load %arg5[%c0_58, %c0_59] : memref<8x128xbf16, #tpu.memory_space<vmem>>, vector<8x128xbf16>
    tpu.vector_store %arg5[%c0_58, %c0_59], %95 {strides = array<i32>} : memref<8x128xbf16, #tpu.memory_space<vmem>>, vector<8x128xbf16>,
    return
  }
  func.func @transform_0(%arg0: i32) -> (i32, i32) {
    %c0_i32 = arith.constant 0 : i32
    %c0_i32_0 = arith.constant 0 : i32
    return %c0_i32, %arg0 : i32, i32
  }
  func.func @transform_1(%arg0: i32) -> (i32, i32, i32) {
    %c0_i32 = arith.constant 0 : i32
    %c0_i32_0 = arith.constant 0 : i32
    %c0_i32_1 = arith.constant 0 : i32
    %c0_i32_2 = arith.constant 0 : i32
    return %c0_i32, %c0_i32_0, %c0_i32_1 : i32, i32, i32
  }
  func.func @transform_2(%arg0: i32) -> (i32, i32) {
    %c0_i32 = arith.constant 0 : i32
    %c0_i32_0 = arith.constant 0 : i32
    %c0_i32_1 = arith.constant 0 : i32
    return %c0_i32, %c0_i32_0 : i32, i32
  }
  func.func @transform_3(%arg0: i32) -> (i32, i32, i32) {
    %c0_i32 = arith.constant 0 : i32
    %c0_i32_0 = arith.constant 0 : i32
    %c0_i32_1 = arith.constant 0 : i32
    %c0_i32_2 = arith.constant 0 : i32
    return %c0_i32, %c0_i32_0, %c0_i32_1 : i32, i32, i32
  }
  func.func @transform_4(%arg0: i32) -> (i32, i32) {
    %c0_i32 = arith.constant 0 : i32
    %c0_i32_0 = arith.constant 0 : i32
    return %c0_i32, %arg0 : i32, i32
  }
}

module attributes {stable_mosaic.version = 11 : i64} {
  func.func @kernel(%arg0: i32, %arg1: memref<8x128xbf16, #tpu.memory_space<vmem>>, %arg2: memref<9x8x8xbf16, #tpu.memory_space<vmem>>, %arg3: memref<8x1xf32, #tpu.memory_space<vmem>>, %arg4: memref<9x1x128xf32, #tpu.memory_space<vmem>>, %arg5: memref<8x128xbf16, #tpu.memory_space<vmem>>, %arg6: memref<8x128xbf16, #tpu.memory_space<vmem>>) attributes {dimension_semantics = [#tpu.dimension_semantics<parallel>], iteration_bounds = array<i64: 2>, scalar_prefetch = 0 : i64, scratch_operands = 0 : i64, tpu.core_type = #tpu.core_type<tc>, window_params = [{transform_indices = @transform_0, window_bounds = array<i64: 8, 128>}, {pipeline_mode = #tpu.pipeline_mode<synchronous>, transform_indices = @transform_1, window_bounds = array<i64: 9, 8, 8>}, {pipeline_mode = #tpu.pipeline_mode<synchronous>, transform_indices = @transform_2, window_bounds = array<i64: 8, 1>}, {pipeline_mode = #tpu.pipeline_mode<synchronous>, transform_indices = @transform_3, window_bounds = array<i64: 9, 1, 128>}, {transform_indices = @transform_4, window_bounds = array<i64: 8, 128>}, {transform_indices = @transform_5, window_bounds = array<i64: 8, 128>}]} {
    %c0 = arith.constant 0 : index
    %c0_0 = arith.constant 0 : index
    %0 = vector.load %arg1[%c0, %c0_0] : memref<8x128xbf16, #tpu.memory_space<vmem>>, vector<8x128xbf16>
    %1 = arith.extf %0 : vector<8x128xbf16> to vector<8x128xf32>
    %c9_i32 = arith.constant 9 : i32
    %2 = tpu.dynamic_rotate %1 by %c9_i32 dim 1 : vector<8x128xf32>, i32 -> vector<8x128xf32>
    %c0_1 = arith.constant 0 : index
    %c0_2 = arith.constant 0 : index
    %c0_3 = arith.constant 0 : index
    %3 = vector.load %arg4[%c0_1, %c0_2, %c0_3] : memref<9x1x128xf32, #tpu.memory_space<vmem>>, vector<1x1x128xf32>
    %4 = vector.shape_cast %3 : vector<1x1x128xf32> to vector<1x128xf32>
    %5 = vector.broadcast %4 : vector<1x128xf32> to vector<8x128xf32>
    %6 = arith.mulf %2, %5 : vector<8x128xf32>
    %7 = arith.truncf %6 : vector<8x128xf32> to vector<8x128xbf16>
    %c0_4 = arith.constant 0 : index
    %c0_5 = arith.constant 0 : index
    %c0_6 = arith.constant 0 : index
    %8 = vector.load %arg2[%c0_4, %c0_5, %c0_6] : memref<9x8x8xbf16, #tpu.memory_space<vmem>>, vector<1x8x8xbf16>
    %9 = vector.shape_cast %8 : vector<1x8x8xbf16> to vector<8x8xbf16>
    %cst = arith.constant dense<0.000000e+00> : vector<8x128xf32>
    %10 = tpu.matmul %9, %7, %cst {dimension_numbers = #tpu.dot_dimension_numbers<[1], [0], [0], [1], [0, 0, 1, 1], [], []>} : vector<8x8xbf16>, vector<8x128xbf16>, vector<8x128xf32> -> vector<8x128xf32>
    %c8_i32 = arith.constant 8 : i32
    %11 = tpu.dynamic_rotate %1 by %c8_i32 dim 1 : vector<8x128xf32>, i32 -> vector<8x128xf32>
    %c1 = arith.constant 1 : index
    %c0_7 = arith.constant 0 : index
    %c0_8 = arith.constant 0 : index
    %12 = vector.load %arg4[%c1, %c0_7, %c0_8] : memref<9x1x128xf32, #tpu.memory_space<vmem>>, vector<1x1x128xf32>
    %13 = vector.shape_cast %12 : vector<1x1x128xf32> to vector<1x128xf32>
    %14 = vector.broadcast %13 : vector<1x128xf32> to vector<8x128xf32>
    %15 = arith.mulf %11, %14 : vector<8x128xf32>
    %16 = arith.truncf %15 : vector<8x128xf32> to vector<8x128xbf16>
    %c1_9 = arith.constant 1 : index
    %c0_10 = arith.constant 0 : index
    %c0_11 = arith.constant 0 : index
    %17 = vector.load %arg2[%c1_9, %c0_10, %c0_11] : memref<9x8x8xbf16, #tpu.memory_space<vmem>>, vector<1x8x8xbf16>
    %18 = vector.shape_cast %17 : vector<1x8x8xbf16> to vector<8x8xbf16>
    %cst_12 = arith.constant dense<0.000000e+00> : vector<8x128xf32>
    %19 = tpu.matmul %18, %16, %cst_12 {dimension_numbers = #tpu.dot_dimension_numbers<[1], [0], [0], [1], [0, 0, 1, 1], [], []>} : vector<8x8xbf16>, vector<8x128xbf16>, vector<8x128xf32> -> vector<8x128xf32>
    %20 = arith.addf %10, %19 : vector<8x128xf32>
    %c7_i32 = arith.constant 7 : i32
    %21 = tpu.dynamic_rotate %1 by %c7_i32 dim 1 : vector<8x128xf32>, i32 -> vector<8x128xf32>
    %c2 = arith.constant 2 : index
    %c0_13 = arith.constant 0 : index
    %c0_14 = arith.constant 0 : index
    %22 = vector.load %arg4[%c2, %c0_13, %c0_14] : memref<9x1x128xf32, #tpu.memory_space<vmem>>, vector<1x1x128xf32>
    %23 = vector.shape_cast %22 : vector<1x1x128xf32> to vector<1x128xf32>
    %24 = vector.broadcast %23 : vector<1x128xf32> to vector<8x128xf32>
    %25 = arith.mulf %21, %24 : vector<8x128xf32>
    %26 = arith.truncf %25 : vector<8x128xf32> to vector<8x128xbf16>
    %c2_15 = arith.constant 2 : index
    %c0_16 = arith.constant 0 : index
    %c0_17 = arith.constant 0 : index
    %27 = vector.load %arg2[%c2_15, %c0_16, %c0_17] : memref<9x8x8xbf16, #tpu.memory_space<vmem>>, vector<1x8x8xbf16>
    %28 = vector.shape_cast %27 : vector<1x8x8xbf16> to vector<8x8xbf16>
    %cst_18 = arith.constant dense<0.000000e+00> : vector<8x128xf32>
    %29 = tpu.matmul %28, %26, %cst_18 {dimension_numbers = #tpu.dot_dimension_numbers<[1], [0], [0], [1], [0, 0, 1, 1], [], []>} : vector<8x8xbf16>, vector<8x128xbf16>, vector<8x128xf32> -> vector<8x128xf32>
    %30 = arith.addf %20, %29 : vector<8x128xf32>
    %c1_i32 = arith.constant 1 : i32
    %31 = tpu.dynamic_rotate %1 by %c1_i32 dim 1 : vector<8x128xf32>, i32 -> vector<8x128xf32>
    %c3 = arith.constant 3 : index
    %c0_19 = arith.constant 0 : index
    %c0_20 = arith.constant 0 : index
    %32 = vector.load %arg4[%c3, %c0_19, %c0_20] : memref<9x1x128xf32, #tpu.memory_space<vmem>>, vector<1x1x128xf32>
    %33 = vector.shape_cast %32 : vector<1x1x128xf32> to vector<1x128xf32>
    %34 = vector.broadcast %33 : vector<1x128xf32> to vector<8x128xf32>
    %35 = arith.mulf %31, %34 : vector<8x128xf32>
    %36 = arith.truncf %35 : vector<8x128xf32> to vector<8x128xbf16>
    %c3_21 = arith.constant 3 : index
    %c0_22 = arith.constant 0 : index
    %c0_23 = arith.constant 0 : index
    %37 = vector.load %arg2[%c3_21, %c0_22, %c0_23] : memref<9x8x8xbf16, #tpu.memory_space<vmem>>, vector<1x8x8xbf16>
    %38 = vector.shape_cast %37 : vector<1x8x8xbf16> to vector<8x8xbf16>
    %cst_24 = arith.constant dense<0.000000e+00> : vector<8x128xf32>
    %39 = tpu.matmul %38, %36, %cst_24 {dimension_numbers = #tpu.dot_dimension_numbers<[1], [0], [0], [1], [0, 0, 1, 1], [], []>} : vector<8x8xbf16>, vector<8x128xbf16>, vector<8x128xf32> -> vector<8x128xf32>
    %40 = arith.addf %30, %39 : vector<8x128xf32>
    %c4 = arith.constant 4 : index
    %c0_25 = arith.constant 0 : index
    %c0_26 = arith.constant 0 : index
    %41 = vector.load %arg4[%c4, %c0_25, %c0_26] : memref<9x1x128xf32, #tpu.memory_space<vmem>>, vector<1x1x128xf32>
    %42 = vector.shape_cast %41 : vector<1x1x128xf32> to vector<1x128xf32>
    %43 = vector.broadcast %42 : vector<1x128xf32> to vector<8x128xf32>
    %44 = arith.mulf %1, %43 : vector<8x128xf32>
    %45 = arith.truncf %44 : vector<8x128xf32> to vector<8x128xbf16>
    %c4_27 = arith.constant 4 : index
    %c0_28 = arith.constant 0 : index
    %c0_29 = arith.constant 0 : index
    %46 = vector.load %arg2[%c4_27, %c0_28, %c0_29] : memref<9x8x8xbf16, #tpu.memory_space<vmem>>, vector<1x8x8xbf16>
    %47 = vector.shape_cast %46 : vector<1x8x8xbf16> to vector<8x8xbf16>
    %cst_30 = arith.constant dense<0.000000e+00> : vector<8x128xf32>
    %48 = tpu.matmul %47, %45, %cst_30 {dimension_numbers = #tpu.dot_dimension_numbers<[1], [0], [0], [1], [0, 0, 1, 1], [], []>} : vector<8x8xbf16>, vector<8x128xbf16>, vector<8x128xf32> -> vector<8x128xf32>
    %49 = arith.addf %40, %48 : vector<8x128xf32>
    %c127_i32 = arith.constant 127 : i32
    %50 = tpu.dynamic_rotate %1 by %c127_i32 dim 1 : vector<8x128xf32>, i32 -> vector<8x128xf32>
    %c5 = arith.constant 5 : index
    %c0_31 = arith.constant 0 : index
    %c0_32 = arith.constant 0 : index
    %51 = vector.load %arg4[%c5, %c0_31, %c0_32] : memref<9x1x128xf32, #tpu.memory_space<vmem>>, vector<1x1x128xf32>
    %52 = vector.shape_cast %51 : vector<1x1x128xf32> to vector<1x128xf32>
    %53 = vector.broadcast %52 : vector<1x128xf32> to vector<8x128xf32>
    %54 = arith.mulf %50, %53 : vector<8x128xf32>
    %55 = arith.truncf %54 : vector<8x128xf32> to vector<8x128xbf16>
    %c5_33 = arith.constant 5 : index
    %c0_34 = arith.constant 0 : index
    %c0_35 = arith.constant 0 : index
    %56 = vector.load %arg2[%c5_33, %c0_34, %c0_35] : memref<9x8x8xbf16, #tpu.memory_space<vmem>>, vector<1x8x8xbf16>
    %57 = vector.shape_cast %56 : vector<1x8x8xbf16> to vector<8x8xbf16>
    %cst_36 = arith.constant dense<0.000000e+00> : vector<8x128xf32>
    %58 = tpu.matmul %57, %55, %cst_36 {dimension_numbers = #tpu.dot_dimension_numbers<[1], [0], [0], [1], [0, 0, 1, 1], [], []>} : vector<8x8xbf16>, vector<8x128xbf16>, vector<8x128xf32> -> vector<8x128xf32>
    %59 = arith.addf %49, %58 : vector<8x128xf32>
    %c121_i32 = arith.constant 121 : i32
    %60 = tpu.dynamic_rotate %1 by %c121_i32 dim 1 : vector<8x128xf32>, i32 -> vector<8x128xf32>
    %c6 = arith.constant 6 : index
    %c0_37 = arith.constant 0 : index
    %c0_38 = arith.constant 0 : index
    %61 = vector.load %arg4[%c6, %c0_37, %c0_38] : memref<9x1x128xf32, #tpu.memory_space<vmem>>, vector<1x1x128xf32>
    %62 = vector.shape_cast %61 : vector<1x1x128xf32> to vector<1x128xf32>
    %63 = vector.broadcast %62 : vector<1x128xf32> to vector<8x128xf32>
    %64 = arith.mulf %60, %63 : vector<8x128xf32>
    %65 = arith.truncf %64 : vector<8x128xf32> to vector<8x128xbf16>
    %c6_39 = arith.constant 6 : index
    %c0_40 = arith.constant 0 : index
    %c0_41 = arith.constant 0 : index
    %66 = vector.load %arg2[%c6_39, %c0_40, %c0_41] : memref<9x8x8xbf16, #tpu.memory_space<vmem>>, vector<1x8x8xbf16>
    %67 = vector.shape_cast %66 : vector<1x8x8xbf16> to vector<8x8xbf16>
    %cst_42 = arith.constant dense<0.000000e+00> : vector<8x128xf32>
    %68 = tpu.matmul %67, %65, %cst_42 {dimension_numbers = #tpu.dot_dimension_numbers<[1], [0], [0], [1], [0, 0, 1, 1], [], []>} : vector<8x8xbf16>, vector<8x128xbf16>, vector<8x128xf32> -> vector<8x128xf32>
    %69 = arith.addf %59, %68 : vector<8x128xf32>
    %c120_i32 = arith.constant 120 : i32
    %70 = tpu.dynamic_rotate %1 by %c120_i32 dim 1 : vector<8x128xf32>, i32 -> vector<8x128xf32>
    %c7 = arith.constant 7 : index
    %c0_43 = arith.constant 0 : index
    %c0_44 = arith.constant 0 : index
    %71 = vector.load %arg4[%c7, %c0_43, %c0_44] : memref<9x1x128xf32, #tpu.memory_space<vmem>>, vector<1x1x128xf32>
    %72 = vector.shape_cast %71 : vector<1x1x128xf32> to vector<1x128xf32>
    %73 = vector.broadcast %72 : vector<1x128xf32> to vector<8x128xf32>
    %74 = arith.mulf %70, %73 : vector<8x128xf32>
    %75 = arith.truncf %74 : vector<8x128xf32> to vector<8x128xbf16>
    %c7_45 = arith.constant 7 : index
    %c0_46 = arith.constant 0 : index
    %c0_47 = arith.constant 0 : index
    %76 = vector.load %arg2[%c7_45, %c0_46, %c0_47] : memref<9x8x8xbf16, #tpu.memory_space<vmem>>, vector<1x8x8xbf16>
    %77 = vector.shape_cast %76 : vector<1x8x8xbf16> to vector<8x8xbf16>
    %cst_48 = arith.constant dense<0.000000e+00> : vector<8x128xf32>
    %78 = tpu.matmul %77, %75, %cst_48 {dimension_numbers = #tpu.dot_dimension_numbers<[1], [0], [0], [1], [0, 0, 1, 1], [], []>} : vector<8x8xbf16>, vector<8x128xbf16>, vector<8x128xf32> -> vector<8x128xf32>
    %79 = arith.addf %69, %78 : vector<8x128xf32>
    %c119_i32 = arith.constant 119 : i32
    %80 = tpu.dynamic_rotate %1 by %c119_i32 dim 1 : vector<8x128xf32>, i32 -> vector<8x128xf32>
    %c8 = arith.constant 8 : index
    %c0_49 = arith.constant 0 : index
    %c0_50 = arith.constant 0 : index
    %81 = vector.load %arg4[%c8, %c0_49, %c0_50] : memref<9x1x128xf32, #tpu.memory_space<vmem>>, vector<1x1x128xf32>
    %82 = vector.shape_cast %81 : vector<1x1x128xf32> to vector<1x128xf32>
    %83 = vector.broadcast %82 : vector<1x128xf32> to vector<8x128xf32>
    %84 = arith.mulf %80, %83 : vector<8x128xf32>
    %85 = arith.truncf %84 : vector<8x128xf32> to vector<8x128xbf16>
    %c8_51 = arith.constant 8 : index
    %c0_52 = arith.constant 0 : index
    %c0_53 = arith.constant 0 : index
    %86 = vector.load %arg2[%c8_51, %c0_52, %c0_53] : memref<9x8x8xbf16, #tpu.memory_space<vmem>>, vector<1x8x8xbf16>
    %87 = vector.shape_cast %86 : vector<1x8x8xbf16> to vector<8x8xbf16>
    %cst_54 = arith.constant dense<0.000000e+00> : vector<8x128xf32>
    %88 = tpu.matmul %87, %85, %cst_54 {dimension_numbers = #tpu.dot_dimension_numbers<[1], [0], [0], [1], [0, 0, 1, 1], [], []>} : vector<8x8xbf16>, vector<8x128xbf16>, vector<8x128xf32> -> vector<8x128xf32>
    %89 = arith.addf %79, %88 : vector<8x128xf32>
    %c0_55 = arith.constant 0 : index
    %c0_56 = arith.constant 0 : index
    %90 = vector.load %arg3[%c0_55, %c0_56] : memref<8x1xf32, #tpu.memory_space<vmem>>, vector<8x1xf32>
    %91 = vector.broadcast %90 : vector<8x1xf32> to vector<8x128xf32>
    %92 = arith.addf %89, %91 : vector<8x128xf32>
    %cst_57 = arith.constant 0.000000e+00 : f32
    %93 = vector.broadcast %cst_57 : f32 to vector<8x128xf32>
    %94 = arith.maximumf %92, %93 : vector<8x128xf32>
    %c0_58 = arith.constant 0 : index
    %c0_59 = arith.constant 0 : index
    %95 = vector.load %arg5[%c0_58, %c0_59] : memref<8x128xbf16, #tpu.memory_space<vmem>>, vector<8x128xbf16>
    %96 = arith.extf %95 : vector<8x128xbf16> to vector<8x128xf32>
    %97 = arith.addf %94, %96 : vector<8x128xf32>
    %98 = arith.truncf %97 : vector<8x128xf32> to vector<8x128xbf16>
    %c0_60 = arith.constant 0 : index
    %c0_61 = arith.constant 0 : index
    %99 = vector.load %arg6[%c0_60, %c0_61] : memref<8x128xbf16, #tpu.memory_space<vmem>>, vector<8x128xbf16>
    tpu.vector_store %arg6[%c0_60, %c0_61], %98 {strides = array<i32>} : memref<8x128xbf16, #tpu.memory_space<vmem>>, vector<8x128xbf16>,
    return
  }
  func.func @transform_0(%arg0: i32) -> (i32, i32) {
    %c0_i32 = arith.constant 0 : i32
    %c0_i32_0 = arith.constant 0 : i32
    return %c0_i32, %arg0 : i32, i32
  }
  func.func @transform_1(%arg0: i32) -> (i32, i32, i32) {
    %c0_i32 = arith.constant 0 : i32
    %c0_i32_0 = arith.constant 0 : i32
    %c0_i32_1 = arith.constant 0 : i32
    %c0_i32_2 = arith.constant 0 : i32
    return %c0_i32, %c0_i32_0, %c0_i32_1 : i32, i32, i32
  }
  func.func @transform_2(%arg0: i32) -> (i32, i32) {
    %c0_i32 = arith.constant 0 : i32
    %c0_i32_0 = arith.constant 0 : i32
    %c0_i32_1 = arith.constant 0 : i32
    return %c0_i32, %c0_i32_0 : i32, i32
  }
  func.func @transform_3(%arg0: i32) -> (i32, i32, i32) {
    %c0_i32 = arith.constant 0 : i32
    %c0_i32_0 = arith.constant 0 : i32
    %c0_i32_1 = arith.constant 0 : i32
    %c0_i32_2 = arith.constant 0 : i32
    return %c0_i32, %c0_i32_0, %c0_i32_1 : i32, i32, i32
  }
  func.func @transform_4(%arg0: i32) -> (i32, i32) {
    %c0_i32 = arith.constant 0 : i32
    %c0_i32_0 = arith.constant 0 : i32
    return %c0_i32, %arg0 : i32, i32
  }
  func.func @transform_5(%arg0: i32) -> (i32, i32) {
    %c0_i32 = arith.constant 0 : i32
    %c0_i32_0 = arith.constant 0 : i32
    return %c0_i32, %arg0 : i32, i32
  }
}

module attributes {stable_mosaic.version = 11 : i64} {
  func.func @kernel(%arg0: i32, %arg1: memref<8x128xbf16, #tpu.memory_space<vmem>>, %arg2: memref<9x16x8xbf16, #tpu.memory_space<vmem>>, %arg3: memref<16x1xf32, #tpu.memory_space<vmem>>, %arg4: memref<9x1x128xf32, #tpu.memory_space<vmem>>, %arg5: memref<9x1x128xf32, #tpu.memory_space<vmem>>, %arg6: memref<16x128xbf16, #tpu.memory_space<vmem>>) attributes {dimension_semantics = [#tpu.dimension_semantics<parallel>], iteration_bounds = array<i64: 2>, scalar_prefetch = 0 : i64, scratch_operands = 0 : i64, tpu.core_type = #tpu.core_type<tc>, window_params = [{transform_indices = @transform_0, window_bounds = array<i64: 8, 128>}, {pipeline_mode = #tpu.pipeline_mode<synchronous>, transform_indices = @transform_1, window_bounds = array<i64: 9, 16, 8>}, {pipeline_mode = #tpu.pipeline_mode<synchronous>, transform_indices = @transform_2, window_bounds = array<i64: 16, 1>}, {pipeline_mode = #tpu.pipeline_mode<synchronous>, transform_indices = @transform_3, window_bounds = array<i64: 9, 1, 128>}, {pipeline_mode = #tpu.pipeline_mode<synchronous>, transform_indices = @transform_4, window_bounds = array<i64: 9, 1, 128>}, {transform_indices = @transform_5, window_bounds = array<i64: 16, 128>}]} {
    %c0 = arith.constant 0 : index
    %c0_0 = arith.constant 0 : index
    %0 = vector.load %arg1[%c0, %c0_0] : memref<8x128xbf16, #tpu.memory_space<vmem>>, vector<8x128xbf16>
    %1 = arith.extf %0 : vector<8x128xbf16> to vector<8x128xf32>
    %c9_i32 = arith.constant 9 : i32
    %2 = tpu.dynamic_rotate %1 by %c9_i32 dim 1 : vector<8x128xf32>, i32 -> vector<8x128xf32>
    %c0_1 = arith.constant 0 : index
    %c0_2 = arith.constant 0 : index
    %c0_3 = arith.constant 0 : index
    %3 = vector.load %arg4[%c0_1, %c0_2, %c0_3] : memref<9x1x128xf32, #tpu.memory_space<vmem>>, vector<1x1x128xf32>
    %4 = vector.shape_cast %3 : vector<1x1x128xf32> to vector<1x128xf32>
    %5 = vector.broadcast %4 : vector<1x128xf32> to vector<8x128xf32>
    %6 = arith.mulf %2, %5 : vector<8x128xf32>
    %7 = arith.truncf %6 : vector<8x128xf32> to vector<8x128xbf16>
    %c0_4 = arith.constant 0 : index
    %c0_5 = arith.constant 0 : index
    %c0_6 = arith.constant 0 : index
    %8 = vector.load %arg2[%c0_4, %c0_5, %c0_6] : memref<9x16x8xbf16, #tpu.memory_space<vmem>>, vector<1x16x8xbf16>
    %9 = vector.shape_cast %8 : vector<1x16x8xbf16> to vector<16x8xbf16>
    %cst = arith.constant dense<0.000000e+00> : vector<16x128xf32>
    %10 = tpu.matmul %9, %7, %cst {dimension_numbers = #tpu.dot_dimension_numbers<[1], [0], [0], [1], [0, 0, 1, 1], [], []>} : vector<16x8xbf16>, vector<8x128xbf16>, vector<16x128xf32> -> vector<16x128xf32>
    %c8_i32 = arith.constant 8 : i32
    %11 = tpu.dynamic_rotate %1 by %c8_i32 dim 1 : vector<8x128xf32>, i32 -> vector<8x128xf32>
    %c1 = arith.constant 1 : index
    %c0_7 = arith.constant 0 : index
    %c0_8 = arith.constant 0 : index
    %12 = vector.load %arg4[%c1, %c0_7, %c0_8] : memref<9x1x128xf32, #tpu.memory_space<vmem>>, vector<1x1x128xf32>
    %13 = vector.shape_cast %12 : vector<1x1x128xf32> to vector<1x128xf32>
    %14 = vector.broadcast %13 : vector<1x128xf32> to vector<8x128xf32>
    %15 = arith.mulf %11, %14 : vector<8x128xf32>
    %16 = arith.truncf %15 : vector<8x128xf32> to vector<8x128xbf16>
    %c1_9 = arith.constant 1 : index
    %c0_10 = arith.constant 0 : index
    %c0_11 = arith.constant 0 : index
    %17 = vector.load %arg2[%c1_9, %c0_10, %c0_11] : memref<9x16x8xbf16, #tpu.memory_space<vmem>>, vector<1x16x8xbf16>
    %18 = vector.shape_cast %17 : vector<1x16x8xbf16> to vector<16x8xbf16>
    %cst_12 = arith.constant dense<0.000000e+00> : vector<16x128xf32>
    %19 = tpu.matmul %18, %16, %cst_12 {dimension_numbers = #tpu.dot_dimension_numbers<[1], [0], [0], [1], [0, 0, 1, 1], [], []>} : vector<16x8xbf16>, vector<8x128xbf16>, vector<16x128xf32> -> vector<16x128xf32>
    %20 = arith.addf %10, %19 : vector<16x128xf32>
    %c7_i32 = arith.constant 7 : i32
    %21 = tpu.dynamic_rotate %1 by %c7_i32 dim 1 : vector<8x128xf32>, i32 -> vector<8x128xf32>
    %c2 = arith.constant 2 : index
    %c0_13 = arith.constant 0 : index
    %c0_14 = arith.constant 0 : index
    %22 = vector.load %arg4[%c2, %c0_13, %c0_14] : memref<9x1x128xf32, #tpu.memory_space<vmem>>, vector<1x1x128xf32>
    %23 = vector.shape_cast %22 : vector<1x1x128xf32> to vector<1x128xf32>
    %24 = vector.broadcast %23 : vector<1x128xf32> to vector<8x128xf32>
    %25 = arith.mulf %21, %24 : vector<8x128xf32>
    %26 = arith.truncf %25 : vector<8x128xf32> to vector<8x128xbf16>
    %c2_15 = arith.constant 2 : index
    %c0_16 = arith.constant 0 : index
    %c0_17 = arith.constant 0 : index
    %27 = vector.load %arg2[%c2_15, %c0_16, %c0_17] : memref<9x16x8xbf16, #tpu.memory_space<vmem>>, vector<1x16x8xbf16>
    %28 = vector.shape_cast %27 : vector<1x16x8xbf16> to vector<16x8xbf16>
    %cst_18 = arith.constant dense<0.000000e+00> : vector<16x128xf32>
    %29 = tpu.matmul %28, %26, %cst_18 {dimension_numbers = #tpu.dot_dimension_numbers<[1], [0], [0], [1], [0, 0, 1, 1], [], []>} : vector<16x8xbf16>, vector<8x128xbf16>, vector<16x128xf32> -> vector<16x128xf32>
    %30 = arith.addf %20, %29 : vector<16x128xf32>
    %c1_i32 = arith.constant 1 : i32
    %31 = tpu.dynamic_rotate %1 by %c1_i32 dim 1 : vector<8x128xf32>, i32 -> vector<8x128xf32>
    %c3 = arith.constant 3 : index
    %c0_19 = arith.constant 0 : index
    %c0_20 = arith.constant 0 : index
    %32 = vector.load %arg4[%c3, %c0_19, %c0_20] : memref<9x1x128xf32, #tpu.memory_space<vmem>>, vector<1x1x128xf32>
    %33 = vector.shape_cast %32 : vector<1x1x128xf32> to vector<1x128xf32>
    %34 = vector.broadcast %33 : vector<1x128xf32> to vector<8x128xf32>
    %35 = arith.mulf %31, %34 : vector<8x128xf32>
    %36 = arith.truncf %35 : vector<8x128xf32> to vector<8x128xbf16>
    %c3_21 = arith.constant 3 : index
    %c0_22 = arith.constant 0 : index
    %c0_23 = arith.constant 0 : index
    %37 = vector.load %arg2[%c3_21, %c0_22, %c0_23] : memref<9x16x8xbf16, #tpu.memory_space<vmem>>, vector<1x16x8xbf16>
    %38 = vector.shape_cast %37 : vector<1x16x8xbf16> to vector<16x8xbf16>
    %cst_24 = arith.constant dense<0.000000e+00> : vector<16x128xf32>
    %39 = tpu.matmul %38, %36, %cst_24 {dimension_numbers = #tpu.dot_dimension_numbers<[1], [0], [0], [1], [0, 0, 1, 1], [], []>} : vector<16x8xbf16>, vector<8x128xbf16>, vector<16x128xf32> -> vector<16x128xf32>
    %40 = arith.addf %30, %39 : vector<16x128xf32>
    %c4 = arith.constant 4 : index
    %c0_25 = arith.constant 0 : index
    %c0_26 = arith.constant 0 : index
    %41 = vector.load %arg4[%c4, %c0_25, %c0_26] : memref<9x1x128xf32, #tpu.memory_space<vmem>>, vector<1x1x128xf32>
    %42 = vector.shape_cast %41 : vector<1x1x128xf32> to vector<1x128xf32>
    %43 = vector.broadcast %42 : vector<1x128xf32> to vector<8x128xf32>
    %44 = arith.mulf %1, %43 : vector<8x128xf32>
    %45 = arith.truncf %44 : vector<8x128xf32> to vector<8x128xbf16>
    %c4_27 = arith.constant 4 : index
    %c0_28 = arith.constant 0 : index
    %c0_29 = arith.constant 0 : index
    %46 = vector.load %arg2[%c4_27, %c0_28, %c0_29] : memref<9x16x8xbf16, #tpu.memory_space<vmem>>, vector<1x16x8xbf16>
    %47 = vector.shape_cast %46 : vector<1x16x8xbf16> to vector<16x8xbf16>
    %cst_30 = arith.constant dense<0.000000e+00> : vector<16x128xf32>
    %48 = tpu.matmul %47, %45, %cst_30 {dimension_numbers = #tpu.dot_dimension_numbers<[1], [0], [0], [1], [0, 0, 1, 1], [], []>} : vector<16x8xbf16>, vector<8x128xbf16>, vector<16x128xf32> -> vector<16x128xf32>
    %49 = arith.addf %40, %48 : vector<16x128xf32>
    %c127_i32 = arith.constant 127 : i32
    %50 = tpu.dynamic_rotate %1 by %c127_i32 dim 1 : vector<8x128xf32>, i32 -> vector<8x128xf32>
    %c5 = arith.constant 5 : index
    %c0_31 = arith.constant 0 : index
    %c0_32 = arith.constant 0 : index
    %51 = vector.load %arg4[%c5, %c0_31, %c0_32] : memref<9x1x128xf32, #tpu.memory_space<vmem>>, vector<1x1x128xf32>
    %52 = vector.shape_cast %51 : vector<1x1x128xf32> to vector<1x128xf32>
    %53 = vector.broadcast %52 : vector<1x128xf32> to vector<8x128xf32>
    %54 = arith.mulf %50, %53 : vector<8x128xf32>
    %55 = arith.truncf %54 : vector<8x128xf32> to vector<8x128xbf16>
    %c5_33 = arith.constant 5 : index
    %c0_34 = arith.constant 0 : index
    %c0_35 = arith.constant 0 : index
    %56 = vector.load %arg2[%c5_33, %c0_34, %c0_35] : memref<9x16x8xbf16, #tpu.memory_space<vmem>>, vector<1x16x8xbf16>
    %57 = vector.shape_cast %56 : vector<1x16x8xbf16> to vector<16x8xbf16>
    %cst_36 = arith.constant dense<0.000000e+00> : vector<16x128xf32>
    %58 = tpu.matmul %57, %55, %cst_36 {dimension_numbers = #tpu.dot_dimension_numbers<[1], [0], [0], [1], [0, 0, 1, 1], [], []>} : vector<16x8xbf16>, vector<8x128xbf16>, vector<16x128xf32> -> vector<16x128xf32>
    %59 = arith.addf %49, %58 : vector<16x128xf32>
    %c121_i32 = arith.constant 121 : i32
    %60 = tpu.dynamic_rotate %1 by %c121_i32 dim 1 : vector<8x128xf32>, i32 -> vector<8x128xf32>
    %c6 = arith.constant 6 : index
    %c0_37 = arith.constant 0 : index
    %c0_38 = arith.constant 0 : index
    %61 = vector.load %arg4[%c6, %c0_37, %c0_38] : memref<9x1x128xf32, #tpu.memory_space<vmem>>, vector<1x1x128xf32>
    %62 = vector.shape_cast %61 : vector<1x1x128xf32> to vector<1x128xf32>
    %63 = vector.broadcast %62 : vector<1x128xf32> to vector<8x128xf32>
    %64 = arith.mulf %60, %63 : vector<8x128xf32>
    %65 = arith.truncf %64 : vector<8x128xf32> to vector<8x128xbf16>
    %c6_39 = arith.constant 6 : index
    %c0_40 = arith.constant 0 : index
    %c0_41 = arith.constant 0 : index
    %66 = vector.load %arg2[%c6_39, %c0_40, %c0_41] : memref<9x16x8xbf16, #tpu.memory_space<vmem>>, vector<1x16x8xbf16>
    %67 = vector.shape_cast %66 : vector<1x16x8xbf16> to vector<16x8xbf16>
    %cst_42 = arith.constant dense<0.000000e+00> : vector<16x128xf32>
    %68 = tpu.matmul %67, %65, %cst_42 {dimension_numbers = #tpu.dot_dimension_numbers<[1], [0], [0], [1], [0, 0, 1, 1], [], []>} : vector<16x8xbf16>, vector<8x128xbf16>, vector<16x128xf32> -> vector<16x128xf32>
    %69 = arith.addf %59, %68 : vector<16x128xf32>
    %c120_i32 = arith.constant 120 : i32
    %70 = tpu.dynamic_rotate %1 by %c120_i32 dim 1 : vector<8x128xf32>, i32 -> vector<8x128xf32>
    %c7 = arith.constant 7 : index
    %c0_43 = arith.constant 0 : index
    %c0_44 = arith.constant 0 : index
    %71 = vector.load %arg4[%c7, %c0_43, %c0_44] : memref<9x1x128xf32, #tpu.memory_space<vmem>>, vector<1x1x128xf32>
    %72 = vector.shape_cast %71 : vector<1x1x128xf32> to vector<1x128xf32>
    %73 = vector.broadcast %72 : vector<1x128xf32> to vector<8x128xf32>
    %74 = arith.mulf %70, %73 : vector<8x128xf32>
    %75 = arith.truncf %74 : vector<8x128xf32> to vector<8x128xbf16>
    %c7_45 = arith.constant 7 : index
    %c0_46 = arith.constant 0 : index
    %c0_47 = arith.constant 0 : index
    %76 = vector.load %arg2[%c7_45, %c0_46, %c0_47] : memref<9x16x8xbf16, #tpu.memory_space<vmem>>, vector<1x16x8xbf16>
    %77 = vector.shape_cast %76 : vector<1x16x8xbf16> to vector<16x8xbf16>
    %cst_48 = arith.constant dense<0.000000e+00> : vector<16x128xf32>
    %78 = tpu.matmul %77, %75, %cst_48 {dimension_numbers = #tpu.dot_dimension_numbers<[1], [0], [0], [1], [0, 0, 1, 1], [], []>} : vector<16x8xbf16>, vector<8x128xbf16>, vector<16x128xf32> -> vector<16x128xf32>
    %79 = arith.addf %69, %78 : vector<16x128xf32>
    %c119_i32 = arith.constant 119 : i32
    %80 = tpu.dynamic_rotate %1 by %c119_i32 dim 1 : vector<8x128xf32>, i32 -> vector<8x128xf32>
    %c8 = arith.constant 8 : index
    %c0_49 = arith.constant 0 : index
    %c0_50 = arith.constant 0 : index
    %81 = vector.load %arg4[%c8, %c0_49, %c0_50] : memref<9x1x128xf32, #tpu.memory_space<vmem>>, vector<1x1x128xf32>
    %82 = vector.shape_cast %81 : vector<1x1x128xf32> to vector<1x128xf32>
    %83 = vector.broadcast %82 : vector<1x128xf32> to vector<8x128xf32>
    %84 = arith.mulf %80, %83 : vector<8x128xf32>
    %85 = arith.truncf %84 : vector<8x128xf32> to vector<8x128xbf16>
    %c8_51 = arith.constant 8 : index
    %c0_52 = arith.constant 0 : index
    %c0_53 = arith.constant 0 : index
    %86 = vector.load %arg2[%c8_51, %c0_52, %c0_53] : memref<9x16x8xbf16, #tpu.memory_space<vmem>>, vector<1x16x8xbf16>
    %87 = vector.shape_cast %86 : vector<1x16x8xbf16> to vector<16x8xbf16>
    %cst_54 = arith.constant dense<0.000000e+00> : vector<16x128xf32>
    %88 = tpu.matmul %87, %85, %cst_54 {dimension_numbers = #tpu.dot_dimension_numbers<[1], [0], [0], [1], [0, 0, 1, 1], [], []>} : vector<16x8xbf16>, vector<8x128xbf16>, vector<16x128xf32> -> vector<16x128xf32>
    %89 = arith.addf %79, %88 : vector<16x128xf32>
    %c0_55 = arith.constant 0 : index
    %c0_56 = arith.constant 0 : index
    %90 = vector.load %arg3[%c0_55, %c0_56] : memref<16x1xf32, #tpu.memory_space<vmem>>, vector<16x1xf32>
    %91 = vector.broadcast %90 : vector<16x1xf32> to vector<16x128xf32>
    %92 = arith.addf %89, %91 : vector<16x128xf32>
    %cst_57 = arith.constant 0.000000e+00 : f32
    %93 = vector.broadcast %cst_57 : f32 to vector<16x128xf32>
    %94 = arith.maximumf %92, %93 : vector<16x128xf32>
    %c9_i32_58 = arith.constant 9 : i32
    %95 = tpu.dynamic_rotate %94 by %c9_i32_58 dim 1 : vector<16x128xf32>, i32 -> vector<16x128xf32>
    %c0_59 = arith.constant 0 : index
    %c0_60 = arith.constant 0 : index
    %c0_61 = arith.constant 0 : index
    %96 = vector.load %arg5[%c0_59, %c0_60, %c0_61] : memref<9x1x128xf32, #tpu.memory_space<vmem>>, vector<1x1x128xf32>
    %97 = vector.shape_cast %96 : vector<1x1x128xf32> to vector<1x128xf32>
    %98 = vector.broadcast %97 : vector<1x128xf32> to vector<16x128xf32>
    %99 = arith.addf %95, %98 : vector<16x128xf32>
    %100 = arith.maximumf %94, %99 : vector<16x128xf32>
    %c8_i32_62 = arith.constant 8 : i32
    %101 = tpu.dynamic_rotate %94 by %c8_i32_62 dim 1 : vector<16x128xf32>, i32 -> vector<16x128xf32>
    %c1_63 = arith.constant 1 : index
    %c0_64 = arith.constant 0 : index
    %c0_65 = arith.constant 0 : index
    %102 = vector.load %arg5[%c1_63, %c0_64, %c0_65] : memref<9x1x128xf32, #tpu.memory_space<vmem>>, vector<1x1x128xf32>
    %103 = vector.shape_cast %102 : vector<1x1x128xf32> to vector<1x128xf32>
    %104 = vector.broadcast %103 : vector<1x128xf32> to vector<16x128xf32>
    %105 = arith.addf %101, %104 : vector<16x128xf32>
    %106 = arith.maximumf %100, %105 : vector<16x128xf32>
    %c7_i32_66 = arith.constant 7 : i32
    %107 = tpu.dynamic_rotate %94 by %c7_i32_66 dim 1 : vector<16x128xf32>, i32 -> vector<16x128xf32>
    %c2_67 = arith.constant 2 : index
    %c0_68 = arith.constant 0 : index
    %c0_69 = arith.constant 0 : index
    %108 = vector.load %arg5[%c2_67, %c0_68, %c0_69] : memref<9x1x128xf32, #tpu.memory_space<vmem>>, vector<1x1x128xf32>
    %109 = vector.shape_cast %108 : vector<1x1x128xf32> to vector<1x128xf32>
    %110 = vector.broadcast %109 : vector<1x128xf32> to vector<16x128xf32>
    %111 = arith.addf %107, %110 : vector<16x128xf32>
    %112 = arith.maximumf %106, %111 : vector<16x128xf32>
    %c1_i32_70 = arith.constant 1 : i32
    %113 = tpu.dynamic_rotate %94 by %c1_i32_70 dim 1 : vector<16x128xf32>, i32 -> vector<16x128xf32>
    %c3_71 = arith.constant 3 : index
    %c0_72 = arith.constant 0 : index
    %c0_73 = arith.constant 0 : index
    %114 = vector.load %arg5[%c3_71, %c0_72, %c0_73] : memref<9x1x128xf32, #tpu.memory_space<vmem>>, vector<1x1x128xf32>
    %115 = vector.shape_cast %114 : vector<1x1x128xf32> to vector<1x128xf32>
    %116 = vector.broadcast %115 : vector<1x128xf32> to vector<16x128xf32>
    %117 = arith.addf %113, %116 : vector<16x128xf32>
    %118 = arith.maximumf %112, %117 : vector<16x128xf32>
    %c127_i32_74 = arith.constant 127 : i32
    %119 = tpu.dynamic_rotate %94 by %c127_i32_74 dim 1 : vector<16x128xf32>, i32 -> vector<16x128xf32>
    %c5_75 = arith.constant 5 : index
    %c0_76 = arith.constant 0 : index
    %c0_77 = arith.constant 0 : index
    %120 = vector.load %arg5[%c5_75, %c0_76, %c0_77] : memref<9x1x128xf32, #tpu.memory_space<vmem>>, vector<1x1x128xf32>
    %121 = vector.shape_cast %120 : vector<1x1x128xf32> to vector<1x128xf32>
    %122 = vector.broadcast %121 : vector<1x128xf32> to vector<16x128xf32>
    %123 = arith.addf %119, %122 : vector<16x128xf32>
    %124 = arith.maximumf %118, %123 : vector<16x128xf32>
    %c121_i32_78 = arith.constant 121 : i32
    %125 = tpu.dynamic_rotate %94 by %c121_i32_78 dim 1 : vector<16x128xf32>, i32 -> vector<16x128xf32>
    %c6_79 = arith.constant 6 : index
    %c0_80 = arith.constant 0 : index
    %c0_81 = arith.constant 0 : index
    %126 = vector.load %arg5[%c6_79, %c0_80, %c0_81] : memref<9x1x128xf32, #tpu.memory_space<vmem>>, vector<1x1x128xf32>
    %127 = vector.shape_cast %126 : vector<1x1x128xf32> to vector<1x128xf32>
    %128 = vector.broadcast %127 : vector<1x128xf32> to vector<16x128xf32>
    %129 = arith.addf %125, %128 : vector<16x128xf32>
    %130 = arith.maximumf %124, %129 : vector<16x128xf32>
    %c120_i32_82 = arith.constant 120 : i32
    %131 = tpu.dynamic_rotate %94 by %c120_i32_82 dim 1 : vector<16x128xf32>, i32 -> vector<16x128xf32>
    %c7_83 = arith.constant 7 : index
    %c0_84 = arith.constant 0 : index
    %c0_85 = arith.constant 0 : index
    %132 = vector.load %arg5[%c7_83, %c0_84, %c0_85] : memref<9x1x128xf32, #tpu.memory_space<vmem>>, vector<1x1x128xf32>
    %133 = vector.shape_cast %132 : vector<1x1x128xf32> to vector<1x128xf32>
    %134 = vector.broadcast %133 : vector<1x128xf32> to vector<16x128xf32>
    %135 = arith.addf %131, %134 : vector<16x128xf32>
    %136 = arith.maximumf %130, %135 : vector<16x128xf32>
    %c119_i32_86 = arith.constant 119 : i32
    %137 = tpu.dynamic_rotate %94 by %c119_i32_86 dim 1 : vector<16x128xf32>, i32 -> vector<16x128xf32>
    %c8_87 = arith.constant 8 : index
    %c0_88 = arith.constant 0 : index
    %c0_89 = arith.constant 0 : index
    %138 = vector.load %arg5[%c8_87, %c0_88, %c0_89] : memref<9x1x128xf32, #tpu.memory_space<vmem>>, vector<1x1x128xf32>
    %139 = vector.shape_cast %138 : vector<1x1x128xf32> to vector<1x128xf32>
    %140 = vector.broadcast %139 : vector<1x128xf32> to vector<16x128xf32>
    %141 = arith.addf %137, %140 : vector<16x128xf32>
    %142 = arith.maximumf %136, %141 : vector<16x128xf32>
    %143 = arith.truncf %142 : vector<16x128xf32> to vector<16x128xbf16>
    %c0_90 = arith.constant 0 : index
    %c0_91 = arith.constant 0 : index
    %144 = vector.load %arg6[%c0_90, %c0_91] : memref<16x128xbf16, #tpu.memory_space<vmem>>, vector<16x128xbf16>
    tpu.vector_store %arg6[%c0_90, %c0_91], %143 {strides = array<i32>} : memref<16x128xbf16, #tpu.memory_space<vmem>>, vector<16x128xbf16>,
    return
  }
  func.func @transform_0(%arg0: i32) -> (i32, i32) {
    %c0_i32 = arith.constant 0 : i32
    %c0_i32_0 = arith.constant 0 : i32
    return %c0_i32, %arg0 : i32, i32
  }
  func.func @transform_1(%arg0: i32) -> (i32, i32, i32) {
    %c0_i32 = arith.constant 0 : i32
    %c0_i32_0 = arith.constant 0 : i32
    %c0_i32_1 = arith.constant 0 : i32
    %c0_i32_2 = arith.constant 0 : i32
    return %c0_i32, %c0_i32_0, %c0_i32_1 : i32, i32, i32
  }
  func.func @transform_2(%arg0: i32) -> (i32, i32) {
    %c0_i32 = arith.constant 0 : i32
    %c0_i32_0 = arith.constant 0 : i32
    %c0_i32_1 = arith.constant 0 : i32
    return %c0_i32, %c0_i32_0 : i32, i32
  }
  func.func @transform_3(%arg0: i32) -> (i32, i32, i32) {
    %c0_i32 = arith.constant 0 : i32
    %c0_i32_0 = arith.constant 0 : i32
    %c0_i32_1 = arith.constant 0 : i32
    %c0_i32_2 = arith.constant 0 : i32
    return %c0_i32, %c0_i32_0, %c0_i32_1 : i32, i32, i32
  }
  func.func @transform_4(%arg0: i32) -> (i32, i32, i32) {
    %c0_i32 = arith.constant 0 : i32
    %c0_i32_0 = arith.constant 0 : i32
    %c0_i32_1 = arith.constant 0 : i32
    %c0_i32_2 = arith.constant 0 : i32
    return %c0_i32, %c0_i32_0, %c0_i32_1 : i32, i32, i32
  }
  func.func @transform_5(%arg0: i32) -> (i32, i32) {
    %c0_i32 = arith.constant 0 : i32
    %c0_i32_0 = arith.constant 0 : i32
    return %c0_i32, %arg0 : i32, i32
  }
}

module attributes {stable_mosaic.version = 11 : i64} {
  func.func @kernel(%arg0: i32, %arg1: memref<16x64xbf16, #tpu.memory_space<vmem>>, %arg2: memref<9x16x16xbf16, #tpu.memory_space<vmem>>, %arg3: memref<16x1xf32, #tpu.memory_space<vmem>>, %arg4: memref<9x1x64xf32, #tpu.memory_space<vmem>>, %arg5: memref<16x64xbf16, #tpu.memory_space<vmem>>) attributes {dimension_semantics = [#tpu.dimension_semantics<parallel>], iteration_bounds = array<i64: 1>, scalar_prefetch = 0 : i64, scratch_operands = 0 : i64, tpu.core_type = #tpu.core_type<tc>, window_params = [{transform_indices = @transform_0, window_bounds = array<i64: 16, 64>}, {pipeline_mode = #tpu.pipeline_mode<synchronous>, transform_indices = @transform_1, window_bounds = array<i64: 9, 16, 16>}, {pipeline_mode = #tpu.pipeline_mode<synchronous>, transform_indices = @transform_2, window_bounds = array<i64: 16, 1>}, {pipeline_mode = #tpu.pipeline_mode<synchronous>, transform_indices = @transform_3, window_bounds = array<i64: 9, 1, 64>}, {transform_indices = @transform_4, window_bounds = array<i64: 16, 64>}]} {
    %c0 = arith.constant 0 : index
    %c0_0 = arith.constant 0 : index
    %0 = vector.load %arg1[%c0, %c0_0] : memref<16x64xbf16, #tpu.memory_space<vmem>>, vector<16x64xbf16>
    %1 = arith.extf %0 : vector<16x64xbf16> to vector<16x64xf32>
    %c5_i32 = arith.constant 5 : i32
    %2 = tpu.dynamic_rotate %1 by %c5_i32 dim 1 : vector<16x64xf32>, i32 -> vector<16x64xf32>
    %c0_1 = arith.constant 0 : index
    %c0_2 = arith.constant 0 : index
    %c0_3 = arith.constant 0 : index
    %3 = vector.load %arg4[%c0_1, %c0_2, %c0_3] : memref<9x1x64xf32, #tpu.memory_space<vmem>>, vector<1x1x64xf32>
    %4 = vector.shape_cast %3 : vector<1x1x64xf32> to vector<1x64xf32>
    %5 = vector.broadcast %4 : vector<1x64xf32> to vector<16x64xf32>
    %6 = arith.mulf %2, %5 : vector<16x64xf32>
    %7 = arith.truncf %6 : vector<16x64xf32> to vector<16x64xbf16>
    %c0_4 = arith.constant 0 : index
    %c0_5 = arith.constant 0 : index
    %c0_6 = arith.constant 0 : index
    %8 = vector.load %arg2[%c0_4, %c0_5, %c0_6] : memref<9x16x16xbf16, #tpu.memory_space<vmem>>, vector<1x16x16xbf16>
    %9 = vector.shape_cast %8 : vector<1x16x16xbf16> to vector<16x16xbf16>
    %cst = arith.constant dense<0.000000e+00> : vector<16x64xf32>
    %10 = tpu.matmul %9, %7, %cst {dimension_numbers = #tpu.dot_dimension_numbers<[1], [0], [0], [1], [0, 0, 1, 1], [], []>} : vector<16x16xbf16>, vector<16x64xbf16>, vector<16x64xf32> -> vector<16x64xf32>
    %c4_i32 = arith.constant 4 : i32
    %11 = tpu.dynamic_rotate %1 by %c4_i32 dim 1 : vector<16x64xf32>, i32 -> vector<16x64xf32>
    %c1 = arith.constant 1 : index
    %c0_7 = arith.constant 0 : index
    %c0_8 = arith.constant 0 : index
    %12 = vector.load %arg4[%c1, %c0_7, %c0_8] : memref<9x1x64xf32, #tpu.memory_space<vmem>>, vector<1x1x64xf32>
    %13 = vector.shape_cast %12 : vector<1x1x64xf32> to vector<1x64xf32>
    %14 = vector.broadcast %13 : vector<1x64xf32> to vector<16x64xf32>
    %15 = arith.mulf %11, %14 : vector<16x64xf32>
    %16 = arith.truncf %15 : vector<16x64xf32> to vector<16x64xbf16>
    %c1_9 = arith.constant 1 : index
    %c0_10 = arith.constant 0 : index
    %c0_11 = arith.constant 0 : index
    %17 = vector.load %arg2[%c1_9, %c0_10, %c0_11] : memref<9x16x16xbf16, #tpu.memory_space<vmem>>, vector<1x16x16xbf16>
    %18 = vector.shape_cast %17 : vector<1x16x16xbf16> to vector<16x16xbf16>
    %cst_12 = arith.constant dense<0.000000e+00> : vector<16x64xf32>
    %19 = tpu.matmul %18, %16, %cst_12 {dimension_numbers = #tpu.dot_dimension_numbers<[1], [0], [0], [1], [0, 0, 1, 1], [], []>} : vector<16x16xbf16>, vector<16x64xbf16>, vector<16x64xf32> -> vector<16x64xf32>
    %20 = arith.addf %10, %19 : vector<16x64xf32>
    %c3_i32 = arith.constant 3 : i32
    %21 = tpu.dynamic_rotate %1 by %c3_i32 dim 1 : vector<16x64xf32>, i32 -> vector<16x64xf32>
    %c2 = arith.constant 2 : index
    %c0_13 = arith.constant 0 : index
    %c0_14 = arith.constant 0 : index
    %22 = vector.load %arg4[%c2, %c0_13, %c0_14] : memref<9x1x64xf32, #tpu.memory_space<vmem>>, vector<1x1x64xf32>
    %23 = vector.shape_cast %22 : vector<1x1x64xf32> to vector<1x64xf32>
    %24 = vector.broadcast %23 : vector<1x64xf32> to vector<16x64xf32>
    %25 = arith.mulf %21, %24 : vector<16x64xf32>
    %26 = arith.truncf %25 : vector<16x64xf32> to vector<16x64xbf16>
    %c2_15 = arith.constant 2 : index
    %c0_16 = arith.constant 0 : index
    %c0_17 = arith.constant 0 : index
    %27 = vector.load %arg2[%c2_15, %c0_16, %c0_17] : memref<9x16x16xbf16, #tpu.memory_space<vmem>>, vector<1x16x16xbf16>
    %28 = vector.shape_cast %27 : vector<1x16x16xbf16> to vector<16x16xbf16>
    %cst_18 = arith.constant dense<0.000000e+00> : vector<16x64xf32>
    %29 = tpu.matmul %28, %26, %cst_18 {dimension_numbers = #tpu.dot_dimension_numbers<[1], [0], [0], [1], [0, 0, 1, 1], [], []>} : vector<16x16xbf16>, vector<16x64xbf16>, vector<16x64xf32> -> vector<16x64xf32>
    %30 = arith.addf %20, %29 : vector<16x64xf32>
    %c1_i32 = arith.constant 1 : i32
    %31 = tpu.dynamic_rotate %1 by %c1_i32 dim 1 : vector<16x64xf32>, i32 -> vector<16x64xf32>
    %c3 = arith.constant 3 : index
    %c0_19 = arith.constant 0 : index
    %c0_20 = arith.constant 0 : index
    %32 = vector.load %arg4[%c3, %c0_19, %c0_20] : memref<9x1x64xf32, #tpu.memory_space<vmem>>, vector<1x1x64xf32>
    %33 = vector.shape_cast %32 : vector<1x1x64xf32> to vector<1x64xf32>
    %34 = vector.broadcast %33 : vector<1x64xf32> to vector<16x64xf32>
    %35 = arith.mulf %31, %34 : vector<16x64xf32>
    %36 = arith.truncf %35 : vector<16x64xf32> to vector<16x64xbf16>
    %c3_21 = arith.constant 3 : index
    %c0_22 = arith.constant 0 : index
    %c0_23 = arith.constant 0 : index
    %37 = vector.load %arg2[%c3_21, %c0_22, %c0_23] : memref<9x16x16xbf16, #tpu.memory_space<vmem>>, vector<1x16x16xbf16>
    %38 = vector.shape_cast %37 : vector<1x16x16xbf16> to vector<16x16xbf16>
    %cst_24 = arith.constant dense<0.000000e+00> : vector<16x64xf32>
    %39 = tpu.matmul %38, %36, %cst_24 {dimension_numbers = #tpu.dot_dimension_numbers<[1], [0], [0], [1], [0, 0, 1, 1], [], []>} : vector<16x16xbf16>, vector<16x64xbf16>, vector<16x64xf32> -> vector<16x64xf32>
    %40 = arith.addf %30, %39 : vector<16x64xf32>
    %c4 = arith.constant 4 : index
    %c0_25 = arith.constant 0 : index
    %c0_26 = arith.constant 0 : index
    %41 = vector.load %arg4[%c4, %c0_25, %c0_26] : memref<9x1x64xf32, #tpu.memory_space<vmem>>, vector<1x1x64xf32>
    %42 = vector.shape_cast %41 : vector<1x1x64xf32> to vector<1x64xf32>
    %43 = vector.broadcast %42 : vector<1x64xf32> to vector<16x64xf32>
    %44 = arith.mulf %1, %43 : vector<16x64xf32>
    %45 = arith.truncf %44 : vector<16x64xf32> to vector<16x64xbf16>
    %c4_27 = arith.constant 4 : index
    %c0_28 = arith.constant 0 : index
    %c0_29 = arith.constant 0 : index
    %46 = vector.load %arg2[%c4_27, %c0_28, %c0_29] : memref<9x16x16xbf16, #tpu.memory_space<vmem>>, vector<1x16x16xbf16>
    %47 = vector.shape_cast %46 : vector<1x16x16xbf16> to vector<16x16xbf16>
    %cst_30 = arith.constant dense<0.000000e+00> : vector<16x64xf32>
    %48 = tpu.matmul %47, %45, %cst_30 {dimension_numbers = #tpu.dot_dimension_numbers<[1], [0], [0], [1], [0, 0, 1, 1], [], []>} : vector<16x16xbf16>, vector<16x64xbf16>, vector<16x64xf32> -> vector<16x64xf32>
    %49 = arith.addf %40, %48 : vector<16x64xf32>
    %c63_i32 = arith.constant 63 : i32
    %50 = tpu.dynamic_rotate %1 by %c63_i32 dim 1 : vector<16x64xf32>, i32 -> vector<16x64xf32>
    %c5 = arith.constant 5 : index
    %c0_31 = arith.constant 0 : index
    %c0_32 = arith.constant 0 : index
    %51 = vector.load %arg4[%c5, %c0_31, %c0_32] : memref<9x1x64xf32, #tpu.memory_space<vmem>>, vector<1x1x64xf32>
    %52 = vector.shape_cast %51 : vector<1x1x64xf32> to vector<1x64xf32>
    %53 = vector.broadcast %52 : vector<1x64xf32> to vector<16x64xf32>
    %54 = arith.mulf %50, %53 : vector<16x64xf32>
    %55 = arith.truncf %54 : vector<16x64xf32> to vector<16x64xbf16>
    %c5_33 = arith.constant 5 : index
    %c0_34 = arith.constant 0 : index
    %c0_35 = arith.constant 0 : index
    %56 = vector.load %arg2[%c5_33, %c0_34, %c0_35] : memref<9x16x16xbf16, #tpu.memory_space<vmem>>, vector<1x16x16xbf16>
    %57 = vector.shape_cast %56 : vector<1x16x16xbf16> to vector<16x16xbf16>
    %cst_36 = arith.constant dense<0.000000e+00> : vector<16x64xf32>
    %58 = tpu.matmul %57, %55, %cst_36 {dimension_numbers = #tpu.dot_dimension_numbers<[1], [0], [0], [1], [0, 0, 1, 1], [], []>} : vector<16x16xbf16>, vector<16x64xbf16>, vector<16x64xf32> -> vector<16x64xf32>
    %59 = arith.addf %49, %58 : vector<16x64xf32>
    %c61_i32 = arith.constant 61 : i32
    %60 = tpu.dynamic_rotate %1 by %c61_i32 dim 1 : vector<16x64xf32>, i32 -> vector<16x64xf32>
    %c6 = arith.constant 6 : index
    %c0_37 = arith.constant 0 : index
    %c0_38 = arith.constant 0 : index
    %61 = vector.load %arg4[%c6, %c0_37, %c0_38] : memref<9x1x64xf32, #tpu.memory_space<vmem>>, vector<1x1x64xf32>
    %62 = vector.shape_cast %61 : vector<1x1x64xf32> to vector<1x64xf32>
    %63 = vector.broadcast %62 : vector<1x64xf32> to vector<16x64xf32>
    %64 = arith.mulf %60, %63 : vector<16x64xf32>
    %65 = arith.truncf %64 : vector<16x64xf32> to vector<16x64xbf16>
    %c6_39 = arith.constant 6 : index
    %c0_40 = arith.constant 0 : index
    %c0_41 = arith.constant 0 : index
    %66 = vector.load %arg2[%c6_39, %c0_40, %c0_41] : memref<9x16x16xbf16, #tpu.memory_space<vmem>>, vector<1x16x16xbf16>
    %67 = vector.shape_cast %66 : vector<1x16x16xbf16> to vector<16x16xbf16>
    %cst_42 = arith.constant dense<0.000000e+00> : vector<16x64xf32>
    %68 = tpu.matmul %67, %65, %cst_42 {dimension_numbers = #tpu.dot_dimension_numbers<[1], [0], [0], [1], [0, 0, 1, 1], [], []>} : vector<16x16xbf16>, vector<16x64xbf16>, vector<16x64xf32> -> vector<16x64xf32>
    %69 = arith.addf %59, %68 : vector<16x64xf32>
    %c60_i32 = arith.constant 60 : i32
    %70 = tpu.dynamic_rotate %1 by %c60_i32 dim 1 : vector<16x64xf32>, i32 -> vector<16x64xf32>
    %c7 = arith.constant 7 : index
    %c0_43 = arith.constant 0 : index
    %c0_44 = arith.constant 0 : index
    %71 = vector.load %arg4[%c7, %c0_43, %c0_44] : memref<9x1x64xf32, #tpu.memory_space<vmem>>, vector<1x1x64xf32>
    %72 = vector.shape_cast %71 : vector<1x1x64xf32> to vector<1x64xf32>
    %73 = vector.broadcast %72 : vector<1x64xf32> to vector<16x64xf32>
    %74 = arith.mulf %70, %73 : vector<16x64xf32>
    %75 = arith.truncf %74 : vector<16x64xf32> to vector<16x64xbf16>
    %c7_45 = arith.constant 7 : index
    %c0_46 = arith.constant 0 : index
    %c0_47 = arith.constant 0 : index
    %76 = vector.load %arg2[%c7_45, %c0_46, %c0_47] : memref<9x16x16xbf16, #tpu.memory_space<vmem>>, vector<1x16x16xbf16>
    %77 = vector.shape_cast %76 : vector<1x16x16xbf16> to vector<16x16xbf16>
    %cst_48 = arith.constant dense<0.000000e+00> : vector<16x64xf32>
    %78 = tpu.matmul %77, %75, %cst_48 {dimension_numbers = #tpu.dot_dimension_numbers<[1], [0], [0], [1], [0, 0, 1, 1], [], []>} : vector<16x16xbf16>, vector<16x64xbf16>, vector<16x64xf32> -> vector<16x64xf32>
    %79 = arith.addf %69, %78 : vector<16x64xf32>
    %c59_i32 = arith.constant 59 : i32
    %80 = tpu.dynamic_rotate %1 by %c59_i32 dim 1 : vector<16x64xf32>, i32 -> vector<16x64xf32>
    %c8 = arith.constant 8 : index
    %c0_49 = arith.constant 0 : index
    %c0_50 = arith.constant 0 : index
    %81 = vector.load %arg4[%c8, %c0_49, %c0_50] : memref<9x1x64xf32, #tpu.memory_space<vmem>>, vector<1x1x64xf32>
    %82 = vector.shape_cast %81 : vector<1x1x64xf32> to vector<1x64xf32>
    %83 = vector.broadcast %82 : vector<1x64xf32> to vector<16x64xf32>
    %84 = arith.mulf %80, %83 : vector<16x64xf32>
    %85 = arith.truncf %84 : vector<16x64xf32> to vector<16x64xbf16>
    %c8_51 = arith.constant 8 : index
    %c0_52 = arith.constant 0 : index
    %c0_53 = arith.constant 0 : index
    %86 = vector.load %arg2[%c8_51, %c0_52, %c0_53] : memref<9x16x16xbf16, #tpu.memory_space<vmem>>, vector<1x16x16xbf16>
    %87 = vector.shape_cast %86 : vector<1x16x16xbf16> to vector<16x16xbf16>
    %cst_54 = arith.constant dense<0.000000e+00> : vector<16x64xf32>
    %88 = tpu.matmul %87, %85, %cst_54 {dimension_numbers = #tpu.dot_dimension_numbers<[1], [0], [0], [1], [0, 0, 1, 1], [], []>} : vector<16x16xbf16>, vector<16x64xbf16>, vector<16x64xf32> -> vector<16x64xf32>
    %89 = arith.addf %79, %88 : vector<16x64xf32>
    %c0_55 = arith.constant 0 : index
    %c0_56 = arith.constant 0 : index
    %90 = vector.load %arg3[%c0_55, %c0_56] : memref<16x1xf32, #tpu.memory_space<vmem>>, vector<16x1xf32>
    %91 = vector.broadcast %90 : vector<16x1xf32> to vector<16x64xf32>
    %92 = arith.addf %89, %91 : vector<16x64xf32>
    %cst_57 = arith.constant 0.000000e+00 : f32
    %93 = vector.broadcast %cst_57 : f32 to vector<16x64xf32>
    %94 = arith.maximumf %92, %93 : vector<16x64xf32>
    %95 = arith.truncf %94 : vector<16x64xf32> to vector<16x64xbf16>
    %c0_58 = arith.constant 0 : index
    %c0_59 = arith.constant 0 : index
    %96 = vector.load %arg5[%c0_58, %c0_59] : memref<16x64xbf16, #tpu.memory_space<vmem>>, vector<16x64xbf16>
    tpu.vector_store %arg5[%c0_58, %c0_59], %95 {strides = array<i32>} : memref<16x64xbf16, #tpu.memory_space<vmem>>, vector<16x64xbf16>,
    return
  }
  func.func @transform_0(%arg0: i32) -> (i32, i32) {
    %c0_i32 = arith.constant 0 : i32
    %c0_i32_0 = arith.constant 0 : i32
    return %c0_i32, %arg0 : i32, i32
  }
  func.func @transform_1(%arg0: i32) -> (i32, i32, i32) {
    %c0_i32 = arith.constant 0 : i32
    %c0_i32_0 = arith.constant 0 : i32
    %c0_i32_1 = arith.constant 0 : i32
    %c0_i32_2 = arith.constant 0 : i32
    return %c0_i32, %c0_i32_0, %c0_i32_1 : i32, i32, i32
  }
  func.func @transform_2(%arg0: i32) -> (i32, i32) {
    %c0_i32 = arith.constant 0 : i32
    %c0_i32_0 = arith.constant 0 : i32
    %c0_i32_1 = arith.constant 0 : i32
    return %c0_i32, %c0_i32_0 : i32, i32
  }
  func.func @transform_3(%arg0: i32) -> (i32, i32, i32) {
    %c0_i32 = arith.constant 0 : i32
    %c0_i32_0 = arith.constant 0 : i32
    %c0_i32_1 = arith.constant 0 : i32
    %c0_i32_2 = arith.constant 0 : i32
    return %c0_i32, %c0_i32_0, %c0_i32_1 : i32, i32, i32
  }
  func.func @transform_4(%arg0: i32) -> (i32, i32) {
    %c0_i32 = arith.constant 0 : i32
    %c0_i32_0 = arith.constant 0 : i32
    return %c0_i32, %arg0 : i32, i32
  }
}

module attributes {stable_mosaic.version = 11 : i64} {
  func.func @kernel(%arg0: i32, %arg1: memref<16x64xbf16, #tpu.memory_space<vmem>>, %arg2: memref<9x16x16xbf16, #tpu.memory_space<vmem>>, %arg3: memref<16x1xf32, #tpu.memory_space<vmem>>, %arg4: memref<9x1x64xf32, #tpu.memory_space<vmem>>, %arg5: memref<16x64xbf16, #tpu.memory_space<vmem>>, %arg6: memref<16x64xbf16, #tpu.memory_space<vmem>>) attributes {dimension_semantics = [#tpu.dimension_semantics<parallel>], iteration_bounds = array<i64: 1>, scalar_prefetch = 0 : i64, scratch_operands = 0 : i64, tpu.core_type = #tpu.core_type<tc>, window_params = [{transform_indices = @transform_0, window_bounds = array<i64: 16, 64>}, {pipeline_mode = #tpu.pipeline_mode<synchronous>, transform_indices = @transform_1, window_bounds = array<i64: 9, 16, 16>}, {pipeline_mode = #tpu.pipeline_mode<synchronous>, transform_indices = @transform_2, window_bounds = array<i64: 16, 1>}, {pipeline_mode = #tpu.pipeline_mode<synchronous>, transform_indices = @transform_3, window_bounds = array<i64: 9, 1, 64>}, {transform_indices = @transform_4, window_bounds = array<i64: 16, 64>}, {transform_indices = @transform_5, window_bounds = array<i64: 16, 64>}]} {
    %c0 = arith.constant 0 : index
    %c0_0 = arith.constant 0 : index
    %0 = vector.load %arg1[%c0, %c0_0] : memref<16x64xbf16, #tpu.memory_space<vmem>>, vector<16x64xbf16>
    %1 = arith.extf %0 : vector<16x64xbf16> to vector<16x64xf32>
    %c5_i32 = arith.constant 5 : i32
    %2 = tpu.dynamic_rotate %1 by %c5_i32 dim 1 : vector<16x64xf32>, i32 -> vector<16x64xf32>
    %c0_1 = arith.constant 0 : index
    %c0_2 = arith.constant 0 : index
    %c0_3 = arith.constant 0 : index
    %3 = vector.load %arg4[%c0_1, %c0_2, %c0_3] : memref<9x1x64xf32, #tpu.memory_space<vmem>>, vector<1x1x64xf32>
    %4 = vector.shape_cast %3 : vector<1x1x64xf32> to vector<1x64xf32>
    %5 = vector.broadcast %4 : vector<1x64xf32> to vector<16x64xf32>
    %6 = arith.mulf %2, %5 : vector<16x64xf32>
    %7 = arith.truncf %6 : vector<16x64xf32> to vector<16x64xbf16>
    %c0_4 = arith.constant 0 : index
    %c0_5 = arith.constant 0 : index
    %c0_6 = arith.constant 0 : index
    %8 = vector.load %arg2[%c0_4, %c0_5, %c0_6] : memref<9x16x16xbf16, #tpu.memory_space<vmem>>, vector<1x16x16xbf16>
    %9 = vector.shape_cast %8 : vector<1x16x16xbf16> to vector<16x16xbf16>
    %cst = arith.constant dense<0.000000e+00> : vector<16x64xf32>
    %10 = tpu.matmul %9, %7, %cst {dimension_numbers = #tpu.dot_dimension_numbers<[1], [0], [0], [1], [0, 0, 1, 1], [], []>} : vector<16x16xbf16>, vector<16x64xbf16>, vector<16x64xf32> -> vector<16x64xf32>
    %c4_i32 = arith.constant 4 : i32
    %11 = tpu.dynamic_rotate %1 by %c4_i32 dim 1 : vector<16x64xf32>, i32 -> vector<16x64xf32>
    %c1 = arith.constant 1 : index
    %c0_7 = arith.constant 0 : index
    %c0_8 = arith.constant 0 : index
    %12 = vector.load %arg4[%c1, %c0_7, %c0_8] : memref<9x1x64xf32, #tpu.memory_space<vmem>>, vector<1x1x64xf32>
    %13 = vector.shape_cast %12 : vector<1x1x64xf32> to vector<1x64xf32>
    %14 = vector.broadcast %13 : vector<1x64xf32> to vector<16x64xf32>
    %15 = arith.mulf %11, %14 : vector<16x64xf32>
    %16 = arith.truncf %15 : vector<16x64xf32> to vector<16x64xbf16>
    %c1_9 = arith.constant 1 : index
    %c0_10 = arith.constant 0 : index
    %c0_11 = arith.constant 0 : index
    %17 = vector.load %arg2[%c1_9, %c0_10, %c0_11] : memref<9x16x16xbf16, #tpu.memory_space<vmem>>, vector<1x16x16xbf16>
    %18 = vector.shape_cast %17 : vector<1x16x16xbf16> to vector<16x16xbf16>
    %cst_12 = arith.constant dense<0.000000e+00> : vector<16x64xf32>
    %19 = tpu.matmul %18, %16, %cst_12 {dimension_numbers = #tpu.dot_dimension_numbers<[1], [0], [0], [1], [0, 0, 1, 1], [], []>} : vector<16x16xbf16>, vector<16x64xbf16>, vector<16x64xf32> -> vector<16x64xf32>
    %20 = arith.addf %10, %19 : vector<16x64xf32>
    %c3_i32 = arith.constant 3 : i32
    %21 = tpu.dynamic_rotate %1 by %c3_i32 dim 1 : vector<16x64xf32>, i32 -> vector<16x64xf32>
    %c2 = arith.constant 2 : index
    %c0_13 = arith.constant 0 : index
    %c0_14 = arith.constant 0 : index
    %22 = vector.load %arg4[%c2, %c0_13, %c0_14] : memref<9x1x64xf32, #tpu.memory_space<vmem>>, vector<1x1x64xf32>
    %23 = vector.shape_cast %22 : vector<1x1x64xf32> to vector<1x64xf32>
    %24 = vector.broadcast %23 : vector<1x64xf32> to vector<16x64xf32>
    %25 = arith.mulf %21, %24 : vector<16x64xf32>
    %26 = arith.truncf %25 : vector<16x64xf32> to vector<16x64xbf16>
    %c2_15 = arith.constant 2 : index
    %c0_16 = arith.constant 0 : index
    %c0_17 = arith.constant 0 : index
    %27 = vector.load %arg2[%c2_15, %c0_16, %c0_17] : memref<9x16x16xbf16, #tpu.memory_space<vmem>>, vector<1x16x16xbf16>
    %28 = vector.shape_cast %27 : vector<1x16x16xbf16> to vector<16x16xbf16>
    %cst_18 = arith.constant dense<0.000000e+00> : vector<16x64xf32>
    %29 = tpu.matmul %28, %26, %cst_18 {dimension_numbers = #tpu.dot_dimension_numbers<[1], [0], [0], [1], [0, 0, 1, 1], [], []>} : vector<16x16xbf16>, vector<16x64xbf16>, vector<16x64xf32> -> vector<16x64xf32>
    %30 = arith.addf %20, %29 : vector<16x64xf32>
    %c1_i32 = arith.constant 1 : i32
    %31 = tpu.dynamic_rotate %1 by %c1_i32 dim 1 : vector<16x64xf32>, i32 -> vector<16x64xf32>
    %c3 = arith.constant 3 : index
    %c0_19 = arith.constant 0 : index
    %c0_20 = arith.constant 0 : index
    %32 = vector.load %arg4[%c3, %c0_19, %c0_20] : memref<9x1x64xf32, #tpu.memory_space<vmem>>, vector<1x1x64xf32>
    %33 = vector.shape_cast %32 : vector<1x1x64xf32> to vector<1x64xf32>
    %34 = vector.broadcast %33 : vector<1x64xf32> to vector<16x64xf32>
    %35 = arith.mulf %31, %34 : vector<16x64xf32>
    %36 = arith.truncf %35 : vector<16x64xf32> to vector<16x64xbf16>
    %c3_21 = arith.constant 3 : index
    %c0_22 = arith.constant 0 : index
    %c0_23 = arith.constant 0 : index
    %37 = vector.load %arg2[%c3_21, %c0_22, %c0_23] : memref<9x16x16xbf16, #tpu.memory_space<vmem>>, vector<1x16x16xbf16>
    %38 = vector.shape_cast %37 : vector<1x16x16xbf16> to vector<16x16xbf16>
    %cst_24 = arith.constant dense<0.000000e+00> : vector<16x64xf32>
    %39 = tpu.matmul %38, %36, %cst_24 {dimension_numbers = #tpu.dot_dimension_numbers<[1], [0], [0], [1], [0, 0, 1, 1], [], []>} : vector<16x16xbf16>, vector<16x64xbf16>, vector<16x64xf32> -> vector<16x64xf32>
    %40 = arith.addf %30, %39 : vector<16x64xf32>
    %c4 = arith.constant 4 : index
    %c0_25 = arith.constant 0 : index
    %c0_26 = arith.constant 0 : index
    %41 = vector.load %arg4[%c4, %c0_25, %c0_26] : memref<9x1x64xf32, #tpu.memory_space<vmem>>, vector<1x1x64xf32>
    %42 = vector.shape_cast %41 : vector<1x1x64xf32> to vector<1x64xf32>
    %43 = vector.broadcast %42 : vector<1x64xf32> to vector<16x64xf32>
    %44 = arith.mulf %1, %43 : vector<16x64xf32>
    %45 = arith.truncf %44 : vector<16x64xf32> to vector<16x64xbf16>
    %c4_27 = arith.constant 4 : index
    %c0_28 = arith.constant 0 : index
    %c0_29 = arith.constant 0 : index
    %46 = vector.load %arg2[%c4_27, %c0_28, %c0_29] : memref<9x16x16xbf16, #tpu.memory_space<vmem>>, vector<1x16x16xbf16>
    %47 = vector.shape_cast %46 : vector<1x16x16xbf16> to vector<16x16xbf16>
    %cst_30 = arith.constant dense<0.000000e+00> : vector<16x64xf32>
    %48 = tpu.matmul %47, %45, %cst_30 {dimension_numbers = #tpu.dot_dimension_numbers<[1], [0], [0], [1], [0, 0, 1, 1], [], []>} : vector<16x16xbf16>, vector<16x64xbf16>, vector<16x64xf32> -> vector<16x64xf32>
    %49 = arith.addf %40, %48 : vector<16x64xf32>
    %c63_i32 = arith.constant 63 : i32
    %50 = tpu.dynamic_rotate %1 by %c63_i32 dim 1 : vector<16x64xf32>, i32 -> vector<16x64xf32>
    %c5 = arith.constant 5 : index
    %c0_31 = arith.constant 0 : index
    %c0_32 = arith.constant 0 : index
    %51 = vector.load %arg4[%c5, %c0_31, %c0_32] : memref<9x1x64xf32, #tpu.memory_space<vmem>>, vector<1x1x64xf32>
    %52 = vector.shape_cast %51 : vector<1x1x64xf32> to vector<1x64xf32>
    %53 = vector.broadcast %52 : vector<1x64xf32> to vector<16x64xf32>
    %54 = arith.mulf %50, %53 : vector<16x64xf32>
    %55 = arith.truncf %54 : vector<16x64xf32> to vector<16x64xbf16>
    %c5_33 = arith.constant 5 : index
    %c0_34 = arith.constant 0 : index
    %c0_35 = arith.constant 0 : index
    %56 = vector.load %arg2[%c5_33, %c0_34, %c0_35] : memref<9x16x16xbf16, #tpu.memory_space<vmem>>, vector<1x16x16xbf16>
    %57 = vector.shape_cast %56 : vector<1x16x16xbf16> to vector<16x16xbf16>
    %cst_36 = arith.constant dense<0.000000e+00> : vector<16x64xf32>
    %58 = tpu.matmul %57, %55, %cst_36 {dimension_numbers = #tpu.dot_dimension_numbers<[1], [0], [0], [1], [0, 0, 1, 1], [], []>} : vector<16x16xbf16>, vector<16x64xbf16>, vector<16x64xf32> -> vector<16x64xf32>
    %59 = arith.addf %49, %58 : vector<16x64xf32>
    %c61_i32 = arith.constant 61 : i32
    %60 = tpu.dynamic_rotate %1 by %c61_i32 dim 1 : vector<16x64xf32>, i32 -> vector<16x64xf32>
    %c6 = arith.constant 6 : index
    %c0_37 = arith.constant 0 : index
    %c0_38 = arith.constant 0 : index
    %61 = vector.load %arg4[%c6, %c0_37, %c0_38] : memref<9x1x64xf32, #tpu.memory_space<vmem>>, vector<1x1x64xf32>
    %62 = vector.shape_cast %61 : vector<1x1x64xf32> to vector<1x64xf32>
    %63 = vector.broadcast %62 : vector<1x64xf32> to vector<16x64xf32>
    %64 = arith.mulf %60, %63 : vector<16x64xf32>
    %65 = arith.truncf %64 : vector<16x64xf32> to vector<16x64xbf16>
    %c6_39 = arith.constant 6 : index
    %c0_40 = arith.constant 0 : index
    %c0_41 = arith.constant 0 : index
    %66 = vector.load %arg2[%c6_39, %c0_40, %c0_41] : memref<9x16x16xbf16, #tpu.memory_space<vmem>>, vector<1x16x16xbf16>
    %67 = vector.shape_cast %66 : vector<1x16x16xbf16> to vector<16x16xbf16>
    %cst_42 = arith.constant dense<0.000000e+00> : vector<16x64xf32>
    %68 = tpu.matmul %67, %65, %cst_42 {dimension_numbers = #tpu.dot_dimension_numbers<[1], [0], [0], [1], [0, 0, 1, 1], [], []>} : vector<16x16xbf16>, vector<16x64xbf16>, vector<16x64xf32> -> vector<16x64xf32>
    %69 = arith.addf %59, %68 : vector<16x64xf32>
    %c60_i32 = arith.constant 60 : i32
    %70 = tpu.dynamic_rotate %1 by %c60_i32 dim 1 : vector<16x64xf32>, i32 -> vector<16x64xf32>
    %c7 = arith.constant 7 : index
    %c0_43 = arith.constant 0 : index
    %c0_44 = arith.constant 0 : index
    %71 = vector.load %arg4[%c7, %c0_43, %c0_44] : memref<9x1x64xf32, #tpu.memory_space<vmem>>, vector<1x1x64xf32>
    %72 = vector.shape_cast %71 : vector<1x1x64xf32> to vector<1x64xf32>
    %73 = vector.broadcast %72 : vector<1x64xf32> to vector<16x64xf32>
    %74 = arith.mulf %70, %73 : vector<16x64xf32>
    %75 = arith.truncf %74 : vector<16x64xf32> to vector<16x64xbf16>
    %c7_45 = arith.constant 7 : index
    %c0_46 = arith.constant 0 : index
    %c0_47 = arith.constant 0 : index
    %76 = vector.load %arg2[%c7_45, %c0_46, %c0_47] : memref<9x16x16xbf16, #tpu.memory_space<vmem>>, vector<1x16x16xbf16>
    %77 = vector.shape_cast %76 : vector<1x16x16xbf16> to vector<16x16xbf16>
    %cst_48 = arith.constant dense<0.000000e+00> : vector<16x64xf32>
    %78 = tpu.matmul %77, %75, %cst_48 {dimension_numbers = #tpu.dot_dimension_numbers<[1], [0], [0], [1], [0, 0, 1, 1], [], []>} : vector<16x16xbf16>, vector<16x64xbf16>, vector<16x64xf32> -> vector<16x64xf32>
    %79 = arith.addf %69, %78 : vector<16x64xf32>
    %c59_i32 = arith.constant 59 : i32
    %80 = tpu.dynamic_rotate %1 by %c59_i32 dim 1 : vector<16x64xf32>, i32 -> vector<16x64xf32>
    %c8 = arith.constant 8 : index
    %c0_49 = arith.constant 0 : index
    %c0_50 = arith.constant 0 : index
    %81 = vector.load %arg4[%c8, %c0_49, %c0_50] : memref<9x1x64xf32, #tpu.memory_space<vmem>>, vector<1x1x64xf32>
    %82 = vector.shape_cast %81 : vector<1x1x64xf32> to vector<1x64xf32>
    %83 = vector.broadcast %82 : vector<1x64xf32> to vector<16x64xf32>
    %84 = arith.mulf %80, %83 : vector<16x64xf32>
    %85 = arith.truncf %84 : vector<16x64xf32> to vector<16x64xbf16>
    %c8_51 = arith.constant 8 : index
    %c0_52 = arith.constant 0 : index
    %c0_53 = arith.constant 0 : index
    %86 = vector.load %arg2[%c8_51, %c0_52, %c0_53] : memref<9x16x16xbf16, #tpu.memory_space<vmem>>, vector<1x16x16xbf16>
    %87 = vector.shape_cast %86 : vector<1x16x16xbf16> to vector<16x16xbf16>
    %cst_54 = arith.constant dense<0.000000e+00> : vector<16x64xf32>
    %88 = tpu.matmul %87, %85, %cst_54 {dimension_numbers = #tpu.dot_dimension_numbers<[1], [0], [0], [1], [0, 0, 1, 1], [], []>} : vector<16x16xbf16>, vector<16x64xbf16>, vector<16x64xf32> -> vector<16x64xf32>
    %89 = arith.addf %79, %88 : vector<16x64xf32>
    %c0_55 = arith.constant 0 : index
    %c0_56 = arith.constant 0 : index
    %90 = vector.load %arg3[%c0_55, %c0_56] : memref<16x1xf32, #tpu.memory_space<vmem>>, vector<16x1xf32>
    %91 = vector.broadcast %90 : vector<16x1xf32> to vector<16x64xf32>
    %92 = arith.addf %89, %91 : vector<16x64xf32>
    %cst_57 = arith.constant 0.000000e+00 : f32
    %93 = vector.broadcast %cst_57 : f32 to vector<16x64xf32>
    %94 = arith.maximumf %92, %93 : vector<16x64xf32>
    %c0_58 = arith.constant 0 : index
    %c0_59 = arith.constant 0 : index
    %95 = vector.load %arg5[%c0_58, %c0_59] : memref<16x64xbf16, #tpu.memory_space<vmem>>, vector<16x64xbf16>
    %96 = arith.extf %95 : vector<16x64xbf16> to vector<16x64xf32>
    %97 = arith.addf %94, %96 : vector<16x64xf32>
    %98 = arith.truncf %97 : vector<16x64xf32> to vector<16x64xbf16>
    %c0_60 = arith.constant 0 : index
    %c0_61 = arith.constant 0 : index
    %99 = vector.load %arg6[%c0_60, %c0_61] : memref<16x64xbf16, #tpu.memory_space<vmem>>, vector<16x64xbf16>
    tpu.vector_store %arg6[%c0_60, %c0_61], %98 {strides = array<i32>} : memref<16x64xbf16, #tpu.memory_space<vmem>>, vector<16x64xbf16>,
    return
  }
  func.func @transform_0(%arg0: i32) -> (i32, i32) {
    %c0_i32 = arith.constant 0 : i32
    %c0_i32_0 = arith.constant 0 : i32
    return %c0_i32, %arg0 : i32, i32
  }
  func.func @transform_1(%arg0: i32) -> (i32, i32, i32) {
    %c0_i32 = arith.constant 0 : i32
    %c0_i32_0 = arith.constant 0 : i32
    %c0_i32_1 = arith.constant 0 : i32
    %c0_i32_2 = arith.constant 0 : i32
    return %c0_i32, %c0_i32_0, %c0_i32_1 : i32, i32, i32
  }
  func.func @transform_2(%arg0: i32) -> (i32, i32) {
    %c0_i32 = arith.constant 0 : i32
    %c0_i32_0 = arith.constant 0 : i32
    %c0_i32_1 = arith.constant 0 : i32
    return %c0_i32, %c0_i32_0 : i32, i32
  }
  func.func @transform_3(%arg0: i32) -> (i32, i32, i32) {
    %c0_i32 = arith.constant 0 : i32
    %c0_i32_0 = arith.constant 0 : i32
    %c0_i32_1 = arith.constant 0 : i32
    %c0_i32_2 = arith.constant 0 : i32
    return %c0_i32, %c0_i32_0, %c0_i32_1 : i32, i32, i32
  }
  func.func @transform_4(%arg0: i32) -> (i32, i32) {
    %c0_i32 = arith.constant 0 : i32
    %c0_i32_0 = arith.constant 0 : i32
    return %c0_i32, %arg0 : i32, i32
  }
  func.func @transform_5(%arg0: i32) -> (i32, i32) {
    %c0_i32 = arith.constant 0 : i32
    %c0_i32_0 = arith.constant 0 : i32
    return %c0_i32, %arg0 : i32, i32
  }
}

module attributes {stable_mosaic.version = 11 : i64} {
  func.func @_dense2_kernel(%arg0: i32, %arg1: memref<4x256xbf16, #tpu.memory_space<vmem>>, %arg2: memref<256x64xbf16, #tpu.memory_space<vmem>>, %arg3: memref<1x64xf32, #tpu.memory_space<vmem>>, %arg4: memref<64x32xbf16, #tpu.memory_space<vmem>>, %arg5: memref<1x32xf32, #tpu.memory_space<vmem>>, %arg6: memref<4x32xf32, #tpu.memory_space<vmem>>) attributes {dimension_semantics = [#tpu.dimension_semantics<parallel>], iteration_bounds = array<i64: 1>, scalar_prefetch = 0 : i64, scratch_operands = 0 : i64, tpu.core_type = #tpu.core_type<tc>, window_params = [{transform_indices = @transform_0, window_bounds = array<i64: 4, 256>}, {pipeline_mode = #tpu.pipeline_mode<synchronous>, transform_indices = @transform_1, window_bounds = array<i64: 256, 64>}, {pipeline_mode = #tpu.pipeline_mode<synchronous>, transform_indices = @transform_2, window_bounds = array<i64: 1, 64>}, {pipeline_mode = #tpu.pipeline_mode<synchronous>, transform_indices = @transform_3, window_bounds = array<i64: 64, 32>}, {pipeline_mode = #tpu.pipeline_mode<synchronous>, transform_indices = @transform_4, window_bounds = array<i64: 1, 32>}, {transform_indices = @transform_5, window_bounds = array<i64: 4, 32>}]} {
    %c0 = arith.constant 0 : index
    %c0_0 = arith.constant 0 : index
    %0 = vector.load %arg1[%c0, %c0_0] : memref<4x256xbf16, #tpu.memory_space<vmem>>, vector<4x256xbf16>
    %c0_1 = arith.constant 0 : index
    %c0_2 = arith.constant 0 : index
    %1 = vector.load %arg2[%c0_1, %c0_2] : memref<256x64xbf16, #tpu.memory_space<vmem>>, vector<256x64xbf16>
    %cst = arith.constant dense<0.000000e+00> : vector<4x64xf32>
    %2 = tpu.matmul %0, %1, %cst {dimension_numbers = #tpu.dot_dimension_numbers<[1], [0], [0], [1], [0, 0, 1, 1], [], []>} : vector<4x256xbf16>, vector<256x64xbf16>, vector<4x64xf32> -> vector<4x64xf32>
    %c0_3 = arith.constant 0 : index
    %c0_4 = arith.constant 0 : index
    %3 = vector.load %arg3[%c0_3, %c0_4] : memref<1x64xf32, #tpu.memory_space<vmem>>, vector<1x64xf32>
    %4 = vector.broadcast %3 : vector<1x64xf32> to vector<4x64xf32>
    %5 = arith.addf %2, %4 : vector<4x64xf32>
    %cst_5 = arith.constant 0.000000e+00 : f32
    %6 = vector.broadcast %cst_5 : f32 to vector<4x64xf32>
    %7 = arith.maximumf %5, %6 : vector<4x64xf32>
    %8 = arith.truncf %7 : vector<4x64xf32> to vector<4x64xbf16>
    %c0_6 = arith.constant 0 : index
    %c0_7 = arith.constant 0 : index
    %9 = vector.load %arg4[%c0_6, %c0_7] : memref<64x32xbf16, #tpu.memory_space<vmem>>, vector<64x32xbf16>
    %cst_8 = arith.constant dense<0.000000e+00> : vector<4x32xf32>
    %10 = tpu.matmul %8, %9, %cst_8 {dimension_numbers = #tpu.dot_dimension_numbers<[1], [0], [0], [1], [0, 0, 1, 1], [], []>} : vector<4x64xbf16>, vector<64x32xbf16>, vector<4x32xf32> -> vector<4x32xf32>
    %c0_9 = arith.constant 0 : index
    %c0_10 = arith.constant 0 : index
    %11 = vector.load %arg5[%c0_9, %c0_10] : memref<1x32xf32, #tpu.memory_space<vmem>>, vector<1x32xf32>
    %12 = vector.broadcast %11 : vector<1x32xf32> to vector<4x32xf32>
    %13 = arith.addf %10, %12 : vector<4x32xf32>
    %cst_11 = arith.constant 0.000000e+00 : f32
    %14 = vector.broadcast %cst_11 : f32 to vector<4x32xf32>
    %15 = arith.maximumf %13, %14 : vector<4x32xf32>
    %c0_12 = arith.constant 0 : index
    %c0_13 = arith.constant 0 : index
    %16 = vector.load %arg6[%c0_12, %c0_13] : memref<4x32xf32, #tpu.memory_space<vmem>>, vector<4x32xf32>
    tpu.vector_store %arg6[%c0_12, %c0_13], %15 {strides = array<i32>} : memref<4x32xf32, #tpu.memory_space<vmem>>, vector<4x32xf32>,
    return
  }
  func.func @transform_0(%arg0: i32) -> (i32, i32) {
    %c0_i32 = arith.constant 0 : i32
    %c0_i32_0 = arith.constant 0 : i32
    return %arg0, %c0_i32 : i32, i32
  }
  func.func @transform_1(%arg0: i32) -> (i32, i32) {
    %c0_i32 = arith.constant 0 : i32
    %c0_i32_0 = arith.constant 0 : i32
    %c0_i32_1 = arith.constant 0 : i32
    return %c0_i32, %c0_i32_0 : i32, i32
  }
  func.func @transform_2(%arg0: i32) -> (i32, i32) {
    %c0_i32 = arith.constant 0 : i32
    %c0_i32_0 = arith.constant 0 : i32
    %c0_i32_1 = arith.constant 0 : i32
    return %c0_i32, %c0_i32_0 : i32, i32
  }
  func.func @transform_3(%arg0: i32) -> (i32, i32) {
    %c0_i32 = arith.constant 0 : i32
    %c0_i32_0 = arith.constant 0 : i32
    %c0_i32_1 = arith.constant 0 : i32
    return %c0_i32, %c0_i32_0 : i32, i32
  }
  func.func @transform_4(%arg0: i32) -> (i32, i32) {
    %c0_i32 = arith.constant 0 : i32
    %c0_i32_0 = arith.constant 0 : i32
    %c0_i32_1 = arith.constant 0 : i32
    return %c0_i32, %c0_i32_0 : i32, i32
  }
  func.func @transform_5(%arg0: i32) -> (i32, i32) {
    %c0_i32 = arith.constant 0 : i32
    %c0_i32_0 = arith.constant 0 : i32
    return %arg0, %c0_i32 : i32, i32
  }
}

</mosaic_0001>

<llo_original>
// kernel: img_obs_process.9
$region0: #{img_obs_process.9}
  #allocation0 [shape = 'u32[]', space=smem, size = 0x4, offset = 0x4, fixed_abs, tag = 'smem constant byte address 0x4 - core index']
  #allocation1 [shape = 'u32[144,128]{1,0:T(1,128)}', space=vmem, size = 0x12000, scoped, tag = 'internal scratch']
  %s0 = inlined_call_operand.vmem [shape: bf16[8,256], index: 0, kind: input, shape index: {}]
  %s1 = inlined_call_operand.vmem [shape: bf16[9,8,8], index: 1, kind: input, shape index: {}]
  %s2 = inlined_call_operand.vmem [shape: f32[8,1], index: 2, kind: input, shape index: {}]
  %s3 = inlined_call_operand.vmem [shape: f32[9,1,128], index: 3, kind: input, shape index: {}]
  %s4 = inlined_call_operand.vmem [shape: bf16[8,256], index: 4, kind: input, shape index: {}]
  %s5 = inlined_call_operand.vmem [shape: bf16[8,256], index: 5, kind: output, shape index: {}]
  %s6 = sld [smem:[#allocation0]]
  $region53: #{img_obs_process.9} parent=0
    _
  %s8 = ssub.s32 1, %s6
  %s9 = scalar_select 0, %s8, %s6
  loop: start=0, step=1, limit=4
  $region2: #{img_obs_process.9} parent=0 // loop_pre_header
    _
  $region3: #{img_obs_process.9} parent=0 // loop_header
    %s11 = sphi 0, %s15
    %p12 = scmp.ge.s32.totalorder %s11, 4
    %s21 = sphi 0, %s23
    %s24 = sphi 0, %s21
    %s25 = sphi 0, %s24
    %s41 = sphi 0, %s25
    %s45 = sphi 0, %s45
    %s47 = sphi 0, %s45
    %s48 = sphi 0, %s47
    %s62 = sphi 0, %s48
    %s66 = sphi 0, %s66
    %s68 = sphi 0, %s66
    %s69 = sphi 0, %s68
    %s83 = sphi 0, %s69
    %s87 = sphi 0, %s87
    %s89 = sphi 0, %s87
    %s90 = sphi 0, %s89
    %s104 = sphi 0, %s90
    %s110 = sphi 0, %s112
    %s113 = sphi 0, %s110
    %s114 = sphi 0, %s113
    %s130 = sphi 0, %s114
    %s136 = sphi 0, %s138
    %s139 = sphi 0, %s136
    %s140 = sphi 0, %s139
    %s156 = sphi 0, %s140
  $region4: #{img_obs_process.9} parent=0 // loop_header_branch
    %14 = sbr.rel (%p12) target = $region8
  $region5: #{img_obs_process.9} parent=0 // loop_body
    %s16 = ssub.s32 %s11, 1
    %s17 = ssub.s32 %s11, 2
    %s18 = sadd.s32 %s11, 1
    %s19 = ssub.s32 %s11, %s18
    %p20 = scmp.eq.s32.totalorder %s19, 0
    %s22 = sadd.s32 %s21, 1
    %s23 = scalar_select %p20, %s21, %s22
    %p26 = pneg %p20
    %p27 = scmp.eq.s32.totalorder %s11, 1
    %p28 = por %p26, %p27
    %p29 = scmp.ne.s32.totalorder %s21, %s24
    %p30 = scmp.eq.s32.totalorder %s11, 0
    %p31 = por %p29, %p30
    %p32 = scmp.ne.s32.totalorder %s21, %s24
    %p33 = scmp.eq.s32.totalorder %s16, 1
    %p34 = por %p32, %p33
    %p35 = scmp.ne.s32.totalorder %s24, %s25
    %p36 = scmp.eq.s32.totalorder %s16, 0
    %p37 = por %p35, %p36
    %p38 = scmp.ne.s32.totalorder %s24, %s25
    %p39 = scmp.eq.s32.totalorder %s17, 1
    %p40 = por %p38, %p39
    %p42 = scmp.ne.s32.totalorder %s25, %s41
    %p43 = scmp.eq.s32.totalorder %s17, 0
    %p44 = por %p42, %p43
    %s46 = sadd.s32 %s45, 1
    %p49 = scmp.eq.s32.totalorder %s11, 1
    %p50 = scmp.ne.s32.totalorder %s45, %s47
    %p51 = scmp.eq.s32.totalorder %s11, 0
    %p52 = por %p50, %p51
    %p53 = scmp.ne.s32.totalorder %s45, %s47
    %p54 = scmp.eq.s32.totalorder %s16, 1
    %p55 = por %p53, %p54
    %p56 = scmp.ne.s32.totalorder %s47, %s48
    %p57 = scmp.eq.s32.totalorder %s16, 0
    %p58 = por %p56, %p57
    %p59 = scmp.ne.s32.totalorder %s47, %s48
    %p60 = scmp.eq.s32.totalorder %s17, 1
    %p61 = por %p59, %p60
    %p63 = scmp.ne.s32.totalorder %s48, %s62
    %p64 = scmp.eq.s32.totalorder %s17, 0
    %p65 = por %p63, %p64
    %s67 = sadd.s32 %s66, 1
    %p70 = scmp.eq.s32.totalorder %s11, 1
    %p71 = scmp.ne.s32.totalorder %s66, %s68
    %p72 = scmp.eq.s32.totalorder %s11, 0
    %p73 = por %p71, %p72
    %p74 = scmp.ne.s32.totalorder %s66, %s68
    %p75 = scmp.eq.s32.totalorder %s16, 1
    %p76 = por %p74, %p75
    %p77 = scmp.ne.s32.totalorder %s68, %s69
    %p78 = scmp.eq.s32.totalorder %s16, 0
    %p79 = por %p77, %p78
    %p80 = scmp.ne.s32.totalorder %s68, %s69
    %p81 = scmp.eq.s32.totalorder %s17, 1
    %p82 = por %p80, %p81
    %p84 = scmp.ne.s32.totalorder %s69, %s83
    %p85 = scmp.eq.s32.totalorder %s17, 0
    %p86 = por %p84, %p85
    %s88 = sadd.s32 %s87, 1
    %p91 = scmp.eq.s32.totalorder %s11, 1
    %p92 = scmp.ne.s32.totalorder %s87, %s89
    %p93 = scmp.eq.s32.totalorder %s11, 0
    %p94 = por %p92, %p93
    %p95 = scmp.ne.s32.totalorder %s87, %s89
    %p96 = scmp.eq.s32.totalorder %s16, 1
    %p97 = por %p95, %p96
    %p98 = scmp.ne.s32.totalorder %s89, %s90
    %p99 = scmp.eq.s32.totalorder %s16, 0
    %p100 = por %p98, %p99
    %p101 = scmp.ne.s32.totalorder %s89, %s90
    %p102 = scmp.eq.s32.totalorder %s17, 1
    %p103 = por %p101, %p102
    %p105 = scmp.ne.s32.totalorder %s90, %s104
    %p106 = scmp.eq.s32.totalorder %s17, 0
    %p107 = por %p105, %p106
    %s108 = ssub.s32 %s11, %s18
    %p109 = scmp.eq.s32.totalorder %s108, 0
    %s111 = sadd.s32 %s110, 1
    %s112 = scalar_select %p109, %s110, %s111
    %p115 = pneg %p109
    %p116 = scmp.eq.s32.totalorder %s11, 1
    %p117 = por %p115, %p116
    %p118 = scmp.ne.s32.totalorder %s110, %s113
    %p119 = scmp.eq.s32.totalorder %s11, 0
    %p120 = por %p118, %p119
    %p121 = scmp.ne.s32.totalorder %s110, %s113
    %p122 = scmp.eq.s32.totalorder %s16, 1
    %p123 = por %p121, %p122
    %p124 = scmp.ne.s32.totalorder %s113, %s114
    %p125 = scmp.eq.s32.totalorder %s16, 0
    %p126 = por %p124, %p125
    %p127 = scmp.ne.s32.totalorder %s113, %s114
    %p128 = scmp.eq.s32.totalorder %s17, 1
    %p129 = por %p127, %p128
    %p131 = scmp.ne.s32.totalorder %s114, %s130
    %p132 = scmp.eq.s32.totalorder %s17, 0
    %p133 = por %p131, %p132
    %s134 = ssub.s32 %s11, %s18
    %p135 = scmp.eq.s32.totalorder %s134, 0
    %s137 = sadd.s32 %s136, 1
    %s138 = scalar_select %p135, %s136, %s137
    %p141 = pneg %p135
    %p142 = scmp.eq.s32.totalorder %s11, 1
    %p143 = por %p141, %p142
    %p144 = scmp.ne.s32.totalorder %s136, %s139
    %p145 = scmp.eq.s32.totalorder %s11, 0
    %p146 = por %p144, %p145
    %p147 = scmp.ne.s32.totalorder %s136, %s139
    %p148 = scmp.eq.s32.totalorder %s16, 1
    %p149 = por %p147, %p148
    %p150 = scmp.ne.s32.totalorder %s139, %s140
    %p151 = scmp.eq.s32.totalorder %s16, 0
    %p152 = por %p150, %p151
    %p153 = scmp.ne.s32.totalorder %s139, %s140
    %p154 = scmp.eq.s32.totalorder %s17, 1
    %p155 = por %p153, %p154
    %p157 = scmp.ne.s32.totalorder %s140, %s156
    %p158 = scmp.eq.s32.totalorder %s17, 0
    %p159 = por %p157, %p158
    %p160 = scmp.le.s32.totalorder 1, %s11
    %p161 = scmp.lt.s32.totalorder %s11, 3
    %p162 = pnand %p160, %p161
    %p163 = pneg %p162
    // Predicated region
    $region9: #{img_obs_process.9} parent=5 // pred_check
      _
    $region10: #{img_obs_process.9} parent=5 // pred_check_branch
      %165 = sbr.rel (%p162) target = $region12
    $region11: #{img_obs_process.9} parent=5 // pred_region
      %s166 = ssub.s32 %s11, 1
      // Predicated region
      $region13: #{img_obs_process.9} parent=11 // pred_check
        %p167 = pneg %p58
      $region14: #{img_obs_process.9} parent=11 // pred_check_branch
        %169 = sbr.rel (%p167) target = $region16
      $region15: #{img_obs_process.9} parent=11 // pred_region
        _
      $region16: #{img_obs_process.9} parent=11 // pred_fallthru
        _
      // Predicated region
      $region17: #{img_obs_process.9} parent=11 // pred_check
        %p170 = pneg %p79
      $region18: #{img_obs_process.9} parent=11 // pred_check_branch
        %172 = sbr.rel (%p170) target = $region20
      $region19: #{img_obs_process.9} parent=11 // pred_region
        _
      $region20: #{img_obs_process.9} parent=11 // pred_fallthru
        _
      // Predicated region
      $region21: #{img_obs_process.9} parent=11 // pred_check
        %p173 = pneg %p100
      $region22: #{img_obs_process.9} parent=11 // pred_check_branch
        %175 = sbr.rel (%p173) target = $region24
      $region23: #{img_obs_process.9} parent=11 // pred_region
        _
      $region24: #{img_obs_process.9} parent=11 // pred_fallthru
        _
    $region12: #{img_obs_process.9} parent=5 // pred_fallthru
      _
    %p176 = scmp.lt.s32.totalorder %s11, 2
    // Predicated region
    $region25: #{img_obs_process.9} parent=5 // pred_check
      %p177 = pneg %p176
    $region26: #{img_obs_process.9} parent=5 // pred_check_branch
      %179 = sbr.rel (%p177) target = $region28
    $region27: #{img_obs_process.9} parent=5 // pred_region
      // Predicated region
      $region29: #{img_obs_process.9} parent=27 // pred_check
        %p180 = pneg %p31
      $region30: #{img_obs_process.9} parent=27 // pred_check_branch
        %182 = sbr.rel (%p180) target = $region32
      $region31: #{img_obs_process.9} parent=27 // pred_region
        %p183 = scmp.lt.s32.totalorder %s11, 1
        %s184 = scalar_select %p183, %s11, 1
        %s185 = smul.addr %s184, 4
        %s186 = scalar_lea.vmem %s0, %s185
      $region32: #{img_obs_process.9} parent=27 // pred_fallthru
        _
      // Predicated region
      $region33: #{img_obs_process.9} parent=27 // pred_check
        %p187 = pneg %p120
      $region34: #{img_obs_process.9} parent=27 // pred_check_branch
        %189 = sbr.rel (%p187) target = $region36
      $region35: #{img_obs_process.9} parent=27 // pred_region
        %p190 = scmp.lt.s32.totalorder %s11, 1
        %s191 = scalar_select %p190, %s11, 1
        %s192 = smul.addr %s191, 4
        %s193 = scalar_lea.vmem %s4, %s192
      $region36: #{img_obs_process.9} parent=27 // pred_fallthru
        _
    $region28: #{img_obs_process.9} parent=5 // pred_fallthru
      _
    %p194 = scmp.le.s32.totalorder 1, %s11
    %p195 = scmp.lt.s32.totalorder %s11, 3
    %p196 = pnand %p194, %p195
    %p197 = pneg %p196
    // Predicated region
    $region37: #{img_obs_process.9} parent=5 // pred_check
      _
    $region38: #{img_obs_process.9} parent=5 // pred_check_branch
      %199 = sbr.rel (%p196) target = $region40
    $region39: #{img_obs_process.9} parent=5 // pred_region
      %s200 = ssub.s32 %s11, 1
      %p201 = scmp.lt.s32.totalorder %s16, 1
      %s202 = scalar_select %p201, %s16, 1
      %s203 = smul.addr %s202, 4
      %s204 = scalar_lea.vmem %s0, %s203
      %p205 = pneg %p37
      %p206 = pneg %p34
      %p207 = pneg %p58
      %p208 = pneg %p55
      %p209 = pneg %p79
      %p210 = pneg %p76
      %p211 = pneg %p100
      %p212 = pneg %p97
      %p213 = scmp.lt.s32.totalorder %s16, 1
      %s214 = scalar_select %p213, %s16, 1
      %s215 = smul.addr %s214, 4
      %s216 = scalar_lea.vmem %s4, %s215
      %p217 = pneg %p126
      %p218 = pneg %p123
      %p219 = pneg %p152
      %p220 = pneg %p149
      %p221 = scmp.lt.s32.totalorder %s16, 1
      %s222 = scalar_select %p221, %s16, 1
      %s223 = smul.addr %s222, 4
      %s224 = scalar_lea.vmem %s5, %s223
      %p225 = scmp.lt.s32.totalorder %s16, 1
      %s226 = scalar_select %p225, %s16, 1
      %s227 = smul.addr %s226, 4
      %s228 = scalar_lea.vmem %s0, %s227
      %p229 = scmp.lt.s32.totalorder %s16, 1
      %s230 = scalar_select %p229, %s16, 1
      %s231 = smul.addr %s230, 4
      %s232 = scalar_lea.vmem %s4, %s231
      %p233 = scmp.lt.s32.totalorder %s16, 1
      %s234 = scalar_select %p233, %s16, 1
      %s235 = smul.addr %s234, 4
      %s236 = scalar_lea.vmem %s5, %s235
      %v238 = vld [vmem:[%s228] sm:$0xf]
      %v239 = vunpack.c.l.bf16 %v238
      %240 = vrot.lane.b32.xlu0 %v239, 9
      %v241 = vpop.permute.xlu0 %240
      %v242 = vld [vmem:[%s3] sm:$0x1]
      %v244 = vlaneseq
      %v245 = vshrl.u32 %v244, 7
      %v246 = vsub.s32 0, %v245
      %v247 = vrot.slane %v242, %v246
      %v249 = vmul.f32 %v241, %v247
      %v250 = vpack.c.bf16 %v249, %v249
      %v251 = vld [vmem:[%s1] sm:$0xf]
      %252 = vrot.lane.b32.xlu0 %v239, 8
      %v253 = vpop.permute.xlu0 %252
      %s254 = scalar_lea.vmem %s3, 1
      %v255 = vld [vmem:[%s254] sm:$0x1]
      %v257 = vlaneseq
      %v258 = vshrl.u32 %v257, 7
      %v259 = vsub.s32 0, %v258
      %v260 = vrot.slane %v255, %v259
      %v262 = vmul.f32 %v253, %v260
      %v263 = vpack.c.bf16 %v262, %v262
      %s264 = scalar_lea.vmem %s1, 4
      %v265 = vld [vmem:[%s264] sm:$0xf]
      %vm266 = vcmask 64512
      %v268 = vsel %vm266, %v265, 0
      %vm270 = vcmask 1043456
      %v272 = vsel %vm270, %v263, 0
      %274 = vmatprep.subr.bf16.mxu0 0
      %275 = vmatpush1.bf16.msra.mxu0 %v272
      %276 = vmatprep.subr.bf16.mxu0 0
      %277 = vmatpush1.bf16.msra.mxu0 0
      %278 = vmatprep.subr.bf16.mxu0 0
      %279 = vmatpush1.bf16.msra.mxu0 0
      %280 = vmatprep.subr.bf16.mxu0 0
      %281 = vmatpush1.bf16.msra.mxu0 0
      %282 = vmatprep.subr.bf16.mxu0 0
      %283 = vmatpush1.bf16.msra.mxu0 0
      %284 = vmatprep.subr.bf16.mxu0 0
      %285 = vmatpush1.bf16.msra.mxu0 0
      %286 = vmatprep.subr.bf16.mxu0 0
      %287 = vmatpush1.bf16.msra.mxu0 0
      %288 = vmatprep.subr.bf16.mxu0 0
      %289 = vmatpush1.bf16.msra.mxu0 0
      %290 = vmatprep.subr.bf16.mxu0 0
      %291 = vmatpush1.bf16.msra.mxu0 0
      %292 = vmatprep.subr.bf16.mxu0 0
      %293 = vmatpush1.bf16.msra.mxu0 0
      %294 = vmatprep.subr.bf16.mxu0 0
      %295 = vmatpush1.bf16.msra.mxu0 0
      %296 = vmatprep.subr.bf16.mxu0 0
      %297 = vmatpush1.bf16.msra.mxu0 0
      %298 = vmatprep.subr.bf16.mxu0 0
      %299 = vmatpush1.bf16.msra.mxu0 0
      %300 = vmatprep.subr.bf16.mxu0 0
      %301 = vmatpush1.bf16.msra.mxu0 0
      %302 = vmatprep.subr.bf16.mxu0 0
      %303 = vmatpush1.bf16.msra.mxu0 0
      %304 = vmatprep.subr.bf16.mxu0 0
      %305 = vmatpush1.bf16.msra.mxu0 0
      %306 = vmatprep.mubr.bf16.mxu0 0
      %307 = vmatmul.mubr.bf16.gmra.mrb[0].mxu0 %v268
      %v308 = vpop.f32.mrb[0].mxu0
      %v309 = vadd.f32 0.0, %v308
      %v310 = vpop.f32.mrb[0].mxu0
      %v311 = vpop.f32.mrb[0].mxu0
      %v312 = vpop.f32.mrb[0].mxu0
      %313 = vdwg.mxu0
      %v315 = vsel %vm266, %v251, 0
      %v318 = vsel %vm270, %v250, 0
      %320 = vmatprep.subr.bf16.mxu0 0
      %321 = vmatpush1.bf16.msra.mxu0 %v318
      %322 = vmatprep.subr.bf16.mxu0 0
      %323 = vmatpush1.bf16.msra.mxu0 0
      %324 = vmatprep.subr.bf16.mxu0 0
      %325 = vmatpush1.bf16.msra.mxu0 0
      %326 = vmatprep.subr.bf16.mxu0 0
      %327 = vmatpush1.bf16.msra.mxu0 0
      %328 = vmatprep.subr.bf16.mxu0 0
      %329 = vmatpush1.bf16.msra.mxu0 0
      %330 = vmatprep.subr.bf16.mxu0 0
      %331 = vmatpush1.bf16.msra.mxu0 0
      %332 = vmatprep.subr.bf16.mxu0 0
      %333 = vmatpush1.bf16.msra.mxu0 0
      %334 = vmatprep.subr.bf16.mxu0 0
      %335 = vmatpush1.bf16.msra.mxu0 0
      %336 = vmatprep.subr.bf16.mxu0 0
      %337 = vmatpush1.bf16.msra.mxu0 0
      %338 = vmatprep.subr.bf16.mxu0 0
      %339 = vmatpush1.bf16.msra.mxu0 0
      %340 = vmatprep.subr.bf16.mxu0 0
      %341 = vmatpush1.bf16.msra.mxu0 0
      %342 = vmatprep.subr.bf16.mxu0 0
      %343 = vmatpush1.bf16.msra.mxu0 0
      %344 = vmatprep.subr.bf16.mxu0 0
      %345 = vmatpush1.bf16.msra.mxu0 0
      %346 = vmatprep.subr.bf16.mxu0 0
      %347 = vmatpush1.bf16.msra.mxu0 0
      %348 = vmatprep.subr.bf16.mxu0 0
      %349 = vmatpush1.bf16.msra.mxu0 0
      %350 = vmatprep.subr.bf16.mxu0 0
      %351 = vmatpush1.bf16.msra.mxu0 0
      %352 = vmatprep.mubr.bf16.mxu0 0
      %353 = vmatmul.mubr.bf16.gmra.mrb[0].mxu0 %v315
      %v354 = vpop.f32.mrb[0].mxu0
      %v355 = vadd.f32 %v309, %v354
      %v356 = vpop.f32.mrb[0].mxu0
      %v357 = vpop.f32.mrb[0].mxu0
      %v358 = vpop.f32.mrb[0].mxu0
      %359 = vdwg.mxu0
      %360 = vrot.lane.b32.xlu0 %v239, 7
      %v361 = vpop.permute.xlu0 %360
      %s362 = scalar_lea.vmem %s3, 2
      %v363 = vld [vmem:[%s362] sm:$0x1]
      %v365 = vlaneseq
      %v366 = vshrl.u32 %v365, 7
      %v367 = vsub.s32 0, %v366
      %v368 = vrot.slane %v363, %v367
      %v370 = vmul.f32 %v361, %v368
      %v371 = vpack.c.bf16 %v370, %v370
      %s372 = scalar_lea.vmem %s1, 8
      %v373 = vld [vmem:[%s372] sm:$0xf]
      %v375 = vsel %vm266, %v373, 0
      %v378 = vsel %vm270, %v371, 0
      %380 = vmatprep.subr.bf16.mxu0 0
      %381 = vmatpush1.bf16.msra.mxu0 %v378
      %382 = vmatprep.subr.bf16.mxu0 0
      %383 = vmatpush1.bf16.msra.mxu0 0
      %384 = vmatprep.subr.bf16.mxu0 0
      %385 = vmatpush1.bf16.msra.mxu0 0
      %386 = vmatprep.subr.bf16.mxu0 0
      %387 = vmatpush1.bf16.msra.mxu0 0
      %388 = vmatprep.subr.bf16.mxu0 0
      %389 = vmatpush1.bf16.msra.mxu0 0
      %390 = vmatprep.subr.bf16.mxu0 0
      %391 = vmatpush1.bf16.msra.mxu0 0
      %392 = vmatprep.subr.bf16.mxu0 0
      %393 = vmatpush1.bf16.msra.mxu0 0
      %394 = vmatprep.subr.bf16.mxu0 0
      %395 = vmatpush1.bf16.msra.mxu0 0
      %396 = vmatprep.subr.bf16.mxu0 0
      %397 = vmatpush1.bf16.msra.mxu0 0
      %398 = vmatprep.subr.bf16.mxu0 0
      %399 = vmatpush1.bf16.msra.mxu0 0
      %400 = vmatprep.subr.bf16.mxu0 0
      %401 = vmatpush1.bf16.msra.mxu0 0
      %402 = vmatprep.subr.bf16.mxu0 0
      %403 = vmatpush1.bf16.msra.mxu0 0
      %404 = vmatprep.subr.bf16.mxu0 0
      %405 = vmatpush1.bf16.msra.mxu0 0
      %406 = vmatprep.subr.bf16.mxu0 0
      %407 = vmatpush1.bf16.msra.mxu0 0
      %408 = vmatprep.subr.bf16.mxu0 0
      %409 = vmatpush1.bf16.msra.mxu0 0
      %410 = vmatprep.subr.bf16.mxu0 0
      %411 = vmatpush1.bf16.msra.mxu0 0
      %412 = vmatprep.mubr.bf16.mxu0 0
      %413 = vmatmul.mubr.bf16.gmra.mrb[0].mxu0 %v375
      %v414 = vpop.f32.mrb[0].mxu0
      %v415 = vadd.f32 0.0, %v414
      %v416 = vpop.f32.mrb[0].mxu0
      %v417 = vpop.f32.mrb[0].mxu0
      %v418 = vpop.f32.mrb[0].mxu0
      %419 = vdwg.mxu0
      %v420 = vadd.f32 %v355, %v415
      %421 = vrot.lane.b32.xlu0 %v239, 1
      %v422 = vpop.permute.xlu0 %421
      %s423 = scalar_lea.vmem %s3, 3
      %v424 = vld [vmem:[%s423] sm:$0x1]
      %v426 = vlaneseq
      %v427 = vshrl.u32 %v426, 7
      %v428 = vsub.s32 0, %v427
      %v429 = vrot.slane %v424, %v428
      %v431 = vmul.f32 %v422, %v429
      %v432 = vpack.c.bf16 %v431, %v431
      %s433 = scalar_lea.vmem %s1, 12
      %v434 = vld [vmem:[%s433] sm:$0xf]
      %v436 = vsel %vm266, %v434, 0
      %v439 = vsel %vm270, %v432, 0
      %441 = vmatprep.subr.bf16.mxu0 0
      %442 = vmatpush1.bf16.msra.mxu0 %v439
      %443 = vmatprep.subr.bf16.mxu0 0
      %444 = vmatpush1.bf16.msra.mxu0 0
      %445 = vmatprep.subr.bf16.mxu0 0
      %446 = vmatpush1.bf16.msra.mxu0 0
      %447 = vmatprep.subr.bf16.mxu0 0
      %448 = vmatpush1.bf16.msra.mxu0 0
      %449 = vmatprep.subr.bf16.mxu0 0
      %450 = vmatpush1.bf16.msra.mxu0 0
      %451 = vmatprep.subr.bf16.mxu0 0
      %452 = vmatpush1.bf16.msra.mxu0 0
      %453 = vmatprep.subr.bf16.mxu0 0
      %454 = vmatpush1.bf16.msra.mxu0 0
      %455 = vmatprep.subr.bf16.mxu0 0
      %456 = vmatpush1.bf16.msra.mxu0 0
      %457 = vmatprep.subr.bf16.mxu0 0
      %458 = vmatpush1.bf16.msra.mxu0 0
      %459 = vmatprep.subr.bf16.mxu0 0
      %460 = vmatpush1.bf16.msra.mxu0 0
      %461 = vmatprep.subr.bf16.mxu0 0
      %462 = vmatpush1.bf16.msra.mxu0 0
      %463 = vmatprep.subr.bf16.mxu0 0
      %464 = vmatpush1.bf16.msra.mxu0 0
      %465 = vmatprep.subr.bf16.mxu0 0
      %466 = vmatpush1.bf16.msra.mxu0 0
      %467 = vmatprep.subr.bf16.mxu0 0
      %468 = vmatpush1.bf16.msra.mxu0 0
      %469 = vmatprep.subr.bf16.mxu0 0
      %470 = vmatpush1.bf16.msra.mxu0 0
      %471 = vmatprep.subr.bf16.mxu0 0
      %472 = vmatpush1.bf16.msra.mxu0 0
      %473 = vmatprep.mubr.bf16.mxu0 0
      %474 = vmatmul.mubr.bf16.gmra.mrb[0].mxu0 %v436
      %v475 = vpop.f32.mrb[0].mxu0
      %v476 = vadd.f32 0.0, %v475
      %v477 = vpop.f32.mrb[0].mxu0
      %v478 = vpop.f32.mrb[0].mxu0
      %v479 = vpop.f32.mrb[0].mxu0
      %480 = vdwg.mxu0
      %v481 = vadd.f32 %v420, %v476
      %s482 = scalar_lea.vmem %s3, 4
      %v483 = vld [vmem:[%s482] sm:$0x1]
      %v485 = vlaneseq
      %v486 = vshrl.u32 %v485, 7
      %v487 = vsub.s32 0, %v486
      %v488 = vrot.slane %v483, %v487
      %v490 = vmul.f32 %v239, %v488
      %v491 = vpack.c.bf16 %v490, %v490
      %s492 = scalar_lea.vmem %s1, 16
      %v493 = vld [vmem:[%s492] sm:$0xf]
      %v495 = vsel %vm266, %v493, 0
      %v498 = vsel %vm270, %v491, 0
      %500 = vmatprep.subr.bf16.mxu0 0
      %501 = vmatpush1.bf16.msra.mxu0 %v498
      %502 = vmatprep.subr.bf16.mxu0 0
      %503 = vmatpush1.bf16.msra.mxu0 0
      %504 = vmatprep.subr.bf16.mxu0 0
      %505 = vmatpush1.bf16.msra.mxu0 0
      %506 = vmatprep.subr.bf16.mxu0 0
      %507 = vmatpush1.bf16.msra.mxu0 0
      %508 = vmatprep.subr.bf16.mxu0 0
      %509 = vmatpush1.bf16.msra.mxu0 0
      %510 = vmatprep.subr.bf16.mxu0 0
      %511 = vmatpush1.bf16.msra.mxu0 0
      %512 = vmatprep.subr.bf16.mxu0 0
      %513 = vmatpush1.bf16.msra.mxu0 0
      %514 = vmatprep.subr.bf16.mxu0 0
      %515 = vmatpush1.bf16.msra.mxu0 0
      %516 = vmatprep.subr.bf16.mxu0 0
      %517 = vmatpush1.bf16.msra.mxu0 0
      %518 = vmatprep.subr.bf16.mxu0 0
      %519 = vmatpush1.bf16.msra.mxu0 0
      %520 = vmatprep.subr.bf16.mxu0 0
      %521 = vmatpush1.bf16.msra.mxu0 0
      %522 = vmatprep.subr.bf16.mxu0 0
      %523 = vmatpush1.bf16.msra.mxu0 0
      %524 = vmatprep.subr.bf16.mxu0 0
      %525 = vmatpush1.bf16.msra.mxu0 0
      %526 = vmatprep.subr.bf16.mxu0 0
      %527 = vmatpush1.bf16.msra.mxu0 0
      %528 = vmatprep.subr.bf16.mxu0 0
      %529 = vmatpush1.bf16.msra.mxu0 0
      %530 = vmatprep.subr.bf16.mxu0 0
      %531 = vmatpush1.bf16.msra.mxu0 0
      %532 = vmatprep.mubr.bf16.mxu0 0
      %533 = vmatmul.mubr.bf16.gmra.mrb[0].mxu0 %v495
      %v534 = vpop.f32.mrb[0].mxu0
      %v535 = vadd.f32 0.0, %v534
      %v536 = vpop.f32.mrb[0].mxu0
      %v537 = vpop.f32.mrb[0].mxu0
      %v538 = vpop.f32.mrb[0].mxu0
      %539 = vdwg.mxu0
      %v540 = vadd.f32 %v481, %v535
      %541 = vrot.lane.b32.xlu0 %v239, 127
      %v542 = vpop.permute.xlu0 %541
      %s543 = scalar_lea.vmem %s3, 5
      %v544 = vld [vmem:[%s543] sm:$0x1]
      %v546 = vlaneseq
      %v547 = vshrl.u32 %v546, 7
      %v548 = vsub.s32 0, %v547
      %v549 = vrot.slane %v544, %v548
      %v551 = vmul.f32 %v542, %v549
      %v552 = vpack.c.bf16 %v551, %v551
      %s553 = scalar_lea.vmem %s1, 20
      %v554 = vld [vmem:[%s553] sm:$0xf]
      %v556 = vsel %vm266, %v554, 0
      %v559 = vsel %vm270, %v552, 0
      %561 = vmatprep.subr.bf16.mxu0 0
      %562 = vmatpush1.bf16.msra.mxu0 %v559
      %563 = vmatprep.subr.bf16.mxu0 0
      %564 = vmatpush1.bf16.msra.mxu0 0
      %565 = vmatprep.subr.bf16.mxu0 0
      %566 = vmatpush1.bf16.msra.mxu0 0
      %567 = vmatprep.subr.bf16.mxu0 0
      %568 = vmatpush1.bf16.msra.mxu0 0
      %569 = vmatprep.subr.bf16.mxu0 0
      %570 = vmatpush1.bf16.msra.mxu0 0
      %571 = vmatprep.subr.bf16.mxu0 0
      %572 = vmatpush1.bf16.msra.mxu0 0
      %573 = vmatprep.subr.bf16.mxu0 0
      %574 = vmatpush1.bf16.msra.mxu0 0
      %575 = vmatprep.subr.bf16.mxu0 0
      %576 = vmatpush1.bf16.msra.mxu0 0
      %577 = vmatprep.subr.bf16.mxu0 0
      %578 = vmatpush1.bf16.msra.mxu0 0
      %579 = vmatprep.subr.bf16.mxu0 0
      %580 = vmatpush1.bf16.msra.mxu0 0
      %581 = vmatprep.subr.bf16.mxu0 0
      %582 = vmatpush1.bf16.msra.mxu0 0
      %583 = vmatprep.subr.bf16.mxu0 0
      %584 = vmatpush1.bf16.msra.mxu0 0
      %585 = vmatprep.subr.bf16.mxu0 0
      %586 = vmatpush1.bf16.msra.mxu0 0
      %587 = vmatprep.subr.bf16.mxu0 0
      %588 = vmatpush1.bf16.msra.mxu0 0
      %589 = vmatprep.subr.bf16.mxu0 0
      %590 = vmatpush1.bf16.msra.mxu0 0
      %591 = vmatprep.subr.bf16.mxu0 0
      %592 = vmatpush1.bf16.msra.mxu0 0
      %593 = vmatprep.mubr.bf16.mxu0 0
      %594 = vmatmul.mubr.bf16.gmra.mrb[0].mxu0 %v556
      %v595 = vpop.f32.mrb[0].mxu0
      %v596 = vadd.f32 0.0, %v595
      %v597 = vpop.f32.mrb[0].mxu0
      %v598 = vpop.f32.mrb[0].mxu0
      %v599 = vpop.f32.mrb[0].mxu0
      %600 = vdwg.mxu0
      %v601 = vadd.f32 %v540, %v596
      %602 = vrot.lane.b32.xlu0 %v239, 121
      %v603 = vpop.permute.xlu0 %602
      %s604 = scalar_lea.vmem %s3, 6
      %v605 = vld [vmem:[%s604] sm:$0x1]
      %v607 = vlaneseq
      %v608 = vshrl.u32 %v607, 7
      %v609 = vsub.s32 0, %v608
      %v610 = vrot.slane %v605, %v609
      %v612 = vmul.f32 %v603, %v610
      %v613 = vpack.c.bf16 %v612, %v612
      %s614 = scalar_lea.vmem %s1, 24
      %v615 = vld [vmem:[%s614] sm:$0xf]
      %v617 = vsel %vm266, %v615, 0
      %v620 = vsel %vm270, %v613, 0
      %622 = vmatprep.subr.bf16.mxu0 0
      %623 = vmatpush1.bf16.msra.mxu0 %v620
      %624 = vmatprep.subr.bf16.mxu0 0
      %625 = vmatpush1.bf16.msra.mxu0 0
      %626 = vmatprep.subr.bf16.mxu0 0
      %627 = vmatpush1.bf16.msra.mxu0 0
      %628 = vmatprep.subr.bf16.mxu0 0
      %629 = vmatpush1.bf16.msra.mxu0 0
      %630 = vmatprep.subr.bf16.mxu0 0
      %631 = vmatpush1.bf16.msra.mxu0 0
      %632 = vmatprep.subr.bf16.mxu0 0
      %633 = vmatpush1.bf16.msra.mxu0 0
      %634 = vmatprep.subr.bf16.mxu0 0
      %635 = vmatpush1.bf16.msra.mxu0 0
      %636 = vmatprep.subr.bf16.mxu0 0
      %637 = vmatpush1.bf16.msra.mxu0 0
      %638 = vmatprep.subr.bf16.mxu0 0
      %639 = vmatpush1.bf16.msra.mxu0 0
      %640 = vmatprep.subr.bf16.mxu0 0
      %641 = vmatpush1.bf16.msra.mxu0 0
      %642 = vmatprep.subr.bf16.mxu0 0
      %643 = vmatpush1.bf16.msra.mxu0 0
      %644 = vmatprep.subr.bf16.mxu0 0
      %645 = vmatpush1.bf16.msra.mxu0 0
      %646 = vmatprep.subr.bf16.mxu0 0
      %647 = vmatpush1.bf16.msra.mxu0 0
      %648 = vmatprep.subr.bf16.mxu0 0
      %649 = vmatpush1.bf16.msra.mxu0 0
      %650 = vmatprep.subr.bf16.mxu0 0
      %651 = vmatpush1.bf16.msra.mxu0 0
      %652 = vmatprep.subr.bf16.mxu0 0
      %653 = vmatpush1.bf16.msra.mxu0 0
      %654 = vmatprep.mubr.bf16.mxu0 0
      %655 = vmatmul.mubr.bf16.gmra.mrb[0].mxu0 %v617
      %v656 = vpop.f32.mrb[0].mxu0
      %v657 = vadd.f32 0.0, %v656
      %v658 = vpop.f32.mrb[0].mxu0
      %v659 = vpop.f32.mrb[0].mxu0
      %v660 = vpop.f32.mrb[0].mxu0
      %661 = vdwg.mxu0
      %v662 = vadd.f32 %v601, %v657
      %663 = vrot.lane.b32.xlu0 %v239, 120
      %v664 = vpop.permute.xlu0 %663
      %s665 = scalar_lea.vmem %s3, 7
      %v666 = vld [vmem:[%s665] sm:$0x1]
      %v668 = vlaneseq
      %v669 = vshrl.u32 %v668, 7
      %v670 = vsub.s32 0, %v669
      %v671 = vrot.slane %v666, %v670
      %v673 = vmul.f32 %v664, %v671
      %v674 = vpack.c.bf16 %v673, %v673
      %s675 = scalar_lea.vmem %s1, 28
      %v676 = vld [vmem:[%s675] sm:$0xf]
      %v678 = vsel %vm266, %v676, 0
      %v681 = vsel %vm270, %v674, 0
      %683 = vmatprep.subr.bf16.mxu0 0
      %684 = vmatpush1.bf16.msra.mxu0 %v681
      %685 = vmatprep.subr.bf16.mxu0 0
      %686 = vmatpush1.bf16.msra.mxu0 0
      %687 = vmatprep.subr.bf16.mxu0 0
      %688 = vmatpush1.bf16.msra.mxu0 0
      %689 = vmatprep.subr.bf16.mxu0 0
      %690 = vmatpush1.bf16.msra.mxu0 0
      %691 = vmatprep.subr.bf16.mxu0 0
      %692 = vmatpush1.bf16.msra.mxu0 0
      %693 = vmatprep.subr.bf16.mxu0 0
      %694 = vmatpush1.bf16.msra.mxu0 0
      %695 = vmatprep.subr.bf16.mxu0 0
      %696 = vmatpush1.bf16.msra.mxu0 0
      %697 = vmatprep.subr.bf16.mxu0 0
      %698 = vmatpush1.bf16.msra.mxu0 0
      %699 = vmatprep.subr.bf16.mxu0 0
      %700 = vmatpush1.bf16.msra.mxu0 0
      %701 = vmatprep.subr.bf16.mxu0 0
      %702 = vmatpush1.bf16.msra.mxu0 0
      %703 = vmatprep.subr.bf16.mxu0 0
      %704 = vmatpush1.bf16.msra.mxu0 0
      %705 = vmatprep.subr.bf16.mxu0 0
      %706 = vmatpush1.bf16.msra.mxu0 0
      %707 = vmatprep.subr.bf16.mxu0 0
      %708 = vmatpush1.bf16.msra.mxu0 0
      %709 = vmatprep.subr.bf16.mxu0 0
      %710 = vmatpush1.bf16.msra.mxu0 0
      %711 = vmatprep.subr.bf16.mxu0 0
      %712 = vmatpush1.bf16.msra.mxu0 0
      %713 = vmatprep.subr.bf16.mxu0 0
      %714 = vmatpush1.bf16.msra.mxu0 0
      %715 = vmatprep.mubr.bf16.mxu0 0
      %716 = vmatmul.mubr.bf16.gmra.mrb[0].mxu0 %v678
      %v717 = vpop.f32.mrb[0].mxu0
      %v718 = vadd.f32 0.0, %v717
      %v719 = vpop.f32.mrb[0].mxu0
      %v720 = vpop.f32.mrb[0].mxu0
      %v721 = vpop.f32.mrb[0].mxu0
      %722 = vdwg.mxu0
      %v723 = vadd.f32 %v662, %v718
      %724 = vrot.lane.b32.xlu0 %v239, 119
      %v725 = vpop.permute.xlu0 %724
      %s726 = scalar_lea.vmem %s3, 8
      %v727 = vld [vmem:[%s726] sm:$0x1]
      %v729 = vlaneseq
      %v730 = vshrl.u32 %v729, 7
      %v731 = vsub.s32 0, %v730
      %v732 = vrot.slane %v727, %v731
      %v734 = vmul.f32 %v725, %v732
      %v735 = vpack.c.bf16 %v734, %v734
      %s736 = scalar_lea.vmem %s1, 32
      %v737 = vld [vmem:[%s736] sm:$0xf]
      %v739 = vsel %vm266, %v737, 0
      %v742 = vsel %vm270, %v735, 0
      %744 = vmatprep.subr.bf16.mxu0 0
      %745 = vmatpush1.bf16.msra.mxu0 %v742
      %746 = vmatprep.subr.bf16.mxu0 0
      %747 = vmatpush1.bf16.msra.mxu0 0
      %748 = vmatprep.subr.bf16.mxu0 0
      %749 = vmatpush1.bf16.msra.mxu0 0
      %750 = vmatprep.subr.bf16.mxu0 0
      %751 = vmatpush1.bf16.msra.mxu0 0
      %752 = vmatprep.subr.bf16.mxu0 0
      %753 = vmatpush1.bf16.msra.mxu0 0
      %754 = vmatprep.subr.bf16.mxu0 0
      %755 = vmatpush1.bf16.msra.mxu0 0
      %756 = vmatprep.subr.bf16.mxu0 0
      %757 = vmatpush1.bf16.msra.mxu0 0
      %758 = vmatprep.subr.bf16.mxu0 0
      %759 = vmatpush1.bf16.msra.mxu0 0
      %760 = vmatprep.subr.bf16.mxu0 0
      %761 = vmatpush1.bf16.msra.mxu0 0
      %762 = vmatprep.subr.bf16.mxu0 0
      %763 = vmatpush1.bf16.msra.mxu0 0
      %764 = vmatprep.subr.bf16.mxu0 0
      %765 = vmatpush1.bf16.msra.mxu0 0
      %766 = vmatprep.subr.bf16.mxu0 0
      %767 = vmatpush1.bf16.msra.mxu0 0
      %768 = vmatprep.subr.bf16.mxu0 0
      %769 = vmatpush1.bf16.msra.mxu0 0
      %770 = vmatprep.subr.bf16.mxu0 0
      %771 = vmatpush1.bf16.msra.mxu0 0
      %772 = vmatprep.subr.bf16.mxu0 0
      %773 = vmatpush1.bf16.msra.mxu0 0
      %774 = vmatprep.subr.bf16.mxu0 0
      %775 = vmatpush1.bf16.msra.mxu0 0
      %776 = vmatprep.mubr.bf16.mxu0 0
      %777 = vmatmul.mubr.bf16.gmra.mrb[0].mxu0 %v739
      %v778 = vpop.f32.mrb[0].mxu0
      %v779 = vadd.f32 0.0, %v778
      %v780 = vpop.f32.mrb[0].mxu0
      %v781 = vpop.f32.mrb[0].mxu0
      %v782 = vpop.f32.mrb[0].mxu0
      %783 = vdwg.mxu0
      %v784 = vadd.f32 %v723, %v779
      %v785 = vld [vmem:[%s2] sm:$0xff]
      %787 = vset.pattern.permute.xlu0 0
      %788 = vperm.xlu0 %787, %v785
      %v789 = vpop.permute.xlu0 %788
      %v791 = vadd.f32 %v784, %v789
      %v792 = vmax.f32 %v791, 0.0
      %v793 = vld [vmem:[%s232] sm:$0xf]
      %v794 = vunpack.c.l.bf16 %v793
      %v795 = vadd.f32 %v792, %v794
      %v796 = vpack.c.bf16 %v795, %v795
      %797 = vst [vmem:[%s236] sm:$0xf] %v796
      %p798 = scmp.lt.s32.totalorder %s16, 1
      %s799 = scalar_select %p798, %s16, 1
      %s800 = smul.addr %s799, 4
      %s801 = scalar_lea.vmem %s5, %s800
      // Predicated region
      $region41: #{img_obs_process.9} parent=39 // pred_check
        %p802 = pneg %p149
      $region42: #{img_obs_process.9} parent=39 // pred_check_branch
        %804 = sbr.rel (%p802) target = $region44
      $region43: #{img_obs_process.9} parent=39 // pred_region
        _
      $region44: #{img_obs_process.9} parent=39 // pred_fallthru
        _
    $region40: #{img_obs_process.9} parent=5 // pred_fallthru
      _
    %p805 = scmp.le.s32.totalorder 2, %s11
    // Predicated region
    $region45: #{img_obs_process.9} parent=5 // pred_check
      %p806 = pneg %p805
    $region46: #{img_obs_process.9} parent=5 // pred_check_branch
      %808 = sbr.rel (%p806) target = $region48
    $region47: #{img_obs_process.9} parent=5 // pred_region
      %s809 = ssub.s32 %s11, 2
      // Predicated region
      $region49: #{img_obs_process.9} parent=47 // pred_check
        %p810 = pneg %p155
      $region50: #{img_obs_process.9} parent=47 // pred_check_branch
        %812 = sbr.rel (%p810) target = $region52
      $region51: #{img_obs_process.9} parent=47 // pred_region
        %p813 = scmp.lt.s32.totalorder %s17, 1
        %s814 = scalar_select %p813, %s17, 1
        %s815 = smul.addr %s814, 4
        %s816 = scalar_lea.vmem %s5, %s815
      $region52: #{img_obs_process.9} parent=47 // pred_fallthru
        _
    $region48: #{img_obs_process.9} parent=5 // pred_fallthru
      _
  $region6: #{img_obs_process.9} parent=0 // loop_footer
    %s15 = sadd.s32 1, %s11
  $region7: #{img_obs_process.9} parent=0 // loop_footer_branch
    %10 = sbr.rel target = $region3
  $region8: #{img_obs_process.9} parent=0 // loop_exit
    _

// kernel: img_obs_process.8
$region0: #{img_obs_process.8}
  #allocation0 [shape = 'u32[]', space=smem, size = 0x4, offset = 0x4, fixed_abs, tag = 'smem constant byte address 0x4 - core index']
  #allocation1 [shape = 'u32[144,128]{1,0:T(1,128)}', space=vmem, size = 0x12000, scoped, tag = 'internal scratch']
  %s0 = inlined_call_operand.vmem [shape: bf16[8,256], index: 0, kind: input, shape index: {}]
  %s1 = inlined_call_operand.vmem [shape: bf16[9,8,8], index: 1, kind: input, shape index: {}]
  %s2 = inlined_call_operand.vmem [shape: f32[8,1], index: 2, kind: input, shape index: {}]
  %s3 = inlined_call_operand.vmem [shape: f32[9,1,128], index: 3, kind: input, shape index: {}]
  %s4 = inlined_call_operand.vmem [shape: bf16[8,256], index: 4, kind: output, shape index: {}]
  %s5 = sld [smem:[#allocation0]]
  $region49: #{img_obs_process.8} parent=0
    _
  %s7 = ssub.s32 1, %s5
  %s8 = scalar_select 0, %s7, %s5
  loop: start=0, step=1, limit=4
  $region2: #{img_obs_process.8} parent=0 // loop_pre_header
    _
  $region3: #{img_obs_process.8} parent=0 // loop_header
    %s10 = sphi 0, %s14
    %p11 = scmp.ge.s32.totalorder %s10, 4
    %s20 = sphi 0, %s22
    %s23 = sphi 0, %s20
    %s24 = sphi 0, %s23
    %s40 = sphi 0, %s24
    %s44 = sphi 0, %s44
    %s46 = sphi 0, %s44
    %s47 = sphi 0, %s46
    %s61 = sphi 0, %s47
    %s65 = sphi 0, %s65
    %s67 = sphi 0, %s65
    %s68 = sphi 0, %s67
    %s82 = sphi 0, %s68
    %s86 = sphi 0, %s86
    %s88 = sphi 0, %s86
    %s89 = sphi 0, %s88
    %s103 = sphi 0, %s89
    %s109 = sphi 0, %s111
    %s112 = sphi 0, %s109
    %s113 = sphi 0, %s112
    %s129 = sphi 0, %s113
  $region4: #{img_obs_process.8} parent=0 // loop_header_branch
    %13 = sbr.rel (%p11) target = $region8
  $region5: #{img_obs_process.8} parent=0 // loop_body
    %s15 = ssub.s32 %s10, 1
    %s16 = ssub.s32 %s10, 2
    %s17 = sadd.s32 %s10, 1
    %s18 = ssub.s32 %s10, %s17
    %p19 = scmp.eq.s32.totalorder %s18, 0
    %s21 = sadd.s32 %s20, 1
    %s22 = scalar_select %p19, %s20, %s21
    %p25 = pneg %p19
    %p26 = scmp.eq.s32.totalorder %s10, 1
    %p27 = por %p25, %p26
    %p28 = scmp.ne.s32.totalorder %s20, %s23
    %p29 = scmp.eq.s32.totalorder %s10, 0
    %p30 = por %p28, %p29
    %p31 = scmp.ne.s32.totalorder %s20, %s23
    %p32 = scmp.eq.s32.totalorder %s15, 1
    %p33 = por %p31, %p32
    %p34 = scmp.ne.s32.totalorder %s23, %s24
    %p35 = scmp.eq.s32.totalorder %s15, 0
    %p36 = por %p34, %p35
    %p37 = scmp.ne.s32.totalorder %s23, %s24
    %p38 = scmp.eq.s32.totalorder %s16, 1
    %p39 = por %p37, %p38
    %p41 = scmp.ne.s32.totalorder %s24, %s40
    %p42 = scmp.eq.s32.totalorder %s16, 0
    %p43 = por %p41, %p42
    %s45 = sadd.s32 %s44, 1
    %p48 = scmp.eq.s32.totalorder %s10, 1
    %p49 = scmp.ne.s32.totalorder %s44, %s46
    %p50 = scmp.eq.s32.totalorder %s10, 0
    %p51 = por %p49, %p50
    %p52 = scmp.ne.s32.totalorder %s44, %s46
    %p53 = scmp.eq.s32.totalorder %s15, 1
    %p54 = por %p52, %p53
    %p55 = scmp.ne.s32.totalorder %s46, %s47
    %p56 = scmp.eq.s32.totalorder %s15, 0
    %p57 = por %p55, %p56
    %p58 = scmp.ne.s32.totalorder %s46, %s47
    %p59 = scmp.eq.s32.totalorder %s16, 1
    %p60 = por %p58, %p59
    %p62 = scmp.ne.s32.totalorder %s47, %s61
    %p63 = scmp.eq.s32.totalorder %s16, 0
    %p64 = por %p62, %p63
    %s66 = sadd.s32 %s65, 1
    %p69 = scmp.eq.s32.totalorder %s10, 1
    %p70 = scmp.ne.s32.totalorder %s65, %s67
    %p71 = scmp.eq.s32.totalorder %s10, 0
    %p72 = por %p70, %p71
    %p73 = scmp.ne.s32.totalorder %s65, %s67
    %p74 = scmp.eq.s32.totalorder %s15, 1
    %p75 = por %p73, %p74
    %p76 = scmp.ne.s32.totalorder %s67, %s68
    %p77 = scmp.eq.s32.totalorder %s15, 0
    %p78 = por %p76, %p77
    %p79 = scmp.ne.s32.totalorder %s67, %s68
    %p80 = scmp.eq.s32.totalorder %s16, 1
    %p81 = por %p79, %p80
    %p83 = scmp.ne.s32.totalorder %s68, %s82
    %p84 = scmp.eq.s32.totalorder %s16, 0
    %p85 = por %p83, %p84
    %s87 = sadd.s32 %s86, 1
    %p90 = scmp.eq.s32.totalorder %s10, 1
    %p91 = scmp.ne.s32.totalorder %s86, %s88
    %p92 = scmp.eq.s32.totalorder %s10, 0
    %p93 = por %p91, %p92
    %p94 = scmp.ne.s32.totalorder %s86, %s88
    %p95 = scmp.eq.s32.totalorder %s15, 1
    %p96 = por %p94, %p95
    %p97 = scmp.ne.s32.totalorder %s88, %s89
    %p98 = scmp.eq.s32.totalorder %s15, 0
    %p99 = por %p97, %p98
    %p100 = scmp.ne.s32.totalorder %s88, %s89
    %p101 = scmp.eq.s32.totalorder %s16, 1
    %p102 = por %p100, %p101
    %p104 = scmp.ne.s32.totalorder %s89, %s103
    %p105 = scmp.eq.s32.totalorder %s16, 0
    %p106 = por %p104, %p105
    %s107 = ssub.s32 %s10, %s17
    %p108 = scmp.eq.s32.totalorder %s107, 0
    %s110 = sadd.s32 %s109, 1
    %s111 = scalar_select %p108, %s109, %s110
    %p114 = pneg %p108
    %p115 = scmp.eq.s32.totalorder %s10, 1
    %p116 = por %p114, %p115
    %p117 = scmp.ne.s32.totalorder %s109, %s112
    %p118 = scmp.eq.s32.totalorder %s10, 0
    %p119 = por %p117, %p118
    %p120 = scmp.ne.s32.totalorder %s109, %s112
    %p121 = scmp.eq.s32.totalorder %s15, 1
    %p122 = por %p120, %p121
    %p123 = scmp.ne.s32.totalorder %s112, %s113
    %p124 = scmp.eq.s32.totalorder %s15, 0
    %p125 = por %p123, %p124
    %p126 = scmp.ne.s32.totalorder %s112, %s113
    %p127 = scmp.eq.s32.totalorder %s16, 1
    %p128 = por %p126, %p127
    %p130 = scmp.ne.s32.totalorder %s113, %s129
    %p131 = scmp.eq.s32.totalorder %s16, 0
    %p132 = por %p130, %p131
    %p133 = scmp.le.s32.totalorder 1, %s10
    %p134 = scmp.lt.s32.totalorder %s10, 3
    %p135 = pnand %p133, %p134
    %p136 = pneg %p135
    // Predicated region
    $region9: #{img_obs_process.8} parent=5 // pred_check
      _
    $region10: #{img_obs_process.8} parent=5 // pred_check_branch
      %138 = sbr.rel (%p135) target = $region12
    $region11: #{img_obs_process.8} parent=5 // pred_region
      %s139 = ssub.s32 %s10, 1
      // Predicated region
      $region13: #{img_obs_process.8} parent=11 // pred_check
        %p140 = pneg %p57
      $region14: #{img_obs_process.8} parent=11 // pred_check_branch
        %142 = sbr.rel (%p140) target = $region16
      $region15: #{img_obs_process.8} parent=11 // pred_region
        _
      $region16: #{img_obs_process.8} parent=11 // pred_fallthru
        _
      // Predicated region
      $region17: #{img_obs_process.8} parent=11 // pred_check
        %p143 = pneg %p78
      $region18: #{img_obs_process.8} parent=11 // pred_check_branch
        %145 = sbr.rel (%p143) target = $region20
      $region19: #{img_obs_process.8} parent=11 // pred_region
        _
      $region20: #{img_obs_process.8} parent=11 // pred_fallthru
        _
      // Predicated region
      $region21: #{img_obs_process.8} parent=11 // pred_check
        %p146 = pneg %p99
      $region22: #{img_obs_process.8} parent=11 // pred_check_branch
        %148 = sbr.rel (%p146) target = $region24
      $region23: #{img_obs_process.8} parent=11 // pred_region
        _
      $region24: #{img_obs_process.8} parent=11 // pred_fallthru
        _
    $region12: #{img_obs_process.8} parent=5 // pred_fallthru
      _
    %p149 = scmp.lt.s32.totalorder %s10, 2
    // Predicated region
    $region25: #{img_obs_process.8} parent=5 // pred_check
      %p150 = pneg %p149
    $region26: #{img_obs_process.8} parent=5 // pred_check_branch
      %152 = sbr.rel (%p150) target = $region28
    $region27: #{img_obs_process.8} parent=5 // pred_region
      // Predicated region
      $region29: #{img_obs_process.8} parent=27 // pred_check
        %p153 = pneg %p30
      $region30: #{img_obs_process.8} parent=27 // pred_check_branch
        %155 = sbr.rel (%p153) target = $region32
      $region31: #{img_obs_process.8} parent=27 // pred_region
        %p156 = scmp.lt.s32.totalorder %s10, 1
        %s157 = scalar_select %p156, %s10, 1
        %s158 = smul.addr %s157, 4
        %s159 = scalar_lea.vmem %s0, %s158
      $region32: #{img_obs_process.8} parent=27 // pred_fallthru
        _
    $region28: #{img_obs_process.8} parent=5 // pred_fallthru
      _
    %p160 = scmp.le.s32.totalorder 1, %s10
    %p161 = scmp.lt.s32.totalorder %s10, 3
    %p162 = pnand %p160, %p161
    %p163 = pneg %p162
    // Predicated region
    $region33: #{img_obs_process.8} parent=5 // pred_check
      _
    $region34: #{img_obs_process.8} parent=5 // pred_check_branch
      %165 = sbr.rel (%p162) target = $region36
    $region35: #{img_obs_process.8} parent=5 // pred_region
      %s166 = ssub.s32 %s10, 1
      %p167 = scmp.lt.s32.totalorder %s15, 1
      %s168 = scalar_select %p167, %s15, 1
      %s169 = smul.addr %s168, 4
      %s170 = scalar_lea.vmem %s0, %s169
      %p171 = pneg %p36
      %p172 = pneg %p33
      %p173 = pneg %p57
      %p174 = pneg %p54
      %p175 = pneg %p78
      %p176 = pneg %p75
      %p177 = pneg %p99
      %p178 = pneg %p96
      %p179 = pneg %p125
      %p180 = pneg %p122
      %p181 = scmp.lt.s32.totalorder %s15, 1
      %s182 = scalar_select %p181, %s15, 1
      %s183 = smul.addr %s182, 4
      %s184 = scalar_lea.vmem %s4, %s183
      %p185 = scmp.lt.s32.totalorder %s15, 1
      %s186 = scalar_select %p185, %s15, 1
      %s187 = smul.addr %s186, 4
      %s188 = scalar_lea.vmem %s0, %s187
      %p189 = scmp.lt.s32.totalorder %s15, 1
      %s190 = scalar_select %p189, %s15, 1
      %s191 = smul.addr %s190, 4
      %s192 = scalar_lea.vmem %s4, %s191
      %v194 = vld [vmem:[%s188] sm:$0xf]
      %v195 = vunpack.c.l.bf16 %v194
      %196 = vrot.lane.b32.xlu0 %v195, 9
      %v197 = vpop.permute.xlu0 %196
      %v198 = vld [vmem:[%s3] sm:$0x1]
      %v200 = vlaneseq
      %v201 = vshrl.u32 %v200, 7
      %v202 = vsub.s32 0, %v201
      %v203 = vrot.slane %v198, %v202
      %v205 = vmul.f32 %v197, %v203
      %v206 = vpack.c.bf16 %v205, %v205
      %v207 = vld [vmem:[%s1] sm:$0xf]
      %208 = vrot.lane.b32.xlu0 %v195, 8
      %v209 = vpop.permute.xlu0 %208
      %s210 = scalar_lea.vmem %s3, 1
      %v211 = vld [vmem:[%s210] sm:$0x1]
      %v213 = vlaneseq
      %v214 = vshrl.u32 %v213, 7
      %v215 = vsub.s32 0, %v214
      %v216 = vrot.slane %v211, %v215
      %v218 = vmul.f32 %v209, %v216
      %v219 = vpack.c.bf16 %v218, %v218
      %s220 = scalar_lea.vmem %s1, 4
      %v221 = vld [vmem:[%s220] sm:$0xf]
      %vm222 = vcmask 64512
      %v224 = vsel %vm222, %v221, 0
      %vm226 = vcmask 1043456
      %v228 = vsel %vm226, %v219, 0
      %230 = vmatprep.subr.bf16.mxu0 0
      %231 = vmatpush1.bf16.msra.mxu0 %v228
      %232 = vmatprep.subr.bf16.mxu0 0
      %233 = vmatpush1.bf16.msra.mxu0 0
      %234 = vmatprep.subr.bf16.mxu0 0
      %235 = vmatpush1.bf16.msra.mxu0 0
      %236 = vmatprep.subr.bf16.mxu0 0
      %237 = vmatpush1.bf16.msra.mxu0 0
      %238 = vmatprep.subr.bf16.mxu0 0
      %239 = vmatpush1.bf16.msra.mxu0 0
      %240 = vmatprep.subr.bf16.mxu0 0
      %241 = vmatpush1.bf16.msra.mxu0 0
      %242 = vmatprep.subr.bf16.mxu0 0
      %243 = vmatpush1.bf16.msra.mxu0 0
      %244 = vmatprep.subr.bf16.mxu0 0
      %245 = vmatpush1.bf16.msra.mxu0 0
      %246 = vmatprep.subr.bf16.mxu0 0
      %247 = vmatpush1.bf16.msra.mxu0 0
      %248 = vmatprep.subr.bf16.mxu0 0
      %249 = vmatpush1.bf16.msra.mxu0 0
      %250 = vmatprep.subr.bf16.mxu0 0
      %251 = vmatpush1.bf16.msra.mxu0 0
      %252 = vmatprep.subr.bf16.mxu0 0
      %253 = vmatpush1.bf16.msra.mxu0 0
      %254 = vmatprep.subr.bf16.mxu0 0
      %255 = vmatpush1.bf16.msra.mxu0 0
      %256 = vmatprep.subr.bf16.mxu0 0
      %257 = vmatpush1.bf16.msra.mxu0 0
      %258 = vmatprep.subr.bf16.mxu0 0
      %259 = vmatpush1.bf16.msra.mxu0 0
      %260 = vmatprep.subr.bf16.mxu0 0
      %261 = vmatpush1.bf16.msra.mxu0 0
      %262 = vmatprep.mubr.bf16.mxu0 0
      %263 = vmatmul.mubr.bf16.gmra.mrb[0].mxu0 %v224
      %v264 = vpop.f32.mrb[0].mxu0
      %v265 = vadd.f32 0.0, %v264
      %v266 = vpop.f32.mrb[0].mxu0
      %v267 = vpop.f32.mrb[0].mxu0
      %v268 = vpop.f32.mrb[0].mxu0
      %269 = vdwg.mxu0
      %v271 = vsel %vm222, %v207, 0
      %v274 = vsel %vm226, %v206, 0
      %276 = vmatprep.subr.bf16.mxu0 0
      %277 = vmatpush1.bf16.msra.mxu0 %v274
      %278 = vmatprep.subr.bf16.mxu0 0
      %279 = vmatpush1.bf16.msra.mxu0 0
      %280 = vmatprep.subr.bf16.mxu0 0
      %281 = vmatpush1.bf16.msra.mxu0 0
      %282 = vmatprep.subr.bf16.mxu0 0
      %283 = vmatpush1.bf16.msra.mxu0 0
      %284 = vmatprep.subr.bf16.mxu0 0
      %285 = vmatpush1.bf16.msra.mxu0 0
      %286 = vmatprep.subr.bf16.mxu0 0
      %287 = vmatpush1.bf16.msra.mxu0 0
      %288 = vmatprep.subr.bf16.mxu0 0
      %289 = vmatpush1.bf16.msra.mxu0 0
      %290 = vmatprep.subr.bf16.mxu0 0
      %291 = vmatpush1.bf16.msra.mxu0 0
      %292 = vmatprep.subr.bf16.mxu0 0
      %293 = vmatpush1.bf16.msra.mxu0 0
      %294 = vmatprep.subr.bf16.mxu0 0
      %295 = vmatpush1.bf16.msra.mxu0 0
      %296 = vmatprep.subr.bf16.mxu0 0
      %297 = vmatpush1.bf16.msra.mxu0 0
      %298 = vmatprep.subr.bf16.mxu0 0
      %299 = vmatpush1.bf16.msra.mxu0 0
      %300 = vmatprep.subr.bf16.mxu0 0
      %301 = vmatpush1.bf16.msra.mxu0 0
      %302 = vmatprep.subr.bf16.mxu0 0
      %303 = vmatpush1.bf16.msra.mxu0 0
      %304 = vmatprep.subr.bf16.mxu0 0
      %305 = vmatpush1.bf16.msra.mxu0 0
      %306 = vmatprep.subr.bf16.mxu0 0
      %307 = vmatpush1.bf16.msra.mxu0 0
      %308 = vmatprep.mubr.bf16.mxu0 0
      %309 = vmatmul.mubr.bf16.gmra.mrb[0].mxu0 %v271
      %v310 = vpop.f32.mrb[0].mxu0
      %v311 = vadd.f32 %v265, %v310
      %v312 = vpop.f32.mrb[0].mxu0
      %v313 = vpop.f32.mrb[0].mxu0
      %v314 = vpop.f32.mrb[0].mxu0
      %315 = vdwg.mxu0
      %316 = vrot.lane.b32.xlu0 %v195, 7
      %v317 = vpop.permute.xlu0 %316
      %s318 = scalar_lea.vmem %s3, 2
      %v319 = vld [vmem:[%s318] sm:$0x1]
      %v321 = vlaneseq
      %v322 = vshrl.u32 %v321, 7
      %v323 = vsub.s32 0, %v322
      %v324 = vrot.slane %v319, %v323
      %v326 = vmul.f32 %v317, %v324
      %v327 = vpack.c.bf16 %v326, %v326
      %s328 = scalar_lea.vmem %s1, 8
      %v329 = vld [vmem:[%s328] sm:$0xf]
      %v331 = vsel %vm222, %v329, 0
      %v334 = vsel %vm226, %v327, 0
      %336 = vmatprep.subr.bf16.mxu0 0
      %337 = vmatpush1.bf16.msra.mxu0 %v334
      %338 = vmatprep.subr.bf16.mxu0 0
      %339 = vmatpush1.bf16.msra.mxu0 0
      %340 = vmatprep.subr.bf16.mxu0 0
      %341 = vmatpush1.bf16.msra.mxu0 0
      %342 = vmatprep.subr.bf16.mxu0 0
      %343 = vmatpush1.bf16.msra.mxu0 0
      %344 = vmatprep.subr.bf16.mxu0 0
      %345 = vmatpush1.bf16.msra.mxu0 0
      %346 = vmatprep.subr.bf16.mxu0 0
      %347 = vmatpush1.bf16.msra.mxu0 0
      %348 = vmatprep.subr.bf16.mxu0 0
      %349 = vmatpush1.bf16.msra.mxu0 0
      %350 = vmatprep.subr.bf16.mxu0 0
      %351 = vmatpush1.bf16.msra.mxu0 0
      %352 = vmatprep.subr.bf16.mxu0 0
      %353 = vmatpush1.bf16.msra.mxu0 0
      %354 = vmatprep.subr.bf16.mxu0 0
      %355 = vmatpush1.bf16.msra.mxu0 0
      %356 = vmatprep.subr.bf16.mxu0 0
      %357 = vmatpush1.bf16.msra.mxu0 0
      %358 = vmatprep.subr.bf16.mxu0 0
      %359 = vmatpush1.bf16.msra.mxu0 0
      %360 = vmatprep.subr.bf16.mxu0 0
      %361 = vmatpush1.bf16.msra.mxu0 0
      %362 = vmatprep.subr.bf16.mxu0 0
      %363 = vmatpush1.bf16.msra.mxu0 0
      %364 = vmatprep.subr.bf16.mxu0 0
      %365 = vmatpush1.bf16.msra.mxu0 0
      %366 = vmatprep.subr.bf16.mxu0 0
      %367 = vmatpush1.bf16.msra.mxu0 0
      %368 = vmatprep.mubr.bf16.mxu0 0
      %369 = vmatmul.mubr.bf16.gmra.mrb[0].mxu0 %v331
      %v370 = vpop.f32.mrb[0].mxu0
      %v371 = vadd.f32 0.0, %v370
      %v372 = vpop.f32.mrb[0].mxu0
      %v373 = vpop.f32.mrb[0].mxu0
      %v374 = vpop.f32.mrb[0].mxu0
      %375 = vdwg.mxu0
      %v376 = vadd.f32 %v311, %v371
      %377 = vrot.lane.b32.xlu0 %v195, 1
      %v378 = vpop.permute.xlu0 %377
      %s379 = scalar_lea.vmem %s3, 3
      %v380 = vld [vmem:[%s379] sm:$0x1]
      %v382 = vlaneseq
      %v383 = vshrl.u32 %v382, 7
      %v384 = vsub.s32 0, %v383
      %v385 = vrot.slane %v380, %v384
      %v387 = vmul.f32 %v378, %v385
      %v388 = vpack.c.bf16 %v387, %v387
      %s389 = scalar_lea.vmem %s1, 12
      %v390 = vld [vmem:[%s389] sm:$0xf]
      %v392 = vsel %vm222, %v390, 0
      %v395 = vsel %vm226, %v388, 0
      %397 = vmatprep.subr.bf16.mxu0 0
      %398 = vmatpush1.bf16.msra.mxu0 %v395
      %399 = vmatprep.subr.bf16.mxu0 0
      %400 = vmatpush1.bf16.msra.mxu0 0
      %401 = vmatprep.subr.bf16.mxu0 0
      %402 = vmatpush1.bf16.msra.mxu0 0
      %403 = vmatprep.subr.bf16.mxu0 0
      %404 = vmatpush1.bf16.msra.mxu0 0
      %405 = vmatprep.subr.bf16.mxu0 0
      %406 = vmatpush1.bf16.msra.mxu0 0
      %407 = vmatprep.subr.bf16.mxu0 0
      %408 = vmatpush1.bf16.msra.mxu0 0
      %409 = vmatprep.subr.bf16.mxu0 0
      %410 = vmatpush1.bf16.msra.mxu0 0
      %411 = vmatprep.subr.bf16.mxu0 0
      %412 = vmatpush1.bf16.msra.mxu0 0
      %413 = vmatprep.subr.bf16.mxu0 0
      %414 = vmatpush1.bf16.msra.mxu0 0
      %415 = vmatprep.subr.bf16.mxu0 0
      %416 = vmatpush1.bf16.msra.mxu0 0
      %417 = vmatprep.subr.bf16.mxu0 0
      %418 = vmatpush1.bf16.msra.mxu0 0
      %419 = vmatprep.subr.bf16.mxu0 0
      %420 = vmatpush1.bf16.msra.mxu0 0
      %421 = vmatprep.subr.bf16.mxu0 0
      %422 = vmatpush1.bf16.msra.mxu0 0
      %423 = vmatprep.subr.bf16.mxu0 0
      %424 = vmatpush1.bf16.msra.mxu0 0
      %425 = vmatprep.subr.bf16.mxu0 0
      %426 = vmatpush1.bf16.msra.mxu0 0
      %427 = vmatprep.subr.bf16.mxu0 0
      %428 = vmatpush1.bf16.msra.mxu0 0
      %429 = vmatprep.mubr.bf16.mxu0 0
      %430 = vmatmul.mubr.bf16.gmra.mrb[0].mxu0 %v392
      %v431 = vpop.f32.mrb[0].mxu0
      %v432 = vadd.f32 0.0, %v431
      %v433 = vpop.f32.mrb[0].mxu0
      %v434 = vpop.f32.mrb[0].mxu0
      %v435 = vpop.f32.mrb[0].mxu0
      %436 = vdwg.mxu0
      %v437 = vadd.f32 %v376, %v432
      %s438 = scalar_lea.vmem %s3, 4
      %v439 = vld [vmem:[%s438] sm:$0x1]
      %v441 = vlaneseq
      %v442 = vshrl.u32 %v441, 7
      %v443 = vsub.s32 0, %v442
      %v444 = vrot.slane %v439, %v443
      %v446 = vmul.f32 %v195, %v444
      %v447 = vpack.c.bf16 %v446, %v446
      %s448 = scalar_lea.vmem %s1, 16
      %v449 = vld [vmem:[%s448] sm:$0xf]
      %v451 = vsel %vm222, %v449, 0
      %v454 = vsel %vm226, %v447, 0
      %456 = vmatprep.subr.bf16.mxu0 0
      %457 = vmatpush1.bf16.msra.mxu0 %v454
      %458 = vmatprep.subr.bf16.mxu0 0
      %459 = vmatpush1.bf16.msra.mxu0 0
      %460 = vmatprep.subr.bf16.mxu0 0
      %461 = vmatpush1.bf16.msra.mxu0 0
      %462 = vmatprep.subr.bf16.mxu0 0
      %463 = vmatpush1.bf16.msra.mxu0 0
      %464 = vmatprep.subr.bf16.mxu0 0
      %465 = vmatpush1.bf16.msra.mxu0 0
      %466 = vmatprep.subr.bf16.mxu0 0
      %467 = vmatpush1.bf16.msra.mxu0 0
      %468 = vmatprep.subr.bf16.mxu0 0
      %469 = vmatpush1.bf16.msra.mxu0 0
      %470 = vmatprep.subr.bf16.mxu0 0
      %471 = vmatpush1.bf16.msra.mxu0 0
      %472 = vmatprep.subr.bf16.mxu0 0
      %473 = vmatpush1.bf16.msra.mxu0 0
      %474 = vmatprep.subr.bf16.mxu0 0
      %475 = vmatpush1.bf16.msra.mxu0 0
      %476 = vmatprep.subr.bf16.mxu0 0
      %477 = vmatpush1.bf16.msra.mxu0 0
      %478 = vmatprep.subr.bf16.mxu0 0
      %479 = vmatpush1.bf16.msra.mxu0 0
      %480 = vmatprep.subr.bf16.mxu0 0
      %481 = vmatpush1.bf16.msra.mxu0 0
      %482 = vmatprep.subr.bf16.mxu0 0
      %483 = vmatpush1.bf16.msra.mxu0 0
      %484 = vmatprep.subr.bf16.mxu0 0
      %485 = vmatpush1.bf16.msra.mxu0 0
      %486 = vmatprep.subr.bf16.mxu0 0
      %487 = vmatpush1.bf16.msra.mxu0 0
      %488 = vmatprep.mubr.bf16.mxu0 0
      %489 = vmatmul.mubr.bf16.gmra.mrb[0].mxu0 %v451
      %v490 = vpop.f32.mrb[0].mxu0
      %v491 = vadd.f32 0.0, %v490
      %v492 = vpop.f32.mrb[0].mxu0
      %v493 = vpop.f32.mrb[0].mxu0
      %v494 = vpop.f32.mrb[0].mxu0
      %495 = vdwg.mxu0
      %v496 = vadd.f32 %v437, %v491
      %497 = vrot.lane.b32.xlu0 %v195, 127
      %v498 = vpop.permute.xlu0 %497
      %s499 = scalar_lea.vmem %s3, 5
      %v500 = vld [vmem:[%s499] sm:$0x1]
      %v502 = vlaneseq
      %v503 = vshrl.u32 %v502, 7
      %v504 = vsub.s32 0, %v503
      %v505 = vrot.slane %v500, %v504
      %v507 = vmul.f32 %v498, %v505
      %v508 = vpack.c.bf16 %v507, %v507
      %s509 = scalar_lea.vmem %s1, 20
      %v510 = vld [vmem:[%s509] sm:$0xf]
      %v512 = vsel %vm222, %v510, 0
      %v515 = vsel %vm226, %v508, 0
      %517 = vmatprep.subr.bf16.mxu0 0
      %518 = vmatpush1.bf16.msra.mxu0 %v515
      %519 = vmatprep.subr.bf16.mxu0 0
      %520 = vmatpush1.bf16.msra.mxu0 0
      %521 = vmatprep.subr.bf16.mxu0 0
      %522 = vmatpush1.bf16.msra.mxu0 0
      %523 = vmatprep.subr.bf16.mxu0 0
      %524 = vmatpush1.bf16.msra.mxu0 0
      %525 = vmatprep.subr.bf16.mxu0 0
      %526 = vmatpush1.bf16.msra.mxu0 0
      %527 = vmatprep.subr.bf16.mxu0 0
      %528 = vmatpush1.bf16.msra.mxu0 0
      %529 = vmatprep.subr.bf16.mxu0 0
      %530 = vmatpush1.bf16.msra.mxu0 0
      %531 = vmatprep.subr.bf16.mxu0 0
      %532 = vmatpush1.bf16.msra.mxu0 0
      %533 = vmatprep.subr.bf16.mxu0 0
      %534 = vmatpush1.bf16.msra.mxu0 0
      %535 = vmatprep.subr.bf16.mxu0 0
      %536 = vmatpush1.bf16.msra.mxu0 0
      %537 = vmatprep.subr.bf16.mxu0 0
      %538 = vmatpush1.bf16.msra.mxu0 0
      %539 = vmatprep.subr.bf16.mxu0 0
      %540 = vmatpush1.bf16.msra.mxu0 0
      %541 = vmatprep.subr.bf16.mxu0 0
      %542 = vmatpush1.bf16.msra.mxu0 0
      %543 = vmatprep.subr.bf16.mxu0 0
      %544 = vmatpush1.bf16.msra.mxu0 0
      %545 = vmatprep.subr.bf16.mxu0 0
      %546 = vmatpush1.bf16.msra.mxu0 0
      %547 = vmatprep.subr.bf16.mxu0 0
      %548 = vmatpush1.bf16.msra.mxu0 0
      %549 = vmatprep.mubr.bf16.mxu0 0
      %550 = vmatmul.mubr.bf16.gmra.mrb[0].mxu0 %v512
      %v551 = vpop.f32.mrb[0].mxu0
      %v552 = vadd.f32 0.0, %v551
      %v553 = vpop.f32.mrb[0].mxu0
      %v554 = vpop.f32.mrb[0].mxu0
      %v555 = vpop.f32.mrb[0].mxu0
      %556 = vdwg.mxu0
      %v557 = vadd.f32 %v496, %v552
      %558 = vrot.lane.b32.xlu0 %v195, 121
      %v559 = vpop.permute.xlu0 %558
      %s560 = scalar_lea.vmem %s3, 6
      %v561 = vld [vmem:[%s560] sm:$0x1]
      %v563 = vlaneseq
      %v564 = vshrl.u32 %v563, 7
      %v565 = vsub.s32 0, %v564
      %v566 = vrot.slane %v561, %v565
      %v568 = vmul.f32 %v559, %v566
      %v569 = vpack.c.bf16 %v568, %v568
      %s570 = scalar_lea.vmem %s1, 24
      %v571 = vld [vmem:[%s570] sm:$0xf]
      %v573 = vsel %vm222, %v571, 0
      %v576 = vsel %vm226, %v569, 0
      %578 = vmatprep.subr.bf16.mxu0 0
      %579 = vmatpush1.bf16.msra.mxu0 %v576
      %580 = vmatprep.subr.bf16.mxu0 0
      %581 = vmatpush1.bf16.msra.mxu0 0
      %582 = vmatprep.subr.bf16.mxu0 0
      %583 = vmatpush1.bf16.msra.mxu0 0
      %584 = vmatprep.subr.bf16.mxu0 0
      %585 = vmatpush1.bf16.msra.mxu0 0
      %586 = vmatprep.subr.bf16.mxu0 0
      %587 = vmatpush1.bf16.msra.mxu0 0
      %588 = vmatprep.subr.bf16.mxu0 0
      %589 = vmatpush1.bf16.msra.mxu0 0
      %590 = vmatprep.subr.bf16.mxu0 0
      %591 = vmatpush1.bf16.msra.mxu0 0
      %592 = vmatprep.subr.bf16.mxu0 0
      %593 = vmatpush1.bf16.msra.mxu0 0
      %594 = vmatprep.subr.bf16.mxu0 0
      %595 = vmatpush1.bf16.msra.mxu0 0
      %596 = vmatprep.subr.bf16.mxu0 0
      %597 = vmatpush1.bf16.msra.mxu0 0
      %598 = vmatprep.subr.bf16.mxu0 0
      %599 = vmatpush1.bf16.msra.mxu0 0
      %600 = vmatprep.subr.bf16.mxu0 0
      %601 = vmatpush1.bf16.msra.mxu0 0
      %602 = vmatprep.subr.bf16.mxu0 0
      %603 = vmatpush1.bf16.msra.mxu0 0
      %604 = vmatprep.subr.bf16.mxu0 0
      %605 = vmatpush1.bf16.msra.mxu0 0
      %606 = vmatprep.subr.bf16.mxu0 0
      %607 = vmatpush1.bf16.msra.mxu0 0
      %608 = vmatprep.subr.bf16.mxu0 0
      %609 = vmatpush1.bf16.msra.mxu0 0
      %610 = vmatprep.mubr.bf16.mxu0 0
      %611 = vmatmul.mubr.bf16.gmra.mrb[0].mxu0 %v573
      %v612 = vpop.f32.mrb[0].mxu0
      %v613 = vadd.f32 0.0, %v612
      %v614 = vpop.f32.mrb[0].mxu0
      %v615 = vpop.f32.mrb[0].mxu0
      %v616 = vpop.f32.mrb[0].mxu0
      %617 = vdwg.mxu0
      %v618 = vadd.f32 %v557, %v613
      %619 = vrot.lane.b32.xlu0 %v195, 120
      %v620 = vpop.permute.xlu0 %619
      %s621 = scalar_lea.vmem %s3, 7
      %v622 = vld [vmem:[%s621] sm:$0x1]
      %v624 = vlaneseq
      %v625 = vshrl.u32 %v624, 7
      %v626 = vsub.s32 0, %v625
      %v627 = vrot.slane %v622, %v626
      %v629 = vmul.f32 %v620, %v627
      %v630 = vpack.c.bf16 %v629, %v629
      %s631 = scalar_lea.vmem %s1, 28
      %v632 = vld [vmem:[%s631] sm:$0xf]
      %v634 = vsel %vm222, %v632, 0
      %v637 = vsel %vm226, %v630, 0
      %639 = vmatprep.subr.bf16.mxu0 0
      %640 = vmatpush1.bf16.msra.mxu0 %v637
      %641 = vmatprep.subr.bf16.mxu0 0
      %642 = vmatpush1.bf16.msra.mxu0 0
      %643 = vmatprep.subr.bf16.mxu0 0
      %644 = vmatpush1.bf16.msra.mxu0 0
      %645 = vmatprep.subr.bf16.mxu0 0
      %646 = vmatpush1.bf16.msra.mxu0 0
      %647 = vmatprep.subr.bf16.mxu0 0
      %648 = vmatpush1.bf16.msra.mxu0 0
      %649 = vmatprep.subr.bf16.mxu0 0
      %650 = vmatpush1.bf16.msra.mxu0 0
      %651 = vmatprep.subr.bf16.mxu0 0
      %652 = vmatpush1.bf16.msra.mxu0 0
      %653 = vmatprep.subr.bf16.mxu0 0
      %654 = vmatpush1.bf16.msra.mxu0 0
      %655 = vmatprep.subr.bf16.mxu0 0
      %656 = vmatpush1.bf16.msra.mxu0 0
      %657 = vmatprep.subr.bf16.mxu0 0
      %658 = vmatpush1.bf16.msra.mxu0 0
      %659 = vmatprep.subr.bf16.mxu0 0
      %660 = vmatpush1.bf16.msra.mxu0 0
      %661 = vmatprep.subr.bf16.mxu0 0
      %662 = vmatpush1.bf16.msra.mxu0 0
      %663 = vmatprep.subr.bf16.mxu0 0
      %664 = vmatpush1.bf16.msra.mxu0 0
      %665 = vmatprep.subr.bf16.mxu0 0
      %666 = vmatpush1.bf16.msra.mxu0 0
      %667 = vmatprep.subr.bf16.mxu0 0
      %668 = vmatpush1.bf16.msra.mxu0 0
      %669 = vmatprep.subr.bf16.mxu0 0
      %670 = vmatpush1.bf16.msra.mxu0 0
      %671 = vmatprep.mubr.bf16.mxu0 0
      %672 = vmatmul.mubr.bf16.gmra.mrb[0].mxu0 %v634
      %v673 = vpop.f32.mrb[0].mxu0
      %v674 = vadd.f32 0.0, %v673
      %v675 = vpop.f32.mrb[0].mxu0
      %v676 = vpop.f32.mrb[0].mxu0
      %v677 = vpop.f32.mrb[0].mxu0
      %678 = vdwg.mxu0
      %v679 = vadd.f32 %v618, %v674
      %680 = vrot.lane.b32.xlu0 %v195, 119
      %v681 = vpop.permute.xlu0 %680
      %s682 = scalar_lea.vmem %s3, 8
      %v683 = vld [vmem:[%s682] sm:$0x1]
      %v685 = vlaneseq
      %v686 = vshrl.u32 %v685, 7
      %v687 = vsub.s32 0, %v686
      %v688 = vrot.slane %v683, %v687
      %v690 = vmul.f32 %v681, %v688
      %v691 = vpack.c.bf16 %v690, %v690
      %s692 = scalar_lea.vmem %s1, 32
      %v693 = vld [vmem:[%s692] sm:$0xf]
      %v695 = vsel %vm222, %v693, 0
      %v698 = vsel %vm226, %v691, 0
      %700 = vmatprep.subr.bf16.mxu0 0
      %701 = vmatpush1.bf16.msra.mxu0 %v698
      %702 = vmatprep.subr.bf16.mxu0 0
      %703 = vmatpush1.bf16.msra.mxu0 0
      %704 = vmatprep.subr.bf16.mxu0 0
      %705 = vmatpush1.bf16.msra.mxu0 0
      %706 = vmatprep.subr.bf16.mxu0 0
      %707 = vmatpush1.bf16.msra.mxu0 0
      %708 = vmatprep.subr.bf16.mxu0 0
      %709 = vmatpush1.bf16.msra.mxu0 0
      %710 = vmatprep.subr.bf16.mxu0 0
      %711 = vmatpush1.bf16.msra.mxu0 0
      %712 = vmatprep.subr.bf16.mxu0 0
      %713 = vmatpush1.bf16.msra.mxu0 0
      %714 = vmatprep.subr.bf16.mxu0 0
      %715 = vmatpush1.bf16.msra.mxu0 0
      %716 = vmatprep.subr.bf16.mxu0 0
      %717 = vmatpush1.bf16.msra.mxu0 0
      %718 = vmatprep.subr.bf16.mxu0 0
      %719 = vmatpush1.bf16.msra.mxu0 0
      %720 = vmatprep.subr.bf16.mxu0 0
      %721 = vmatpush1.bf16.msra.mxu0 0
      %722 = vmatprep.subr.bf16.mxu0 0
      %723 = vmatpush1.bf16.msra.mxu0 0
      %724 = vmatprep.subr.bf16.mxu0 0
      %725 = vmatpush1.bf16.msra.mxu0 0
      %726 = vmatprep.subr.bf16.mxu0 0
      %727 = vmatpush1.bf16.msra.mxu0 0
      %728 = vmatprep.subr.bf16.mxu0 0
      %729 = vmatpush1.bf16.msra.mxu0 0
      %730 = vmatprep.subr.bf16.mxu0 0
      %731 = vmatpush1.bf16.msra.mxu0 0
      %732 = vmatprep.mubr.bf16.mxu0 0
      %733 = vmatmul.mubr.bf16.gmra.mrb[0].mxu0 %v695
      %v734 = vpop.f32.mrb[0].mxu0
      %v735 = vadd.f32 0.0, %v734
      %v736 = vpop.f32.mrb[0].mxu0
      %v737 = vpop.f32.mrb[0].mxu0
      %v738 = vpop.f32.mrb[0].mxu0
      %739 = vdwg.mxu0
      %v740 = vadd.f32 %v679, %v735
      %v741 = vld [vmem:[%s2] sm:$0xff]
      %743 = vset.pattern.permute.xlu0 0
      %744 = vperm.xlu0 %743, %v741
      %v745 = vpop.permute.xlu0 %744
      %v747 = vadd.f32 %v740, %v745
      %v748 = vmax.f32 %v747, 0.0
      %v749 = vpack.c.bf16 %v748, %v748
      %750 = vst [vmem:[%s192] sm:$0xf] %v749
      %p751 = scmp.lt.s32.totalorder %s15, 1
      %s752 = scalar_select %p751, %s15, 1
      %s753 = smul.addr %s752, 4
      %s754 = scalar_lea.vmem %s4, %s753
      // Predicated region
      $region37: #{img_obs_process.8} parent=35 // pred_check
        %p755 = pneg %p122
      $region38: #{img_obs_process.8} parent=35 // pred_check_branch
        %757 = sbr.rel (%p755) target = $region40
      $region39: #{img_obs_process.8} parent=35 // pred_region
        _
      $region40: #{img_obs_process.8} parent=35 // pred_fallthru
        _
    $region36: #{img_obs_process.8} parent=5 // pred_fallthru
      _
    %p758 = scmp.le.s32.totalorder 2, %s10
    // Predicated region
    $region41: #{img_obs_process.8} parent=5 // pred_check
      %p759 = pneg %p758
    $region42: #{img_obs_process.8} parent=5 // pred_check_branch
      %761 = sbr.rel (%p759) target = $region44
    $region43: #{img_obs_process.8} parent=5 // pred_region
      %s762 = ssub.s32 %s10, 2
      // Predicated region
      $region45: #{img_obs_process.8} parent=43 // pred_check
        %p763 = pneg %p128
      $region46: #{img_obs_process.8} parent=43 // pred_check_branch
        %765 = sbr.rel (%p763) target = $region48
      $region47: #{img_obs_process.8} parent=43 // pred_region
        %p766 = scmp.lt.s32.totalorder %s16, 1
        %s767 = scalar_select %p766, %s16, 1
        %s768 = smul.addr %s767, 4
        %s769 = scalar_lea.vmem %s4, %s768
      $region48: #{img_obs_process.8} parent=43 // pred_fallthru
        _
    $region44: #{img_obs_process.8} parent=5 // pred_fallthru
      _
  $region6: #{img_obs_process.8} parent=0 // loop_footer
    %s14 = sadd.s32 1, %s10
  $region7: #{img_obs_process.8} parent=0 // loop_footer_branch
    %9 = sbr.rel target = $region3
  $region8: #{img_obs_process.8} parent=0 // loop_exit
    _

// kernel: img_obs_process.7
$region0: #{img_obs_process.7}
  #allocation0 [shape = 'u32[]', space=smem, size = 0x4, offset = 0x4, fixed_abs, tag = 'smem constant byte address 0x4 - core index']
  #allocation1 [shape = 'u32[144,128]{1,0:T(1,128)}', space=vmem, size = 0x12000, scoped, tag = 'internal scratch']
  %s0 = inlined_call_operand.vmem [shape: bf16[3,1024], index: 0, kind: input, shape index: {}]
  %s1 = inlined_call_operand.vmem [shape: bf16[9,8,3], index: 1, kind: input, shape index: {}]
  %s2 = inlined_call_operand.vmem [shape: f32[8,1], index: 2, kind: input, shape index: {}]
  %s3 = inlined_call_operand.vmem [shape: f32[9,1,512], index: 3, kind: input, shape index: {}]
  %s4 = inlined_call_operand.vmem [shape: f32[9,1,512], index: 4, kind: input, shape index: {}]
  %s5 = inlined_call_operand.vmem [shape: bf16[8,1024], index: 5, kind: output, shape index: {}]
  %s6 = sld [smem:[#allocation0]]
  $region53: #{img_obs_process.7} parent=0
    _
  %s8 = ssub.s32 1, %s6
  %s9 = scalar_select 0, %s8, %s6
  loop: start=0, step=1, limit=4
  $region2: #{img_obs_process.7} parent=0 // loop_pre_header
    _
  $region3: #{img_obs_process.7} parent=0 // loop_header
    %s11 = sphi 0, %s15
    %p12 = scmp.ge.s32.totalorder %s11, 4
    %s21 = sphi 0, %s23
    %s24 = sphi 0, %s21
    %s25 = sphi 0, %s24
    %s41 = sphi 0, %s25
    %s45 = sphi 0, %s45
    %s47 = sphi 0, %s45
    %s48 = sphi 0, %s47
    %s62 = sphi 0, %s48
    %s66 = sphi 0, %s66
    %s68 = sphi 0, %s66
    %s69 = sphi 0, %s68
    %s83 = sphi 0, %s69
    %s87 = sphi 0, %s87
    %s89 = sphi 0, %s87
    %s90 = sphi 0, %s89
    %s104 = sphi 0, %s90
    %s108 = sphi 0, %s108
    %s110 = sphi 0, %s108
    %s111 = sphi 0, %s110
    %s125 = sphi 0, %s111
    %s131 = sphi 0, %s133
    %s134 = sphi 0, %s131
    %s135 = sphi 0, %s134
    %s151 = sphi 0, %s135
  $region4: #{img_obs_process.7} parent=0 // loop_header_branch
    %14 = sbr.rel (%p12) target = $region8
  $region5: #{img_obs_process.7} parent=0 // loop_body
    %s16 = ssub.s32 %s11, 1
    %s17 = ssub.s32 %s11, 2
    %s18 = sadd.s32 %s11, 1
    %s19 = ssub.s32 %s11, %s18
    %p20 = scmp.eq.s32.totalorder %s19, 0
    %s22 = sadd.s32 %s21, 1
    %s23 = scalar_select %p20, %s21, %s22
    %p26 = pneg %p20
    %p27 = scmp.eq.s32.totalorder %s11, 1
    %p28 = por %p26, %p27
    %p29 = scmp.ne.s32.totalorder %s21, %s24
    %p30 = scmp.eq.s32.totalorder %s11, 0
    %p31 = por %p29, %p30
    %p32 = scmp.ne.s32.totalorder %s21, %s24
    %p33 = scmp.eq.s32.totalorder %s16, 1
    %p34 = por %p32, %p33
    %p35 = scmp.ne.s32.totalorder %s24, %s25
    %p36 = scmp.eq.s32.totalorder %s16, 0
    %p37 = por %p35, %p36
    %p38 = scmp.ne.s32.totalorder %s24, %s25
    %p39 = scmp.eq.s32.totalorder %s17, 1
    %p40 = por %p38, %p39
    %p42 = scmp.ne.s32.totalorder %s25, %s41
    %p43 = scmp.eq.s32.totalorder %s17, 0
    %p44 = por %p42, %p43
    %s46 = sadd.s32 %s45, 1
    %p49 = scmp.eq.s32.totalorder %s11, 1
    %p50 = scmp.ne.s32.totalorder %s45, %s47
    %p51 = scmp.eq.s32.totalorder %s11, 0
    %p52 = por %p50, %p51
    %p53 = scmp.ne.s32.totalorder %s45, %s47
    %p54 = scmp.eq.s32.totalorder %s16, 1
    %p55 = por %p53, %p54
    %p56 = scmp.ne.s32.totalorder %s47, %s48
    %p57 = scmp.eq.s32.totalorder %s16, 0
    %p58 = por %p56, %p57
    %p59 = scmp.ne.s32.totalorder %s47, %s48
    %p60 = scmp.eq.s32.totalorder %s17, 1
    %p61 = por %p59, %p60
    %p63 = scmp.ne.s32.totalorder %s48, %s62
    %p64 = scmp.eq.s32.totalorder %s17, 0
    %p65 = por %p63, %p64
    %s67 = sadd.s32 %s66, 1
    %p70 = scmp.eq.s32.totalorder %s11, 1
    %p71 = scmp.ne.s32.totalorder %s66, %s68
    %p72 = scmp.eq.s32.totalorder %s11, 0
    %p73 = por %p71, %p72
    %p74 = scmp.ne.s32.totalorder %s66, %s68
    %p75 = scmp.eq.s32.totalorder %s16, 1
    %p76 = por %p74, %p75
    %p77 = scmp.ne.s32.totalorder %s68, %s69
    %p78 = scmp.eq.s32.totalorder %s16, 0
    %p79 = por %p77, %p78
    %p80 = scmp.ne.s32.totalorder %s68, %s69
    %p81 = scmp.eq.s32.totalorder %s17, 1
    %p82 = por %p80, %p81
    %p84 = scmp.ne.s32.totalorder %s69, %s83
    %p85 = scmp.eq.s32.totalorder %s17, 0
    %p86 = por %p84, %p85
    %s88 = sadd.s32 %s87, 1
    %p91 = scmp.eq.s32.totalorder %s11, 1
    %p92 = scmp.ne.s32.totalorder %s87, %s89
    %p93 = scmp.eq.s32.totalorder %s11, 0
    %p94 = por %p92, %p93
    %p95 = scmp.ne.s32.totalorder %s87, %s89
    %p96 = scmp.eq.s32.totalorder %s16, 1
    %p97 = por %p95, %p96
    %p98 = scmp.ne.s32.totalorder %s89, %s90
    %p99 = scmp.eq.s32.totalorder %s16, 0
    %p100 = por %p98, %p99
    %p101 = scmp.ne.s32.totalorder %s89, %s90
    %p102 = scmp.eq.s32.totalorder %s17, 1
    %p103 = por %p101, %p102
    %p105 = scmp.ne.s32.totalorder %s90, %s104
    %p106 = scmp.eq.s32.totalorder %s17, 0
    %p107 = por %p105, %p106
    %s109 = sadd.s32 %s108, 1
    %p112 = scmp.eq.s32.totalorder %s11, 1
    %p113 = scmp.ne.s32.totalorder %s108, %s110
    %p114 = scmp.eq.s32.totalorder %s11, 0
    %p115 = por %p113, %p114
    %p116 = scmp.ne.s32.totalorder %s108, %s110
    %p117 = scmp.eq.s32.totalorder %s16, 1
    %p118 = por %p116, %p117
    %p119 = scmp.ne.s32.totalorder %s110, %s111
    %p120 = scmp.eq.s32.totalorder %s16, 0
    %p121 = por %p119, %p120
    %p122 = scmp.ne.s32.totalorder %s110, %s111
    %p123 = scmp.eq.s32.totalorder %s17, 1
    %p124 = por %p122, %p123
    %p126 = scmp.ne.s32.totalorder %s111, %s125
    %p127 = scmp.eq.s32.totalorder %s17, 0
    %p128 = por %p126, %p127
    %s129 = ssub.s32 %s11, %s18
    %p130 = scmp.eq.s32.totalorder %s129, 0
    %s132 = sadd.s32 %s131, 1
    %s133 = scalar_select %p130, %s131, %s132
    %p136 = pneg %p130
    %p137 = scmp.eq.s32.totalorder %s11, 1
    %p138 = por %p136, %p137
    %p139 = scmp.ne.s32.totalorder %s131, %s134
    %p140 = scmp.eq.s32.totalorder %s11, 0
    %p141 = por %p139, %p140
    %p142 = scmp.ne.s32.totalorder %s131, %s134
    %p143 = scmp.eq.s32.totalorder %s16, 1
    %p144 = por %p142, %p143
    %p145 = scmp.ne.s32.totalorder %s134, %s135
    %p146 = scmp.eq.s32.totalorder %s16, 0
    %p147 = por %p145, %p146
    %p148 = scmp.ne.s32.totalorder %s134, %s135
    %p149 = scmp.eq.s32.totalorder %s17, 1
    %p150 = por %p148, %p149
    %p152 = scmp.ne.s32.totalorder %s135, %s151
    %p153 = scmp.eq.s32.totalorder %s17, 0
    %p154 = por %p152, %p153
    %p155 = scmp.le.s32.totalorder 1, %s11
    %p156 = scmp.lt.s32.totalorder %s11, 3
    %p157 = pnand %p155, %p156
    %p158 = pneg %p157
    // Predicated region
    $region9: #{img_obs_process.7} parent=5 // pred_check
      _
    $region10: #{img_obs_process.7} parent=5 // pred_check_branch
      %160 = sbr.rel (%p157) target = $region12
    $region11: #{img_obs_process.7} parent=5 // pred_region
      %s161 = ssub.s32 %s11, 1
      // Predicated region
      $region13: #{img_obs_process.7} parent=11 // pred_check
        %p162 = pneg %p58
      $region14: #{img_obs_process.7} parent=11 // pred_check_branch
        %164 = sbr.rel (%p162) target = $region16
      $region15: #{img_obs_process.7} parent=11 // pred_region
        _
      $region16: #{img_obs_process.7} parent=11 // pred_fallthru
        _
      // Predicated region
      $region17: #{img_obs_process.7} parent=11 // pred_check
        %p165 = pneg %p79
      $region18: #{img_obs_process.7} parent=11 // pred_check_branch
        %167 = sbr.rel (%p165) target = $region20
      $region19: #{img_obs_process.7} parent=11 // pred_region
        _
      $region20: #{img_obs_process.7} parent=11 // pred_fallthru
        _
      // Predicated region
      $region21: #{img_obs_process.7} parent=11 // pred_check
        %p168 = pneg %p100
      $region22: #{img_obs_process.7} parent=11 // pred_check_branch
        %170 = sbr.rel (%p168) target = $region24
      $region23: #{img_obs_process.7} parent=11 // pred_region
        _
      $region24: #{img_obs_process.7} parent=11 // pred_fallthru
        _
      // Predicated region
      $region25: #{img_obs_process.7} parent=11 // pred_check
        %p171 = pneg %p121
      $region26: #{img_obs_process.7} parent=11 // pred_check_branch
        %173 = sbr.rel (%p171) target = $region28
      $region27: #{img_obs_process.7} parent=11 // pred_region
        _
      $region28: #{img_obs_process.7} parent=11 // pred_fallthru
        _
    $region12: #{img_obs_process.7} parent=5 // pred_fallthru
      _
    %p174 = scmp.lt.s32.totalorder %s11, 2
    // Predicated region
    $region29: #{img_obs_process.7} parent=5 // pred_check
      %p175 = pneg %p174
    $region30: #{img_obs_process.7} parent=5 // pred_check_branch
      %177 = sbr.rel (%p175) target = $region32
    $region31: #{img_obs_process.7} parent=5 // pred_region
      // Predicated region
      $region33: #{img_obs_process.7} parent=31 // pred_check
        %p178 = pneg %p31
      $region34: #{img_obs_process.7} parent=31 // pred_check_branch
        %180 = sbr.rel (%p178) target = $region36
      $region35: #{img_obs_process.7} parent=31 // pred_region
        %s181 = smul.u32 4, %s11
        %p182 = scmp.lt.s32.totalorder %s181, 7
        %s183 = scalar_select %p182, %s181, 7
        %s184 = smul.addr %s183, 2
        %s185 = scalar_lea.vmem %s0, %s184
        %s186 = smul.u32 4, %s11
      $region36: #{img_obs_process.7} parent=31 // pred_fallthru
        _
    $region32: #{img_obs_process.7} parent=5 // pred_fallthru
      _
    %p187 = scmp.le.s32.totalorder 1, %s11
    %p188 = scmp.lt.s32.totalorder %s11, 3
    %p189 = pnand %p187, %p188
    %p190 = pneg %p189
    // Predicated region
    $region37: #{img_obs_process.7} parent=5 // pred_check
      _
    $region38: #{img_obs_process.7} parent=5 // pred_check_branch
      %192 = sbr.rel (%p189) target = $region40
    $region39: #{img_obs_process.7} parent=5 // pred_region
      %s193 = ssub.s32 %s11, 1
      %s194 = smul.u32 4, %s16
      %p195 = scmp.lt.s32.totalorder %s194, 7
      %s196 = scalar_select %p195, %s194, 7
      %s197 = smul.addr %s196, 2
      %s198 = scalar_lea.vmem %s0, %s197
      %p199 = pneg %p37
      %p200 = pneg %p34
      %p201 = pneg %p58
      %p202 = pneg %p55
      %p203 = pneg %p79
      %p204 = pneg %p76
      %p205 = pneg %p100
      %p206 = pneg %p97
      %p207 = pneg %p121
      %p208 = pneg %p118
      %p209 = pneg %p147
      %p210 = pneg %p144
      %s211 = smul.u32 4, %s16
      %p212 = scmp.lt.s32.totalorder %s211, 7
      %s213 = scalar_select %p212, %s211, 7
      %s214 = smul.addr %s213, 4
      %s215 = scalar_lea.vmem %s5, %s214
      %s216 = smul.u32 4, %s16
      %p217 = scmp.lt.s32.totalorder %s216, 7
      %s218 = scalar_select %p217, %s216, 7
      %s219 = smul.addr %s218, 2
      %s220 = scalar_lea.vmem %s0, %s219
      %s221 = smul.u32 4, %s16
      %s222 = smul.u32 4, %s16
      %p223 = scmp.lt.s32.totalorder %s222, 7
      %s224 = scalar_select %p223, %s222, 7
      %s225 = smul.addr %s224, 4
      %s226 = scalar_lea.vmem %s5, %s225
      %s227 = smul.u32 4, %s16
      %v229 = vld [vmem:[%s220] sm:$0xff]
      %v230 = vunpack.c.l.bf16 %v229
      %v231 = vunpack.c.h.bf16 %v229
      %v234 = vcombine.high %v230, %v230
      %v235 = vcombine.high %v231, %v231
      %238 = vrot.lane.b32.xlu0 %v230, 17
      %v239 = vpop.permute.xlu0 %238
      %240 = vrot.lane.b32.xlu0 %v234, 17
      %v241 = vpop.permute.xlu0 %240
      %242 = vrot.lane.b32.xlu0 %v231, 17
      %v243 = vpop.permute.xlu0 %242
      %244 = vrot.lane.b32.xlu0 %v235, 17
      %v245 = vpop.permute.xlu0 %244
      %v246 = vlaneseq
      %v247 = vand.u32 %v246, 127
      %vm248 = vcmp.lt.s32.totalorder %v247, 17
      %v249 = vsel %vm248, %v243, %v245
      %v250 = vsel %vm248, %v241, %v243
      %v251 = vsel %vm248, %v239, %v241
      %v252 = vsel %vm248, %v245, %v239
      %v253 = vld [vmem:[%s3] sm:$0xf]
      %v255 = vlaneseq
      %v256 = vshrl.u32 %v255, 7
      %v257 = vsub.s32 0, %v256
      %v258 = vrot.slane %v253, %v257
      %v259 = vlaneseq
      %v260 = vshrl.u32 %v259, 7
      %v261 = vsub.s32 1, %v260
      %v262 = vrot.slane %v253, %v261
      %v263 = vlaneseq
      %v264 = vshrl.u32 %v263, 7
      %v265 = vsub.s32 2, %v264
      %v266 = vrot.slane %v253, %v265
      %v267 = vlaneseq
      %v268 = vshrl.u32 %v267, 7
      %v269 = vsub.s32 3, %v268
      %v270 = vrot.slane %v253, %v269
      %v275 = vmul.f32 %v252, %v258
      %v276 = vmul.f32 %v251, %v262
      %v277 = vmul.f32 %v250, %v266
      %v278 = vmul.f32 %v249, %v270
      %v279 = vpack.c.bf16 %v275, %v275
      %v280 = vpack.c.bf16 %v276, %v276
      %v281 = vpack.c.bf16 %v277, %v277
      %v282 = vpack.c.bf16 %v278, %v278
      %v283 = vld [vmem:[%s1] sm:$0xf]
      %284 = vrot.lane.b32.xlu0 %v230, 16
      %v285 = vpop.permute.xlu0 %284
      %286 = vrot.lane.b32.xlu0 %v234, 16
      %v287 = vpop.permute.xlu0 %286
      %288 = vrot.lane.b32.xlu0 %v231, 16
      %v289 = vpop.permute.xlu0 %288
      %290 = vrot.lane.b32.xlu0 %v235, 16
      %v291 = vpop.permute.xlu0 %290
      %vm292 = vcmp.lt.s32.totalorder %v247, 16
      %v293 = vsel %vm292, %v289, %v291
      %v294 = vsel %vm292, %v287, %v289
      %v295 = vsel %vm292, %v285, %v287
      %v296 = vsel %vm292, %v291, %v285
      %s297 = scalar_lea.vmem %s3, 4
      %v298 = vld [vmem:[%s297] sm:$0xf]
      %v300 = vlaneseq
      %v301 = vshrl.u32 %v300, 7
      %v302 = vsub.s32 0, %v301
      %v303 = vrot.slane %v298, %v302
      %v304 = vlaneseq
      %v305 = vshrl.u32 %v304, 7
      %v306 = vsub.s32 1, %v305
      %v307 = vrot.slane %v298, %v306
      %v308 = vlaneseq
      %v309 = vshrl.u32 %v308, 7
      %v310 = vsub.s32 2, %v309
      %v311 = vrot.slane %v298, %v310
      %v312 = vlaneseq
      %v313 = vshrl.u32 %v312, 7
      %v314 = vsub.s32 3, %v313
      %v315 = vrot.slane %v298, %v314
      %v320 = vmul.f32 %v296, %v303
      %v321 = vmul.f32 %v295, %v307
      %v322 = vmul.f32 %v294, %v311
      %v323 = vmul.f32 %v293, %v315
      %v324 = vpack.c.bf16 %v320, %v320
      %v325 = vpack.c.bf16 %v321, %v321
      %v326 = vpack.c.bf16 %v322, %v322
      %v327 = vpack.c.bf16 %v323, %v323
      %s328 = scalar_lea.vmem %s1, 4
      %v329 = vld [vmem:[%s328] sm:$0xf]
      %vm330 = vcmask 23552
      %v332 = vsel %vm330, %v329, 0
      %vm334 = vcmask 1040384
      %vm335 = vcmask 1041408
      %v336 = vsel %vm334, 4294967295, 65535
      %v337 = vsel %vm335, %v336, 0
      %v339 = vand.u32 %v324, %v337
      %v342 = vand.u32 %v325, %v337
      %v345 = vand.u32 %v326, %v337
      %v348 = vand.u32 %v327, %v337
      %350 = vmatprep.subr.bf16.mxu0 %v342
      %351 = vmatpush1.bf16.msra.mxu0 %v339
      %352 = vmatprep.subr.bf16.mxu0 0
      %353 = vmatpush1.bf16.msra.mxu0 0
      %354 = vmatprep.subr.bf16.mxu0 0
      %355 = vmatpush1.bf16.msra.mxu0 0
      %356 = vmatprep.subr.bf16.mxu0 0
      %357 = vmatpush1.bf16.msra.mxu0 0
      %358 = vmatprep.subr.bf16.mxu0 0
      %359 = vmatpush1.bf16.msra.mxu0 0
      %360 = vmatprep.subr.bf16.mxu0 0
      %361 = vmatpush1.bf16.msra.mxu0 0
      %362 = vmatprep.subr.bf16.mxu0 0
      %363 = vmatpush1.bf16.msra.mxu0 0
      %364 = vmatprep.subr.bf16.mxu0 0
      %365 = vmatpush1.bf16.msra.mxu0 0
      %366 = vmatprep.subr.bf16.mxu0 0
      %367 = vmatpush1.bf16.msra.mxu0 0
      %368 = vmatprep.subr.bf16.mxu0 0
      %369 = vmatpush1.bf16.msra.mxu0 0
      %370 = vmatprep.subr.bf16.mxu0 0
      %371 = vmatpush1.bf16.msra.mxu0 0
      %372 = vmatprep.subr.bf16.mxu0 0
      %373 = vmatpush1.bf16.msra.mxu0 0
      %374 = vmatprep.subr.bf16.mxu0 0
      %375 = vmatpush1.bf16.msra.mxu0 0
      %376 = vmatprep.subr.bf16.mxu0 0
      %377 = vmatpush1.bf16.msra.mxu0 0
      %378 = vmatprep.subr.bf16.mxu0 0
      %379 = vmatpush1.bf16.msra.mxu0 0
      %380 = vmatprep.subr.bf16.mxu0 0
      %381 = vmatpush1.bf16.msra.mxu0 0
      %382 = vmatprep.mubr.bf16.mxu0 0
      %383 = vmatmul.mubr.bf16.gmra.mrb[0].mxu0 %v332
      %v384 = vpop.f32.mrb[0].mxu0
      %v385 = vadd.f32 0.0, %v384
      %v386 = vpop.f32.mrb[0].mxu0
      %v387 = vadd.f32 0.0, %v386
      %v388 = vpop.f32.mrb[0].mxu0
      %v389 = vpop.f32.mrb[0].mxu0
      %390 = vdwg.mxu0
      %391 = vmatprep.subr.bf16.mxu0 %v348
      %392 = vmatpush1.bf16.msra.mxu0 %v345
      %393 = vmatprep.subr.bf16.mxu0 0
      %394 = vmatpush1.bf16.msra.mxu0 0
      %395 = vmatprep.subr.bf16.mxu0 0
      %396 = vmatpush1.bf16.msra.mxu0 0
      %397 = vmatprep.subr.bf16.mxu0 0
      %398 = vmatpush1.bf16.msra.mxu0 0
      %399 = vmatprep.subr.bf16.mxu0 0
      %400 = vmatpush1.bf16.msra.mxu0 0
      %401 = vmatprep.subr.bf16.mxu0 0
      %402 = vmatpush1.bf16.msra.mxu0 0
      %403 = vmatprep.subr.bf16.mxu0 0
      %404 = vmatpush1.bf16.msra.mxu0 0
      %405 = vmatprep.subr.bf16.mxu0 0
      %406 = vmatpush1.bf16.msra.mxu0 0
      %407 = vmatprep.subr.bf16.mxu0 0
      %408 = vmatpush1.bf16.msra.mxu0 0
      %409 = vmatprep.subr.bf16.mxu0 0
      %410 = vmatpush1.bf16.msra.mxu0 0
      %411 = vmatprep.subr.bf16.mxu0 0
      %412 = vmatpush1.bf16.msra.mxu0 0
      %413 = vmatprep.subr.bf16.mxu0 0
      %414 = vmatpush1.bf16.msra.mxu0 0
      %415 = vmatprep.subr.bf16.mxu0 0
      %416 = vmatpush1.bf16.msra.mxu0 0
      %417 = vmatprep.subr.bf16.mxu0 0
      %418 = vmatpush1.bf16.msra.mxu0 0
      %419 = vmatprep.subr.bf16.mxu0 0
      %420 = vmatpush1.bf16.msra.mxu0 0
      %421 = vmatprep.subr.bf16.mxu0 0
      %422 = vmatpush1.bf16.msra.mxu0 0
      %423 = vmatprep.mubr.bf16.mxu0 0
      %424 = vmatmul.mubr.bf16.gmra.mrb[0].mxu0 %v332
      %v425 = vpop.f32.mrb[0].mxu0
      %v426 = vadd.f32 0.0, %v425
      %v427 = vpop.f32.mrb[0].mxu0
      %v428 = vadd.f32 0.0, %v427
      %v429 = vpop.f32.mrb[0].mxu0
      %v430 = vpop.f32.mrb[0].mxu0
      %431 = vdwg.mxu0
      %v433 = vsel %vm330, %v283, 0
      %v436 = vand.u32 %v279, %v337
      %v439 = vand.u32 %v280, %v337
      %v442 = vand.u32 %v281, %v337
      %v445 = vand.u32 %v282, %v337
      %447 = vmatprep.subr.bf16.mxu0 %v439
      %448 = vmatpush1.bf16.msra.mxu0 %v436
      %449 = vmatprep.subr.bf16.mxu0 0
      %450 = vmatpush1.bf16.msra.mxu0 0
      %451 = vmatprep.subr.bf16.mxu0 0
      %452 = vmatpush1.bf16.msra.mxu0 0
      %453 = vmatprep.subr.bf16.mxu0 0
      %454 = vmatpush1.bf16.msra.mxu0 0
      %455 = vmatprep.subr.bf16.mxu0 0
      %456 = vmatpush1.bf16.msra.mxu0 0
      %457 = vmatprep.subr.bf16.mxu0 0
      %458 = vmatpush1.bf16.msra.mxu0 0
      %459 = vmatprep.subr.bf16.mxu0 0
      %460 = vmatpush1.bf16.msra.mxu0 0
      %461 = vmatprep.subr.bf16.mxu0 0
      %462 = vmatpush1.bf16.msra.mxu0 0
      %463 = vmatprep.subr.bf16.mxu0 0
      %464 = vmatpush1.bf16.msra.mxu0 0
      %465 = vmatprep.subr.bf16.mxu0 0
      %466 = vmatpush1.bf16.msra.mxu0 0
      %467 = vmatprep.subr.bf16.mxu0 0
      %468 = vmatpush1.bf16.msra.mxu0 0
      %469 = vmatprep.subr.bf16.mxu0 0
      %470 = vmatpush1.bf16.msra.mxu0 0
      %471 = vmatprep.subr.bf16.mxu0 0
      %472 = vmatpush1.bf16.msra.mxu0 0
      %473 = vmatprep.subr.bf16.mxu0 0
      %474 = vmatpush1.bf16.msra.mxu0 0
      %475 = vmatprep.subr.bf16.mxu0 0
      %476 = vmatpush1.bf16.msra.mxu0 0
      %477 = vmatprep.subr.bf16.mxu0 0
      %478 = vmatpush1.bf16.msra.mxu0 0
      %479 = vmatprep.mubr.bf16.mxu0 0
      %480 = vmatmul.mubr.bf16.gmra.mrb[0].mxu0 %v433
      %v481 = vpop.f32.mrb[0].mxu0
      %v482 = vadd.f32 %v385, %v481
      %v483 = vpop.f32.mrb[0].mxu0
      %v484 = vadd.f32 %v387, %v483
      %v485 = vpop.f32.mrb[0].mxu0
      %v486 = vpop.f32.mrb[0].mxu0
      %487 = vdwg.mxu0
      %488 = vmatprep.subr.bf16.mxu0 %v445
      %489 = vmatpush1.bf16.msra.mxu0 %v442
      %490 = vmatprep.subr.bf16.mxu0 0
      %491 = vmatpush1.bf16.msra.mxu0 0
      %492 = vmatprep.subr.bf16.mxu0 0
      %493 = vmatpush1.bf16.msra.mxu0 0
      %494 = vmatprep.subr.bf16.mxu0 0
      %495 = vmatpush1.bf16.msra.mxu0 0
      %496 = vmatprep.subr.bf16.mxu0 0
      %497 = vmatpush1.bf16.msra.mxu0 0
      %498 = vmatprep.subr.bf16.mxu0 0
      %499 = vmatpush1.bf16.msra.mxu0 0
      %500 = vmatprep.subr.bf16.mxu0 0
      %501 = vmatpush1.bf16.msra.mxu0 0
      %502 = vmatprep.subr.bf16.mxu0 0
      %503 = vmatpush1.bf16.msra.mxu0 0
      %504 = vmatprep.subr.bf16.mxu0 0
      %505 = vmatpush1.bf16.msra.mxu0 0
      %506 = vmatprep.subr.bf16.mxu0 0
      %507 = vmatpush1.bf16.msra.mxu0 0
      %508 = vmatprep.subr.bf16.mxu0 0
      %509 = vmatpush1.bf16.msra.mxu0 0
      %510 = vmatprep.subr.bf16.mxu0 0
      %511 = vmatpush1.bf16.msra.mxu0 0
      %512 = vmatprep.subr.bf16.mxu0 0
      %513 = vmatpush1.bf16.msra.mxu0 0
      %514 = vmatprep.subr.bf16.mxu0 0
      %515 = vmatpush1.bf16.msra.mxu0 0
      %516 = vmatprep.subr.bf16.mxu0 0
      %517 = vmatpush1.bf16.msra.mxu0 0
      %518 = vmatprep.subr.bf16.mxu0 0
      %519 = vmatpush1.bf16.msra.mxu0 0
      %520 = vmatprep.mubr.bf16.mxu0 0
      %521 = vmatmul.mubr.bf16.gmra.mrb[0].mxu0 %v433
      %v522 = vpop.f32.mrb[0].mxu0
      %v523 = vadd.f32 %v426, %v522
      %v524 = vpop.f32.mrb[0].mxu0
      %v525 = vadd.f32 %v428, %v524
      %v526 = vpop.f32.mrb[0].mxu0
      %v527 = vpop.f32.mrb[0].mxu0
      %528 = vdwg.mxu0
      %529 = vrot.lane.b32.xlu0 %v230, 15
      %v530 = vpop.permute.xlu0 %529
      %531 = vrot.lane.b32.xlu0 %v234, 15
      %v532 = vpop.permute.xlu0 %531
      %533 = vrot.lane.b32.xlu0 %v231, 15
      %v534 = vpop.permute.xlu0 %533
      %535 = vrot.lane.b32.xlu0 %v235, 15
      %v536 = vpop.permute.xlu0 %535
      %vm537 = vcmp.lt.s32.totalorder %v247, 15
      %v538 = vsel %vm537, %v534, %v536
      %v539 = vsel %vm537, %v532, %v534
      %v540 = vsel %vm537, %v530, %v532
      %v541 = vsel %vm537, %v536, %v530
      %s542 = scalar_lea.vmem %s3, 8
      %v543 = vld [vmem:[%s542] sm:$0xf]
      %v545 = vlaneseq
      %v546 = vshrl.u32 %v545, 7
      %v547 = vsub.s32 0, %v546
      %v548 = vrot.slane %v543, %v547
      %v549 = vlaneseq
      %v550 = vshrl.u32 %v549, 7
      %v551 = vsub.s32 1, %v550
      %v552 = vrot.slane %v543, %v551
      %v553 = vlaneseq
      %v554 = vshrl.u32 %v553, 7
      %v555 = vsub.s32 2, %v554
      %v556 = vrot.slane %v543, %v555
      %v557 = vlaneseq
      %v558 = vshrl.u32 %v557, 7
      %v559 = vsub.s32 3, %v558
      %v560 = vrot.slane %v543, %v559
      %v565 = vmul.f32 %v541, %v548
      %v566 = vmul.f32 %v540, %v552
      %v567 = vmul.f32 %v539, %v556
      %v568 = vmul.f32 %v538, %v560
      %v569 = vpack.c.bf16 %v565, %v565
      %v570 = vpack.c.bf16 %v566, %v566
      %v571 = vpack.c.bf16 %v567, %v567
      %v572 = vpack.c.bf16 %v568, %v568
      %s573 = scalar_lea.vmem %s1, 8
      %v574 = vld [vmem:[%s573] sm:$0xf]
      %v576 = vsel %vm330, %v574, 0
      %v579 = vand.u32 %v569, %v337
      %v582 = vand.u32 %v570, %v337
      %v585 = vand.u32 %v571, %v337
      %v588 = vand.u32 %v572, %v337
      %590 = vmatprep.subr.bf16.mxu0 %v582
      %591 = vmatpush1.bf16.msra.mxu0 %v579
      %592 = vmatprep.subr.bf16.mxu0 0
      %593 = vmatpush1.bf16.msra.mxu0 0
      %594 = vmatprep.subr.bf16.mxu0 0
      %595 = vmatpush1.bf16.msra.mxu0 0
      %596 = vmatprep.subr.bf16.mxu0 0
      %597 = vmatpush1.bf16.msra.mxu0 0
      %598 = vmatprep.subr.bf16.mxu0 0
      %599 = vmatpush1.bf16.msra.mxu0 0
      %600 = vmatprep.subr.bf16.mxu0 0
      %601 = vmatpush1.bf16.msra.mxu0 0
      %602 = vmatprep.subr.bf16.mxu0 0
      %603 = vmatpush1.bf16.msra.mxu0 0
      %604 = vmatprep.subr.bf16.mxu0 0
      %605 = vmatpush1.bf16.msra.mxu0 0
      %606 = vmatprep.subr.bf16.mxu0 0
      %607 = vmatpush1.bf16.msra.mxu0 0
      %608 = vmatprep.subr.bf16.mxu0 0
      %609 = vmatpush1.bf16.msra.mxu0 0
      %610 = vmatprep.subr.bf16.mxu0 0
      %611 = vmatpush1.bf16.msra.mxu0 0
      %612 = vmatprep.subr.bf16.mxu0 0
      %613 = vmatpush1.bf16.msra.mxu0 0
      %614 = vmatprep.subr.bf16.mxu0 0
      %615 = vmatpush1.bf16.msra.mxu0 0
      %616 = vmatprep.subr.bf16.mxu0 0
      %617 = vmatpush1.bf16.msra.mxu0 0
      %618 = vmatprep.subr.bf16.mxu0 0
      %619 = vmatpush1.bf16.msra.mxu0 0
      %620 = vmatprep.subr.bf16.mxu0 0
      %621 = vmatpush1.bf16.msra.mxu0 0
      %622 = vmatprep.mubr.bf16.mxu0 0
      %623 = vmatmul.mubr.bf16.gmra.mrb[0].mxu0 %v576
      %v624 = vpop.f32.mrb[0].mxu0
      %v625 = vadd.f32 0.0, %v624
      %v626 = vpop.f32.mrb[0].mxu0
      %v627 = vadd.f32 0.0, %v626
      %v628 = vpop.f32.mrb[0].mxu0
      %v629 = vpop.f32.mrb[0].mxu0
      %630 = vdwg.mxu0
      %631 = vmatprep.subr.bf16.mxu0 %v588
      %632 = vmatpush1.bf16.msra.mxu0 %v585
      %633 = vmatprep.subr.bf16.mxu0 0
      %634 = vmatpush1.bf16.msra.mxu0 0
      %635 = vmatprep.subr.bf16.mxu0 0
      %636 = vmatpush1.bf16.msra.mxu0 0
      %637 = vmatprep.subr.bf16.mxu0 0
      %638 = vmatpush1.bf16.msra.mxu0 0
      %639 = vmatprep.subr.bf16.mxu0 0
      %640 = vmatpush1.bf16.msra.mxu0 0
      %641 = vmatprep.subr.bf16.mxu0 0
      %642 = vmatpush1.bf16.msra.mxu0 0
      %643 = vmatprep.subr.bf16.mxu0 0
      %644 = vmatpush1.bf16.msra.mxu0 0
      %645 = vmatprep.subr.bf16.mxu0 0
      %646 = vmatpush1.bf16.msra.mxu0 0
      %647 = vmatprep.subr.bf16.mxu0 0
      %648 = vmatpush1.bf16.msra.mxu0 0
      %649 = vmatprep.subr.bf16.mxu0 0
      %650 = vmatpush1.bf16.msra.mxu0 0
      %651 = vmatprep.subr.bf16.mxu0 0
      %652 = vmatpush1.bf16.msra.mxu0 0
      %653 = vmatprep.subr.bf16.mxu0 0
      %654 = vmatpush1.bf16.msra.mxu0 0
      %655 = vmatprep.subr.bf16.mxu0 0
      %656 = vmatpush1.bf16.msra.mxu0 0
      %657 = vmatprep.subr.bf16.mxu0 0
      %658 = vmatpush1.bf16.msra.mxu0 0
      %659 = vmatprep.subr.bf16.mxu0 0
      %660 = vmatpush1.bf16.msra.mxu0 0
      %661 = vmatprep.subr.bf16.mxu0 0
      %662 = vmatpush1.bf16.msra.mxu0 0
      %663 = vmatprep.mubr.bf16.mxu0 0
      %664 = vmatmul.mubr.bf16.gmra.mrb[0].mxu0 %v576
      %v665 = vpop.f32.mrb[0].mxu0
      %v666 = vadd.f32 0.0, %v665
      %v667 = vpop.f32.mrb[0].mxu0
      %v668 = vadd.f32 0.0, %v667
      %v669 = vpop.f32.mrb[0].mxu0
      %v670 = vpop.f32.mrb[0].mxu0
      %671 = vdwg.mxu0
      %v672 = vadd.f32 %v482, %v625
      %v673 = vadd.f32 %v484, %v627
      %v674 = vadd.f32 %v523, %v666
      %v675 = vadd.f32 %v525, %v668
      %676 = vrot.lane.b32.xlu0 %v230, 1
      %v677 = vpop.permute.xlu0 %676
      %678 = vrot.lane.b32.xlu0 %v234, 1
      %v679 = vpop.permute.xlu0 %678
      %680 = vrot.lane.b32.xlu0 %v231, 1
      %v681 = vpop.permute.xlu0 %680
      %682 = vrot.lane.b32.xlu0 %v235, 1
      %v683 = vpop.permute.xlu0 %682
      %vm684 = vcmp.lt.s32.totalorder %v247, 1
      %v685 = vsel %vm684, %v681, %v683
      %v686 = vsel %vm684, %v679, %v681
      %v687 = vsel %vm684, %v677, %v679
      %v688 = vsel %vm684, %v683, %v677
      %s689 = scalar_lea.vmem %s3, 12
      %v690 = vld [vmem:[%s689] sm:$0xf]
      %v692 = vlaneseq
      %v693 = vshrl.u32 %v692, 7
      %v694 = vsub.s32 0, %v693
      %v695 = vrot.slane %v690, %v694
      %v696 = vlaneseq
      %v697 = vshrl.u32 %v696, 7
      %v698 = vsub.s32 1, %v697
      %v699 = vrot.slane %v690, %v698
      %v700 = vlaneseq
      %v701 = vshrl.u32 %v700, 7
      %v702 = vsub.s32 2, %v701
      %v703 = vrot.slane %v690, %v702
      %v704 = vlaneseq
      %v705 = vshrl.u32 %v704, 7
      %v706 = vsub.s32 3, %v705
      %v707 = vrot.slane %v690, %v706
      %v712 = vmul.f32 %v688, %v695
      %v713 = vmul.f32 %v687, %v699
      %v714 = vmul.f32 %v686, %v703
      %v715 = vmul.f32 %v685, %v707
      %v716 = vpack.c.bf16 %v712, %v712
      %v717 = vpack.c.bf16 %v713, %v713
      %v718 = vpack.c.bf16 %v714, %v714
      %v719 = vpack.c.bf16 %v715, %v715
      %s720 = scalar_lea.vmem %s1, 12
      %v721 = vld [vmem:[%s720] sm:$0xf]
      %v723 = vsel %vm330, %v721, 0
      %v726 = vand.u32 %v716, %v337
      %v729 = vand.u32 %v717, %v337
      %v732 = vand.u32 %v718, %v337
      %v735 = vand.u32 %v719, %v337
      %737 = vmatprep.subr.bf16.mxu0 %v729
      %738 = vmatpush1.bf16.msra.mxu0 %v726
      %739 = vmatprep.subr.bf16.mxu0 0
      %740 = vmatpush1.bf16.msra.mxu0 0
      %741 = vmatprep.subr.bf16.mxu0 0
      %742 = vmatpush1.bf16.msra.mxu0 0
      %743 = vmatprep.subr.bf16.mxu0 0
      %744 = vmatpush1.bf16.msra.mxu0 0
      %745 = vmatprep.subr.bf16.mxu0 0
      %746 = vmatpush1.bf16.msra.mxu0 0
      %747 = vmatprep.subr.bf16.mxu0 0
      %748 = vmatpush1.bf16.msra.mxu0 0
      %749 = vmatprep.subr.bf16.mxu0 0
      %750 = vmatpush1.bf16.msra.mxu0 0
      %751 = vmatprep.subr.bf16.mxu0 0
      %752 = vmatpush1.bf16.msra.mxu0 0
      %753 = vmatprep.subr.bf16.mxu0 0
      %754 = vmatpush1.bf16.msra.mxu0 0
      %755 = vmatprep.subr.bf16.mxu0 0
      %756 = vmatpush1.bf16.msra.mxu0 0
      %757 = vmatprep.subr.bf16.mxu0 0
      %758 = vmatpush1.bf16.msra.mxu0 0
      %759 = vmatprep.subr.bf16.mxu0 0
      %760 = vmatpush1.bf16.msra.mxu0 0
      %761 = vmatprep.subr.bf16.mxu0 0
      %762 = vmatpush1.bf16.msra.mxu0 0
      %763 = vmatprep.subr.bf16.mxu0 0
      %764 = vmatpush1.bf16.msra.mxu0 0
      %765 = vmatprep.subr.bf16.mxu0 0
      %766 = vmatpush1.bf16.msra.mxu0 0
      %767 = vmatprep.subr.bf16.mxu0 0
      %768 = vmatpush1.bf16.msra.mxu0 0
      %769 = vmatprep.mubr.bf16.mxu0 0
      %770 = vmatmul.mubr.bf16.gmra.mrb[0].mxu0 %v723
      %v771 = vpop.f32.mrb[0].mxu0
      %v772 = vadd.f32 0.0, %v771
      %v773 = vpop.f32.mrb[0].mxu0
      %v774 = vadd.f32 0.0, %v773
      %v775 = vpop.f32.mrb[0].mxu0
      %v776 = vpop.f32.mrb[0].mxu0
      %777 = vdwg.mxu0
      %778 = vmatprep.subr.bf16.mxu0 %v735
      %779 = vmatpush1.bf16.msra.mxu0 %v732
      %780 = vmatprep.subr.bf16.mxu0 0
      %781 = vmatpush1.bf16.msra.mxu0 0
      %782 = vmatprep.subr.bf16.mxu0 0
      %783 = vmatpush1.bf16.msra.mxu0 0
      %784 = vmatprep.subr.bf16.mxu0 0
      %785 = vmatpush1.bf16.msra.mxu0 0
      %786 = vmatprep.subr.bf16.mxu0 0
      %787 = vmatpush1.bf16.msra.mxu0 0
      %788 = vmatprep.subr.bf16.mxu0 0
      %789 = vmatpush1.bf16.msra.mxu0 0
      %790 = vmatprep.subr.bf16.mxu0 0
      %791 = vmatpush1.bf16.msra.mxu0 0
      %792 = vmatprep.subr.bf16.mxu0 0
      %793 = vmatpush1.bf16.msra.mxu0 0
      %794 = vmatprep.subr.bf16.mxu0 0
      %795 = vmatpush1.bf16.msra.mxu0 0
      %796 = vmatprep.subr.bf16.mxu0 0
      %797 = vmatpush1.bf16.msra.mxu0 0
      %798 = vmatprep.subr.bf16.mxu0 0
      %799 = vmatpush1.bf16.msra.mxu0 0
      %800 = vmatprep.subr.bf16.mxu0 0
      %801 = vmatpush1.bf16.msra.mxu0 0
      %802 = vmatprep.subr.bf16.mxu0 0
      %803 = vmatpush1.bf16.msra.mxu0 0
      %804 = vmatprep.subr.bf16.mxu0 0
      %805 = vmatpush1.bf16.msra.mxu0 0
      %806 = vmatprep.subr.bf16.mxu0 0
      %807 = vmatpush1.bf16.msra.mxu0 0
      %808 = vmatprep.subr.bf16.mxu0 0
      %809 = vmatpush1.bf16.msra.mxu0 0
      %810 = vmatprep.mubr.bf16.mxu0 0
      %811 = vmatmul.mubr.bf16.gmra.mrb[0].mxu0 %v723
      %v812 = vpop.f32.mrb[0].mxu0
      %v813 = vadd.f32 0.0, %v812
      %v814 = vpop.f32.mrb[0].mxu0
      %v815 = vadd.f32 0.0, %v814
      %v816 = vpop.f32.mrb[0].mxu0
      %v817 = vpop.f32.mrb[0].mxu0
      %818 = vdwg.mxu0
      %v819 = vadd.f32 %v672, %v772
      %v820 = vadd.f32 %v673, %v774
      %v821 = vadd.f32 %v674, %v813
      %v822 = vadd.f32 %v675, %v815
      %s823 = scalar_lea.vmem %s3, 16
      %v824 = vld [vmem:[%s823] sm:$0xf]
      %v826 = vlaneseq
      %v827 = vshrl.u32 %v826, 7
      %v828 = vsub.s32 0, %v827
      %v829 = vrot.slane %v824, %v828
      %v830 = vlaneseq
      %v831 = vshrl.u32 %v830, 7
      %v832 = vsub.s32 1, %v831
      %v833 = vrot.slane %v824, %v832
      %v834 = vlaneseq
      %v835 = vshrl.u32 %v834, 7
      %v836 = vsub.s32 2, %v835
      %v837 = vrot.slane %v824, %v836
      %v838 = vlaneseq
      %v839 = vshrl.u32 %v838, 7
      %v840 = vsub.s32 3, %v839
      %v841 = vrot.slane %v824, %v840
      %v842 = vcombine.low %v829, %v833
      %v843 = vcombine.low %v837, %v841
      %v846 = vmul.f32 %v230, %v842
      %v847 = vmul.f32 %v231, %v843
      %v850 = vcombine.high %v846, %v846
      %v851 = vcombine.high %v847, %v847
      %v854 = vpack.c.bf16 %v846, %v846
      %v855 = vpack.c.bf16 %v850, %v850
      %v856 = vpack.c.bf16 %v847, %v847
      %v857 = vpack.c.bf16 %v851, %v851
      %s858 = scalar_lea.vmem %s1, 16
      %v859 = vld [vmem:[%s858] sm:$0xf]
      %v861 = vsel %vm330, %v859, 0
      %v864 = vand.u32 %v854, %v337
      %v867 = vand.u32 %v855, %v337
      %v870 = vand.u32 %v856, %v337
      %v873 = vand.u32 %v857, %v337
      %875 = vmatprep.subr.bf16.mxu0 %v867
      %876 = vmatpush1.bf16.msra.mxu0 %v864
      %877 = vmatprep.subr.bf16.mxu0 0
      %878 = vmatpush1.bf16.msra.mxu0 0
      %879 = vmatprep.subr.bf16.mxu0 0
      %880 = vmatpush1.bf16.msra.mxu0 0
      %881 = vmatprep.subr.bf16.mxu0 0
      %882 = vmatpush1.bf16.msra.mxu0 0
      %883 = vmatprep.subr.bf16.mxu0 0
      %884 = vmatpush1.bf16.msra.mxu0 0
      %885 = vmatprep.subr.bf16.mxu0 0
      %886 = vmatpush1.bf16.msra.mxu0 0
      %887 = vmatprep.subr.bf16.mxu0 0
      %888 = vmatpush1.bf16.msra.mxu0 0
      %889 = vmatprep.subr.bf16.mxu0 0
      %890 = vmatpush1.bf16.msra.mxu0 0
      %891 = vmatprep.subr.bf16.mxu0 0
      %892 = vmatpush1.bf16.msra.mxu0 0
      %893 = vmatprep.subr.bf16.mxu0 0
      %894 = vmatpush1.bf16.msra.mxu0 0
      %895 = vmatprep.subr.bf16.mxu0 0
      %896 = vmatpush1.bf16.msra.mxu0 0
      %897 = vmatprep.subr.bf16.mxu0 0
      %898 = vmatpush1.bf16.msra.mxu0 0
      %899 = vmatprep.subr.bf16.mxu0 0
      %900 = vmatpush1.bf16.msra.mxu0 0
      %901 = vmatprep.subr.bf16.mxu0 0
      %902 = vmatpush1.bf16.msra.mxu0 0
      %903 = vmatprep.subr.bf16.mxu0 0
      %904 = vmatpush1.bf16.msra.mxu0 0
      %905 = vmatprep.subr.bf16.mxu0 0
      %906 = vmatpush1.bf16.msra.mxu0 0
      %907 = vmatprep.mubr.bf16.mxu0 0
      %908 = vmatmul.mubr.bf16.gmra.mrb[0].mxu0 %v861
      %v909 = vpop.f32.mrb[0].mxu0
      %v910 = vadd.f32 0.0, %v909
      %v911 = vpop.f32.mrb[0].mxu0
      %v912 = vadd.f32 0.0, %v911
      %v913 = vpop.f32.mrb[0].mxu0
      %v914 = vpop.f32.mrb[0].mxu0
      %915 = vdwg.mxu0
      %916 = vmatprep.subr.bf16.mxu0 %v873
      %917 = vmatpush1.bf16.msra.mxu0 %v870
      %918 = vmatprep.subr.bf16.mxu0 0
      %919 = vmatpush1.bf16.msra.mxu0 0
      %920 = vmatprep.subr.bf16.mxu0 0
      %921 = vmatpush1.bf16.msra.mxu0 0
      %922 = vmatprep.subr.bf16.mxu0 0
      %923 = vmatpush1.bf16.msra.mxu0 0
      %924 = vmatprep.subr.bf16.mxu0 0
      %925 = vmatpush1.bf16.msra.mxu0 0
      %926 = vmatprep.subr.bf16.mxu0 0
      %927 = vmatpush1.bf16.msra.mxu0 0
      %928 = vmatprep.subr.bf16.mxu0 0
      %929 = vmatpush1.bf16.msra.mxu0 0
      %930 = vmatprep.subr.bf16.mxu0 0
      %931 = vmatpush1.bf16.msra.mxu0 0
      %932 = vmatprep.subr.bf16.mxu0 0
      %933 = vmatpush1.bf16.msra.mxu0 0
      %934 = vmatprep.subr.bf16.mxu0 0
      %935 = vmatpush1.bf16.msra.mxu0 0
      %936 = vmatprep.subr.bf16.mxu0 0
      %937 = vmatpush1.bf16.msra.mxu0 0
      %938 = vmatprep.subr.bf16.mxu0 0
      %939 = vmatpush1.bf16.msra.mxu0 0
      %940 = vmatprep.subr.bf16.mxu0 0
      %941 = vmatpush1.bf16.msra.mxu0 0
      %942 = vmatprep.subr.bf16.mxu0 0
      %943 = vmatpush1.bf16.msra.mxu0 0
      %944 = vmatprep.subr.bf16.mxu0 0
      %945 = vmatpush1.bf16.msra.mxu0 0
      %946 = vmatprep.subr.bf16.mxu0 0
      %947 = vmatpush1.bf16.msra.mxu0 0
      %948 = vmatprep.mubr.bf16.mxu0 0
      %949 = vmatmul.mubr.bf16.gmra.mrb[0].mxu0 %v861
      %v950 = vpop.f32.mrb[0].mxu0
      %v951 = vadd.f32 0.0, %v950
      %v952 = vpop.f32.mrb[0].mxu0
      %v953 = vadd.f32 0.0, %v952
      %v954 = vpop.f32.mrb[0].mxu0
      %v955 = vpop.f32.mrb[0].mxu0
      %956 = vdwg.mxu0
      %v957 = vadd.f32 %v819, %v910
      %v958 = vadd.f32 %v820, %v912
      %v959 = vadd.f32 %v821, %v951
      %v960 = vadd.f32 %v822, %v953
      %961 = vrot.lane.b32.xlu0 %v230, 127
      %v962 = vpop.permute.xlu0 %961
      %963 = vrot.lane.b32.xlu0 %v234, 127
      %v964 = vpop.permute.xlu0 %963
      %965 = vrot.lane.b32.xlu0 %v231, 127
      %v966 = vpop.permute.xlu0 %965
      %967 = vrot.lane.b32.xlu0 %v235, 127
      %v968 = vpop.permute.xlu0 %967
      %vm969 = vcmp.lt.s32.totalorder %v247, 127
      %v970 = vsel %vm969, %v966, %v968
      %v971 = vsel %vm969, %v964, %v966
      %v972 = vsel %vm969, %v962, %v964
      %v973 = vsel %vm969, %v968, %v962
      %s974 = scalar_lea.vmem %s3, 20
      %v975 = vld [vmem:[%s974] sm:$0xf]
      %v977 = vlaneseq
      %v978 = vshrl.u32 %v977, 7
      %v979 = vsub.s32 0, %v978
      %v980 = vrot.slane %v975, %v979
      %v981 = vlaneseq
      %v982 = vshrl.u32 %v981, 7
      %v983 = vsub.s32 1, %v982
      %v984 = vrot.slane %v975, %v983
      %v985 = vlaneseq
      %v986 = vshrl.u32 %v985, 7
      %v987 = vsub.s32 2, %v986
      %v988 = vrot.slane %v975, %v987
      %v989 = vlaneseq
      %v990 = vshrl.u32 %v989, 7
      %v991 = vsub.s32 3, %v990
      %v992 = vrot.slane %v975, %v991
      %v997 = vmul.f32 %v972, %v980
      %v998 = vmul.f32 %v971, %v984
      %v999 = vmul.f32 %v970, %v988
      %v1000 = vmul.f32 %v973, %v992
      %v1001 = vpack.c.bf16 %v997, %v997
      %v1002 = vpack.c.bf16 %v998, %v998
      %v1003 = vpack.c.bf16 %v999, %v999
      %v1004 = vpack.c.bf16 %v1000, %v1000
      %s1005 = scalar_lea.vmem %s1, 20
      %v1006 = vld [vmem:[%s1005] sm:$0xf]
      %v1008 = vsel %vm330, %v1006, 0
      %v1011 = vand.u32 %v1001, %v337
      %v1014 = vand.u32 %v1002, %v337
      %v1017 = vand.u32 %v1003, %v337
      %v1020 = vand.u32 %v1004, %v337
      %1022 = vmatprep.subr.bf16.mxu0 %v1014
      %1023 = vmatpush1.bf16.msra.mxu0 %v1011
      %1024 = vmatprep.subr.bf16.mxu0 0
      %1025 = vmatpush1.bf16.msra.mxu0 0
      %1026 = vmatprep.subr.bf16.mxu0 0
      %1027 = vmatpush1.bf16.msra.mxu0 0
      %1028 = vmatprep.subr.bf16.mxu0 0
      %1029 = vmatpush1.bf16.msra.mxu0 0
      %1030 = vmatprep.subr.bf16.mxu0 0
      %1031 = vmatpush1.bf16.msra.mxu0 0
      %1032 = vmatprep.subr.bf16.mxu0 0
      %1033 = vmatpush1.bf16.msra.mxu0 0
      %1034 = vmatprep.subr.bf16.mxu0 0
      %1035 = vmatpush1.bf16.msra.mxu0 0
      %1036 = vmatprep.subr.bf16.mxu0 0
      %1037 = vmatpush1.bf16.msra.mxu0 0
      %1038 = vmatprep.subr.bf16.mxu0 0
      %1039 = vmatpush1.bf16.msra.mxu0 0
      %1040 = vmatprep.subr.bf16.mxu0 0
      %1041 = vmatpush1.bf16.msra.mxu0 0
      %1042 = vmatprep.subr.bf16.mxu0 0
      %1043 = vmatpush1.bf16.msra.mxu0 0
      %1044 = vmatprep.subr.bf16.mxu0 0
      %1045 = vmatpush1.bf16.msra.mxu0 0
      %1046 = vmatprep.subr.bf16.mxu0 0
      %1047 = vmatpush1.bf16.msra.mxu0 0
      %1048 = vmatprep.subr.bf16.mxu0 0
      %1049 = vmatpush1.bf16.msra.mxu0 0
      %1050 = vmatprep.subr.bf16.mxu0 0
      %1051 = vmatpush1.bf16.msra.mxu0 0
      %1052 = vmatprep.subr.bf16.mxu0 0
      %1053 = vmatpush1.bf16.msra.mxu0 0
      %1054 = vmatprep.mubr.bf16.mxu0 0
      %1055 = vmatmul.mubr.bf16.gmra.mrb[0].mxu0 %v1008
      %v1056 = vpop.f32.mrb[0].mxu0
      %v1057 = vadd.f32 0.0, %v1056
      %v1058 = vpop.f32.mrb[0].mxu0
      %v1059 = vadd.f32 0.0, %v1058
      %v1060 = vpop.f32.mrb[0].mxu0
      %v1061 = vpop.f32.mrb[0].mxu0
      %1062 = vdwg.mxu0
      %1063 = vmatprep.subr.bf16.mxu0 %v1020
      %1064 = vmatpush1.bf16.msra.mxu0 %v1017
      %1065 = vmatprep.subr.bf16.mxu0 0
      %1066 = vmatpush1.bf16.msra.mxu0 0
      %1067 = vmatprep.subr.bf16.mxu0 0
      %1068 = vmatpush1.bf16.msra.mxu0 0
      %1069 = vmatprep.subr.bf16.mxu0 0
      %1070 = vmatpush1.bf16.msra.mxu0 0
      %1071 = vmatprep.subr.bf16.mxu0 0
      %1072 = vmatpush1.bf16.msra.mxu0 0
      %1073 = vmatprep.subr.bf16.mxu0 0
      %1074 = vmatpush1.bf16.msra.mxu0 0
      %1075 = vmatprep.subr.bf16.mxu0 0
      %1076 = vmatpush1.bf16.msra.mxu0 0
      %1077 = vmatprep.subr.bf16.mxu0 0
      %1078 = vmatpush1.bf16.msra.mxu0 0
      %1079 = vmatprep.subr.bf16.mxu0 0
      %1080 = vmatpush1.bf16.msra.mxu0 0
      %1081 = vmatprep.subr.bf16.mxu0 0
      %1082 = vmatpush1.bf16.msra.mxu0 0
      %1083 = vmatprep.subr.bf16.mxu0 0
      %1084 = vmatpush1.bf16.msra.mxu0 0
      %1085 = vmatprep.subr.bf16.mxu0 0
      %1086 = vmatpush1.bf16.msra.mxu0 0
      %1087 = vmatprep.subr.bf16.mxu0 0
      %1088 = vmatpush1.bf16.msra.mxu0 0
      %1089 = vmatprep.subr.bf16.mxu0 0
      %1090 = vmatpush1.bf16.msra.mxu0 0
      %1091 = vmatprep.subr.bf16.mxu0 0
      %1092 = vmatpush1.bf16.msra.mxu0 0
      %1093 = vmatprep.subr.bf16.mxu0 0
      %1094 = vmatpush1.bf16.msra.mxu0 0
      %1095 = vmatprep.mubr.bf16.mxu0 0
      %1096 = vmatmul.mubr.bf16.gmra.mrb[0].mxu0 %v1008
      %v1097 = vpop.f32.mrb[0].mxu0
      %v1098 = vadd.f32 0.0, %v1097
      %v1099 = vpop.f32.mrb[0].mxu0
      %v1100 = vadd.f32 0.0, %v1099
      %v1101 = vpop.f32.mrb[0].mxu0
      %v1102 = vpop.f32.mrb[0].mxu0
      %1103 = vdwg.mxu0
      %v1104 = vadd.f32 %v957, %v1057
      %v1105 = vadd.f32 %v958, %v1059
      %v1106 = vadd.f32 %v959, %v1098
      %v1107 = vadd.f32 %v960, %v1100
      %1108 = vrot.lane.b32.xlu0 %v230, 113
      %v1109 = vpop.permute.xlu0 %1108
      %1110 = vrot.lane.b32.xlu0 %v234, 113
      %v1111 = vpop.permute.xlu0 %1110
      %1112 = vrot.lane.b32.xlu0 %v231, 113
      %v1113 = vpop.permute.xlu0 %1112
      %1114 = vrot.lane.b32.xlu0 %v235, 113
      %v1115 = vpop.permute.xlu0 %1114
      %vm1116 = vcmp.lt.s32.totalorder %v247, 113
      %v1117 = vsel %vm1116, %v1113, %v1115
      %v1118 = vsel %vm1116, %v1111, %v1113
      %v1119 = vsel %vm1116, %v1109, %v1111
      %v1120 = vsel %vm1116, %v1115, %v1109
      %s1121 = scalar_lea.vmem %s3, 24
      %v1122 = vld [vmem:[%s1121] sm:$0xf]
      %v1124 = vlaneseq
      %v1125 = vshrl.u32 %v1124, 7
      %v1126 = vsub.s32 0, %v1125
      %v1127 = vrot.slane %v1122, %v1126
      %v1128 = vlaneseq
      %v1129 = vshrl.u32 %v1128, 7
      %v1130 = vsub.s32 1, %v1129
      %v1131 = vrot.slane %v1122, %v1130
      %v1132 = vlaneseq
      %v1133 = vshrl.u32 %v1132, 7
      %v1134 = vsub.s32 2, %v1133
      %v1135 = vrot.slane %v1122, %v1134
      %v1136 = vlaneseq
      %v1137 = vshrl.u32 %v1136, 7
      %v1138 = vsub.s32 3, %v1137
      %v1139 = vrot.slane %v1122, %v1138
      %v1144 = vmul.f32 %v1119, %v1127
      %v1145 = vmul.f32 %v1118, %v1131
      %v1146 = vmul.f32 %v1117, %v1135
      %v1147 = vmul.f32 %v1120, %v1139
      %v1148 = vpack.c.bf16 %v1144, %v1144
      %v1149 = vpack.c.bf16 %v1145, %v1145
      %v1150 = vpack.c.bf16 %v1146, %v1146
      %v1151 = vpack.c.bf16 %v1147, %v1147
      %s1152 = scalar_lea.vmem %s1, 24
      %v1153 = vld [vmem:[%s1152] sm:$0xf]
      %v1155 = vsel %vm330, %v1153, 0
      %v1158 = vand.u32 %v1148, %v337
      %v1161 = vand.u32 %v1149, %v337
      %v1164 = vand.u32 %v1150, %v337
      %v1167 = vand.u32 %v1151, %v337
      %1169 = vmatprep.subr.bf16.mxu0 %v1161
      %1170 = vmatpush1.bf16.msra.mxu0 %v1158
      %1171 = vmatprep.subr.bf16.mxu0 0
      %1172 = vmatpush1.bf16.msra.mxu0 0
      %1173 = vmatprep.subr.bf16.mxu0 0
      %1174 = vmatpush1.bf16.msra.mxu0 0
      %1175 = vmatprep.subr.bf16.mxu0 0
      %1176 = vmatpush1.bf16.msra.mxu0 0
      %1177 = vmatprep.subr.bf16.mxu0 0
      %1178 = vmatpush1.bf16.msra.mxu0 0
      %1179 = vmatprep.subr.bf16.mxu0 0
      %1180 = vmatpush1.bf16.msra.mxu0 0
      %1181 = vmatprep.subr.bf16.mxu0 0
      %1182 = vmatpush1.bf16.msra.mxu0 0
      %1183 = vmatprep.subr.bf16.mxu0 0
      %1184 = vmatpush1.bf16.msra.mxu0 0
      %1185 = vmatprep.subr.bf16.mxu0 0
      %1186 = vmatpush1.bf16.msra.mxu0 0
      %1187 = vmatprep.subr.bf16.mxu0 0
      %1188 = vmatpush1.bf16.msra.mxu0 0
      %1189 = vmatprep.subr.bf16.mxu0 0
      %1190 = vmatpush1.bf16.msra.mxu0 0
      %1191 = vmatprep.subr.bf16.mxu0 0
      %1192 = vmatpush1.bf16.msra.mxu0 0
      %1193 = vmatprep.subr.bf16.mxu0 0
      %1194 = vmatpush1.bf16.msra.mxu0 0
      %1195 = vmatprep.subr.bf16.mxu0 0
      %1196 = vmatpush1.bf16.msra.mxu0 0
      %1197 = vmatprep.subr.bf16.mxu0 0
      %1198 = vmatpush1.bf16.msra.mxu0 0
      %1199 = vmatprep.subr.bf16.mxu0 0
      %1200 = vmatpush1.bf16.msra.mxu0 0
      %1201 = vmatprep.mubr.bf16.mxu0 0
      %1202 = vmatmul.mubr.bf16.gmra.mrb[0].mxu0 %v1155
      %v1203 = vpop.f32.mrb[0].mxu0
      %v1204 = vadd.f32 0.0, %v1203
      %v1205 = vpop.f32.mrb[0].mxu0
      %v1206 = vadd.f32 0.0, %v1205
      %v1207 = vpop.f32.mrb[0].mxu0
      %v1208 = vpop.f32.mrb[0].mxu0
      %1209 = vdwg.mxu0
      %1210 = vmatprep.subr.bf16.mxu0 %v1167
      %1211 = vmatpush1.bf16.msra.mxu0 %v1164
      %1212 = vmatprep.subr.bf16.mxu0 0
      %1213 = vmatpush1.bf16.msra.mxu0 0
      %1214 = vmatprep.subr.bf16.mxu0 0
      %1215 = vmatpush1.bf16.msra.mxu0 0
      %1216 = vmatprep.subr.bf16.mxu0 0
      %1217 = vmatpush1.bf16.msra.mxu0 0
      %1218 = vmatprep.subr.bf16.mxu0 0
      %1219 = vmatpush1.bf16.msra.mxu0 0
      %1220 = vmatprep.subr.bf16.mxu0 0
      %1221 = vmatpush1.bf16.msra.mxu0 0
      %1222 = vmatprep.subr.bf16.mxu0 0
      %1223 = vmatpush1.bf16.msra.mxu0 0
      %1224 = vmatprep.subr.bf16.mxu0 0
      %1225 = vmatpush1.bf16.msra.mxu0 0
      %1226 = vmatprep.subr.bf16.mxu0 0
      %1227 = vmatpush1.bf16.msra.mxu0 0
      %1228 = vmatprep.subr.bf16.mxu0 0
      %1229 = vmatpush1.bf16.msra.mxu0 0
      %1230 = vmatprep.subr.bf16.mxu0 0
      %1231 = vmatpush1.bf16.msra.mxu0 0
      %1232 = vmatprep.subr.bf16.mxu0 0
      %1233 = vmatpush1.bf16.msra.mxu0 0
      %1234 = vmatprep.subr.bf16.mxu0 0
      %1235 = vmatpush1.bf16.msra.mxu0 0
      %1236 = vmatprep.subr.bf16.mxu0 0
      %1237 = vmatpush1.bf16.msra.mxu0 0
      %1238 = vmatprep.subr.bf16.mxu0 0
      %1239 = vmatpush1.bf16.msra.mxu0 0
      %1240 = vmatprep.subr.bf16.mxu0 0
      %1241 = vmatpush1.bf16.msra.mxu0 0
      %1242 = vmatprep.mubr.bf16.mxu0 0
      %1243 = vmatmul.mubr.bf16.gmra.mrb[0].mxu0 %v1155
      %v1244 = vpop.f32.mrb[0].mxu0
      %v1245 = vadd.f32 0.0, %v1244
      %v1246 = vpop.f32.mrb[0].mxu0
      %v1247 = vadd.f32 0.0, %v1246
      %v1248 = vpop.f32.mrb[0].mxu0
      %v1249 = vpop.f32.mrb[0].mxu0
      %1250 = vdwg.mxu0
      %v1251 = vadd.f32 %v1104, %v1204
      %v1252 = vadd.f32 %v1105, %v1206
      %v1253 = vadd.f32 %v1106, %v1245
      %v1254 = vadd.f32 %v1107, %v1247
      %1255 = vrot.lane.b32.xlu0 %v230, 112
      %v1256 = vpop.permute.xlu0 %1255
      %1257 = vrot.lane.b32.xlu0 %v234, 112
      %v1258 = vpop.permute.xlu0 %1257
      %1259 = vrot.lane.b32.xlu0 %v231, 112
      %v1260 = vpop.permute.xlu0 %1259
      %1261 = vrot.lane.b32.xlu0 %v235, 112
      %v1262 = vpop.permute.xlu0 %1261
      %vm1263 = vcmp.lt.s32.totalorder %v247, 112
      %v1264 = vsel %vm1263, %v1260, %v1262
      %v1265 = vsel %vm1263, %v1258, %v1260
      %v1266 = vsel %vm1263, %v1256, %v1258
      %v1267 = vsel %vm1263, %v1262, %v1256
      %s1268 = scalar_lea.vmem %s3, 28
      %v1269 = vld [vmem:[%s1268] sm:$0xf]
      %v1271 = vlaneseq
      %v1272 = vshrl.u32 %v1271, 7
      %v1273 = vsub.s32 0, %v1272
      %v1274 = vrot.slane %v1269, %v1273
      %v1275 = vlaneseq
      %v1276 = vshrl.u32 %v1275, 7
      %v1277 = vsub.s32 1, %v1276
      %v1278 = vrot.slane %v1269, %v1277
      %v1279 = vlaneseq
      %v1280 = vshrl.u32 %v1279, 7
      %v1281 = vsub.s32 2, %v1280
      %v1282 = vrot.slane %v1269, %v1281
      %v1283 = vlaneseq
      %v1284 = vshrl.u32 %v1283, 7
      %v1285 = vsub.s32 3, %v1284
      %v1286 = vrot.slane %v1269, %v1285
      %v1291 = vmul.f32 %v1266, %v1274
      %v1292 = vmul.f32 %v1265, %v1278
      %v1293 = vmul.f32 %v1264, %v1282
      %v1294 = vmul.f32 %v1267, %v1286
      %v1295 = vpack.c.bf16 %v1291, %v1291
      %v1296 = vpack.c.bf16 %v1292, %v1292
      %v1297 = vpack.c.bf16 %v1293, %v1293
      %v1298 = vpack.c.bf16 %v1294, %v1294
      %s1299 = scalar_lea.vmem %s1, 28
      %v1300 = vld [vmem:[%s1299] sm:$0xf]
      %v1302 = vsel %vm330, %v1300, 0
      %v1305 = vand.u32 %v1295, %v337
      %v1308 = vand.u32 %v1296, %v337
      %v1311 = vand.u32 %v1297, %v337
      %v1314 = vand.u32 %v1298, %v337
      %1316 = vmatprep.subr.bf16.mxu0 %v1308
      %1317 = vmatpush1.bf16.msra.mxu0 %v1305
      %1318 = vmatprep.subr.bf16.mxu0 0
      %1319 = vmatpush1.bf16.msra.mxu0 0
      %1320 = vmatprep.subr.bf16.mxu0 0
      %1321 = vmatpush1.bf16.msra.mxu0 0
      %1322 = vmatprep.subr.bf16.mxu0 0
      %1323 = vmatpush1.bf16.msra.mxu0 0
      %1324 = vmatprep.subr.bf16.mxu0 0
      %1325 = vmatpush1.bf16.msra.mxu0 0
      %1326 = vmatprep.subr.bf16.mxu0 0
      %1327 = vmatpush1.bf16.msra.mxu0 0
      %1328 = vmatprep.subr.bf16.mxu0 0
      %1329 = vmatpush1.bf16.msra.mxu0 0
      %1330 = vmatprep.subr.bf16.mxu0 0
      %1331 = vmatpush1.bf16.msra.mxu0 0
      %1332 = vmatprep.subr.bf16.mxu0 0
      %1333 = vmatpush1.bf16.msra.mxu0 0
      %1334 = vmatprep.subr.bf16.mxu0 0
      %1335 = vmatpush1.bf16.msra.mxu0 0
      %1336 = vmatprep.subr.bf16.mxu0 0
      %1337 = vmatpush1.bf16.msra.mxu0 0
      %1338 = vmatprep.subr.bf16.mxu0 0
      %1339 = vmatpush1.bf16.msra.mxu0 0
      %1340 = vmatprep.subr.bf16.mxu0 0
      %1341 = vmatpush1.bf16.msra.mxu0 0
      %1342 = vmatprep.subr.bf16.mxu0 0
      %1343 = vmatpush1.bf16.msra.mxu0 0
      %1344 = vmatprep.subr.bf16.mxu0 0
      %1345 = vmatpush1.bf16.msra.mxu0 0
      %1346 = vmatprep.subr.bf16.mxu0 0
      %1347 = vmatpush1.bf16.msra.mxu0 0
      %1348 = vmatprep.mubr.bf16.mxu0 0
      %1349 = vmatmul.mubr.bf16.gmra.mrb[0].mxu0 %v1302
      %v1350 = vpop.f32.mrb[0].mxu0
      %v1351 = vadd.f32 0.0, %v1350
      %v1352 = vpop.f32.mrb[0].mxu0
      %v1353 = vadd.f32 0.0, %v1352
      %v1354 = vpop.f32.mrb[0].mxu0
      %v1355 = vpop.f32.mrb[0].mxu0
      %1356 = vdwg.mxu0
      %1357 = vmatprep.subr.bf16.mxu0 %v1314
      %1358 = vmatpush1.bf16.msra.mxu0 %v1311
      %1359 = vmatprep.subr.bf16.mxu0 0
      %1360 = vmatpush1.bf16.msra.mxu0 0
      %1361 = vmatprep.subr.bf16.mxu0 0
      %1362 = vmatpush1.bf16.msra.mxu0 0
      %1363 = vmatprep.subr.bf16.mxu0 0
      %1364 = vmatpush1.bf16.msra.mxu0 0
      %1365 = vmatprep.subr.bf16.mxu0 0
      %1366 = vmatpush1.bf16.msra.mxu0 0
      %1367 = vmatprep.subr.bf16.mxu0 0
      %1368 = vmatpush1.bf16.msra.mxu0 0
      %1369 = vmatprep.subr.bf16.mxu0 0
      %1370 = vmatpush1.bf16.msra.mxu0 0
      %1371 = vmatprep.subr.bf16.mxu0 0
      %1372 = vmatpush1.bf16.msra.mxu0 0
      %1373 = vmatprep.subr.bf16.mxu0 0
      %1374 = vmatpush1.bf16.msra.mxu0 0
      %1375 = vmatprep.subr.bf16.mxu0 0
      %1376 = vmatpush1.bf16.msra.mxu0 0
      %1377 = vmatprep.subr.bf16.mxu0 0
      %1378 = vmatpush1.bf16.msra.mxu0 0
      %1379 = vmatprep.subr.bf16.mxu0 0
      %1380 = vmatpush1.bf16.msra.mxu0 0
      %1381 = vmatprep.subr.bf16.mxu0 0
      %1382 = vmatpush1.bf16.msra.mxu0 0
      %1383 = vmatprep.subr.bf16.mxu0 0
      %1384 = vmatpush1.bf16.msra.mxu0 0
      %1385 = vmatprep.subr.bf16.mxu0 0
      %1386 = vmatpush1.bf16.msra.mxu0 0
      %1387 = vmatprep.subr.bf16.mxu0 0
      %1388 = vmatpush1.bf16.msra.mxu0 0
      %1389 = vmatprep.mubr.bf16.mxu0 0
      %1390 = vmatmul.mubr.bf16.gmra.mrb[0].mxu0 %v1302
      %v1391 = vpop.f32.mrb[0].mxu0
      %v1392 = vadd.f32 0.0, %v1391
      %v1393 = vpop.f32.mrb[0].mxu0
      %v1394 = vadd.f32 0.0, %v1393
      %v1395 = vpop.f32.mrb[0].mxu0
      %v1396 = vpop.f32.mrb[0].mxu0
      %1397 = vdwg.mxu0
      %v1398 = vadd.f32 %v1251, %v1351
      %v1399 = vadd.f32 %v1252, %v1353
      %v1400 = vadd.f32 %v1253, %v1392
      %v1401 = vadd.f32 %v1254, %v1394
      %1402 = vrot.lane.b32.xlu0 %v230, 111
      %v1403 = vpop.permute.xlu0 %1402
      %1404 = vrot.lane.b32.xlu0 %v234, 111
      %v1405 = vpop.permute.xlu0 %1404
      %1406 = vrot.lane.b32.xlu0 %v231, 111
      %v1407 = vpop.permute.xlu0 %1406
      %1408 = vrot.lane.b32.xlu0 %v235, 111
      %v1409 = vpop.permute.xlu0 %1408
      %vm1410 = vcmp.lt.s32.totalorder %v247, 111
      %v1411 = vsel %vm1410, %v1407, %v1409
      %v1412 = vsel %vm1410, %v1405, %v1407
      %v1413 = vsel %vm1410, %v1403, %v1405
      %v1414 = vsel %vm1410, %v1409, %v1403
      %s1415 = scalar_lea.vmem %s3, 32
      %v1416 = vld [vmem:[%s1415] sm:$0xf]
      %v1418 = vlaneseq
      %v1419 = vshrl.u32 %v1418, 7
      %v1420 = vsub.s32 0, %v1419
      %v1421 = vrot.slane %v1416, %v1420
      %v1422 = vlaneseq
      %v1423 = vshrl.u32 %v1422, 7
      %v1424 = vsub.s32 1, %v1423
      %v1425 = vrot.slane %v1416, %v1424
      %v1426 = vlaneseq
      %v1427 = vshrl.u32 %v1426, 7
      %v1428 = vsub.s32 2, %v1427
      %v1429 = vrot.slane %v1416, %v1428
      %v1430 = vlaneseq
      %v1431 = vshrl.u32 %v1430, 7
      %v1432 = vsub.s32 3, %v1431
      %v1433 = vrot.slane %v1416, %v1432
      %v1438 = vmul.f32 %v1413, %v1421
      %v1439 = vmul.f32 %v1412, %v1425
      %v1440 = vmul.f32 %v1411, %v1429
      %v1441 = vmul.f32 %v1414, %v1433
      %v1442 = vpack.c.bf16 %v1438, %v1438
      %v1443 = vpack.c.bf16 %v1439, %v1439
      %v1444 = vpack.c.bf16 %v1440, %v1440
      %v1445 = vpack.c.bf16 %v1441, %v1441
      %s1446 = scalar_lea.vmem %s1, 32
      %v1447 = vld [vmem:[%s1446] sm:$0xf]
      %v1449 = vsel %vm330, %v1447, 0
      %v1452 = vand.u32 %v1442, %v337
      %v1455 = vand.u32 %v1443, %v337
      %v1458 = vand.u32 %v1444, %v337
      %v1461 = vand.u32 %v1445, %v337
      %1463 = vmatprep.subr.bf16.mxu0 %v1455
      %1464 = vmatpush1.bf16.msra.mxu0 %v1452
      %1465 = vmatprep.subr.bf16.mxu0 0
      %1466 = vmatpush1.bf16.msra.mxu0 0
      %1467 = vmatprep.subr.bf16.mxu0 0
      %1468 = vmatpush1.bf16.msra.mxu0 0
      %1469 = vmatprep.subr.bf16.mxu0 0
      %1470 = vmatpush1.bf16.msra.mxu0 0
      %1471 = vmatprep.subr.bf16.mxu0 0
      %1472 = vmatpush1.bf16.msra.mxu0 0
      %1473 = vmatprep.subr.bf16.mxu0 0
      %1474 = vmatpush1.bf16.msra.mxu0 0
      %1475 = vmatprep.subr.bf16.mxu0 0
      %1476 = vmatpush1.bf16.msra.mxu0 0
      %1477 = vmatprep.subr.bf16.mxu0 0
      %1478 = vmatpush1.bf16.msra.mxu0 0
      %1479 = vmatprep.subr.bf16.mxu0 0
      %1480 = vmatpush1.bf16.msra.mxu0 0
      %1481 = vmatprep.subr.bf16.mxu0 0
      %1482 = vmatpush1.bf16.msra.mxu0 0
      %1483 = vmatprep.subr.bf16.mxu0 0
      %1484 = vmatpush1.bf16.msra.mxu0 0
      %1485 = vmatprep.subr.bf16.mxu0 0
      %1486 = vmatpush1.bf16.msra.mxu0 0
      %1487 = vmatprep.subr.bf16.mxu0 0
      %1488 = vmatpush1.bf16.msra.mxu0 0
      %1489 = vmatprep.subr.bf16.mxu0 0
      %1490 = vmatpush1.bf16.msra.mxu0 0
      %1491 = vmatprep.subr.bf16.mxu0 0
      %1492 = vmatpush1.bf16.msra.mxu0 0
      %1493 = vmatprep.subr.bf16.mxu0 0
      %1494 = vmatpush1.bf16.msra.mxu0 0
      %1495 = vmatprep.mubr.bf16.mxu0 0
      %1496 = vmatmul.mubr.bf16.gmra.mrb[0].mxu0 %v1449
      %v1497 = vpop.f32.mrb[0].mxu0
      %v1498 = vadd.f32 0.0, %v1497
      %v1499 = vpop.f32.mrb[0].mxu0
      %v1500 = vadd.f32 0.0, %v1499
      %v1501 = vpop.f32.mrb[0].mxu0
      %v1502 = vpop.f32.mrb[0].mxu0
      %1503 = vdwg.mxu0
      %1504 = vmatprep.subr.bf16.mxu0 %v1461
      %1505 = vmatpush1.bf16.msra.mxu0 %v1458
      %1506 = vmatprep.subr.bf16.mxu0 0
      %1507 = vmatpush1.bf16.msra.mxu0 0
      %1508 = vmatprep.subr.bf16.mxu0 0
      %1509 = vmatpush1.bf16.msra.mxu0 0
      %1510 = vmatprep.subr.bf16.mxu0 0
      %1511 = vmatpush1.bf16.msra.mxu0 0
      %1512 = vmatprep.subr.bf16.mxu0 0
      %1513 = vmatpush1.bf16.msra.mxu0 0
      %1514 = vmatprep.subr.bf16.mxu0 0
      %1515 = vmatpush1.bf16.msra.mxu0 0
      %1516 = vmatprep.subr.bf16.mxu0 0
      %1517 = vmatpush1.bf16.msra.mxu0 0
      %1518 = vmatprep.subr.bf16.mxu0 0
      %1519 = vmatpush1.bf16.msra.mxu0 0
      %1520 = vmatprep.subr.bf16.mxu0 0
      %1521 = vmatpush1.bf16.msra.mxu0 0
      %1522 = vmatprep.subr.bf16.mxu0 0
      %1523 = vmatpush1.bf16.msra.mxu0 0
      %1524 = vmatprep.subr.bf16.mxu0 0
      %1525 = vmatpush1.bf16.msra.mxu0 0
      %1526 = vmatprep.subr.bf16.mxu0 0
      %1527 = vmatpush1.bf16.msra.mxu0 0
      %1528 = vmatprep.subr.bf16.mxu0 0
      %1529 = vmatpush1.bf16.msra.mxu0 0
      %1530 = vmatprep.subr.bf16.mxu0 0
      %1531 = vmatpush1.bf16.msra.mxu0 0
      %1532 = vmatprep.subr.bf16.mxu0 0
      %1533 = vmatpush1.bf16.msra.mxu0 0
      %1534 = vmatprep.subr.bf16.mxu0 0
      %1535 = vmatpush1.bf16.msra.mxu0 0
      %1536 = vmatprep.mubr.bf16.mxu0 0
      %1537 = vmatmul.mubr.bf16.gmra.mrb[0].mxu0 %v1449
      %v1538 = vpop.f32.mrb[0].mxu0
      %v1539 = vadd.f32 0.0, %v1538
      %v1540 = vpop.f32.mrb[0].mxu0
      %v1541 = vadd.f32 0.0, %v1540
      %v1542 = vpop.f32.mrb[0].mxu0
      %v1543 = vpop.f32.mrb[0].mxu0
      %1544 = vdwg.mxu0
      %v1545 = vadd.f32 %v1398, %v1498
      %v1546 = vadd.f32 %v1399, %v1500
      %v1547 = vadd.f32 %v1400, %v1539
      %v1548 = vadd.f32 %v1401, %v1541
      %v1549 = vld [vmem:[%s2] sm:$0xff]
      %1551 = vset.pattern.permute.xlu0 0
      %1552 = vperm.xlu0 %1551, %v1549
      %v1553 = vpop.permute.xlu0 %1552
      %v1555 = vadd.f32 %v1545, %v1553
      %v1556 = vadd.f32 %v1546, %v1553
      %v1557 = vadd.f32 %v1547, %v1553
      %v1558 = vadd.f32 %v1548, %v1553
      %v1559 = vmax.f32 %v1555, 0.0
      %v1560 = vmax.f32 %v1556, 0.0
      %v1561 = vmax.f32 %v1557, 0.0
      %v1562 = vmax.f32 %v1558, 0.0
      %1563 = vrot.lane.b32.xlu0 %v1559, 17
      %v1564 = vpop.permute.xlu0 %1563
      %1565 = vrot.lane.b32.xlu0 %v1560, 17
      %v1566 = vpop.permute.xlu0 %1565
      %1567 = vrot.lane.b32.xlu0 %v1561, 17
      %v1568 = vpop.permute.xlu0 %1567
      %1569 = vrot.lane.b32.xlu0 %v1562, 17
      %v1570 = vpop.permute.xlu0 %1569
      %v1571 = vsel %vm248, %v1568, %v1570
      %v1572 = vsel %vm248, %v1566, %v1568
      %v1573 = vsel %vm248, %v1564, %v1566
      %v1574 = vsel %vm248, %v1570, %v1564
      %v1575 = vld [vmem:[%s4] sm:$0xf]
      %v1577 = vlaneseq
      %v1578 = vshrl.u32 %v1577, 7
      %v1579 = vsub.s32 0, %v1578
      %v1580 = vrot.slane %v1575, %v1579
      %v1581 = vlaneseq
      %v1582 = vshrl.u32 %v1581, 7
      %v1583 = vsub.s32 1, %v1582
      %v1584 = vrot.slane %v1575, %v1583
      %v1585 = vlaneseq
      %v1586 = vshrl.u32 %v1585, 7
      %v1587 = vsub.s32 2, %v1586
      %v1588 = vrot.slane %v1575, %v1587
      %v1589 = vlaneseq
      %v1590 = vshrl.u32 %v1589, 7
      %v1591 = vsub.s32 3, %v1590
      %v1592 = vrot.slane %v1575, %v1591
      %v1597 = vadd.f32 %v1574, %v1580
      %v1598 = vadd.f32 %v1573, %v1584
      %v1599 = vadd.f32 %v1572, %v1588
      %v1600 = vadd.f32 %v1571, %v1592
      %v1601 = vmax.f32 %v1559, %v1597
      %v1602 = vmax.f32 %v1560, %v1598
      %v1603 = vmax.f32 %v1561, %v1599
      %v1604 = vmax.f32 %v1562, %v1600
      %1605 = vrot.lane.b32.xlu0 %v1559, 16
      %v1606 = vpop.permute.xlu0 %1605
      %1607 = vrot.lane.b32.xlu0 %v1560, 16
      %v1608 = vpop.permute.xlu0 %1607
      %1609 = vrot.lane.b32.xlu0 %v1561, 16
      %v1610 = vpop.permute.xlu0 %1609
      %1611 = vrot.lane.b32.xlu0 %v1562, 16
      %v1612 = vpop.permute.xlu0 %1611
      %v1613 = vsel %vm292, %v1610, %v1612
      %v1614 = vsel %vm292, %v1608, %v1610
      %v1615 = vsel %vm292, %v1606, %v1608
      %v1616 = vsel %vm292, %v1612, %v1606
      %s1617 = scalar_lea.vmem %s4, 4
      %v1618 = vld [vmem:[%s1617] sm:$0xf]
      %v1620 = vlaneseq
      %v1621 = vshrl.u32 %v1620, 7
      %v1622 = vsub.s32 0, %v1621
      %v1623 = vrot.slane %v1618, %v1622
      %v1624 = vlaneseq
      %v1625 = vshrl.u32 %v1624, 7
      %v1626 = vsub.s32 1, %v1625
      %v1627 = vrot.slane %v1618, %v1626
      %v1628 = vlaneseq
      %v1629 = vshrl.u32 %v1628, 7
      %v1630 = vsub.s32 2, %v1629
      %v1631 = vrot.slane %v1618, %v1630
      %v1632 = vlaneseq
      %v1633 = vshrl.u32 %v1632, 7
      %v1634 = vsub.s32 3, %v1633
      %v1635 = vrot.slane %v1618, %v1634
      %v1640 = vadd.f32 %v1616, %v1623
      %v1641 = vadd.f32 %v1615, %v1627
      %v1642 = vadd.f32 %v1614, %v1631
      %v1643 = vadd.f32 %v1613, %v1635
      %v1644 = vmax.f32 %v1601, %v1640
      %v1645 = vmax.f32 %v1602, %v1641
      %v1646 = vmax.f32 %v1603, %v1642
      %v1647 = vmax.f32 %v1604, %v1643
      %1648 = vrot.lane.b32.xlu0 %v1559, 15
      %v1649 = vpop.permute.xlu0 %1648
      %1650 = vrot.lane.b32.xlu0 %v1560, 15
      %v1651 = vpop.permute.xlu0 %1650
      %1652 = vrot.lane.b32.xlu0 %v1561, 15
      %v1653 = vpop.permute.xlu0 %1652
      %1654 = vrot.lane.b32.xlu0 %v1562, 15
      %v1655 = vpop.permute.xlu0 %1654
      %v1656 = vsel %vm537, %v1653, %v1655
      %v1657 = vsel %vm537, %v1651, %v1653
      %v1658 = vsel %vm537, %v1649, %v1651
      %v1659 = vsel %vm537, %v1655, %v1649
      %s1660 = scalar_lea.vmem %s4, 8
      %v1661 = vld [vmem:[%s1660] sm:$0xf]
      %v1663 = vlaneseq
      %v1664 = vshrl.u32 %v1663, 7
      %v1665 = vsub.s32 0, %v1664
      %v1666 = vrot.slane %v1661, %v1665
      %v1667 = vlaneseq
      %v1668 = vshrl.u32 %v1667, 7
      %v1669 = vsub.s32 1, %v1668
      %v1670 = vrot.slane %v1661, %v1669
      %v1671 = vlaneseq
      %v1672 = vshrl.u32 %v1671, 7
      %v1673 = vsub.s32 2, %v1672
      %v1674 = vrot.slane %v1661, %v1673
      %v1675 = vlaneseq
      %v1676 = vshrl.u32 %v1675, 7
      %v1677 = vsub.s32 3, %v1676
      %v1678 = vrot.slane %v1661, %v1677
      %v1683 = vadd.f32 %v1659, %v1666
      %v1684 = vadd.f32 %v1658, %v1670
      %v1685 = vadd.f32 %v1657, %v1674
      %v1686 = vadd.f32 %v1656, %v1678
      %v1687 = vmax.f32 %v1644, %v1683
      %v1688 = vmax.f32 %v1645, %v1684
      %v1689 = vmax.f32 %v1646, %v1685
      %v1690 = vmax.f32 %v1647, %v1686
      %1691 = vrot.lane.b32.xlu0 %v1559, 1
      %v1692 = vpop.permute.xlu0 %1691
      %1693 = vrot.lane.b32.xlu0 %v1560, 1
      %v1694 = vpop.permute.xlu0 %1693
      %1695 = vrot.lane.b32.xlu0 %v1561, 1
      %v1696 = vpop.permute.xlu0 %1695
      %1697 = vrot.lane.b32.xlu0 %v1562, 1
      %v1698 = vpop.permute.xlu0 %1697
      %v1699 = vsel %vm684, %v1696, %v1698
      %v1700 = vsel %vm684, %v1694, %v1696
      %v1701 = vsel %vm684, %v1692, %v1694
      %v1702 = vsel %vm684, %v1698, %v1692
      %s1703 = scalar_lea.vmem %s4, 12
      %v1704 = vld [vmem:[%s1703] sm:$0xf]
      %v1706 = vlaneseq
      %v1707 = vshrl.u32 %v1706, 7
      %v1708 = vsub.s32 0, %v1707
      %v1709 = vrot.slane %v1704, %v1708
      %v1710 = vlaneseq
      %v1711 = vshrl.u32 %v1710, 7
      %v1712 = vsub.s32 1, %v1711
      %v1713 = vrot.slane %v1704, %v1712
      %v1714 = vlaneseq
      %v1715 = vshrl.u32 %v1714, 7
      %v1716 = vsub.s32 2, %v1715
      %v1717 = vrot.slane %v1704, %v1716
      %v1718 = vlaneseq
      %v1719 = vshrl.u32 %v1718, 7
      %v1720 = vsub.s32 3, %v1719
      %v1721 = vrot.slane %v1704, %v1720
      %v1726 = vadd.f32 %v1702, %v1709
      %v1727 = vadd.f32 %v1701, %v1713
      %v1728 = vadd.f32 %v1700, %v1717
      %v1729 = vadd.f32 %v1699, %v1721
      %v1730 = vmax.f32 %v1687, %v1726
      %v1731 = vmax.f32 %v1688, %v1727
      %v1732 = vmax.f32 %v1689, %v1728
      %v1733 = vmax.f32 %v1690, %v1729
      %1734 = vrot.lane.b32.xlu0 %v1559, 127
      %v1735 = vpop.permute.xlu0 %1734
      %1736 = vrot.lane.b32.xlu0 %v1560, 127
      %v1737 = vpop.permute.xlu0 %1736
      %1738 = vrot.lane.b32.xlu0 %v1561, 127
      %v1739 = vpop.permute.xlu0 %1738
      %1740 = vrot.lane.b32.xlu0 %v1562, 127
      %v1741 = vpop.permute.xlu0 %1740
      %v1742 = vsel %vm969, %v1739, %v1741
      %v1743 = vsel %vm969, %v1737, %v1739
      %v1744 = vsel %vm969, %v1735, %v1737
      %v1745 = vsel %vm969, %v1741, %v1735
      %s1746 = scalar_lea.vmem %s4, 20
      %v1747 = vld [vmem:[%s1746] sm:$0xf]
      %v1749 = vlaneseq
      %v1750 = vshrl.u32 %v1749, 7
      %v1751 = vsub.s32 0, %v1750
      %v1752 = vrot.slane %v1747, %v1751
      %v1753 = vlaneseq
      %v1754 = vshrl.u32 %v1753, 7
      %v1755 = vsub.s32 1, %v1754
      %v1756 = vrot.slane %v1747, %v1755
      %v1757 = vlaneseq
      %v1758 = vshrl.u32 %v1757, 7
      %v1759 = vsub.s32 2, %v1758
      %v1760 = vrot.slane %v1747, %v1759
      %v1761 = vlaneseq
      %v1762 = vshrl.u32 %v1761, 7
      %v1763 = vsub.s32 3, %v1762
      %v1764 = vrot.slane %v1747, %v1763
      %v1769 = vadd.f32 %v1744, %v1752
      %v1770 = vadd.f32 %v1743, %v1756
      %v1771 = vadd.f32 %v1742, %v1760
      %v1772 = vadd.f32 %v1745, %v1764
      %v1773 = vmax.f32 %v1730, %v1769
      %v1774 = vmax.f32 %v1731, %v1770
      %v1775 = vmax.f32 %v1732, %v1771
      %v1776 = vmax.f32 %v1733, %v1772
      %1777 = vrot.lane.b32.xlu0 %v1559, 113
      %v1778 = vpop.permute.xlu0 %1777
      %1779 = vrot.lane.b32.xlu0 %v1560, 113
      %v1780 = vpop.permute.xlu0 %1779
      %1781 = vrot.lane.b32.xlu0 %v1561, 113
      %v1782 = vpop.permute.xlu0 %1781
      %1783 = vrot.lane.b32.xlu0 %v1562, 113
      %v1784 = vpop.permute.xlu0 %1783
      %v1785 = vsel %vm1116, %v1782, %v1784
      %v1786 = vsel %vm1116, %v1780, %v1782
      %v1787 = vsel %vm1116, %v1778, %v1780
      %v1788 = vsel %vm1116, %v1784, %v1778
      %s1789 = scalar_lea.vmem %s4, 24
      %v1790 = vld [vmem:[%s1789] sm:$0xf]
      %v1792 = vlaneseq
      %v1793 = vshrl.u32 %v1792, 7
      %v1794 = vsub.s32 0, %v1793
      %v1795 = vrot.slane %v1790, %v1794
      %v1796 = vlaneseq
      %v1797 = vshrl.u32 %v1796, 7
      %v1798 = vsub.s32 1, %v1797
      %v1799 = vrot.slane %v1790, %v1798
      %v1800 = vlaneseq
      %v1801 = vshrl.u32 %v1800, 7
      %v1802 = vsub.s32 2, %v1801
      %v1803 = vrot.slane %v1790, %v1802
      %v1804 = vlaneseq
      %v1805 = vshrl.u32 %v1804, 7
      %v1806 = vsub.s32 3, %v1805
      %v1807 = vrot.slane %v1790, %v1806
      %v1812 = vadd.f32 %v1787, %v1795
      %v1813 = vadd.f32 %v1786, %v1799
      %v1814 = vadd.f32 %v1785, %v1803
      %v1815 = vadd.f32 %v1788, %v1807
      %v1816 = vmax.f32 %v1773, %v1812
      %v1817 = vmax.f32 %v1774, %v1813
      %v1818 = vmax.f32 %v1775, %v1814
      %v1819 = vmax.f32 %v1776, %v1815
      %1820 = vrot.lane.b32.xlu0 %v1559, 112
      %v1821 = vpop.permute.xlu0 %1820
      %1822 = vrot.lane.b32.xlu0 %v1560, 112
      %v1823 = vpop.permute.xlu0 %1822
      %1824 = vrot.lane.b32.xlu0 %v1561, 112
      %v1825 = vpop.permute.xlu0 %1824
      %1826 = vrot.lane.b32.xlu0 %v1562, 112
      %v1827 = vpop.permute.xlu0 %1826
      %v1828 = vsel %vm1263, %v1825, %v1827
      %v1829 = vsel %vm1263, %v1823, %v1825
      %v1830 = vsel %vm1263, %v1821, %v1823
      %v1831 = vsel %vm1263, %v1827, %v1821
      %s1832 = scalar_lea.vmem %s4, 28
      %v1833 = vld [vmem:[%s1832] sm:$0xf]
      %v1835 = vlaneseq
      %v1836 = vshrl.u32 %v1835, 7
      %v1837 = vsub.s32 0, %v1836
      %v1838 = vrot.slane %v1833, %v1837
      %v1839 = vlaneseq
      %v1840 = vshrl.u32 %v1839, 7
      %v1841 = vsub.s32 1, %v1840
      %v1842 = vrot.slane %v1833, %v1841
      %v1843 = vlaneseq
      %v1844 = vshrl.u32 %v1843, 7
      %v1845 = vsub.s32 2, %v1844
      %v1846 = vrot.slane %v1833, %v1845
      %v1847 = vlaneseq
      %v1848 = vshrl.u32 %v1847, 7
      %v1849 = vsub.s32 3, %v1848
      %v1850 = vrot.slane %v1833, %v1849
      %v1855 = vadd.f32 %v1830, %v1838
      %v1856 = vadd.f32 %v1829, %v1842
      %v1857 = vadd.f32 %v1828, %v1846
      %v1858 = vadd.f32 %v1831, %v1850
      %v1859 = vmax.f32 %v1816, %v1855
      %v1860 = vmax.f32 %v1817, %v1856
      %v1861 = vmax.f32 %v1818, %v1857
      %v1862 = vmax.f32 %v1819, %v1858
      %1863 = vrot.lane.b32.xlu0 %v1559, 111
      %v1864 = vpop.permute.xlu0 %1863
      %1865 = vrot.lane.b32.xlu0 %v1560, 111
      %v1866 = vpop.permute.xlu0 %1865
      %1867 = vrot.lane.b32.xlu0 %v1561, 111
      %v1868 = vpop.permute.xlu0 %1867
      %1869 = vrot.lane.b32.xlu0 %v1562, 111
      %v1870 = vpop.permute.xlu0 %1869
      %v1871 = vsel %vm1410, %v1868, %v1870
      %v1872 = vsel %vm1410, %v1866, %v1868
      %v1873 = vsel %vm1410, %v1864, %v1866
      %v1874 = vsel %vm1410, %v1870, %v1864
      %s1875 = scalar_lea.vmem %s4, 32
      %v1876 = vld [vmem:[%s1875] sm:$0xf]
      %v1878 = vlaneseq
      %v1879 = vshrl.u32 %v1878, 7
      %v1880 = vsub.s32 0, %v1879
      %v1881 = vrot.slane %v1876, %v1880
      %v1882 = vlaneseq
      %v1883 = vshrl.u32 %v1882, 7
      %v1884 = vsub.s32 1, %v1883
      %v1885 = vrot.slane %v1876, %v1884
      %v1886 = vlaneseq
      %v1887 = vshrl.u32 %v1886, 7
      %v1888 = vsub.s32 2, %v1887
      %v1889 = vrot.slane %v1876, %v1888
      %v1890 = vlaneseq
      %v1891 = vshrl.u32 %v1890, 7
      %v1892 = vsub.s32 3, %v1891
      %v1893 = vrot.slane %v1876, %v1892
      %v1898 = vadd.f32 %v1873, %v1881
      %v1899 = vadd.f32 %v1872, %v1885
      %v1900 = vadd.f32 %v1871, %v1889
      %v1901 = vadd.f32 %v1874, %v1893
      %v1902 = vmax.f32 %v1859, %v1898
      %v1903 = vmax.f32 %v1860, %v1899
      %v1904 = vmax.f32 %v1861, %v1900
      %v1905 = vmax.f32 %v1862, %v1901
      %v1906 = vpack.c.bf16 %v1902, %v1902
      %v1907 = vpack.c.bf16 %v1903, %v1903
      %v1908 = vpack.c.bf16 %v1904, %v1904
      %v1909 = vpack.c.bf16 %v1905, %v1905
      %v1914 = vunpack.c.l.b16 %v1906
      %v1915 = vunpack.c.l.b16 %v1907
      %v1916 = vunpack.c.l.b16 %v1908
      %v1917 = vunpack.c.l.b16 %v1909
      %v1918 = vpack.c.b16 %v1915, %v1914
      %v1919 = vpack.c.b16 %v1917, %v1916
      %1922 = vst [vmem:[%s226] sm:$0xff] %v1918
      %1923 = vst [vmem:[%s226 + $0x8] sm:$0xff] %v1919
      %s1924 = smul.u32 4, %s16
      %p1925 = scmp.lt.s32.totalorder %s1924, 7
      %s1926 = scalar_select %p1925, %s1924, 7
      %s1927 = smul.addr %s1926, 4
      %s1928 = scalar_lea.vmem %s5, %s1927
      // Predicated region
      $region41: #{img_obs_process.7} parent=39 // pred_check
        %p1929 = pneg %p144
      $region42: #{img_obs_process.7} parent=39 // pred_check_branch
        %1931 = sbr.rel (%p1929) target = $region44
      $region43: #{img_obs_process.7} parent=39 // pred_region
        %s1932 = smul.u32 4, %s16
      $region44: #{img_obs_process.7} parent=39 // pred_fallthru
        _
    $region40: #{img_obs_process.7} parent=5 // pred_fallthru
      _
    %p1933 = scmp.le.s32.totalorder 2, %s11
    // Predicated region
    $region45: #{img_obs_process.7} parent=5 // pred_check
      %p1934 = pneg %p1933
    $region46: #{img_obs_process.7} parent=5 // pred_check_branch
      %1936 = sbr.rel (%p1934) target = $region48
    $region47: #{img_obs_process.7} parent=5 // pred_region
      %s1937 = ssub.s32 %s11, 2
      // Predicated region
      $region49: #{img_obs_process.7} parent=47 // pred_check
        %p1938 = pneg %p150
      $region50: #{img_obs_process.7} parent=47 // pred_check_branch
        %1940 = sbr.rel (%p1938) target = $region52
      $region51: #{img_obs_process.7} parent=47 // pred_region
        %s1941 = smul.u32 4, %s17
        %p1942 = scmp.lt.s32.totalorder %s1941, 7
        %s1943 = scalar_select %p1942, %s1941, 7
        %s1944 = smul.addr %s1943, 4
        %s1945 = scalar_lea.vmem %s5, %s1944
      $region52: #{img_obs_process.7} parent=47 // pred_fallthru
        _
    $region48: #{img_obs_process.7} parent=5 // pred_fallthru
      _
  $region6: #{img_obs_process.7} parent=0 // loop_footer
    %s15 = sadd.s32 1, %s11
  $region7: #{img_obs_process.7} parent=0 // loop_footer_branch
    %10 = sbr.rel target = $region3
  $region8: #{img_obs_process.7} parent=0 // loop_exit
    _

// kernel: img_obs_process.10
$region0: #{img_obs_process.10}
  #allocation0 [shape = 'u32[]', space=smem, size = 0x4, offset = 0x4, fixed_abs, tag = 'smem constant byte address 0x4 - core index']
  #allocation1 [shape = 'u32[144,128]{1,0:T(1,128)}', space=vmem, size = 0x12000, scoped, tag = 'internal scratch']
  %s0 = inlined_call_operand.vmem [shape: bf16[8,256], index: 0, kind: input, shape index: {}]
  %s1 = inlined_call_operand.vmem [shape: bf16[9,16,8], index: 1, kind: input, shape index: {}]
  %s2 = inlined_call_operand.vmem [shape: f32[16,1], index: 2, kind: input, shape index: {}]
  %s3 = inlined_call_operand.vmem [shape: f32[9,1,128], index: 3, kind: input, shape index: {}]
  %s4 = inlined_call_operand.vmem [shape: f32[9,1,128], index: 4, kind: input, shape index: {}]
  %s5 = inlined_call_operand.vmem [shape: bf16[16,256], index: 5, kind: output, shape index: {}]
  %s6 = sld [smem:[#allocation0]]
  $region90: #{img_obs_process.10} parent=0
    _
  %s8 = ssub.s32 1, %s6
  %s9 = scalar_select 0, %s8, %s6
  $region1: #{img_obs_process.10} parent=0
    #allocation2 [shape = 'u8[8192]{0}', space=vmem, size = 0x2000, scoped, tag = 'output window, operand 0']
    loop: start=0, step=1, limit=4
    $region2: #{img_obs_process.10} parent=1 // loop_pre_header
      _
    $region3: #{img_obs_process.10} parent=1 // loop_header
      %s11 = sphi 0, %s15
      %p12 = scmp.ge.s32.totalorder %s11, 4
      %s21 = sphi 0, %s23
      %s24 = sphi 0, %s21
      %s25 = sphi 0, %s24
      %s41 = sphi 0, %s25
      %s45 = sphi 0, %s45
      %s47 = sphi 0, %s45
      %s48 = sphi 0, %s47
      %s62 = sphi 0, %s48
      %s66 = sphi 0, %s66
      %s68 = sphi 0, %s66
      %s69 = sphi 0, %s68
      %s83 = sphi 0, %s69
      %s87 = sphi 0, %s87
      %s89 = sphi 0, %s87
      %s90 = sphi 0, %s89
      %s104 = sphi 0, %s90
      %s108 = sphi 0, %s108
      %s110 = sphi 0, %s108
      %s111 = sphi 0, %s110
      %s125 = sphi 0, %s111
      %s131 = sphi 0, %s133
      %s134 = sphi 0, %s131
      %s135 = sphi 0, %s134
      %s151 = sphi 0, %s135
    $region4: #{img_obs_process.10} parent=1 // loop_header_branch
      %14 = sbr.rel (%p12) target = $region8
    $region5: #{img_obs_process.10} parent=1 // loop_body
      %s16 = ssub.s32 %s11, 1
      %s17 = ssub.s32 %s11, 2
      %s18 = sadd.s32 %s11, 1
      %s19 = ssub.s32 %s11, %s18
      %p20 = scmp.eq.s32.totalorder %s19, 0
      %s22 = sadd.s32 %s21, 1
      %s23 = scalar_select %p20, %s21, %s22
      %p26 = pneg %p20
      %p27 = scmp.eq.s32.totalorder %s11, 1
      %p28 = por %p26, %p27
      %p29 = scmp.ne.s32.totalorder %s21, %s24
      %p30 = scmp.eq.s32.totalorder %s11, 0
      %p31 = por %p29, %p30
      %p32 = scmp.ne.s32.totalorder %s21, %s24
      %p33 = scmp.eq.s32.totalorder %s16, 1
      %p34 = por %p32, %p33
      %p35 = scmp.ne.s32.totalorder %s24, %s25
      %p36 = scmp.eq.s32.totalorder %s16, 0
      %p37 = por %p35, %p36
      %p38 = scmp.ne.s32.totalorder %s24, %s25
      %p39 = scmp.eq.s32.totalorder %s17, 1
      %p40 = por %p38, %p39
      %p42 = scmp.ne.s32.totalorder %s25, %s41
      %p43 = scmp.eq.s32.totalorder %s17, 0
      %p44 = por %p42, %p43
      %s46 = sadd.s32 %s45, 1
      %p49 = scmp.eq.s32.totalorder %s11, 1
      %p50 = scmp.ne.s32.totalorder %s45, %s47
      %p51 = scmp.eq.s32.totalorder %s11, 0
      %p52 = por %p50, %p51
      %p53 = scmp.ne.s32.totalorder %s45, %s47
      %p54 = scmp.eq.s32.totalorder %s16, 1
      %p55 = por %p53, %p54
      %p56 = scmp.ne.s32.totalorder %s47, %s48
      %p57 = scmp.eq.s32.totalorder %s16, 0
      %p58 = por %p56, %p57
      %p59 = scmp.ne.s32.totalorder %s47, %s48
      %p60 = scmp.eq.s32.totalorder %s17, 1
      %p61 = por %p59, %p60
      %p63 = scmp.ne.s32.totalorder %s48, %s62
      %p64 = scmp.eq.s32.totalorder %s17, 0
      %p65 = por %p63, %p64
      %s67 = sadd.s32 %s66, 1
      %p70 = scmp.eq.s32.totalorder %s11, 1
      %p71 = scmp.ne.s32.totalorder %s66, %s68
      %p72 = scmp.eq.s32.totalorder %s11, 0
      %p73 = por %p71, %p72
      %p74 = scmp.ne.s32.totalorder %s66, %s68
      %p75 = scmp.eq.s32.totalorder %s16, 1
      %p76 = por %p74, %p75
      %p77 = scmp.ne.s32.totalorder %s68, %s69
      %p78 = scmp.eq.s32.totalorder %s16, 0
      %p79 = por %p77, %p78
      %p80 = scmp.ne.s32.totalorder %s68, %s69
      %p81 = scmp.eq.s32.totalorder %s17, 1
      %p82 = por %p80, %p81
      %p84 = scmp.ne.s32.totalorder %s69, %s83
      %p85 = scmp.eq.s32.totalorder %s17, 0
      %p86 = por %p84, %p85
      %s88 = sadd.s32 %s87, 1
      %p91 = scmp.eq.s32.totalorder %s11, 1
      %p92 = scmp.ne.s32.totalorder %s87, %s89
      %p93 = scmp.eq.s32.totalorder %s11, 0
      %p94 = por %p92, %p93
      %p95 = scmp.ne.s32.totalorder %s87, %s89
      %p96 = scmp.eq.s32.totalorder %s16, 1
      %p97 = por %p95, %p96
      %p98 = scmp.ne.s32.totalorder %s89, %s90
      %p99 = scmp.eq.s32.totalorder %s16, 0
      %p100 = por %p98, %p99
      %p101 = scmp.ne.s32.totalorder %s89, %s90
      %p102 = scmp.eq.s32.totalorder %s17, 1
      %p103 = por %p101, %p102
      %p105 = scmp.ne.s32.totalorder %s90, %s104
      %p106 = scmp.eq.s32.totalorder %s17, 0
      %p107 = por %p105, %p106
      %s109 = sadd.s32 %s108, 1
      %p112 = scmp.eq.s32.totalorder %s11, 1
      %p113 = scmp.ne.s32.totalorder %s108, %s110
      %p114 = scmp.eq.s32.totalorder %s11, 0
      %p115 = por %p113, %p114
      %p116 = scmp.ne.s32.totalorder %s108, %s110
      %p117 = scmp.eq.s32.totalorder %s16, 1
      %p118 = por %p116, %p117
      %p119 = scmp.ne.s32.totalorder %s110, %s111
      %p120 = scmp.eq.s32.totalorder %s16, 0
      %p121 = por %p119, %p120
      %p122 = scmp.ne.s32.totalorder %s110, %s111
      %p123 = scmp.eq.s32.totalorder %s17, 1
      %p124 = por %p122, %p123
      %p126 = scmp.ne.s32.totalorder %s111, %s125
      %p127 = scmp.eq.s32.totalorder %s17, 0
      %p128 = por %p126, %p127
      %s129 = ssub.s32 %s11, %s18
      %p130 = scmp.eq.s32.totalorder %s129, 0
      %s132 = sadd.s32 %s131, 1
      %s133 = scalar_select %p130, %s131, %s132
      %p136 = pneg %p130
      %p137 = scmp.eq.s32.totalorder %s11, 1
      %p138 = por %p136, %p137
      %p139 = scmp.ne.s32.totalorder %s131, %s134
      %p140 = scmp.eq.s32.totalorder %s11, 0
      %p141 = por %p139, %p140
      %p142 = scmp.ne.s32.totalorder %s131, %s134
      %p143 = scmp.eq.s32.totalorder %s16, 1
      %p144 = por %p142, %p143
      %p145 = scmp.ne.s32.totalorder %s134, %s135
      %p146 = scmp.eq.s32.totalorder %s16, 0
      %p147 = por %p145, %p146
      %p148 = scmp.ne.s32.totalorder %s134, %s135
      %p149 = scmp.eq.s32.totalorder %s17, 1
      %p150 = por %p148, %p149
      %p152 = scmp.ne.s32.totalorder %s135, %s151
      %p153 = scmp.eq.s32.totalorder %s17, 0
      %p154 = por %p152, %p153
      %p155 = scmp.le.s32.totalorder 1, %s11
      %p156 = scmp.lt.s32.totalorder %s11, 3
      %p157 = pnand %p155, %p156
      %p158 = pneg %p157
      // Predicated region
      $region9: #{img_obs_process.10} parent=5 // pred_check
        _
      $region10: #{img_obs_process.10} parent=5 // pred_check_branch
        %160 = sbr.rel (%p157) target = $region12
      $region11: #{img_obs_process.10} parent=5 // pred_region
        %s161 = ssub.s32 %s11, 1
        // Predicated region
        $region13: #{img_obs_process.10} parent=11 // pred_check
          %p162 = pneg %p58
        $region14: #{img_obs_process.10} parent=11 // pred_check_branch
          %164 = sbr.rel (%p162) target = $region16
        $region15: #{img_obs_process.10} parent=11 // pred_region
          _
        $region16: #{img_obs_process.10} parent=11 // pred_fallthru
          _
        // Predicated region
        $region17: #{img_obs_process.10} parent=11 // pred_check
          %p165 = pneg %p79
        $region18: #{img_obs_process.10} parent=11 // pred_check_branch
          %167 = sbr.rel (%p165) target = $region20
        $region19: #{img_obs_process.10} parent=11 // pred_region
          _
        $region20: #{img_obs_process.10} parent=11 // pred_fallthru
          _
        // Predicated region
        $region21: #{img_obs_process.10} parent=11 // pred_check
          %p168 = pneg %p100
        $region22: #{img_obs_process.10} parent=11 // pred_check_branch
          %170 = sbr.rel (%p168) target = $region24
        $region23: #{img_obs_process.10} parent=11 // pred_region
          _
        $region24: #{img_obs_process.10} parent=11 // pred_fallthru
          _
        // Predicated region
        $region25: #{img_obs_process.10} parent=11 // pred_check
          %p171 = pneg %p121
        $region26: #{img_obs_process.10} parent=11 // pred_check_branch
          %173 = sbr.rel (%p171) target = $region28
        $region27: #{img_obs_process.10} parent=11 // pred_region
          _
        $region28: #{img_obs_process.10} parent=11 // pred_fallthru
          _
      $region12: #{img_obs_process.10} parent=5 // pred_fallthru
        _
      %p174 = scmp.lt.s32.totalorder %s11, 2
      // Predicated region
      $region29: #{img_obs_process.10} parent=5 // pred_check
        %p175 = pneg %p174
      $region30: #{img_obs_process.10} parent=5 // pred_check_branch
        %177 = sbr.rel (%p175) target = $region32
      $region31: #{img_obs_process.10} parent=5 // pred_region
        // Predicated region
        $region33: #{img_obs_process.10} parent=31 // pred_check
          %p178 = pneg %p31
        $region34: #{img_obs_process.10} parent=31 // pred_check_branch
          %180 = sbr.rel (%p178) target = $region36
        $region35: #{img_obs_process.10} parent=31 // pred_region
          %p181 = scmp.lt.s32.totalorder %s11, 1
          %s182 = scalar_select %p181, %s11, 1
          %s183 = smul.addr %s182, 4
          %s184 = scalar_lea.vmem %s0, %s183
        $region36: #{img_obs_process.10} parent=31 // pred_fallthru
          _
      $region32: #{img_obs_process.10} parent=5 // pred_fallthru
        _
      %p185 = scmp.le.s32.totalorder 1, %s11
      %p186 = scmp.lt.s32.totalorder %s11, 3
      %p187 = pnand %p185, %p186
      %p188 = pneg %p187
      // Predicated region
      $region37: #{img_obs_process.10} parent=5 // pred_check
        _
      $region38: #{img_obs_process.10} parent=5 // pred_check_branch
        %190 = sbr.rel (%p187) target = $region40
      $region39: #{img_obs_process.10} parent=5 // pred_region
        %s191 = ssub.s32 %s11, 1
        %p192 = scmp.lt.s32.totalorder %s16, 1
        %s193 = scalar_select %p192, %s16, 1
        %s194 = smul.addr %s193, 4
        %s195 = scalar_lea.vmem %s0, %s194
        %p196 = pneg %p37
        %p197 = pneg %p34
        %p198 = pneg %p58
        %p199 = pneg %p55
        %p200 = pneg %p79
        %p201 = pneg %p76
        %p202 = pneg %p100
        %p203 = pneg %p97
        %p204 = pneg %p121
        %p205 = pneg %p118
        %p206 = pneg %p147
        %p207 = pneg %p144
        %s208 = sand.u32 %s134, 1
        %s209 = sand.u32 %s134, 1
        %s210 = smul.addr %s209, 8
        %s211 = scalar_lea.vmem [#allocation2], %s210
        %p212 = scmp.lt.s32.totalorder %s16, 1
        %s213 = scalar_select %p212, %s16, 1
        %s214 = smul.addr %s213, 4
        %s215 = scalar_lea.vmem %s0, %s214
        %v217 = vld [vmem:[%s215] sm:$0xf]
        %v218 = vunpack.c.l.bf16 %v217
        %219 = vrot.lane.b32.xlu0 %v218, 9
        %v220 = vpop.permute.xlu0 %219
        %v221 = vld [vmem:[%s3] sm:$0x1]
        %v223 = vlaneseq
        %v224 = vshrl.u32 %v223, 7
        %v225 = vsub.s32 0, %v224
        %v226 = vrot.slane %v221, %v225
        %v228 = vmul.f32 %v220, %v226
        %v229 = vpack.c.bf16 %v228, %v228
        %v230 = vld [vmem:[%s1] sm:$0xf]
        %v231 = vld [vmem:[%s1 + $0x4] sm:$0xf]
        %232 = vrot.lane.b32.xlu0 %v218, 8
        %v233 = vpop.permute.xlu0 %232
        %s234 = scalar_lea.vmem %s3, 1
        %v235 = vld [vmem:[%s234] sm:$0x1]
        %v237 = vlaneseq
        %v238 = vshrl.u32 %v237, 7
        %v239 = vsub.s32 0, %v238
        %v240 = vrot.slane %v235, %v239
        %v242 = vmul.f32 %v233, %v240
        %v243 = vpack.c.bf16 %v242, %v242
        %s244 = scalar_lea.vmem %s1, 8
        %v245 = vld [vmem:[%s244] sm:$0xf]
        %v246 = vld [vmem:[%s244 + $0x4] sm:$0xf]
        %v249 = vunpack.c.l.b16 %v245
        %v250 = vunpack.c.l.b16 %v246
        %v251 = vpack.c.b16 %v250, %v249
        %vm252 = vcmask 64512
        %v254 = vsel %vm252, %v251, 0
        %vm256 = vcmask 1043456
        %v258 = vsel %vm256, %v243, 0
        %260 = vmatprep.subr.bf16.mxu0 0
        %261 = vmatpush1.bf16.msra.mxu0 %v258
        %262 = vmatprep.subr.bf16.mxu0 0
        %263 = vmatpush1.bf16.msra.mxu0 0
        %264 = vmatprep.subr.bf16.mxu0 0
        %265 = vmatpush1.bf16.msra.mxu0 0
        %266 = vmatprep.subr.bf16.mxu0 0
        %267 = vmatpush1.bf16.msra.mxu0 0
        %268 = vmatprep.subr.bf16.mxu0 0
        %269 = vmatpush1.bf16.msra.mxu0 0
        %270 = vmatprep.subr.bf16.mxu0 0
        %271 = vmatpush1.bf16.msra.mxu0 0
        %272 = vmatprep.subr.bf16.mxu0 0
        %273 = vmatpush1.bf16.msra.mxu0 0
        %274 = vmatprep.subr.bf16.mxu0 0
        %275 = vmatpush1.bf16.msra.mxu0 0
        %276 = vmatprep.subr.bf16.mxu0 0
        %277 = vmatpush1.bf16.msra.mxu0 0
        %278 = vmatprep.subr.bf16.mxu0 0
        %279 = vmatpush1.bf16.msra.mxu0 0
        %280 = vmatprep.subr.bf16.mxu0 0
        %281 = vmatpush1.bf16.msra.mxu0 0
        %282 = vmatprep.subr.bf16.mxu0 0
        %283 = vmatpush1.bf16.msra.mxu0 0
        %284 = vmatprep.subr.bf16.mxu0 0
        %285 = vmatpush1.bf16.msra.mxu0 0
        %286 = vmatprep.subr.bf16.mxu0 0
        %287 = vmatpush1.bf16.msra.mxu0 0
        %288 = vmatprep.subr.bf16.mxu0 0
        %289 = vmatpush1.bf16.msra.mxu0 0
        %290 = vmatprep.subr.bf16.mxu0 0
        %291 = vmatpush1.bf16.msra.mxu0 0
        %292 = vmatprep.mubr.bf16.mxu0 0
        %293 = vmatmul.mubr.bf16.gmra.mrb[0].mxu0 %v254
        %v294 = vpop.f32.mrb[0].mxu0
        %v295 = vadd.f32 0.0, %v294
        %v296 = vpop.f32.mrb[0].mxu0
        %v297 = vpop.f32.mrb[0].mxu0
        %v298 = vadd.f32 0.0, %v297
        %v299 = vpop.f32.mrb[0].mxu0
        %300 = vdwg.mxu0
        %v303 = vunpack.c.l.b16 %v230
        %v304 = vunpack.c.l.b16 %v231
        %v305 = vpack.c.b16 %v304, %v303
        %v307 = vsel %vm252, %v305, 0
        %v310 = vsel %vm256, %v229, 0
        %312 = vmatprep.subr.bf16.mxu0 0
        %313 = vmatpush1.bf16.msra.mxu0 %v310
        %314 = vmatprep.subr.bf16.mxu0 0
        %315 = vmatpush1.bf16.msra.mxu0 0
        %316 = vmatprep.subr.bf16.mxu0 0
        %317 = vmatpush1.bf16.msra.mxu0 0
        %318 = vmatprep.subr.bf16.mxu0 0
        %319 = vmatpush1.bf16.msra.mxu0 0
        %320 = vmatprep.subr.bf16.mxu0 0
        %321 = vmatpush1.bf16.msra.mxu0 0
        %322 = vmatprep.subr.bf16.mxu0 0
        %323 = vmatpush1.bf16.msra.mxu0 0
        %324 = vmatprep.subr.bf16.mxu0 0
        %325 = vmatpush1.bf16.msra.mxu0 0
        %326 = vmatprep.subr.bf16.mxu0 0
        %327 = vmatpush1.bf16.msra.mxu0 0
        %328 = vmatprep.subr.bf16.mxu0 0
        %329 = vmatpush1.bf16.msra.mxu0 0
        %330 = vmatprep.subr.bf16.mxu0 0
        %331 = vmatpush1.bf16.msra.mxu0 0
        %332 = vmatprep.subr.bf16.mxu0 0
        %333 = vmatpush1.bf16.msra.mxu0 0
        %334 = vmatprep.subr.bf16.mxu0 0
        %335 = vmatpush1.bf16.msra.mxu0 0
        %336 = vmatprep.subr.bf16.mxu0 0
        %337 = vmatpush1.bf16.msra.mxu0 0
        %338 = vmatprep.subr.bf16.mxu0 0
        %339 = vmatpush1.bf16.msra.mxu0 0
        %340 = vmatprep.subr.bf16.mxu0 0
        %341 = vmatpush1.bf16.msra.mxu0 0
        %342 = vmatprep.subr.bf16.mxu0 0
        %343 = vmatpush1.bf16.msra.mxu0 0
        %344 = vmatprep.mubr.bf16.mxu0 0
        %345 = vmatmul.mubr.bf16.gmra.mrb[0].mxu0 %v307
        %v346 = vpop.f32.mrb[0].mxu0
        %v347 = vadd.f32 %v295, %v346
        %v348 = vpop.f32.mrb[0].mxu0
        %v349 = vpop.f32.mrb[0].mxu0
        %v350 = vadd.f32 %v298, %v349
        %v351 = vpop.f32.mrb[0].mxu0
        %352 = vdwg.mxu0
        %353 = vrot.lane.b32.xlu0 %v218, 7
        %v354 = vpop.permute.xlu0 %353
        %s355 = scalar_lea.vmem %s3, 2
        %v356 = vld [vmem:[%s355] sm:$0x1]
        %v358 = vlaneseq
        %v359 = vshrl.u32 %v358, 7
        %v360 = vsub.s32 0, %v359
        %v361 = vrot.slane %v356, %v360
        %v363 = vmul.f32 %v354, %v361
        %v364 = vpack.c.bf16 %v363, %v363
        %s365 = scalar_lea.vmem %s1, 16
        %v366 = vld [vmem:[%s365] sm:$0xf]
        %v367 = vld [vmem:[%s365 + $0x4] sm:$0xf]
        %v370 = vunpack.c.l.b16 %v366
        %v371 = vunpack.c.l.b16 %v367
        %v372 = vpack.c.b16 %v371, %v370
        %v374 = vsel %vm252, %v372, 0
        %v377 = vsel %vm256, %v364, 0
        %379 = vmatprep.subr.bf16.mxu0 0
        %380 = vmatpush1.bf16.msra.mxu0 %v377
        %381 = vmatprep.subr.bf16.mxu0 0
        %382 = vmatpush1.bf16.msra.mxu0 0
        %383 = vmatprep.subr.bf16.mxu0 0
        %384 = vmatpush1.bf16.msra.mxu0 0
        %385 = vmatprep.subr.bf16.mxu0 0
        %386 = vmatpush1.bf16.msra.mxu0 0
        %387 = vmatprep.subr.bf16.mxu0 0
        %388 = vmatpush1.bf16.msra.mxu0 0
        %389 = vmatprep.subr.bf16.mxu0 0
        %390 = vmatpush1.bf16.msra.mxu0 0
        %391 = vmatprep.subr.bf16.mxu0 0
        %392 = vmatpush1.bf16.msra.mxu0 0
        %393 = vmatprep.subr.bf16.mxu0 0
        %394 = vmatpush1.bf16.msra.mxu0 0
        %395 = vmatprep.subr.bf16.mxu0 0
        %396 = vmatpush1.bf16.msra.mxu0 0
        %397 = vmatprep.subr.bf16.mxu0 0
        %398 = vmatpush1.bf16.msra.mxu0 0
        %399 = vmatprep.subr.bf16.mxu0 0
        %400 = vmatpush1.bf16.msra.mxu0 0
        %401 = vmatprep.subr.bf16.mxu0 0
        %402 = vmatpush1.bf16.msra.mxu0 0
        %403 = vmatprep.subr.bf16.mxu0 0
        %404 = vmatpush1.bf16.msra.mxu0 0
        %405 = vmatprep.subr.bf16.mxu0 0
        %406 = vmatpush1.bf16.msra.mxu0 0
        %407 = vmatprep.subr.bf16.mxu0 0
        %408 = vmatpush1.bf16.msra.mxu0 0
        %409 = vmatprep.subr.bf16.mxu0 0
        %410 = vmatpush1.bf16.msra.mxu0 0
        %411 = vmatprep.mubr.bf16.mxu0 0
        %412 = vmatmul.mubr.bf16.gmra.mrb[0].mxu0 %v374
        %v413 = vpop.f32.mrb[0].mxu0
        %v414 = vadd.f32 0.0, %v413
        %v415 = vpop.f32.mrb[0].mxu0
        %v416 = vpop.f32.mrb[0].mxu0
        %v417 = vadd.f32 0.0, %v416
        %v418 = vpop.f32.mrb[0].mxu0
        %419 = vdwg.mxu0
        %v420 = vadd.f32 %v347, %v414
        %v421 = vadd.f32 %v350, %v417
        %422 = vrot.lane.b32.xlu0 %v218, 1
        %v423 = vpop.permute.xlu0 %422
        %s424 = scalar_lea.vmem %s3, 3
        %v425 = vld [vmem:[%s424] sm:$0x1]
        %v427 = vlaneseq
        %v428 = vshrl.u32 %v427, 7
        %v429 = vsub.s32 0, %v428
        %v430 = vrot.slane %v425, %v429
        %v432 = vmul.f32 %v423, %v430
        %v433 = vpack.c.bf16 %v432, %v432
        %s434 = scalar_lea.vmem %s1, 24
        %v435 = vld [vmem:[%s434] sm:$0xf]
        %v436 = vld [vmem:[%s434 + $0x4] sm:$0xf]
        %v439 = vunpack.c.l.b16 %v435
        %v440 = vunpack.c.l.b16 %v436
        %v441 = vpack.c.b16 %v440, %v439
        %v443 = vsel %vm252, %v441, 0
        %v446 = vsel %vm256, %v433, 0
        %448 = vmatprep.subr.bf16.mxu0 0
        %449 = vmatpush1.bf16.msra.mxu0 %v446
        %450 = vmatprep.subr.bf16.mxu0 0
        %451 = vmatpush1.bf16.msra.mxu0 0
        %452 = vmatprep.subr.bf16.mxu0 0
        %453 = vmatpush1.bf16.msra.mxu0 0
        %454 = vmatprep.subr.bf16.mxu0 0
        %455 = vmatpush1.bf16.msra.mxu0 0
        %456 = vmatprep.subr.bf16.mxu0 0
        %457 = vmatpush1.bf16.msra.mxu0 0
        %458 = vmatprep.subr.bf16.mxu0 0
        %459 = vmatpush1.bf16.msra.mxu0 0
        %460 = vmatprep.subr.bf16.mxu0 0
        %461 = vmatpush1.bf16.msra.mxu0 0
        %462 = vmatprep.subr.bf16.mxu0 0
        %463 = vmatpush1.bf16.msra.mxu0 0
        %464 = vmatprep.subr.bf16.mxu0 0
        %465 = vmatpush1.bf16.msra.mxu0 0
        %466 = vmatprep.subr.bf16.mxu0 0
        %467 = vmatpush1.bf16.msra.mxu0 0
        %468 = vmatprep.subr.bf16.mxu0 0
        %469 = vmatpush1.bf16.msra.mxu0 0
        %470 = vmatprep.subr.bf16.mxu0 0
        %471 = vmatpush1.bf16.msra.mxu0 0
        %472 = vmatprep.subr.bf16.mxu0 0
        %473 = vmatpush1.bf16.msra.mxu0 0
        %474 = vmatprep.subr.bf16.mxu0 0
        %475 = vmatpush1.bf16.msra.mxu0 0
        %476 = vmatprep.subr.bf16.mxu0 0
        %477 = vmatpush1.bf16.msra.mxu0 0
        %478 = vmatprep.subr.bf16.mxu0 0
        %479 = vmatpush1.bf16.msra.mxu0 0
        %480 = vmatprep.mubr.bf16.mxu0 0
        %481 = vmatmul.mubr.bf16.gmra.mrb[0].mxu0 %v443
        %v482 = vpop.f32.mrb[0].mxu0
        %v483 = vadd.f32 0.0, %v482
        %v484 = vpop.f32.mrb[0].mxu0
        %v485 = vpop.f32.mrb[0].mxu0
        %v486 = vadd.f32 0.0, %v485
        %v487 = vpop.f32.mrb[0].mxu0
        %488 = vdwg.mxu0
        %v489 = vadd.f32 %v420, %v483
        %v490 = vadd.f32 %v421, %v486
        %s491 = scalar_lea.vmem %s3, 4
        %v492 = vld [vmem:[%s491] sm:$0x1]
        %v494 = vlaneseq
        %v495 = vshrl.u32 %v494, 7
        %v496 = vsub.s32 0, %v495
        %v497 = vrot.slane %v492, %v496
        %v499 = vmul.f32 %v218, %v497
        %v500 = vpack.c.bf16 %v499, %v499
        %s501 = scalar_lea.vmem %s1, 32
        %v502 = vld [vmem:[%s501] sm:$0xf]
        %v503 = vld [vmem:[%s501 + $0x4] sm:$0xf]
        %v506 = vunpack.c.l.b16 %v502
        %v507 = vunpack.c.l.b16 %v503
        %v508 = vpack.c.b16 %v507, %v506
        %v510 = vsel %vm252, %v508, 0
        %v513 = vsel %vm256, %v500, 0
        %515 = vmatprep.subr.bf16.mxu0 0
        %516 = vmatpush1.bf16.msra.mxu0 %v513
        %517 = vmatprep.subr.bf16.mxu0 0
        %518 = vmatpush1.bf16.msra.mxu0 0
        %519 = vmatprep.subr.bf16.mxu0 0
        %520 = vmatpush1.bf16.msra.mxu0 0
        %521 = vmatprep.subr.bf16.mxu0 0
        %522 = vmatpush1.bf16.msra.mxu0 0
        %523 = vmatprep.subr.bf16.mxu0 0
        %524 = vmatpush1.bf16.msra.mxu0 0
        %525 = vmatprep.subr.bf16.mxu0 0
        %526 = vmatpush1.bf16.msra.mxu0 0
        %527 = vmatprep.subr.bf16.mxu0 0
        %528 = vmatpush1.bf16.msra.mxu0 0
        %529 = vmatprep.subr.bf16.mxu0 0
        %530 = vmatpush1.bf16.msra.mxu0 0
        %531 = vmatprep.subr.bf16.mxu0 0
        %532 = vmatpush1.bf16.msra.mxu0 0
        %533 = vmatprep.subr.bf16.mxu0 0
        %534 = vmatpush1.bf16.msra.mxu0 0
        %535 = vmatprep.subr.bf16.mxu0 0
        %536 = vmatpush1.bf16.msra.mxu0 0
        %537 = vmatprep.subr.bf16.mxu0 0
        %538 = vmatpush1.bf16.msra.mxu0 0
        %539 = vmatprep.subr.bf16.mxu0 0
        %540 = vmatpush1.bf16.msra.mxu0 0
        %541 = vmatprep.subr.bf16.mxu0 0
        %542 = vmatpush1.bf16.msra.mxu0 0
        %543 = vmatprep.subr.bf16.mxu0 0
        %544 = vmatpush1.bf16.msra.mxu0 0
        %545 = vmatprep.subr.bf16.mxu0 0
        %546 = vmatpush1.bf16.msra.mxu0 0
        %547 = vmatprep.mubr.bf16.mxu0 0
        %548 = vmatmul.mubr.bf16.gmra.mrb[0].mxu0 %v510
        %v549 = vpop.f32.mrb[0].mxu0
        %v550 = vadd.f32 0.0, %v549
        %v551 = vpop.f32.mrb[0].mxu0
        %v552 = vpop.f32.mrb[0].mxu0
        %v553 = vadd.f32 0.0, %v552
        %v554 = vpop.f32.mrb[0].mxu0
        %555 = vdwg.mxu0
        %v556 = vadd.f32 %v489, %v550
        %v557 = vadd.f32 %v490, %v553
        %558 = vrot.lane.b32.xlu0 %v218, 127
        %v559 = vpop.permute.xlu0 %558
        %s560 = scalar_lea.vmem %s3, 5
        %v561 = vld [vmem:[%s560] sm:$0x1]
        %v563 = vlaneseq
        %v564 = vshrl.u32 %v563, 7
        %v565 = vsub.s32 0, %v564
        %v566 = vrot.slane %v561, %v565
        %v568 = vmul.f32 %v559, %v566
        %v569 = vpack.c.bf16 %v568, %v568
        %s570 = scalar_lea.vmem %s1, 40
        %v571 = vld [vmem:[%s570] sm:$0xf]
        %v572 = vld [vmem:[%s570 + $0x4] sm:$0xf]
        %v575 = vunpack.c.l.b16 %v571
        %v576 = vunpack.c.l.b16 %v572
        %v577 = vpack.c.b16 %v576, %v575
        %v579 = vsel %vm252, %v577, 0
        %v582 = vsel %vm256, %v569, 0
        %584 = vmatprep.subr.bf16.mxu0 0
        %585 = vmatpush1.bf16.msra.mxu0 %v582
        %586 = vmatprep.subr.bf16.mxu0 0
        %587 = vmatpush1.bf16.msra.mxu0 0
        %588 = vmatprep.subr.bf16.mxu0 0
        %589 = vmatpush1.bf16.msra.mxu0 0
        %590 = vmatprep.subr.bf16.mxu0 0
        %591 = vmatpush1.bf16.msra.mxu0 0
        %592 = vmatprep.subr.bf16.mxu0 0
        %593 = vmatpush1.bf16.msra.mxu0 0
        %594 = vmatprep.subr.bf16.mxu0 0
        %595 = vmatpush1.bf16.msra.mxu0 0
        %596 = vmatprep.subr.bf16.mxu0 0
        %597 = vmatpush1.bf16.msra.mxu0 0
        %598 = vmatprep.subr.bf16.mxu0 0
        %599 = vmatpush1.bf16.msra.mxu0 0
        %600 = vmatprep.subr.bf16.mxu0 0
        %601 = vmatpush1.bf16.msra.mxu0 0
        %602 = vmatprep.subr.bf16.mxu0 0
        %603 = vmatpush1.bf16.msra.mxu0 0
        %604 = vmatprep.subr.bf16.mxu0 0
        %605 = vmatpush1.bf16.msra.mxu0 0
        %606 = vmatprep.subr.bf16.mxu0 0
        %607 = vmatpush1.bf16.msra.mxu0 0
        %608 = vmatprep.subr.bf16.mxu0 0
        %609 = vmatpush1.bf16.msra.mxu0 0
        %610 = vmatprep.subr.bf16.mxu0 0
        %611 = vmatpush1.bf16.msra.mxu0 0
        %612 = vmatprep.subr.bf16.mxu0 0
        %613 = vmatpush1.bf16.msra.mxu0 0
        %614 = vmatprep.subr.bf16.mxu0 0
        %615 = vmatpush1.bf16.msra.mxu0 0
        %616 = vmatprep.mubr.bf16.mxu0 0
        %617 = vmatmul.mubr.bf16.gmra.mrb[0].mxu0 %v579
        %v618 = vpop.f32.mrb[0].mxu0
        %v619 = vadd.f32 0.0, %v618
        %v620 = vpop.f32.mrb[0].mxu0
        %v621 = vpop.f32.mrb[0].mxu0
        %v622 = vadd.f32 0.0, %v621
        %v623 = vpop.f32.mrb[0].mxu0
        %624 = vdwg.mxu0
        %v625 = vadd.f32 %v556, %v619
        %v626 = vadd.f32 %v557, %v622
        %627 = vrot.lane.b32.xlu0 %v218, 121
        %v628 = vpop.permute.xlu0 %627
        %s629 = scalar_lea.vmem %s3, 6
        %v630 = vld [vmem:[%s629] sm:$0x1]
        %v632 = vlaneseq
        %v633 = vshrl.u32 %v632, 7
        %v634 = vsub.s32 0, %v633
        %v635 = vrot.slane %v630, %v634
        %v637 = vmul.f32 %v628, %v635
        %v638 = vpack.c.bf16 %v637, %v637
        %s639 = scalar_lea.vmem %s1, 48
        %v640 = vld [vmem:[%s639] sm:$0xf]
        %v641 = vld [vmem:[%s639 + $0x4] sm:$0xf]
        %v644 = vunpack.c.l.b16 %v640
        %v645 = vunpack.c.l.b16 %v641
        %v646 = vpack.c.b16 %v645, %v644
        %v648 = vsel %vm252, %v646, 0
        %v651 = vsel %vm256, %v638, 0
        %653 = vmatprep.subr.bf16.mxu0 0
        %654 = vmatpush1.bf16.msra.mxu0 %v651
        %655 = vmatprep.subr.bf16.mxu0 0
        %656 = vmatpush1.bf16.msra.mxu0 0
        %657 = vmatprep.subr.bf16.mxu0 0
        %658 = vmatpush1.bf16.msra.mxu0 0
        %659 = vmatprep.subr.bf16.mxu0 0
        %660 = vmatpush1.bf16.msra.mxu0 0
        %661 = vmatprep.subr.bf16.mxu0 0
        %662 = vmatpush1.bf16.msra.mxu0 0
        %663 = vmatprep.subr.bf16.mxu0 0
        %664 = vmatpush1.bf16.msra.mxu0 0
        %665 = vmatprep.subr.bf16.mxu0 0
        %666 = vmatpush1.bf16.msra.mxu0 0
        %667 = vmatprep.subr.bf16.mxu0 0
        %668 = vmatpush1.bf16.msra.mxu0 0
        %669 = vmatprep.subr.bf16.mxu0 0
        %670 = vmatpush1.bf16.msra.mxu0 0
        %671 = vmatprep.subr.bf16.mxu0 0
        %672 = vmatpush1.bf16.msra.mxu0 0
        %673 = vmatprep.subr.bf16.mxu0 0
        %674 = vmatpush1.bf16.msra.mxu0 0
        %675 = vmatprep.subr.bf16.mxu0 0
        %676 = vmatpush1.bf16.msra.mxu0 0
        %677 = vmatprep.subr.bf16.mxu0 0
        %678 = vmatpush1.bf16.msra.mxu0 0
        %679 = vmatprep.subr.bf16.mxu0 0
        %680 = vmatpush1.bf16.msra.mxu0 0
        %681 = vmatprep.subr.bf16.mxu0 0
        %682 = vmatpush1.bf16.msra.mxu0 0
        %683 = vmatprep.subr.bf16.mxu0 0
        %684 = vmatpush1.bf16.msra.mxu0 0
        %685 = vmatprep.mubr.bf16.mxu0 0
        %686 = vmatmul.mubr.bf16.gmra.mrb[0].mxu0 %v648
        %v687 = vpop.f32.mrb[0].mxu0
        %v688 = vadd.f32 0.0, %v687
        %v689 = vpop.f32.mrb[0].mxu0
        %v690 = vpop.f32.mrb[0].mxu0
        %v691 = vadd.f32 0.0, %v690
        %v692 = vpop.f32.mrb[0].mxu0
        %693 = vdwg.mxu0
        %v694 = vadd.f32 %v625, %v688
        %v695 = vadd.f32 %v626, %v691
        %696 = vrot.lane.b32.xlu0 %v218, 120
        %v697 = vpop.permute.xlu0 %696
        %s698 = scalar_lea.vmem %s3, 7
        %v699 = vld [vmem:[%s698] sm:$0x1]
        %v701 = vlaneseq
        %v702 = vshrl.u32 %v701, 7
        %v703 = vsub.s32 0, %v702
        %v704 = vrot.slane %v699, %v703
        %v706 = vmul.f32 %v697, %v704
        %v707 = vpack.c.bf16 %v706, %v706
        %s708 = scalar_lea.vmem %s1, 56
        %v709 = vld [vmem:[%s708] sm:$0xf]
        %v710 = vld [vmem:[%s708 + $0x4] sm:$0xf]
        %v713 = vunpack.c.l.b16 %v709
        %v714 = vunpack.c.l.b16 %v710
        %v715 = vpack.c.b16 %v714, %v713
        %v717 = vsel %vm252, %v715, 0
        %v720 = vsel %vm256, %v707, 0
        %722 = vmatprep.subr.bf16.mxu0 0
        %723 = vmatpush1.bf16.msra.mxu0 %v720
        %724 = vmatprep.subr.bf16.mxu0 0
        %725 = vmatpush1.bf16.msra.mxu0 0
        %726 = vmatprep.subr.bf16.mxu0 0
        %727 = vmatpush1.bf16.msra.mxu0 0
        %728 = vmatprep.subr.bf16.mxu0 0
        %729 = vmatpush1.bf16.msra.mxu0 0
        %730 = vmatprep.subr.bf16.mxu0 0
        %731 = vmatpush1.bf16.msra.mxu0 0
        %732 = vmatprep.subr.bf16.mxu0 0
        %733 = vmatpush1.bf16.msra.mxu0 0
        %734 = vmatprep.subr.bf16.mxu0 0
        %735 = vmatpush1.bf16.msra.mxu0 0
        %736 = vmatprep.subr.bf16.mxu0 0
        %737 = vmatpush1.bf16.msra.mxu0 0
        %738 = vmatprep.subr.bf16.mxu0 0
        %739 = vmatpush1.bf16.msra.mxu0 0
        %740 = vmatprep.subr.bf16.mxu0 0
        %741 = vmatpush1.bf16.msra.mxu0 0
        %742 = vmatprep.subr.bf16.mxu0 0
        %743 = vmatpush1.bf16.msra.mxu0 0
        %744 = vmatprep.subr.bf16.mxu0 0
        %745 = vmatpush1.bf16.msra.mxu0 0
        %746 = vmatprep.subr.bf16.mxu0 0
        %747 = vmatpush1.bf16.msra.mxu0 0
        %748 = vmatprep.subr.bf16.mxu0 0
        %749 = vmatpush1.bf16.msra.mxu0 0
        %750 = vmatprep.subr.bf16.mxu0 0
        %751 = vmatpush1.bf16.msra.mxu0 0
        %752 = vmatprep.subr.bf16.mxu0 0
        %753 = vmatpush1.bf16.msra.mxu0 0
        %754 = vmatprep.mubr.bf16.mxu0 0
        %755 = vmatmul.mubr.bf16.gmra.mrb[0].mxu0 %v717
        %v756 = vpop.f32.mrb[0].mxu0
        %v757 = vadd.f32 0.0, %v756
        %v758 = vpop.f32.mrb[0].mxu0
        %v759 = vpop.f32.mrb[0].mxu0
        %v760 = vadd.f32 0.0, %v759
        %v761 = vpop.f32.mrb[0].mxu0
        %762 = vdwg.mxu0
        %v763 = vadd.f32 %v694, %v757
        %v764 = vadd.f32 %v695, %v760
        %765 = vrot.lane.b32.xlu0 %v218, 119
        %v766 = vpop.permute.xlu0 %765
        %s767 = scalar_lea.vmem %s3, 8
        %v768 = vld [vmem:[%s767] sm:$0x1]
        %v770 = vlaneseq
        %v771 = vshrl.u32 %v770, 7
        %v772 = vsub.s32 0, %v771
        %v773 = vrot.slane %v768, %v772
        %v775 = vmul.f32 %v766, %v773
        %v776 = vpack.c.bf16 %v775, %v775
        %s777 = scalar_lea.vmem %s1, 64
        %v778 = vld [vmem:[%s777] sm:$0xf]
        %v779 = vld [vmem:[%s777 + $0x4] sm:$0xf]
        %v782 = vunpack.c.l.b16 %v778
        %v783 = vunpack.c.l.b16 %v779
        %v784 = vpack.c.b16 %v783, %v782
        %v786 = vsel %vm252, %v784, 0
        %v789 = vsel %vm256, %v776, 0
        %791 = vmatprep.subr.bf16.mxu0 0
        %792 = vmatpush1.bf16.msra.mxu0 %v789
        %793 = vmatprep.subr.bf16.mxu0 0
        %794 = vmatpush1.bf16.msra.mxu0 0
        %795 = vmatprep.subr.bf16.mxu0 0
        %796 = vmatpush1.bf16.msra.mxu0 0
        %797 = vmatprep.subr.bf16.mxu0 0
        %798 = vmatpush1.bf16.msra.mxu0 0
        %799 = vmatprep.subr.bf16.mxu0 0
        %800 = vmatpush1.bf16.msra.mxu0 0
        %801 = vmatprep.subr.bf16.mxu0 0
        %802 = vmatpush1.bf16.msra.mxu0 0
        %803 = vmatprep.subr.bf16.mxu0 0
        %804 = vmatpush1.bf16.msra.mxu0 0
        %805 = vmatprep.subr.bf16.mxu0 0
        %806 = vmatpush1.bf16.msra.mxu0 0
        %807 = vmatprep.subr.bf16.mxu0 0
        %808 = vmatpush1.bf16.msra.mxu0 0
        %809 = vmatprep.subr.bf16.mxu0 0
        %810 = vmatpush1.bf16.msra.mxu0 0
        %811 = vmatprep.subr.bf16.mxu0 0
        %812 = vmatpush1.bf16.msra.mxu0 0
        %813 = vmatprep.subr.bf16.mxu0 0
        %814 = vmatpush1.bf16.msra.mxu0 0
        %815 = vmatprep.subr.bf16.mxu0 0
        %816 = vmatpush1.bf16.msra.mxu0 0
        %817 = vmatprep.subr.bf16.mxu0 0
        %818 = vmatpush1.bf16.msra.mxu0 0
        %819 = vmatprep.subr.bf16.mxu0 0
        %820 = vmatpush1.bf16.msra.mxu0 0
        %821 = vmatprep.subr.bf16.mxu0 0
        %822 = vmatpush1.bf16.msra.mxu0 0
        %823 = vmatprep.mubr.bf16.mxu0 0
        %824 = vmatmul.mubr.bf16.gmra.mrb[0].mxu0 %v786
        %v825 = vpop.f32.mrb[0].mxu0
        %v826 = vadd.f32 0.0, %v825
        %v827 = vpop.f32.mrb[0].mxu0
        %v828 = vpop.f32.mrb[0].mxu0
        %v829 = vadd.f32 0.0, %v828
        %v830 = vpop.f32.mrb[0].mxu0
        %831 = vdwg.mxu0
        %v832 = vadd.f32 %v763, %v826
        %v833 = vadd.f32 %v764, %v829
        %v834 = vld [vmem:[%s2] sm:$0xff]
        %v835 = vld [vmem:[%s2 + $0x8] sm:$0xff]
        %837 = vset.pattern.permute.xlu0 0
        %838 = vperm.xlu0 %837, %v834
        %v839 = vpop.permute.xlu0 %838
        %842 = vset.pattern.permute.xlu0 0
        %843 = vperm.xlu0 %842, %v835
        %v844 = vpop.permute.xlu0 %843
        %v846 = vadd.f32 %v832, %v839
        %v847 = vadd.f32 %v833, %v844
        %v848 = vmax.f32 %v846, 0.0
        %v849 = vmax.f32 %v847, 0.0
        %850 = vrot.lane.b32.xlu0 %v848, 9
        %v851 = vpop.permute.xlu0 %850
        %852 = vrot.lane.b32.xlu0 %v849, 9
        %v853 = vpop.permute.xlu0 %852
        %v854 = vld [vmem:[%s4] sm:$0x1]
        %v856 = vlaneseq
        %v857 = vshrl.u32 %v856, 7
        %v858 = vsub.s32 0, %v857
        %v859 = vrot.slane %v854, %v858
        %v861 = vadd.f32 %v851, %v859
        %v862 = vadd.f32 %v853, %v859
        %v863 = vmax.f32 %v848, %v861
        %v864 = vmax.f32 %v849, %v862
        %865 = vrot.lane.b32.xlu0 %v848, 8
        %v866 = vpop.permute.xlu0 %865
        %867 = vrot.lane.b32.xlu0 %v849, 8
        %v868 = vpop.permute.xlu0 %867
        %s869 = scalar_lea.vmem %s4, 1
        %v870 = vld [vmem:[%s869] sm:$0x1]
        %v872 = vlaneseq
        %v873 = vshrl.u32 %v872, 7
        %v874 = vsub.s32 0, %v873
        %v875 = vrot.slane %v870, %v874
        %v877 = vadd.f32 %v866, %v875
        %v878 = vadd.f32 %v868, %v875
        %v879 = vmax.f32 %v863, %v877
        %v880 = vmax.f32 %v864, %v878
        %881 = vrot.lane.b32.xlu0 %v848, 7
        %v882 = vpop.permute.xlu0 %881
        %883 = vrot.lane.b32.xlu0 %v849, 7
        %v884 = vpop.permute.xlu0 %883
        %s885 = scalar_lea.vmem %s4, 2
        %v886 = vld [vmem:[%s885] sm:$0x1]
        %v888 = vlaneseq
        %v889 = vshrl.u32 %v888, 7
        %v890 = vsub.s32 0, %v889
        %v891 = vrot.slane %v886, %v890
        %v893 = vadd.f32 %v882, %v891
        %v894 = vadd.f32 %v884, %v891
        %v895 = vmax.f32 %v879, %v893
        %v896 = vmax.f32 %v880, %v894
        %897 = vrot.lane.b32.xlu0 %v848, 1
        %v898 = vpop.permute.xlu0 %897
        %899 = vrot.lane.b32.xlu0 %v849, 1
        %v900 = vpop.permute.xlu0 %899
        %s901 = scalar_lea.vmem %s4, 3
        %v902 = vld [vmem:[%s901] sm:$0x1]
        %v904 = vlaneseq
        %v905 = vshrl.u32 %v904, 7
        %v906 = vsub.s32 0, %v905
        %v907 = vrot.slane %v902, %v906
        %v909 = vadd.f32 %v898, %v907
        %v910 = vadd.f32 %v900, %v907
        %v911 = vmax.f32 %v895, %v909
        %v912 = vmax.f32 %v896, %v910
        %913 = vrot.lane.b32.xlu0 %v848, 127
        %v914 = vpop.permute.xlu0 %913
        %915 = vrot.lane.b32.xlu0 %v849, 127
        %v916 = vpop.permute.xlu0 %915
        %s917 = scalar_lea.vmem %s4, 5
        %v918 = vld [vmem:[%s917] sm:$0x1]
        %v920 = vlaneseq
        %v921 = vshrl.u32 %v920, 7
        %v922 = vsub.s32 0, %v921
        %v923 = vrot.slane %v918, %v922
        %v925 = vadd.f32 %v914, %v923
        %v926 = vadd.f32 %v916, %v923
        %v927 = vmax.f32 %v911, %v925
        %v928 = vmax.f32 %v912, %v926
        %929 = vrot.lane.b32.xlu0 %v848, 121
        %v930 = vpop.permute.xlu0 %929
        %931 = vrot.lane.b32.xlu0 %v849, 121
        %v932 = vpop.permute.xlu0 %931
        %s933 = scalar_lea.vmem %s4, 6
        %v934 = vld [vmem:[%s933] sm:$0x1]
        %v936 = vlaneseq
        %v937 = vshrl.u32 %v936, 7
        %v938 = vsub.s32 0, %v937
        %v939 = vrot.slane %v934, %v938
        %v941 = vadd.f32 %v930, %v939
        %v942 = vadd.f32 %v932, %v939
        %v943 = vmax.f32 %v927, %v941
        %v944 = vmax.f32 %v928, %v942
        %945 = vrot.lane.b32.xlu0 %v848, 120
        %v946 = vpop.permute.xlu0 %945
        %947 = vrot.lane.b32.xlu0 %v849, 120
        %v948 = vpop.permute.xlu0 %947
        %s949 = scalar_lea.vmem %s4, 7
        %v950 = vld [vmem:[%s949] sm:$0x1]
        %v952 = vlaneseq
        %v953 = vshrl.u32 %v952, 7
        %v954 = vsub.s32 0, %v953
        %v955 = vrot.slane %v950, %v954
        %v957 = vadd.f32 %v946, %v955
        %v958 = vadd.f32 %v948, %v955
        %v959 = vmax.f32 %v943, %v957
        %v960 = vmax.f32 %v944, %v958
        %961 = vrot.lane.b32.xlu0 %v848, 119
        %v962 = vpop.permute.xlu0 %961
        %963 = vrot.lane.b32.xlu0 %v849, 119
        %v964 = vpop.permute.xlu0 %963
        %s965 = scalar_lea.vmem %s4, 8
        %v966 = vld [vmem:[%s965] sm:$0x1]
        %v968 = vlaneseq
        %v969 = vshrl.u32 %v968, 7
        %v970 = vsub.s32 0, %v969
        %v971 = vrot.slane %v966, %v970
        %v973 = vadd.f32 %v962, %v971
        %v974 = vadd.f32 %v964, %v971
        %v975 = vmax.f32 %v959, %v973
        %v976 = vmax.f32 %v960, %v974
        %v977 = vpack.c.bf16 %v976, %v975
        %v979 = vunpack.c.l.b16 %v977
        %v980 = vunpack.c.h.b16 %v977
        %v981 = vpack.c.b16 %v979, %v979
        %v982 = vpack.c.b16 %v980, %v980
        %985 = vst [vmem:[%s211] sm:$0xf] %v981
        %986 = vst [vmem:[%s211 + $0x4] sm:$0xf] %v982
        %s987 = sand.u32 %s134, 1
        %s988 = sand.u32 %s134, 1
        %s989 = smul.addr %s988, 8
        %s990 = scalar_lea.vmem [#allocation2], %s989
        // Predicated region
        $region41: #{img_obs_process.10} parent=39 // pred_check
          %p991 = pneg %p144
        $region42: #{img_obs_process.10} parent=39 // pred_check_branch
          %993 = sbr.rel (%p991) target = $region44
        $region43: #{img_obs_process.10} parent=39 // pred_region
          %s994 = smul.addr %s16, 4
          %s995 = scalar_lea.vmem %s5, %s994
          // Predicated region
          $region45: #{img_obs_process.10} parent=43 // pred_check
            _
          $region46: #{img_obs_process.10} parent=43 // pred_check_branch
            %997 = sbr.rel (0) target = $region48
          $region47: #{img_obs_process.10} parent=43 // pred_region
            // Predicated region
            $region49: #{img_obs_process.10} parent=47 // pred_check
              _
            $region50: #{img_obs_process.10} parent=47 // pred_check_branch
              %999 = sbr.rel target = $region52
            $region51: #{img_obs_process.10} parent=47 // pred_region
              // Predicated region
              $region64: #{img_obs_process.10} parent=51 // pred_check
                _
              $region65: #{img_obs_process.10} parent=51 // pred_check_branch
                %1016 = sbr.rel (0) target = $region67
              $region66: #{img_obs_process.10} parent=51 // pred_region
                loop: start=0, step=1, limit=1
                $region68: #{img_obs_process.10} parent=66 // loop_pre_header
                  _
                $region69: #{img_obs_process.10} parent=66 // loop_header
                  %s1018 = sphi 0, %s1022
                  %p1019 = scmp.ge.s32.totalorder %s1018, 1
                  %s1023 = sphi %s990, %s990
                  %s1024 = sphi %s995, %s995
                $region70: #{img_obs_process.10} parent=66 // loop_header_branch
                  %1021 = sbr.rel (%p1019) target = $region74
                $region71: #{img_obs_process.10} parent=66 // loop_body
                  _
                $region72: #{img_obs_process.10} parent=66 // loop_footer
                  %s1022 = sadd.s32 1, %s1018
                $region73: #{img_obs_process.10} parent=66 // loop_footer_branch
                  %1017 = sbr.rel target = $region69
                $region74: #{img_obs_process.10} parent=66 // loop_exit
                  _
                loop: start=0, step=1, limit=1
                $region75: #{img_obs_process.10} parent=66 // loop_pre_header
                  _
                $region76: #{img_obs_process.10} parent=66 // loop_header
                  %s1027 = sphi 0, %s1031
                  %p1028 = scmp.ge.s32.totalorder %s1027, 1
                  %s1032 = sphi %s990, %s990
                  %s1033 = sphi %s995, %s995
                $region77: #{img_obs_process.10} parent=66 // loop_header_branch
                  %1030 = sbr.rel (%p1028) target = $region81
                $region78: #{img_obs_process.10} parent=66 // loop_body
                  %v1034 = vld [vmem:[%s1032] sm:$0xf]
                  %1035 = vst [vmem:[%s1033] sm:$0xf] %v1034
                  %v1036 = vld [vmem:[%s1032 + $0x4] sm:$0xf]
                  %1037 = vst [vmem:[%s1033 + $0x8] sm:$0xf] %v1036
                $region79: #{img_obs_process.10} parent=66 // loop_footer
                  %s1031 = sadd.s32 1, %s1027
                $region80: #{img_obs_process.10} parent=66 // loop_footer_branch
                  %1026 = sbr.rel target = $region76
                $region81: #{img_obs_process.10} parent=66 // loop_exit
                  _
              $region67: #{img_obs_process.10} parent=51 // pred_fallthru
                _
            $region52: #{img_obs_process.10} parent=47 // pred_fallthru
              _
            // Predicated region
            $region53: #{img_obs_process.10} parent=47 // pred_check
              _
            $region54: #{img_obs_process.10} parent=47 // pred_check_branch
              %1001 = sbr.rel (0) target = $region56
            $region55: #{img_obs_process.10} parent=47 // pred_region
              loop: start=0, step=1, limit=1
              $region57: #{img_obs_process.10} parent=55 // loop_pre_header
                _
              $region58: #{img_obs_process.10} parent=55 // loop_header
                %s1004 = sphi 0, %s1008
                %p1005 = scmp.ge.s32.totalorder %s1004, 1
                %s1009 = sphi %s990, %s990
                %s1010 = sphi %s995, %s995
              $region59: #{img_obs_process.10} parent=55 // loop_header_branch
                %1007 = sbr.rel (%p1005) target = $region63
              $region60: #{img_obs_process.10} parent=55 // loop_body
                %v1011 = vld [vmem:[%s1009] sm:$0xf]
                %1012 = vst [vmem:[%s1010] sm:$0xf] %v1011
                %v1013 = vld [vmem:[%s1009 + $0x4] sm:$0xf]
                %1014 = vst [vmem:[%s1010 + $0x8] sm:$0xf] %v1013
              $region61: #{img_obs_process.10} parent=55 // loop_footer
                %s1008 = sadd.s32 1, %s1004
              $region62: #{img_obs_process.10} parent=55 // loop_footer_branch
                %1003 = sbr.rel target = $region58
              $region63: #{img_obs_process.10} parent=55 // loop_exit
                _
            $region56: #{img_obs_process.10} parent=47 // pred_fallthru
              _
          $region48: #{img_obs_process.10} parent=43 // pred_fallthru
            _
          %1038 = vnop
        $region44: #{img_obs_process.10} parent=39 // pred_fallthru
          _
      $region40: #{img_obs_process.10} parent=5 // pred_fallthru
        _
      %p1039 = scmp.le.s32.totalorder 2, %s11
      // Predicated region
      $region82: #{img_obs_process.10} parent=5 // pred_check
        %p1040 = pneg %p1039
      $region83: #{img_obs_process.10} parent=5 // pred_check_branch
        %1042 = sbr.rel (%p1040) target = $region85
      $region84: #{img_obs_process.10} parent=5 // pred_region
        %s1043 = ssub.s32 %s11, 2
        // Predicated region
        $region86: #{img_obs_process.10} parent=84 // pred_check
          %p1044 = pneg %p150
        $region87: #{img_obs_process.10} parent=84 // pred_check_branch
          %1046 = sbr.rel (%p1044) target = $region89
        $region88: #{img_obs_process.10} parent=84 // pred_region
          %s1047 = sand.u32 %s135, 1
          %s1048 = sand.u32 %s135, 1
          %s1049 = smul.addr %s1048, 8
          %s1050 = scalar_lea.vmem [#allocation2], %s1049
        $region89: #{img_obs_process.10} parent=84 // pred_fallthru
          _
      $region85: #{img_obs_process.10} parent=5 // pred_fallthru
        _
    $region6: #{img_obs_process.10} parent=1 // loop_footer
      %s15 = sadd.s32 1, %s11
    $region7: #{img_obs_process.10} parent=1 // loop_footer_branch
      %10 = sbr.rel target = $region3
    $region8: #{img_obs_process.10} parent=1 // loop_exit
      _

// kernel: img_obs_process.12
$region0: #{img_obs_process.12}
  #allocation0 [shape = 'u32[]', space=smem, size = 0x4, offset = 0x4, fixed_abs, tag = 'smem constant byte address 0x4 - core index']
  #allocation1 [shape = 'u32[144,128]{1,0:T(1,128)}', space=vmem, size = 0x12000, scoped, tag = 'internal scratch']
  %s0 = inlined_call_operand.vmem [shape: bf16[16,64], index: 0, kind: input, shape index: {}]
  %s1 = inlined_call_operand.vmem [shape: bf16[9,16,16], index: 1, kind: input, shape index: {}]
  %s2 = inlined_call_operand.vmem [shape: f32[16,1], index: 2, kind: input, shape index: {}]
  %s3 = inlined_call_operand.vmem [shape: f32[9,1,64], index: 3, kind: input, shape index: {}]
  %s4 = inlined_call_operand.vmem [shape: bf16[16,64], index: 4, kind: input, shape index: {}]
  %s5 = inlined_call_operand.vmem [shape: bf16[16,64], index: 5, kind: output, shape index: {}]
  %s6 = sld [smem:[#allocation0]]
  $region30: #{img_obs_process.12} parent=0
    _
  %s8 = ssub.s32 1, %s6
  %s9 = scalar_select 0, %s8, %s6
  // Predicated region
  $region2: #{img_obs_process.12} parent=0 // pred_check
    _
  $region3: #{img_obs_process.12} parent=0 // pred_check_branch
    %11 = sbr.rel (0) target = $region5
  $region4: #{img_obs_process.12} parent=0 // pred_region
    _
  $region5: #{img_obs_process.12} parent=0 // pred_fallthru
    _
  // Predicated region
  $region6: #{img_obs_process.12} parent=0 // pred_check
    _
  $region7: #{img_obs_process.12} parent=0 // pred_check_branch
    %13 = sbr.rel (0) target = $region9
  $region8: #{img_obs_process.12} parent=0 // pred_region
    _
  $region9: #{img_obs_process.12} parent=0 // pred_fallthru
    _
  // Predicated region
  $region10: #{img_obs_process.12} parent=0 // pred_check
    _
  $region11: #{img_obs_process.12} parent=0 // pred_check_branch
    %15 = sbr.rel (0) target = $region13
  $region12: #{img_obs_process.12} parent=0 // pred_region
    _
  $region13: #{img_obs_process.12} parent=0 // pred_fallthru
    _
  // Predicated region
  $region14: #{img_obs_process.12} parent=0 // pred_check
    _
  $region15: #{img_obs_process.12} parent=0 // pred_check_branch
    %17 = sbr.rel (0) target = $region17
  $region16: #{img_obs_process.12} parent=0 // pred_region
    _
  $region17: #{img_obs_process.12} parent=0 // pred_fallthru
    _
  // Predicated region
  $region18: #{img_obs_process.12} parent=0 // pred_check
    _
  $region19: #{img_obs_process.12} parent=0 // pred_check_branch
    %19 = sbr.rel (0) target = $region21
  $region20: #{img_obs_process.12} parent=0 // pred_region
    _
  $region21: #{img_obs_process.12} parent=0 // pred_fallthru
    _
  %v21 = vld [vmem:[%s0] sm:$0xf]
  %v22 = vld [vmem:[%s0 + $0x4] sm:$0xf]
  %v23 = vunpack.c.l.bf16 %v21
  %v24 = vunpack.c.l.bf16 %v22
  %vm25 = vcmask 1048064
  %26 = vrot.lane.b32.xlu0 %v23, 64
  %v27 = vpop.permute.xlu0 %26
  %v28 = vsel %vm25, %v27, %v23
  %29 = vrot.lane.b32.xlu0 %v24, 64
  %v30 = vpop.permute.xlu0 %29
  %v31 = vsel %vm25, %v30, %v24
  %32 = vrot.lane.b32.xlu0 %v28, 64
  %v33 = vpop.permute.xlu0 %32
  %34 = vrot.lane.b32.xlu0 %v31, 64
  %v35 = vpop.permute.xlu0 %34
  %v36 = vsel %vm25, %v33, %v23
  %v37 = vsel %vm25, %v35, %v24
  %v38 = vld [vmem:[%s3] sm:$0x1]
  %v40 = vlaneseq
  %v41 = vshrl.u32 %v40, 7
  %v42 = vsub.s32 0, %v41
  %v43 = vrot.slane %v38, %v42
  %44 = vrot.lane.b32.xlu0 %v43, 59
  %v45 = vpop.permute.xlu0 %44
  %v47 = vmul.f32 %v36, %v45
  %v48 = vmul.f32 %v37, %v45
  %v49 = vpack.c.bf16 %v48, %v47
  %v50 = vld [vmem:[%s1] sm:$0xf]
  %v51 = vld [vmem:[%s1 + $0x4] sm:$0xf]
  %s52 = scalar_lea.vmem %s3, 1
  %v53 = vld [vmem:[%s52] sm:$0x1]
  %v55 = vlaneseq
  %v56 = vshrl.u32 %v55, 7
  %v57 = vsub.s32 0, %v56
  %v58 = vrot.slane %v53, %v57
  %59 = vrot.lane.b32.xlu0 %v58, 60
  %v60 = vpop.permute.xlu0 %59
  %v62 = vmul.f32 %v36, %v60
  %v63 = vmul.f32 %v37, %v60
  %v64 = vpack.c.bf16 %v63, %v62
  %s65 = scalar_lea.vmem %s1, 8
  %v66 = vld [vmem:[%s65] sm:$0xf]
  %v67 = vld [vmem:[%s65 + $0x4] sm:$0xf]
  %v70 = vunpack.c.l.b16 %v66
  %v71 = vunpack.c.l.b16 %v67
  %v72 = vpack.c.b16 %v71, %v70
  %74 = vrot.lane.b32.xlu0 %v64, 68
  %v75 = vpop.permute.xlu0 %74
  %vm77 = vcmask 130048
  %v79 = vsel %vm77, %v72, 0
  %81 = vmatprep.subr.bf16.mxu0 0
  %82 = vmatpush1.bf16.msra.mxu0 %v75
  %83 = vmatprep.subr.bf16.mxu0 0
  %84 = vmatpush1.bf16.msra.mxu0 0
  %85 = vmatprep.subr.bf16.mxu0 0
  %86 = vmatpush1.bf16.msra.mxu0 0
  %87 = vmatprep.subr.bf16.mxu0 0
  %88 = vmatpush1.bf16.msra.mxu0 0
  %89 = vmatprep.subr.bf16.mxu0 0
  %90 = vmatpush1.bf16.msra.mxu0 0
  %91 = vmatprep.subr.bf16.mxu0 0
  %92 = vmatpush1.bf16.msra.mxu0 0
  %93 = vmatprep.subr.bf16.mxu0 0
  %94 = vmatpush1.bf16.msra.mxu0 0
  %95 = vmatprep.subr.bf16.mxu0 0
  %96 = vmatpush1.bf16.msra.mxu0 0
  %97 = vmatprep.subr.bf16.mxu0 0
  %98 = vmatpush1.bf16.msra.mxu0 0
  %99 = vmatprep.subr.bf16.mxu0 0
  %100 = vmatpush1.bf16.msra.mxu0 0
  %101 = vmatprep.subr.bf16.mxu0 0
  %102 = vmatpush1.bf16.msra.mxu0 0
  %103 = vmatprep.subr.bf16.mxu0 0
  %104 = vmatpush1.bf16.msra.mxu0 0
  %105 = vmatprep.subr.bf16.mxu0 0
  %106 = vmatpush1.bf16.msra.mxu0 0
  %107 = vmatprep.subr.bf16.mxu0 0
  %108 = vmatpush1.bf16.msra.mxu0 0
  %109 = vmatprep.subr.bf16.mxu0 0
  %110 = vmatpush1.bf16.msra.mxu0 0
  %111 = vmatprep.subr.bf16.mxu0 0
  %112 = vmatpush1.bf16.msra.mxu0 0
  %113 = vmatprep.mubr.bf16.mxu0 0
  %114 = vmatmul.mubr.bf16.gmra.mrb[0].mxu0 %v79
  %v115 = vpop.f32.mrb[0].mxu0
  %v116 = vadd.f32 0.0, %v115
  %v117 = vpop.f32.mrb[0].mxu0
  %v118 = vpop.f32.mrb[0].mxu0
  %v119 = vadd.f32 0.0, %v118
  %v120 = vpop.f32.mrb[0].mxu0
  %121 = vdwg.mxu0
  %v124 = vunpack.c.l.b16 %v50
  %v125 = vunpack.c.l.b16 %v51
  %v126 = vpack.c.b16 %v125, %v124
  %128 = vrot.lane.b32.xlu0 %v49, 69
  %v129 = vpop.permute.xlu0 %128
  %v132 = vsel %vm77, %v126, 0
  %134 = vmatprep.subr.bf16.mxu0 0
  %135 = vmatpush1.bf16.msra.mxu0 %v129
  %136 = vmatprep.subr.bf16.mxu0 0
  %137 = vmatpush1.bf16.msra.mxu0 0
  %138 = vmatprep.subr.bf16.mxu0 0
  %139 = vmatpush1.bf16.msra.mxu0 0
  %140 = vmatprep.subr.bf16.mxu0 0
  %141 = vmatpush1.bf16.msra.mxu0 0
  %142 = vmatprep.subr.bf16.mxu0 0
  %143 = vmatpush1.bf16.msra.mxu0 0
  %144 = vmatprep.subr.bf16.mxu0 0
  %145 = vmatpush1.bf16.msra.mxu0 0
  %146 = vmatprep.subr.bf16.mxu0 0
  %147 = vmatpush1.bf16.msra.mxu0 0
  %148 = vmatprep.subr.bf16.mxu0 0
  %149 = vmatpush1.bf16.msra.mxu0 0
  %150 = vmatprep.subr.bf16.mxu0 0
  %151 = vmatpush1.bf16.msra.mxu0 0
  %152 = vmatprep.subr.bf16.mxu0 0
  %153 = vmatpush1.bf16.msra.mxu0 0
  %154 = vmatprep.subr.bf16.mxu0 0
  %155 = vmatpush1.bf16.msra.mxu0 0
  %156 = vmatprep.subr.bf16.mxu0 0
  %157 = vmatpush1.bf16.msra.mxu0 0
  %158 = vmatprep.subr.bf16.mxu0 0
  %159 = vmatpush1.bf16.msra.mxu0 0
  %160 = vmatprep.subr.bf16.mxu0 0
  %161 = vmatpush1.bf16.msra.mxu0 0
  %162 = vmatprep.subr.bf16.mxu0 0
  %163 = vmatpush1.bf16.msra.mxu0 0
  %164 = vmatprep.subr.bf16.mxu0 0
  %165 = vmatpush1.bf16.msra.mxu0 0
  %166 = vmatprep.mubr.bf16.mxu0 0
  %167 = vmatmul.mubr.bf16.gmra.mrb[0].mxu0 %v132
  %v168 = vpop.f32.mrb[0].mxu0
  %v169 = vadd.f32 %v116, %v168
  %v170 = vpop.f32.mrb[0].mxu0
  %v171 = vpop.f32.mrb[0].mxu0
  %v172 = vadd.f32 %v119, %v171
  %v173 = vpop.f32.mrb[0].mxu0
  %174 = vdwg.mxu0
  %s175 = scalar_lea.vmem %s3, 2
  %v176 = vld [vmem:[%s175] sm:$0x1]
  %v178 = vlaneseq
  %v179 = vshrl.u32 %v178, 7
  %v180 = vsub.s32 0, %v179
  %v181 = vrot.slane %v176, %v180
  %182 = vrot.lane.b32.xlu0 %v181, 61
  %v183 = vpop.permute.xlu0 %182
  %v185 = vmul.f32 %v36, %v183
  %v186 = vmul.f32 %v37, %v183
  %v187 = vpack.c.bf16 %v186, %v185
  %s188 = scalar_lea.vmem %s1, 16
  %v189 = vld [vmem:[%s188] sm:$0xf]
  %v190 = vld [vmem:[%s188 + $0x4] sm:$0xf]
  %v193 = vunpack.c.l.b16 %v189
  %v194 = vunpack.c.l.b16 %v190
  %v195 = vpack.c.b16 %v194, %v193
  %197 = vrot.lane.b32.xlu0 %v187, 67
  %v198 = vpop.permute.xlu0 %197
  %v201 = vsel %vm77, %v195, 0
  %203 = vmatprep.subr.bf16.mxu0 0
  %204 = vmatpush1.bf16.msra.mxu0 %v198
  %205 = vmatprep.subr.bf16.mxu0 0
  %206 = vmatpush1.bf16.msra.mxu0 0
  %207 = vmatprep.subr.bf16.mxu0 0
  %208 = vmatpush1.bf16.msra.mxu0 0
  %209 = vmatprep.subr.bf16.mxu0 0
  %210 = vmatpush1.bf16.msra.mxu0 0
  %211 = vmatprep.subr.bf16.mxu0 0
  %212 = vmatpush1.bf16.msra.mxu0 0
  %213 = vmatprep.subr.bf16.mxu0 0
  %214 = vmatpush1.bf16.msra.mxu0 0
  %215 = vmatprep.subr.bf16.mxu0 0
  %216 = vmatpush1.bf16.msra.mxu0 0
  %217 = vmatprep.subr.bf16.mxu0 0
  %218 = vmatpush1.bf16.msra.mxu0 0
  %219 = vmatprep.subr.bf16.mxu0 0
  %220 = vmatpush1.bf16.msra.mxu0 0
  %221 = vmatprep.subr.bf16.mxu0 0
  %222 = vmatpush1.bf16.msra.mxu0 0
  %223 = vmatprep.subr.bf16.mxu0 0
  %224 = vmatpush1.bf16.msra.mxu0 0
  %225 = vmatprep.subr.bf16.mxu0 0
  %226 = vmatpush1.bf16.msra.mxu0 0
  %227 = vmatprep.subr.bf16.mxu0 0
  %228 = vmatpush1.bf16.msra.mxu0 0
  %229 = vmatprep.subr.bf16.mxu0 0
  %230 = vmatpush1.bf16.msra.mxu0 0
  %231 = vmatprep.subr.bf16.mxu0 0
  %232 = vmatpush1.bf16.msra.mxu0 0
  %233 = vmatprep.subr.bf16.mxu0 0
  %234 = vmatpush1.bf16.msra.mxu0 0
  %235 = vmatprep.mubr.bf16.mxu0 0
  %236 = vmatmul.mubr.bf16.gmra.mrb[0].mxu0 %v201
  %v237 = vpop.f32.mrb[0].mxu0
  %v238 = vadd.f32 0.0, %v237
  %v239 = vpop.f32.mrb[0].mxu0
  %v240 = vpop.f32.mrb[0].mxu0
  %v241 = vadd.f32 0.0, %v240
  %v242 = vpop.f32.mrb[0].mxu0
  %243 = vdwg.mxu0
  %v244 = vadd.f32 %v169, %v238
  %v245 = vadd.f32 %v172, %v241
  %s246 = scalar_lea.vmem %s3, 3
  %v247 = vld [vmem:[%s246] sm:$0x1]
  %v249 = vlaneseq
  %v250 = vshrl.u32 %v249, 7
  %v251 = vsub.s32 0, %v250
  %v252 = vrot.slane %v247, %v251
  %253 = vrot.lane.b32.xlu0 %v252, 63
  %v254 = vpop.permute.xlu0 %253
  %v256 = vmul.f32 %v36, %v254
  %v257 = vmul.f32 %v37, %v254
  %v258 = vpack.c.bf16 %v257, %v256
  %s259 = scalar_lea.vmem %s1, 24
  %v260 = vld [vmem:[%s259] sm:$0xf]
  %v261 = vld [vmem:[%s259 + $0x4] sm:$0xf]
  %v264 = vunpack.c.l.b16 %v260
  %v265 = vunpack.c.l.b16 %v261
  %v266 = vpack.c.b16 %v265, %v264
  %268 = vrot.lane.b32.xlu0 %v258, 65
  %v269 = vpop.permute.xlu0 %268
  %v272 = vsel %vm77, %v266, 0
  %274 = vmatprep.subr.bf16.mxu0 0
  %275 = vmatpush1.bf16.msra.mxu0 %v269
  %276 = vmatprep.subr.bf16.mxu0 0
  %277 = vmatpush1.bf16.msra.mxu0 0
  %278 = vmatprep.subr.bf16.mxu0 0
  %279 = vmatpush1.bf16.msra.mxu0 0
  %280 = vmatprep.subr.bf16.mxu0 0
  %281 = vmatpush1.bf16.msra.mxu0 0
  %282 = vmatprep.subr.bf16.mxu0 0
  %283 = vmatpush1.bf16.msra.mxu0 0
  %284 = vmatprep.subr.bf16.mxu0 0
  %285 = vmatpush1.bf16.msra.mxu0 0
  %286 = vmatprep.subr.bf16.mxu0 0
  %287 = vmatpush1.bf16.msra.mxu0 0
  %288 = vmatprep.subr.bf16.mxu0 0
  %289 = vmatpush1.bf16.msra.mxu0 0
  %290 = vmatprep.subr.bf16.mxu0 0
  %291 = vmatpush1.bf16.msra.mxu0 0
  %292 = vmatprep.subr.bf16.mxu0 0
  %293 = vmatpush1.bf16.msra.mxu0 0
  %294 = vmatprep.subr.bf16.mxu0 0
  %295 = vmatpush1.bf16.msra.mxu0 0
  %296 = vmatprep.subr.bf16.mxu0 0
  %297 = vmatpush1.bf16.msra.mxu0 0
  %298 = vmatprep.subr.bf16.mxu0 0
  %299 = vmatpush1.bf16.msra.mxu0 0
  %300 = vmatprep.subr.bf16.mxu0 0
  %301 = vmatpush1.bf16.msra.mxu0 0
  %302 = vmatprep.subr.bf16.mxu0 0
  %303 = vmatpush1.bf16.msra.mxu0 0
  %304 = vmatprep.subr.bf16.mxu0 0
  %305 = vmatpush1.bf16.msra.mxu0 0
  %306 = vmatprep.mubr.bf16.mxu0 0
  %307 = vmatmul.mubr.bf16.gmra.mrb[0].mxu0 %v272
  %v308 = vpop.f32.mrb[0].mxu0
  %v309 = vadd.f32 0.0, %v308
  %v310 = vpop.f32.mrb[0].mxu0
  %v311 = vpop.f32.mrb[0].mxu0
  %v312 = vadd.f32 0.0, %v311
  %v313 = vpop.f32.mrb[0].mxu0
  %314 = vdwg.mxu0
  %v315 = vadd.f32 %v244, %v309
  %v316 = vadd.f32 %v245, %v312
  %s317 = scalar_lea.vmem %s3, 4
  %v318 = vld [vmem:[%s317] sm:$0x1]
  %v320 = vlaneseq
  %v321 = vshrl.u32 %v320, 7
  %v322 = vsub.s32 0, %v321
  %v323 = vrot.slane %v318, %v322
  %v325 = vmul.f32 %v23, %v323
  %v326 = vmul.f32 %v24, %v323
  %v327 = vpack.c.bf16 %v326, %v325
  %s328 = scalar_lea.vmem %s1, 32
  %v329 = vld [vmem:[%s328] sm:$0xf]
  %v330 = vld [vmem:[%s328 + $0x4] sm:$0xf]
  %v333 = vunpack.c.l.b16 %v329
  %v334 = vunpack.c.l.b16 %v330
  %v335 = vpack.c.b16 %v334, %v333
  %v337 = vsel %vm77, %v335, 0
  %339 = vmatprep.subr.bf16.mxu0 0
  %340 = vmatpush1.bf16.msra.mxu0 %v327
  %341 = vmatprep.subr.bf16.mxu0 0
  %342 = vmatpush1.bf16.msra.mxu0 0
  %343 = vmatprep.subr.bf16.mxu0 0
  %344 = vmatpush1.bf16.msra.mxu0 0
  %345 = vmatprep.subr.bf16.mxu0 0
  %346 = vmatpush1.bf16.msra.mxu0 0
  %347 = vmatprep.subr.bf16.mxu0 0
  %348 = vmatpush1.bf16.msra.mxu0 0
  %349 = vmatprep.subr.bf16.mxu0 0
  %350 = vmatpush1.bf16.msra.mxu0 0
  %351 = vmatprep.subr.bf16.mxu0 0
  %352 = vmatpush1.bf16.msra.mxu0 0
  %353 = vmatprep.subr.bf16.mxu0 0
  %354 = vmatpush1.bf16.msra.mxu0 0
  %355 = vmatprep.subr.bf16.mxu0 0
  %356 = vmatpush1.bf16.msra.mxu0 0
  %357 = vmatprep.subr.bf16.mxu0 0
  %358 = vmatpush1.bf16.msra.mxu0 0
  %359 = vmatprep.subr.bf16.mxu0 0
  %360 = vmatpush1.bf16.msra.mxu0 0
  %361 = vmatprep.subr.bf16.mxu0 0
  %362 = vmatpush1.bf16.msra.mxu0 0
  %363 = vmatprep.subr.bf16.mxu0 0
  %364 = vmatpush1.bf16.msra.mxu0 0
  %365 = vmatprep.subr.bf16.mxu0 0
  %366 = vmatpush1.bf16.msra.mxu0 0
  %367 = vmatprep.subr.bf16.mxu0 0
  %368 = vmatpush1.bf16.msra.mxu0 0
  %369 = vmatprep.subr.bf16.mxu0 0
  %370 = vmatpush1.bf16.msra.mxu0 0
  %371 = vmatprep.mubr.bf16.mxu0 0
  %372 = vmatmul.mubr.bf16.gmra.mrb[0].mxu0 %v337
  %v373 = vpop.f32.mrb[0].mxu0
  %v374 = vadd.f32 0.0, %v373
  %v375 = vpop.f32.mrb[0].mxu0
  %v376 = vpop.f32.mrb[0].mxu0
  %v377 = vadd.f32 0.0, %v376
  %v378 = vpop.f32.mrb[0].mxu0
  %379 = vdwg.mxu0
  %v380 = vadd.f32 %v315, %v374
  %v381 = vadd.f32 %v316, %v377
  %s382 = scalar_lea.vmem %s3, 5
  %v383 = vld [vmem:[%s382] sm:$0x1]
  %v385 = vlaneseq
  %v386 = vshrl.u32 %v385, 7
  %v387 = vsub.s32 0, %v386
  %v388 = vrot.slane %v383, %v387
  %389 = vrot.lane.b32.xlu0 %v388, 1
  %v390 = vpop.permute.xlu0 %389
  %v392 = vmul.f32 %v36, %v390
  %v393 = vmul.f32 %v37, %v390
  %v394 = vpack.c.bf16 %v393, %v392
  %s395 = scalar_lea.vmem %s1, 40
  %v396 = vld [vmem:[%s395] sm:$0xf]
  %v397 = vld [vmem:[%s395 + $0x4] sm:$0xf]
  %v400 = vunpack.c.l.b16 %v396
  %v401 = vunpack.c.l.b16 %v397
  %v402 = vpack.c.b16 %v401, %v400
  %404 = vrot.lane.b32.xlu0 %v394, 127
  %v405 = vpop.permute.xlu0 %404
  %v408 = vsel %vm77, %v402, 0
  %410 = vmatprep.subr.bf16.mxu0 0
  %411 = vmatpush1.bf16.msra.mxu0 %v405
  %412 = vmatprep.subr.bf16.mxu0 0
  %413 = vmatpush1.bf16.msra.mxu0 0
  %414 = vmatprep.subr.bf16.mxu0 0
  %415 = vmatpush1.bf16.msra.mxu0 0
  %416 = vmatprep.subr.bf16.mxu0 0
  %417 = vmatpush1.bf16.msra.mxu0 0
  %418 = vmatprep.subr.bf16.mxu0 0
  %419 = vmatpush1.bf16.msra.mxu0 0
  %420 = vmatprep.subr.bf16.mxu0 0
  %421 = vmatpush1.bf16.msra.mxu0 0
  %422 = vmatprep.subr.bf16.mxu0 0
  %423 = vmatpush1.bf16.msra.mxu0 0
  %424 = vmatprep.subr.bf16.mxu0 0
  %425 = vmatpush1.bf16.msra.mxu0 0
  %426 = vmatprep.subr.bf16.mxu0 0
  %427 = vmatpush1.bf16.msra.mxu0 0
  %428 = vmatprep.subr.bf16.mxu0 0
  %429 = vmatpush1.bf16.msra.mxu0 0
  %430 = vmatprep.subr.bf16.mxu0 0
  %431 = vmatpush1.bf16.msra.mxu0 0
  %432 = vmatprep.subr.bf16.mxu0 0
  %433 = vmatpush1.bf16.msra.mxu0 0
  %434 = vmatprep.subr.bf16.mxu0 0
  %435 = vmatpush1.bf16.msra.mxu0 0
  %436 = vmatprep.subr.bf16.mxu0 0
  %437 = vmatpush1.bf16.msra.mxu0 0
  %438 = vmatprep.subr.bf16.mxu0 0
  %439 = vmatpush1.bf16.msra.mxu0 0
  %440 = vmatprep.subr.bf16.mxu0 0
  %441 = vmatpush1.bf16.msra.mxu0 0
  %442 = vmatprep.mubr.bf16.mxu0 0
  %443 = vmatmul.mubr.bf16.gmra.mrb[0].mxu0 %v408
  %v444 = vpop.f32.mrb[0].mxu0
  %v445 = vadd.f32 0.0, %v444
  %v446 = vpop.f32.mrb[0].mxu0
  %v447 = vpop.f32.mrb[0].mxu0
  %v448 = vadd.f32 0.0, %v447
  %v449 = vpop.f32.mrb[0].mxu0
  %450 = vdwg.mxu0
  %v451 = vadd.f32 %v380, %v445
  %v452 = vadd.f32 %v381, %v448
  %s453 = scalar_lea.vmem %s3, 6
  %v454 = vld [vmem:[%s453] sm:$0x1]
  %v456 = vlaneseq
  %v457 = vshrl.u32 %v456, 7
  %v458 = vsub.s32 0, %v457
  %v459 = vrot.slane %v454, %v458
  %460 = vrot.lane.b32.xlu0 %v459, 3
  %v461 = vpop.permute.xlu0 %460
  %v463 = vmul.f32 %v36, %v461
  %v464 = vmul.f32 %v37, %v461
  %v465 = vpack.c.bf16 %v464, %v463
  %s466 = scalar_lea.vmem %s1, 48
  %v467 = vld [vmem:[%s466] sm:$0xf]
  %v468 = vld [vmem:[%s466 + $0x4] sm:$0xf]
  %v471 = vunpack.c.l.b16 %v467
  %v472 = vunpack.c.l.b16 %v468
  %v473 = vpack.c.b16 %v472, %v471
  %475 = vrot.lane.b32.xlu0 %v465, 125
  %v476 = vpop.permute.xlu0 %475
  %v479 = vsel %vm77, %v473, 0
  %481 = vmatprep.subr.bf16.mxu0 0
  %482 = vmatpush1.bf16.msra.mxu0 %v476
  %483 = vmatprep.subr.bf16.mxu0 0
  %484 = vmatpush1.bf16.msra.mxu0 0
  %485 = vmatprep.subr.bf16.mxu0 0
  %486 = vmatpush1.bf16.msra.mxu0 0
  %487 = vmatprep.subr.bf16.mxu0 0
  %488 = vmatpush1.bf16.msra.mxu0 0
  %489 = vmatprep.subr.bf16.mxu0 0
  %490 = vmatpush1.bf16.msra.mxu0 0
  %491 = vmatprep.subr.bf16.mxu0 0
  %492 = vmatpush1.bf16.msra.mxu0 0
  %493 = vmatprep.subr.bf16.mxu0 0
  %494 = vmatpush1.bf16.msra.mxu0 0
  %495 = vmatprep.subr.bf16.mxu0 0
  %496 = vmatpush1.bf16.msra.mxu0 0
  %497 = vmatprep.subr.bf16.mxu0 0
  %498 = vmatpush1.bf16.msra.mxu0 0
  %499 = vmatprep.subr.bf16.mxu0 0
  %500 = vmatpush1.bf16.msra.mxu0 0
  %501 = vmatprep.subr.bf16.mxu0 0
  %502 = vmatpush1.bf16.msra.mxu0 0
  %503 = vmatprep.subr.bf16.mxu0 0
  %504 = vmatpush1.bf16.msra.mxu0 0
  %505 = vmatprep.subr.bf16.mxu0 0
  %506 = vmatpush1.bf16.msra.mxu0 0
  %507 = vmatprep.subr.bf16.mxu0 0
  %508 = vmatpush1.bf16.msra.mxu0 0
  %509 = vmatprep.subr.bf16.mxu0 0
  %510 = vmatpush1.bf16.msra.mxu0 0
  %511 = vmatprep.subr.bf16.mxu0 0
  %512 = vmatpush1.bf16.msra.mxu0 0
  %513 = vmatprep.mubr.bf16.mxu0 0
  %514 = vmatmul.mubr.bf16.gmra.mrb[0].mxu0 %v479
  %v515 = vpop.f32.mrb[0].mxu0
  %v516 = vadd.f32 0.0, %v515
  %v517 = vpop.f32.mrb[0].mxu0
  %v518 = vpop.f32.mrb[0].mxu0
  %v519 = vadd.f32 0.0, %v518
  %v520 = vpop.f32.mrb[0].mxu0
  %521 = vdwg.mxu0
  %v522 = vadd.f32 %v451, %v516
  %v523 = vadd.f32 %v452, %v519
  %s524 = scalar_lea.vmem %s3, 7
  %v525 = vld [vmem:[%s524] sm:$0x1]
  %v527 = vlaneseq
  %v528 = vshrl.u32 %v527, 7
  %v529 = vsub.s32 0, %v528
  %v530 = vrot.slane %v525, %v529
  %531 = vrot.lane.b32.xlu0 %v530, 4
  %v532 = vpop.permute.xlu0 %531
  %v534 = vmul.f32 %v36, %v532
  %v535 = vmul.f32 %v37, %v532
  %v536 = vpack.c.bf16 %v535, %v534
  %s537 = scalar_lea.vmem %s1, 56
  %v538 = vld [vmem:[%s537] sm:$0xf]
  %v539 = vld [vmem:[%s537 + $0x4] sm:$0xf]
  %v542 = vunpack.c.l.b16 %v538
  %v543 = vunpack.c.l.b16 %v539
  %v544 = vpack.c.b16 %v543, %v542
  %546 = vrot.lane.b32.xlu0 %v536, 124
  %v547 = vpop.permute.xlu0 %546
  %v550 = vsel %vm77, %v544, 0
  %552 = vmatprep.subr.bf16.mxu0 0
  %553 = vmatpush1.bf16.msra.mxu0 %v547
  %554 = vmatprep.subr.bf16.mxu0 0
  %555 = vmatpush1.bf16.msra.mxu0 0
  %556 = vmatprep.subr.bf16.mxu0 0
  %557 = vmatpush1.bf16.msra.mxu0 0
  %558 = vmatprep.subr.bf16.mxu0 0
  %559 = vmatpush1.bf16.msra.mxu0 0
  %560 = vmatprep.subr.bf16.mxu0 0
  %561 = vmatpush1.bf16.msra.mxu0 0
  %562 = vmatprep.subr.bf16.mxu0 0
  %563 = vmatpush1.bf16.msra.mxu0 0
  %564 = vmatprep.subr.bf16.mxu0 0
  %565 = vmatpush1.bf16.msra.mxu0 0
  %566 = vmatprep.subr.bf16.mxu0 0
  %567 = vmatpush1.bf16.msra.mxu0 0
  %568 = vmatprep.subr.bf16.mxu0 0
  %569 = vmatpush1.bf16.msra.mxu0 0
  %570 = vmatprep.subr.bf16.mxu0 0
  %571 = vmatpush1.bf16.msra.mxu0 0
  %572 = vmatprep.subr.bf16.mxu0 0
  %573 = vmatpush1.bf16.msra.mxu0 0
  %574 = vmatprep.subr.bf16.mxu0 0
  %575 = vmatpush1.bf16.msra.mxu0 0
  %576 = vmatprep.subr.bf16.mxu0 0
  %577 = vmatpush1.bf16.msra.mxu0 0
  %578 = vmatprep.subr.bf16.mxu0 0
  %579 = vmatpush1.bf16.msra.mxu0 0
  %580 = vmatprep.subr.bf16.mxu0 0
  %581 = vmatpush1.bf16.msra.mxu0 0
  %582 = vmatprep.subr.bf16.mxu0 0
  %583 = vmatpush1.bf16.msra.mxu0 0
  %584 = vmatprep.mubr.bf16.mxu0 0
  %585 = vmatmul.mubr.bf16.gmra.mrb[0].mxu0 %v550
  %v586 = vpop.f32.mrb[0].mxu0
  %v587 = vadd.f32 0.0, %v586
  %v588 = vpop.f32.mrb[0].mxu0
  %v589 = vpop.f32.mrb[0].mxu0
  %v590 = vadd.f32 0.0, %v589
  %v591 = vpop.f32.mrb[0].mxu0
  %592 = vdwg.mxu0
  %v593 = vadd.f32 %v522, %v587
  %v594 = vadd.f32 %v523, %v590
  %s595 = scalar_lea.vmem %s3, 8
  %v596 = vld [vmem:[%s595] sm:$0x1]
  %v598 = vlaneseq
  %v599 = vshrl.u32 %v598, 7
  %v600 = vsub.s32 0, %v599
  %v601 = vrot.slane %v596, %v600
  %602 = vrot.lane.b32.xlu0 %v601, 5
  %v603 = vpop.permute.xlu0 %602
  %v605 = vmul.f32 %v36, %v603
  %v606 = vmul.f32 %v37, %v603
  %v607 = vpack.c.bf16 %v606, %v605
  %s608 = scalar_lea.vmem %s1, 64
  %v609 = vld [vmem:[%s608] sm:$0xf]
  %v610 = vld [vmem:[%s608 + $0x4] sm:$0xf]
  %v613 = vunpack.c.l.b16 %v609
  %v614 = vunpack.c.l.b16 %v610
  %v615 = vpack.c.b16 %v614, %v613
  %617 = vrot.lane.b32.xlu0 %v607, 123
  %v618 = vpop.permute.xlu0 %617
  %v621 = vsel %vm77, %v615, 0
  %623 = vmatprep.subr.bf16.mxu0 0
  %624 = vmatpush1.bf16.msra.mxu0 %v618
  %625 = vmatprep.subr.bf16.mxu0 0
  %626 = vmatpush1.bf16.msra.mxu0 0
  %627 = vmatprep.subr.bf16.mxu0 0
  %628 = vmatpush1.bf16.msra.mxu0 0
  %629 = vmatprep.subr.bf16.mxu0 0
  %630 = vmatpush1.bf16.msra.mxu0 0
  %631 = vmatprep.subr.bf16.mxu0 0
  %632 = vmatpush1.bf16.msra.mxu0 0
  %633 = vmatprep.subr.bf16.mxu0 0
  %634 = vmatpush1.bf16.msra.mxu0 0
  %635 = vmatprep.subr.bf16.mxu0 0
  %636 = vmatpush1.bf16.msra.mxu0 0
  %637 = vmatprep.subr.bf16.mxu0 0
  %638 = vmatpush1.bf16.msra.mxu0 0
  %639 = vmatprep.subr.bf16.mxu0 0
  %640 = vmatpush1.bf16.msra.mxu0 0
  %641 = vmatprep.subr.bf16.mxu0 0
  %642 = vmatpush1.bf16.msra.mxu0 0
  %643 = vmatprep.subr.bf16.mxu0 0
  %644 = vmatpush1.bf16.msra.mxu0 0
  %645 = vmatprep.subr.bf16.mxu0 0
  %646 = vmatpush1.bf16.msra.mxu0 0
  %647 = vmatprep.subr.bf16.mxu0 0
  %648 = vmatpush1.bf16.msra.mxu0 0
  %649 = vmatprep.subr.bf16.mxu0 0
  %650 = vmatpush1.bf16.msra.mxu0 0
  %651 = vmatprep.subr.bf16.mxu0 0
  %652 = vmatpush1.bf16.msra.mxu0 0
  %653 = vmatprep.subr.bf16.mxu0 0
  %654 = vmatpush1.bf16.msra.mxu0 0
  %655 = vmatprep.mubr.bf16.mxu0 0
  %656 = vmatmul.mubr.bf16.gmra.mrb[0].mxu0 %v621
  %v657 = vpop.f32.mrb[0].mxu0
  %v658 = vadd.f32 0.0, %v657
  %v659 = vpop.f32.mrb[0].mxu0
  %v660 = vpop.f32.mrb[0].mxu0
  %v661 = vadd.f32 0.0, %v660
  %v662 = vpop.f32.mrb[0].mxu0
  %663 = vdwg.mxu0
  %v664 = vadd.f32 %v593, %v658
  %v665 = vadd.f32 %v594, %v661
  %v666 = vld [vmem:[%s2] sm:$0xff]
  %v667 = vld [vmem:[%s2 + $0x8] sm:$0xff]
  %669 = vset.pattern.permute.xlu0 0
  %670 = vperm.xlu0 %669, %v666
  %v671 = vpop.permute.xlu0 %670
  %674 = vset.pattern.permute.xlu0 0
  %675 = vperm.xlu0 %674, %v667
  %v676 = vpop.permute.xlu0 %675
  %v678 = vadd.f32 %v664, %v671
  %v679 = vadd.f32 %v665, %v676
  %v680 = vmax.f32 %v678, 0.0
  %v681 = vmax.f32 %v679, 0.0
  %v682 = vld [vmem:[%s4] sm:$0xf]
  %v683 = vld [vmem:[%s4 + $0x4] sm:$0xf]
  %v684 = vunpack.c.l.bf16 %v682
  %v685 = vunpack.c.l.bf16 %v683
  %v686 = vadd.f32 %v680, %v684
  %v687 = vadd.f32 %v681, %v685
  %v688 = vpack.c.bf16 %v687, %v686
  %v690 = vunpack.c.l.b16 %v688
  %v691 = vunpack.c.h.b16 %v688
  %v692 = vpack.c.b16 %v690, %v690
  %v693 = vpack.c.b16 %v691, %v691
  %vm696 = vcmask 519168
  %697 = vst.msk [vmem:[%s5] sm:$0xf] %vm696, %v692
  %698 = vst.msk [vmem:[%s5 + $0x4] sm:$0xf] %vm696, %v693
  // Predicated region
  $region22: #{img_obs_process.12} parent=0 // pred_check
    _
  $region23: #{img_obs_process.12} parent=0 // pred_check_branch
    %700 = sbr.rel (0) target = $region25
  $region24: #{img_obs_process.12} parent=0 // pred_region
    _
  $region25: #{img_obs_process.12} parent=0 // pred_fallthru
    _
  // Predicated region
  $region26: #{img_obs_process.12} parent=0 // pred_check
    _
  $region27: #{img_obs_process.12} parent=0 // pred_check_branch
    %702 = sbr.rel (0) target = $region29
  $region28: #{img_obs_process.12} parent=0 // pred_region
    _
  $region29: #{img_obs_process.12} parent=0 // pred_fallthru
    _

// kernel: img_obs_process.11
$region0: #{img_obs_process.11}
  #allocation0 [shape = 'u32[]', space=smem, size = 0x4, offset = 0x4, fixed_abs, tag = 'smem constant byte address 0x4 - core index']
  #allocation1 [shape = 'u32[144,128]{1,0:T(1,128)}', space=vmem, size = 0x12000, scoped, tag = 'internal scratch']
  %s0 = inlined_call_operand.vmem [shape: bf16[16,64], index: 0, kind: input, shape index: {}]
  %s1 = inlined_call_operand.vmem [shape: bf16[9,16,16], index: 1, kind: input, shape index: {}]
  %s2 = inlined_call_operand.vmem [shape: f32[16,1], index: 2, kind: input, shape index: {}]
  %s3 = inlined_call_operand.vmem [shape: f32[9,1,64], index: 3, kind: input, shape index: {}]
  %s4 = inlined_call_operand.vmem [shape: bf16[16,64], index: 4, kind: output, shape index: {}]
  %s5 = sld [smem:[#allocation0]]
  $region26: #{img_obs_process.11} parent=0
    _
  %s7 = ssub.s32 1, %s5
  %s8 = scalar_select 0, %s7, %s5
  // Predicated region
  $region2: #{img_obs_process.11} parent=0 // pred_check
    _
  $region3: #{img_obs_process.11} parent=0 // pred_check_branch
    %10 = sbr.rel (0) target = $region5
  $region4: #{img_obs_process.11} parent=0 // pred_region
    _
  $region5: #{img_obs_process.11} parent=0 // pred_fallthru
    _
  // Predicated region
  $region6: #{img_obs_process.11} parent=0 // pred_check
    _
  $region7: #{img_obs_process.11} parent=0 // pred_check_branch
    %12 = sbr.rel (0) target = $region9
  $region8: #{img_obs_process.11} parent=0 // pred_region
    _
  $region9: #{img_obs_process.11} parent=0 // pred_fallthru
    _
  // Predicated region
  $region10: #{img_obs_process.11} parent=0 // pred_check
    _
  $region11: #{img_obs_process.11} parent=0 // pred_check_branch
    %14 = sbr.rel (0) target = $region13
  $region12: #{img_obs_process.11} parent=0 // pred_region
    _
  $region13: #{img_obs_process.11} parent=0 // pred_fallthru
    _
  // Predicated region
  $region14: #{img_obs_process.11} parent=0 // pred_check
    _
  $region15: #{img_obs_process.11} parent=0 // pred_check_branch
    %16 = sbr.rel (0) target = $region17
  $region16: #{img_obs_process.11} parent=0 // pred_region
    _
  $region17: #{img_obs_process.11} parent=0 // pred_fallthru
    _
  %v18 = vld [vmem:[%s0] sm:$0xf]
  %v19 = vld [vmem:[%s0 + $0x4] sm:$0xf]
  %v20 = vunpack.c.l.bf16 %v18
  %v21 = vunpack.c.l.bf16 %v19
  %vm22 = vcmask 1048064
  %23 = vrot.lane.b32.xlu0 %v20, 64
  %v24 = vpop.permute.xlu0 %23
  %v25 = vsel %vm22, %v24, %v20
  %26 = vrot.lane.b32.xlu0 %v21, 64
  %v27 = vpop.permute.xlu0 %26
  %v28 = vsel %vm22, %v27, %v21
  %29 = vrot.lane.b32.xlu0 %v25, 64
  %v30 = vpop.permute.xlu0 %29
  %31 = vrot.lane.b32.xlu0 %v28, 64
  %v32 = vpop.permute.xlu0 %31
  %v33 = vsel %vm22, %v30, %v20
  %v34 = vsel %vm22, %v32, %v21
  %v35 = vld [vmem:[%s3] sm:$0x1]
  %v37 = vlaneseq
  %v38 = vshrl.u32 %v37, 7
  %v39 = vsub.s32 0, %v38
  %v40 = vrot.slane %v35, %v39
  %41 = vrot.lane.b32.xlu0 %v40, 59
  %v42 = vpop.permute.xlu0 %41
  %v44 = vmul.f32 %v33, %v42
  %v45 = vmul.f32 %v34, %v42
  %v46 = vpack.c.bf16 %v45, %v44
  %v47 = vld [vmem:[%s1] sm:$0xf]
  %v48 = vld [vmem:[%s1 + $0x4] sm:$0xf]
  %s49 = scalar_lea.vmem %s3, 1
  %v50 = vld [vmem:[%s49] sm:$0x1]
  %v52 = vlaneseq
  %v53 = vshrl.u32 %v52, 7
  %v54 = vsub.s32 0, %v53
  %v55 = vrot.slane %v50, %v54
  %56 = vrot.lane.b32.xlu0 %v55, 60
  %v57 = vpop.permute.xlu0 %56
  %v59 = vmul.f32 %v33, %v57
  %v60 = vmul.f32 %v34, %v57
  %v61 = vpack.c.bf16 %v60, %v59
  %s62 = scalar_lea.vmem %s1, 8
  %v63 = vld [vmem:[%s62] sm:$0xf]
  %v64 = vld [vmem:[%s62 + $0x4] sm:$0xf]
  %v67 = vunpack.c.l.b16 %v63
  %v68 = vunpack.c.l.b16 %v64
  %v69 = vpack.c.b16 %v68, %v67
  %71 = vrot.lane.b32.xlu0 %v61, 68
  %v72 = vpop.permute.xlu0 %71
  %vm74 = vcmask 130048
  %v76 = vsel %vm74, %v69, 0
  %78 = vmatprep.subr.bf16.mxu0 0
  %79 = vmatpush1.bf16.msra.mxu0 %v72
  %80 = vmatprep.subr.bf16.mxu0 0
  %81 = vmatpush1.bf16.msra.mxu0 0
  %82 = vmatprep.subr.bf16.mxu0 0
  %83 = vmatpush1.bf16.msra.mxu0 0
  %84 = vmatprep.subr.bf16.mxu0 0
  %85 = vmatpush1.bf16.msra.mxu0 0
  %86 = vmatprep.subr.bf16.mxu0 0
  %87 = vmatpush1.bf16.msra.mxu0 0
  %88 = vmatprep.subr.bf16.mxu0 0
  %89 = vmatpush1.bf16.msra.mxu0 0
  %90 = vmatprep.subr.bf16.mxu0 0
  %91 = vmatpush1.bf16.msra.mxu0 0
  %92 = vmatprep.subr.bf16.mxu0 0
  %93 = vmatpush1.bf16.msra.mxu0 0
  %94 = vmatprep.subr.bf16.mxu0 0
  %95 = vmatpush1.bf16.msra.mxu0 0
  %96 = vmatprep.subr.bf16.mxu0 0
  %97 = vmatpush1.bf16.msra.mxu0 0
  %98 = vmatprep.subr.bf16.mxu0 0
  %99 = vmatpush1.bf16.msra.mxu0 0
  %100 = vmatprep.subr.bf16.mxu0 0
  %101 = vmatpush1.bf16.msra.mxu0 0
  %102 = vmatprep.subr.bf16.mxu0 0
  %103 = vmatpush1.bf16.msra.mxu0 0
  %104 = vmatprep.subr.bf16.mxu0 0
  %105 = vmatpush1.bf16.msra.mxu0 0
  %106 = vmatprep.subr.bf16.mxu0 0
  %107 = vmatpush1.bf16.msra.mxu0 0
  %108 = vmatprep.subr.bf16.mxu0 0
  %109 = vmatpush1.bf16.msra.mxu0 0
  %110 = vmatprep.mubr.bf16.mxu0 0
  %111 = vmatmul.mubr.bf16.gmra.mrb[0].mxu0 %v76
  %v112 = vpop.f32.mrb[0].mxu0
  %v113 = vadd.f32 0.0, %v112
  %v114 = vpop.f32.mrb[0].mxu0
  %v115 = vpop.f32.mrb[0].mxu0
  %v116 = vadd.f32 0.0, %v115
  %v117 = vpop.f32.mrb[0].mxu0
  %118 = vdwg.mxu0
  %v121 = vunpack.c.l.b16 %v47
  %v122 = vunpack.c.l.b16 %v48
  %v123 = vpack.c.b16 %v122, %v121
  %125 = vrot.lane.b32.xlu0 %v46, 69
  %v126 = vpop.permute.xlu0 %125
  %v129 = vsel %vm74, %v123, 0
  %131 = vmatprep.subr.bf16.mxu0 0
  %132 = vmatpush1.bf16.msra.mxu0 %v126
  %133 = vmatprep.subr.bf16.mxu0 0
  %134 = vmatpush1.bf16.msra.mxu0 0
  %135 = vmatprep.subr.bf16.mxu0 0
  %136 = vmatpush1.bf16.msra.mxu0 0
  %137 = vmatprep.subr.bf16.mxu0 0
  %138 = vmatpush1.bf16.msra.mxu0 0
  %139 = vmatprep.subr.bf16.mxu0 0
  %140 = vmatpush1.bf16.msra.mxu0 0
  %141 = vmatprep.subr.bf16.mxu0 0
  %142 = vmatpush1.bf16.msra.mxu0 0
  %143 = vmatprep.subr.bf16.mxu0 0
  %144 = vmatpush1.bf16.msra.mxu0 0
  %145 = vmatprep.subr.bf16.mxu0 0
  %146 = vmatpush1.bf16.msra.mxu0 0
  %147 = vmatprep.subr.bf16.mxu0 0
  %148 = vmatpush1.bf16.msra.mxu0 0
  %149 = vmatprep.subr.bf16.mxu0 0
  %150 = vmatpush1.bf16.msra.mxu0 0
  %151 = vmatprep.subr.bf16.mxu0 0
  %152 = vmatpush1.bf16.msra.mxu0 0
  %153 = vmatprep.subr.bf16.mxu0 0
  %154 = vmatpush1.bf16.msra.mxu0 0
  %155 = vmatprep.subr.bf16.mxu0 0
  %156 = vmatpush1.bf16.msra.mxu0 0
  %157 = vmatprep.subr.bf16.mxu0 0
  %158 = vmatpush1.bf16.msra.mxu0 0
  %159 = vmatprep.subr.bf16.mxu0 0
  %160 = vmatpush1.bf16.msra.mxu0 0
  %161 = vmatprep.subr.bf16.mxu0 0
  %162 = vmatpush1.bf16.msra.mxu0 0
  %163 = vmatprep.mubr.bf16.mxu0 0
  %164 = vmatmul.mubr.bf16.gmra.mrb[0].mxu0 %v129
  %v165 = vpop.f32.mrb[0].mxu0
  %v166 = vadd.f32 %v113, %v165
  %v167 = vpop.f32.mrb[0].mxu0
  %v168 = vpop.f32.mrb[0].mxu0
  %v169 = vadd.f32 %v116, %v168
  %v170 = vpop.f32.mrb[0].mxu0
  %171 = vdwg.mxu0
  %s172 = scalar_lea.vmem %s3, 2
  %v173 = vld [vmem:[%s172] sm:$0x1]
  %v175 = vlaneseq
  %v176 = vshrl.u32 %v175, 7
  %v177 = vsub.s32 0, %v176
  %v178 = vrot.slane %v173, %v177
  %179 = vrot.lane.b32.xlu0 %v178, 61
  %v180 = vpop.permute.xlu0 %179
  %v182 = vmul.f32 %v33, %v180
  %v183 = vmul.f32 %v34, %v180
  %v184 = vpack.c.bf16 %v183, %v182
  %s185 = scalar_lea.vmem %s1, 16
  %v186 = vld [vmem:[%s185] sm:$0xf]
  %v187 = vld [vmem:[%s185 + $0x4] sm:$0xf]
  %v190 = vunpack.c.l.b16 %v186
  %v191 = vunpack.c.l.b16 %v187
  %v192 = vpack.c.b16 %v191, %v190
  %194 = vrot.lane.b32.xlu0 %v184, 67
  %v195 = vpop.permute.xlu0 %194
  %v198 = vsel %vm74, %v192, 0
  %200 = vmatprep.subr.bf16.mxu0 0
  %201 = vmatpush1.bf16.msra.mxu0 %v195
  %202 = vmatprep.subr.bf16.mxu0 0
  %203 = vmatpush1.bf16.msra.mxu0 0
  %204 = vmatprep.subr.bf16.mxu0 0
  %205 = vmatpush1.bf16.msra.mxu0 0
  %206 = vmatprep.subr.bf16.mxu0 0
  %207 = vmatpush1.bf16.msra.mxu0 0
  %208 = vmatprep.subr.bf16.mxu0 0
  %209 = vmatpush1.bf16.msra.mxu0 0
  %210 = vmatprep.subr.bf16.mxu0 0
  %211 = vmatpush1.bf16.msra.mxu0 0
  %212 = vmatprep.subr.bf16.mxu0 0
  %213 = vmatpush1.bf16.msra.mxu0 0
  %214 = vmatprep.subr.bf16.mxu0 0
  %215 = vmatpush1.bf16.msra.mxu0 0
  %216 = vmatprep.subr.bf16.mxu0 0
  %217 = vmatpush1.bf16.msra.mxu0 0
  %218 = vmatprep.subr.bf16.mxu0 0
  %219 = vmatpush1.bf16.msra.mxu0 0
  %220 = vmatprep.subr.bf16.mxu0 0
  %221 = vmatpush1.bf16.msra.mxu0 0
  %222 = vmatprep.subr.bf16.mxu0 0
  %223 = vmatpush1.bf16.msra.mxu0 0
  %224 = vmatprep.subr.bf16.mxu0 0
  %225 = vmatpush1.bf16.msra.mxu0 0
  %226 = vmatprep.subr.bf16.mxu0 0
  %227 = vmatpush1.bf16.msra.mxu0 0
  %228 = vmatprep.subr.bf16.mxu0 0
  %229 = vmatpush1.bf16.msra.mxu0 0
  %230 = vmatprep.subr.bf16.mxu0 0
  %231 = vmatpush1.bf16.msra.mxu0 0
  %232 = vmatprep.mubr.bf16.mxu0 0
  %233 = vmatmul.mubr.bf16.gmra.mrb[0].mxu0 %v198
  %v234 = vpop.f32.mrb[0].mxu0
  %v235 = vadd.f32 0.0, %v234
  %v236 = vpop.f32.mrb[0].mxu0
  %v237 = vpop.f32.mrb[0].mxu0
  %v238 = vadd.f32 0.0, %v237
  %v239 = vpop.f32.mrb[0].mxu0
  %240 = vdwg.mxu0
  %v241 = vadd.f32 %v166, %v235
  %v242 = vadd.f32 %v169, %v238
  %s243 = scalar_lea.vmem %s3, 3
  %v244 = vld [vmem:[%s243] sm:$0x1]
  %v246 = vlaneseq
  %v247 = vshrl.u32 %v246, 7
  %v248 = vsub.s32 0, %v247
  %v249 = vrot.slane %v244, %v248
  %250 = vrot.lane.b32.xlu0 %v249, 63
  %v251 = vpop.permute.xlu0 %250
  %v253 = vmul.f32 %v33, %v251
  %v254 = vmul.f32 %v34, %v251
  %v255 = vpack.c.bf16 %v254, %v253
  %s256 = scalar_lea.vmem %s1, 24
  %v257 = vld [vmem:[%s256] sm:$0xf]
  %v258 = vld [vmem:[%s256 + $0x4] sm:$0xf]
  %v261 = vunpack.c.l.b16 %v257
  %v262 = vunpack.c.l.b16 %v258
  %v263 = vpack.c.b16 %v262, %v261
  %265 = vrot.lane.b32.xlu0 %v255, 65
  %v266 = vpop.permute.xlu0 %265
  %v269 = vsel %vm74, %v263, 0
  %271 = vmatprep.subr.bf16.mxu0 0
  %272 = vmatpush1.bf16.msra.mxu0 %v266
  %273 = vmatprep.subr.bf16.mxu0 0
  %274 = vmatpush1.bf16.msra.mxu0 0
  %275 = vmatprep.subr.bf16.mxu0 0
  %276 = vmatpush1.bf16.msra.mxu0 0
  %277 = vmatprep.subr.bf16.mxu0 0
  %278 = vmatpush1.bf16.msra.mxu0 0
  %279 = vmatprep.subr.bf16.mxu0 0
  %280 = vmatpush1.bf16.msra.mxu0 0
  %281 = vmatprep.subr.bf16.mxu0 0
  %282 = vmatpush1.bf16.msra.mxu0 0
  %283 = vmatprep.subr.bf16.mxu0 0
  %284 = vmatpush1.bf16.msra.mxu0 0
  %285 = vmatprep.subr.bf16.mxu0 0
  %286 = vmatpush1.bf16.msra.mxu0 0
  %287 = vmatprep.subr.bf16.mxu0 0
  %288 = vmatpush1.bf16.msra.mxu0 0
  %289 = vmatprep.subr.bf16.mxu0 0
  %290 = vmatpush1.bf16.msra.mxu0 0
  %291 = vmatprep.subr.bf16.mxu0 0
  %292 = vmatpush1.bf16.msra.mxu0 0
  %293 = vmatprep.subr.bf16.mxu0 0
  %294 = vmatpush1.bf16.msra.mxu0 0
  %295 = vmatprep.subr.bf16.mxu0 0
  %296 = vmatpush1.bf16.msra.mxu0 0
  %297 = vmatprep.subr.bf16.mxu0 0
  %298 = vmatpush1.bf16.msra.mxu0 0
  %299 = vmatprep.subr.bf16.mxu0 0
  %300 = vmatpush1.bf16.msra.mxu0 0
  %301 = vmatprep.subr.bf16.mxu0 0
  %302 = vmatpush1.bf16.msra.mxu0 0
  %303 = vmatprep.mubr.bf16.mxu0 0
  %304 = vmatmul.mubr.bf16.gmra.mrb[0].mxu0 %v269
  %v305 = vpop.f32.mrb[0].mxu0
  %v306 = vadd.f32 0.0, %v305
  %v307 = vpop.f32.mrb[0].mxu0
  %v308 = vpop.f32.mrb[0].mxu0
  %v309 = vadd.f32 0.0, %v308
  %v310 = vpop.f32.mrb[0].mxu0
  %311 = vdwg.mxu0
  %v312 = vadd.f32 %v241, %v306
  %v313 = vadd.f32 %v242, %v309
  %s314 = scalar_lea.vmem %s3, 4
  %v315 = vld [vmem:[%s314] sm:$0x1]
  %v317 = vlaneseq
  %v318 = vshrl.u32 %v317, 7
  %v319 = vsub.s32 0, %v318
  %v320 = vrot.slane %v315, %v319
  %v322 = vmul.f32 %v20, %v320
  %v323 = vmul.f32 %v21, %v320
  %v324 = vpack.c.bf16 %v323, %v322
  %s325 = scalar_lea.vmem %s1, 32
  %v326 = vld [vmem:[%s325] sm:$0xf]
  %v327 = vld [vmem:[%s325 + $0x4] sm:$0xf]
  %v330 = vunpack.c.l.b16 %v326
  %v331 = vunpack.c.l.b16 %v327
  %v332 = vpack.c.b16 %v331, %v330
  %v334 = vsel %vm74, %v332, 0
  %336 = vmatprep.subr.bf16.mxu0 0
  %337 = vmatpush1.bf16.msra.mxu0 %v324
  %338 = vmatprep.subr.bf16.mxu0 0
  %339 = vmatpush1.bf16.msra.mxu0 0
  %340 = vmatprep.subr.bf16.mxu0 0
  %341 = vmatpush1.bf16.msra.mxu0 0
  %342 = vmatprep.subr.bf16.mxu0 0
  %343 = vmatpush1.bf16.msra.mxu0 0
  %344 = vmatprep.subr.bf16.mxu0 0
  %345 = vmatpush1.bf16.msra.mxu0 0
  %346 = vmatprep.subr.bf16.mxu0 0
  %347 = vmatpush1.bf16.msra.mxu0 0
  %348 = vmatprep.subr.bf16.mxu0 0
  %349 = vmatpush1.bf16.msra.mxu0 0
  %350 = vmatprep.subr.bf16.mxu0 0
  %351 = vmatpush1.bf16.msra.mxu0 0
  %352 = vmatprep.subr.bf16.mxu0 0
  %353 = vmatpush1.bf16.msra.mxu0 0
  %354 = vmatprep.subr.bf16.mxu0 0
  %355 = vmatpush1.bf16.msra.mxu0 0
  %356 = vmatprep.subr.bf16.mxu0 0
  %357 = vmatpush1.bf16.msra.mxu0 0
  %358 = vmatprep.subr.bf16.mxu0 0
  %359 = vmatpush1.bf16.msra.mxu0 0
  %360 = vmatprep.subr.bf16.mxu0 0
  %361 = vmatpush1.bf16.msra.mxu0 0
  %362 = vmatprep.subr.bf16.mxu0 0
  %363 = vmatpush1.bf16.msra.mxu0 0
  %364 = vmatprep.subr.bf16.mxu0 0
  %365 = vmatpush1.bf16.msra.mxu0 0
  %366 = vmatprep.subr.bf16.mxu0 0
  %367 = vmatpush1.bf16.msra.mxu0 0
  %368 = vmatprep.mubr.bf16.mxu0 0
  %369 = vmatmul.mubr.bf16.gmra.mrb[0].mxu0 %v334
  %v370 = vpop.f32.mrb[0].mxu0
  %v371 = vadd.f32 0.0, %v370
  %v372 = vpop.f32.mrb[0].mxu0
  %v373 = vpop.f32.mrb[0].mxu0
  %v374 = vadd.f32 0.0, %v373
  %v375 = vpop.f32.mrb[0].mxu0
  %376 = vdwg.mxu0
  %v377 = vadd.f32 %v312, %v371
  %v378 = vadd.f32 %v313, %v374
  %s379 = scalar_lea.vmem %s3, 5
  %v380 = vld [vmem:[%s379] sm:$0x1]
  %v382 = vlaneseq
  %v383 = vshrl.u32 %v382, 7
  %v384 = vsub.s32 0, %v383
  %v385 = vrot.slane %v380, %v384
  %386 = vrot.lane.b32.xlu0 %v385, 1
  %v387 = vpop.permute.xlu0 %386
  %v389 = vmul.f32 %v33, %v387
  %v390 = vmul.f32 %v34, %v387
  %v391 = vpack.c.bf16 %v390, %v389
  %s392 = scalar_lea.vmem %s1, 40
  %v393 = vld [vmem:[%s392] sm:$0xf]
  %v394 = vld [vmem:[%s392 + $0x4] sm:$0xf]
  %v397 = vunpack.c.l.b16 %v393
  %v398 = vunpack.c.l.b16 %v394
  %v399 = vpack.c.b16 %v398, %v397
  %401 = vrot.lane.b32.xlu0 %v391, 127
  %v402 = vpop.permute.xlu0 %401
  %v405 = vsel %vm74, %v399, 0
  %407 = vmatprep.subr.bf16.mxu0 0
  %408 = vmatpush1.bf16.msra.mxu0 %v402
  %409 = vmatprep.subr.bf16.mxu0 0
  %410 = vmatpush1.bf16.msra.mxu0 0
  %411 = vmatprep.subr.bf16.mxu0 0
  %412 = vmatpush1.bf16.msra.mxu0 0
  %413 = vmatprep.subr.bf16.mxu0 0
  %414 = vmatpush1.bf16.msra.mxu0 0
  %415 = vmatprep.subr.bf16.mxu0 0
  %416 = vmatpush1.bf16.msra.mxu0 0
  %417 = vmatprep.subr.bf16.mxu0 0
  %418 = vmatpush1.bf16.msra.mxu0 0
  %419 = vmatprep.subr.bf16.mxu0 0
  %420 = vmatpush1.bf16.msra.mxu0 0
  %421 = vmatprep.subr.bf16.mxu0 0
  %422 = vmatpush1.bf16.msra.mxu0 0
  %423 = vmatprep.subr.bf16.mxu0 0
  %424 = vmatpush1.bf16.msra.mxu0 0
  %425 = vmatprep.subr.bf16.mxu0 0
  %426 = vmatpush1.bf16.msra.mxu0 0
  %427 = vmatprep.subr.bf16.mxu0 0
  %428 = vmatpush1.bf16.msra.mxu0 0
  %429 = vmatprep.subr.bf16.mxu0 0
  %430 = vmatpush1.bf16.msra.mxu0 0
  %431 = vmatprep.subr.bf16.mxu0 0
  %432 = vmatpush1.bf16.msra.mxu0 0
  %433 = vmatprep.subr.bf16.mxu0 0
  %434 = vmatpush1.bf16.msra.mxu0 0
  %435 = vmatprep.subr.bf16.mxu0 0
  %436 = vmatpush1.bf16.msra.mxu0 0
  %437 = vmatprep.subr.bf16.mxu0 0
  %438 = vmatpush1.bf16.msra.mxu0 0
  %439 = vmatprep.mubr.bf16.mxu0 0
  %440 = vmatmul.mubr.bf16.gmra.mrb[0].mxu0 %v405
  %v441 = vpop.f32.mrb[0].mxu0
  %v442 = vadd.f32 0.0, %v441
  %v443 = vpop.f32.mrb[0].mxu0
  %v444 = vpop.f32.mrb[0].mxu0
  %v445 = vadd.f32 0.0, %v444
  %v446 = vpop.f32.mrb[0].mxu0
  %447 = vdwg.mxu0
  %v448 = vadd.f32 %v377, %v442
  %v449 = vadd.f32 %v378, %v445
  %s450 = scalar_lea.vmem %s3, 6
  %v451 = vld [vmem:[%s450] sm:$0x1]
  %v453 = vlaneseq
  %v454 = vshrl.u32 %v453, 7
  %v455 = vsub.s32 0, %v454
  %v456 = vrot.slane %v451, %v455
  %457 = vrot.lane.b32.xlu0 %v456, 3
  %v458 = vpop.permute.xlu0 %457
  %v460 = vmul.f32 %v33, %v458
  %v461 = vmul.f32 %v34, %v458
  %v462 = vpack.c.bf16 %v461, %v460
  %s463 = scalar_lea.vmem %s1, 48
  %v464 = vld [vmem:[%s463] sm:$0xf]
  %v465 = vld [vmem:[%s463 + $0x4] sm:$0xf]
  %v468 = vunpack.c.l.b16 %v464
  %v469 = vunpack.c.l.b16 %v465
  %v470 = vpack.c.b16 %v469, %v468
  %472 = vrot.lane.b32.xlu0 %v462, 125
  %v473 = vpop.permute.xlu0 %472
  %v476 = vsel %vm74, %v470, 0
  %478 = vmatprep.subr.bf16.mxu0 0
  %479 = vmatpush1.bf16.msra.mxu0 %v473
  %480 = vmatprep.subr.bf16.mxu0 0
  %481 = vmatpush1.bf16.msra.mxu0 0
  %482 = vmatprep.subr.bf16.mxu0 0
  %483 = vmatpush1.bf16.msra.mxu0 0
  %484 = vmatprep.subr.bf16.mxu0 0
  %485 = vmatpush1.bf16.msra.mxu0 0
  %486 = vmatprep.subr.bf16.mxu0 0
  %487 = vmatpush1.bf16.msra.mxu0 0
  %488 = vmatprep.subr.bf16.mxu0 0
  %489 = vmatpush1.bf16.msra.mxu0 0
  %490 = vmatprep.subr.bf16.mxu0 0
  %491 = vmatpush1.bf16.msra.mxu0 0
  %492 = vmatprep.subr.bf16.mxu0 0
  %493 = vmatpush1.bf16.msra.mxu0 0
  %494 = vmatprep.subr.bf16.mxu0 0
  %495 = vmatpush1.bf16.msra.mxu0 0
  %496 = vmatprep.subr.bf16.mxu0 0
  %497 = vmatpush1.bf16.msra.mxu0 0
  %498 = vmatprep.subr.bf16.mxu0 0
  %499 = vmatpush1.bf16.msra.mxu0 0
  %500 = vmatprep.subr.bf16.mxu0 0
  %501 = vmatpush1.bf16.msra.mxu0 0
  %502 = vmatprep.subr.bf16.mxu0 0
  %503 = vmatpush1.bf16.msra.mxu0 0
  %504 = vmatprep.subr.bf16.mxu0 0
  %505 = vmatpush1.bf16.msra.mxu0 0
  %506 = vmatprep.subr.bf16.mxu0 0
  %507 = vmatpush1.bf16.msra.mxu0 0
  %508 = vmatprep.subr.bf16.mxu0 0
  %509 = vmatpush1.bf16.msra.mxu0 0
  %510 = vmatprep.mubr.bf16.mxu0 0
  %511 = vmatmul.mubr.bf16.gmra.mrb[0].mxu0 %v476
  %v512 = vpop.f32.mrb[0].mxu0
  %v513 = vadd.f32 0.0, %v512
  %v514 = vpop.f32.mrb[0].mxu0
  %v515 = vpop.f32.mrb[0].mxu0
  %v516 = vadd.f32 0.0, %v515
  %v517 = vpop.f32.mrb[0].mxu0
  %518 = vdwg.mxu0
  %v519 = vadd.f32 %v448, %v513
  %v520 = vadd.f32 %v449, %v516
  %s521 = scalar_lea.vmem %s3, 7
  %v522 = vld [vmem:[%s521] sm:$0x1]
  %v524 = vlaneseq
  %v525 = vshrl.u32 %v524, 7
  %v526 = vsub.s32 0, %v525
  %v527 = vrot.slane %v522, %v526
  %528 = vrot.lane.b32.xlu0 %v527, 4
  %v529 = vpop.permute.xlu0 %528
  %v531 = vmul.f32 %v33, %v529
  %v532 = vmul.f32 %v34, %v529
  %v533 = vpack.c.bf16 %v532, %v531
  %s534 = scalar_lea.vmem %s1, 56
  %v535 = vld [vmem:[%s534] sm:$0xf]
  %v536 = vld [vmem:[%s534 + $0x4] sm:$0xf]
  %v539 = vunpack.c.l.b16 %v535
  %v540 = vunpack.c.l.b16 %v536
  %v541 = vpack.c.b16 %v540, %v539
  %543 = vrot.lane.b32.xlu0 %v533, 124
  %v544 = vpop.permute.xlu0 %543
  %v547 = vsel %vm74, %v541, 0
  %549 = vmatprep.subr.bf16.mxu0 0
  %550 = vmatpush1.bf16.msra.mxu0 %v544
  %551 = vmatprep.subr.bf16.mxu0 0
  %552 = vmatpush1.bf16.msra.mxu0 0
  %553 = vmatprep.subr.bf16.mxu0 0
  %554 = vmatpush1.bf16.msra.mxu0 0
  %555 = vmatprep.subr.bf16.mxu0 0
  %556 = vmatpush1.bf16.msra.mxu0 0
  %557 = vmatprep.subr.bf16.mxu0 0
  %558 = vmatpush1.bf16.msra.mxu0 0
  %559 = vmatprep.subr.bf16.mxu0 0
  %560 = vmatpush1.bf16.msra.mxu0 0
  %561 = vmatprep.subr.bf16.mxu0 0
  %562 = vmatpush1.bf16.msra.mxu0 0
  %563 = vmatprep.subr.bf16.mxu0 0
  %564 = vmatpush1.bf16.msra.mxu0 0
  %565 = vmatprep.subr.bf16.mxu0 0
  %566 = vmatpush1.bf16.msra.mxu0 0
  %567 = vmatprep.subr.bf16.mxu0 0
  %568 = vmatpush1.bf16.msra.mxu0 0
  %569 = vmatprep.subr.bf16.mxu0 0
  %570 = vmatpush1.bf16.msra.mxu0 0
  %571 = vmatprep.subr.bf16.mxu0 0
  %572 = vmatpush1.bf16.msra.mxu0 0
  %573 = vmatprep.subr.bf16.mxu0 0
  %574 = vmatpush1.bf16.msra.mxu0 0
  %575 = vmatprep.subr.bf16.mxu0 0
  %576 = vmatpush1.bf16.msra.mxu0 0
  %577 = vmatprep.subr.bf16.mxu0 0
  %578 = vmatpush1.bf16.msra.mxu0 0
  %579 = vmatprep.subr.bf16.mxu0 0
  %580 = vmatpush1.bf16.msra.mxu0 0
  %581 = vmatprep.mubr.bf16.mxu0 0
  %582 = vmatmul.mubr.bf16.gmra.mrb[0].mxu0 %v547
  %v583 = vpop.f32.mrb[0].mxu0
  %v584 = vadd.f32 0.0, %v583
  %v585 = vpop.f32.mrb[0].mxu0
  %v586 = vpop.f32.mrb[0].mxu0
  %v587 = vadd.f32 0.0, %v586
  %v588 = vpop.f32.mrb[0].mxu0
  %589 = vdwg.mxu0
  %v590 = vadd.f32 %v519, %v584
  %v591 = vadd.f32 %v520, %v587
  %s592 = scalar_lea.vmem %s3, 8
  %v593 = vld [vmem:[%s592] sm:$0x1]
  %v595 = vlaneseq
  %v596 = vshrl.u32 %v595, 7
  %v597 = vsub.s32 0, %v596
  %v598 = vrot.slane %v593, %v597
  %599 = vrot.lane.b32.xlu0 %v598, 5
  %v600 = vpop.permute.xlu0 %599
  %v602 = vmul.f32 %v33, %v600
  %v603 = vmul.f32 %v34, %v600
  %v604 = vpack.c.bf16 %v603, %v602
  %s605 = scalar_lea.vmem %s1, 64
  %v606 = vld [vmem:[%s605] sm:$0xf]
  %v607 = vld [vmem:[%s605 + $0x4] sm:$0xf]
  %v610 = vunpack.c.l.b16 %v606
  %v611 = vunpack.c.l.b16 %v607
  %v612 = vpack.c.b16 %v611, %v610
  %614 = vrot.lane.b32.xlu0 %v604, 123
  %v615 = vpop.permute.xlu0 %614
  %v618 = vsel %vm74, %v612, 0
  %620 = vmatprep.subr.bf16.mxu0 0
  %621 = vmatpush1.bf16.msra.mxu0 %v615
  %622 = vmatprep.subr.bf16.mxu0 0
  %623 = vmatpush1.bf16.msra.mxu0 0
  %624 = vmatprep.subr.bf16.mxu0 0
  %625 = vmatpush1.bf16.msra.mxu0 0
  %626 = vmatprep.subr.bf16.mxu0 0
  %627 = vmatpush1.bf16.msra.mxu0 0
  %628 = vmatprep.subr.bf16.mxu0 0
  %629 = vmatpush1.bf16.msra.mxu0 0
  %630 = vmatprep.subr.bf16.mxu0 0
  %631 = vmatpush1.bf16.msra.mxu0 0
  %632 = vmatprep.subr.bf16.mxu0 0
  %633 = vmatpush1.bf16.msra.mxu0 0
  %634 = vmatprep.subr.bf16.mxu0 0
  %635 = vmatpush1.bf16.msra.mxu0 0
  %636 = vmatprep.subr.bf16.mxu0 0
  %637 = vmatpush1.bf16.msra.mxu0 0
  %638 = vmatprep.subr.bf16.mxu0 0
  %639 = vmatpush1.bf16.msra.mxu0 0
  %640 = vmatprep.subr.bf16.mxu0 0
  %641 = vmatpush1.bf16.msra.mxu0 0
  %642 = vmatprep.subr.bf16.mxu0 0
  %643 = vmatpush1.bf16.msra.mxu0 0
  %644 = vmatprep.subr.bf16.mxu0 0
  %645 = vmatpush1.bf16.msra.mxu0 0
  %646 = vmatprep.subr.bf16.mxu0 0
  %647 = vmatpush1.bf16.msra.mxu0 0
  %648 = vmatprep.subr.bf16.mxu0 0
  %649 = vmatpush1.bf16.msra.mxu0 0
  %650 = vmatprep.subr.bf16.mxu0 0
  %651 = vmatpush1.bf16.msra.mxu0 0
  %652 = vmatprep.mubr.bf16.mxu0 0
  %653 = vmatmul.mubr.bf16.gmra.mrb[0].mxu0 %v618
  %v654 = vpop.f32.mrb[0].mxu0
  %v655 = vadd.f32 0.0, %v654
  %v656 = vpop.f32.mrb[0].mxu0
  %v657 = vpop.f32.mrb[0].mxu0
  %v658 = vadd.f32 0.0, %v657
  %v659 = vpop.f32.mrb[0].mxu0
  %660 = vdwg.mxu0
  %v661 = vadd.f32 %v590, %v655
  %v662 = vadd.f32 %v591, %v658
  %v663 = vld [vmem:[%s2] sm:$0xff]
  %v664 = vld [vmem:[%s2 + $0x8] sm:$0xff]
  %666 = vset.pattern.permute.xlu0 0
  %667 = vperm.xlu0 %666, %v663
  %v668 = vpop.permute.xlu0 %667
  %671 = vset.pattern.permute.xlu0 0
  %672 = vperm.xlu0 %671, %v664
  %v673 = vpop.permute.xlu0 %672
  %v675 = vadd.f32 %v661, %v668
  %v676 = vadd.f32 %v662, %v673
  %v677 = vmax.f32 %v675, 0.0
  %v678 = vmax.f32 %v676, 0.0
  %v679 = vpack.c.bf16 %v678, %v677
  %v681 = vunpack.c.l.b16 %v679
  %v682 = vunpack.c.h.b16 %v679
  %v683 = vpack.c.b16 %v681, %v681
  %v684 = vpack.c.b16 %v682, %v682
  %vm687 = vcmask 519168
  %688 = vst.msk [vmem:[%s4] sm:$0xf] %vm687, %v683
  %689 = vst.msk [vmem:[%s4 + $0x4] sm:$0xf] %vm687, %v684
  // Predicated region
  $region18: #{img_obs_process.11} parent=0 // pred_check
    _
  $region19: #{img_obs_process.11} parent=0 // pred_check_branch
    %691 = sbr.rel (0) target = $region21
  $region20: #{img_obs_process.11} parent=0 // pred_region
    _
  $region21: #{img_obs_process.11} parent=0 // pred_fallthru
    _
  // Predicated region
  $region22: #{img_obs_process.11} parent=0 // pred_check
    _
  $region23: #{img_obs_process.11} parent=0 // pred_check_branch
    %693 = sbr.rel (0) target = $region25
  $region24: #{img_obs_process.11} parent=0 // pred_region
    _
  $region25: #{img_obs_process.11} parent=0 // pred_fallthru
    _

// kernel: img_obs_process.13
$region0: #{img_obs_process.13}
  #allocation0 [shape = 'u32[]', space=smem, size = 0x4, offset = 0x4, fixed_abs, tag = 'smem constant byte address 0x4 - core index']
  #allocation1 [shape = 'u32[144,128]{1,0:T(1,128)}', space=vmem, size = 0x12000, scoped, tag = 'internal scratch']
  %s0 = inlined_call_operand.vmem [shape: bf16[4,256], index: 0, kind: input, shape index: {}]
  %s1 = inlined_call_operand.vmem [shape: bf16[256,64], index: 1, kind: input, shape index: {}]
  %s2 = inlined_call_operand.vmem [shape: f32[1,64], index: 2, kind: input, shape index: {}]
  %s3 = inlined_call_operand.vmem [shape: bf16[64,32], index: 3, kind: input, shape index: {}]
  %s4 = inlined_call_operand.vmem [shape: f32[1,32], index: 4, kind: input, shape index: {}]
  %s5 = inlined_call_operand.hbm [shape: f32[4,32], index: 5, kind: output, shape index: {}]
  %s6 = sld [smem:[#allocation0]]
  $region30: #{img_obs_process.13} parent=0
    _
  %s8 = ssub.s32 1, %s6
  %s9 = scalar_select 0, %s8, %s6
  $region1: #{img_obs_process.13} parent=0
    #allocation2 [shape = 'u8[2048]{0}', space=vmem, size = 0x800, scoped, tag = 'output window, operand 0, single buffered']
    #allocation3 [shape = 's32[1]{0}', space=sflag, size = 0x4, scoped, tag = 'scoped memory for img_obs_process.13']
    %10 = vsyncpa [#allocation3], 0
    // Predicated region
    $region2: #{img_obs_process.13} parent=1 // pred_check
      _
    $region3: #{img_obs_process.13} parent=1 // pred_check_branch
      %12 = sbr.rel (0) target = $region5
    $region4: #{img_obs_process.13} parent=1 // pred_region
      _
    $region5: #{img_obs_process.13} parent=1 // pred_fallthru
      _
    // Predicated region
    $region6: #{img_obs_process.13} parent=1 // pred_check
      _
    $region7: #{img_obs_process.13} parent=1 // pred_check_branch
      %14 = sbr.rel (0) target = $region9
    $region8: #{img_obs_process.13} parent=1 // pred_region
      _
    $region9: #{img_obs_process.13} parent=1 // pred_fallthru
      _
    // Predicated region
    $region10: #{img_obs_process.13} parent=1 // pred_check
      _
    $region11: #{img_obs_process.13} parent=1 // pred_check_branch
      %16 = sbr.rel (0) target = $region13
    $region12: #{img_obs_process.13} parent=1 // pred_region
      _
    $region13: #{img_obs_process.13} parent=1 // pred_fallthru
      _
    // Predicated region
    $region14: #{img_obs_process.13} parent=1 // pred_check
      _
    $region15: #{img_obs_process.13} parent=1 // pred_check_branch
      %18 = sbr.rel (0) target = $region17
    $region16: #{img_obs_process.13} parent=1 // pred_region
      _
    $region17: #{img_obs_process.13} parent=1 // pred_fallthru
      _
    // Predicated region
    $region18: #{img_obs_process.13} parent=1 // pred_check
      _
    $region19: #{img_obs_process.13} parent=1 // pred_check_branch
      %20 = sbr.rel (0) target = $region21
    $region20: #{img_obs_process.13} parent=1 // pred_region
      _
    $region21: #{img_obs_process.13} parent=1 // pred_fallthru
      _
    %v22 = vld [vmem:[%s0] sm:$0xf]
    %v23 = vld [vmem:[%s1] sm:$0xf]
    %v24 = vld [vmem:[%s1 + $0x4] sm:$0xf]
    %v25 = vld [vmem:[%s1 + $0x8] sm:$0xf]
    %v26 = vld [vmem:[%s1 + $0xc] sm:$0xf]
    %v27 = vld [vmem:[%s1 + $0x10] sm:$0xf]
    %v28 = vld [vmem:[%s1 + $0x14] sm:$0xf]
    %v29 = vld [vmem:[%s1 + $0x18] sm:$0xf]
    %v30 = vld [vmem:[%s1 + $0x1c] sm:$0xf]
    %v31 = vld [vmem:[%s1 + $0x20] sm:$0xf]
    %v32 = vld [vmem:[%s1 + $0x24] sm:$0xf]
    %v33 = vld [vmem:[%s1 + $0x28] sm:$0xf]
    %v34 = vld [vmem:[%s1 + $0x2c] sm:$0xf]
    %v35 = vld [vmem:[%s1 + $0x30] sm:$0xf]
    %v36 = vld [vmem:[%s1 + $0x34] sm:$0xf]
    %v37 = vld [vmem:[%s1 + $0x38] sm:$0xf]
    %v38 = vld [vmem:[%s1 + $0x3c] sm:$0xf]
    %v39 = vld [vmem:[%s1 + $0x40] sm:$0xf]
    %v40 = vld [vmem:[%s1 + $0x44] sm:$0xf]
    %v41 = vld [vmem:[%s1 + $0x48] sm:$0xf]
    %v42 = vld [vmem:[%s1 + $0x4c] sm:$0xf]
    %v43 = vld [vmem:[%s1 + $0x50] sm:$0xf]
    %v44 = vld [vmem:[%s1 + $0x54] sm:$0xf]
    %v45 = vld [vmem:[%s1 + $0x58] sm:$0xf]
    %v46 = vld [vmem:[%s1 + $0x5c] sm:$0xf]
    %v47 = vld [vmem:[%s1 + $0x60] sm:$0xf]
    %v48 = vld [vmem:[%s1 + $0x64] sm:$0xf]
    %v49 = vld [vmem:[%s1 + $0x68] sm:$0xf]
    %v50 = vld [vmem:[%s1 + $0x6c] sm:$0xf]
    %v51 = vld [vmem:[%s1 + $0x70] sm:$0xf]
    %v52 = vld [vmem:[%s1 + $0x74] sm:$0xf]
    %v53 = vld [vmem:[%s1 + $0x78] sm:$0xf]
    %v54 = vld [vmem:[%s1 + $0x7c] sm:$0xf]
    %v55 = vld [vmem:[%s2] sm:$0x1]
    %v57 = vlaneseq
    %v58 = vshrl.u32 %v57, 7
    %v59 = vsub.s32 0, %v58
    %v60 = vrot.slane %v55, %v59
    %v64 = vunpack.c.l.s4 1983009808
    %v65 = vunpack.c.0.s8 %v64
    %v66 = vlaneseq
    %v67 = vshrl.u32 %v66, 7
    %v68 = vsub.s32 %v65, %v67
    %v69 = vrot.slane %v22, %v68
    %v70 = vcombine.high %v69, %v69
    %v105 = vunpack.c.l.b16 %v23
    %v106 = vunpack.c.l.b16 %v24
    %v107 = vunpack.c.l.b16 %v25
    %v108 = vunpack.c.l.b16 %v26
    %v109 = vunpack.c.l.b16 %v27
    %v110 = vunpack.c.l.b16 %v28
    %v111 = vunpack.c.l.b16 %v29
    %v112 = vunpack.c.l.b16 %v30
    %v113 = vunpack.c.l.b16 %v31
    %v114 = vunpack.c.l.b16 %v32
    %v115 = vunpack.c.l.b16 %v33
    %v116 = vunpack.c.l.b16 %v34
    %v117 = vunpack.c.l.b16 %v35
    %v118 = vunpack.c.l.b16 %v36
    %v119 = vunpack.c.l.b16 %v37
    %v120 = vunpack.c.l.b16 %v38
    %v121 = vunpack.c.l.b16 %v39
    %v122 = vunpack.c.l.b16 %v40
    %v123 = vunpack.c.l.b16 %v41
    %v124 = vunpack.c.l.b16 %v42
    %v125 = vunpack.c.l.b16 %v43
    %v126 = vunpack.c.l.b16 %v44
    %v127 = vunpack.c.l.b16 %v45
    %v128 = vunpack.c.l.b16 %v46
    %v129 = vunpack.c.l.b16 %v47
    %v130 = vunpack.c.l.b16 %v48
    %v131 = vunpack.c.l.b16 %v49
    %v132 = vunpack.c.l.b16 %v50
    %v133 = vunpack.c.l.b16 %v51
    %v134 = vunpack.c.l.b16 %v52
    %v135 = vunpack.c.l.b16 %v53
    %v136 = vunpack.c.l.b16 %v54
    %v137 = vpack.c.b16 %v106, %v105
    %v138 = vpack.c.b16 %v108, %v107
    %v139 = vpack.c.b16 %v110, %v109
    %v140 = vpack.c.b16 %v112, %v111
    %v141 = vpack.c.b16 %v114, %v113
    %v142 = vpack.c.b16 %v116, %v115
    %v143 = vpack.c.b16 %v118, %v117
    %v144 = vpack.c.b16 %v120, %v119
    %v145 = vpack.c.b16 %v122, %v121
    %v146 = vpack.c.b16 %v124, %v123
    %v147 = vpack.c.b16 %v126, %v125
    %v148 = vpack.c.b16 %v128, %v127
    %v149 = vpack.c.b16 %v130, %v129
    %v150 = vpack.c.b16 %v132, %v131
    %v151 = vpack.c.b16 %v134, %v133
    %v152 = vpack.c.b16 %v136, %v135
    %169 = vmatprep.subr.bf16.mxu0 0
    %170 = vmatpush1.bf16.msra.mxu0 %v137
    %171 = vmatprep.subr.bf16.mxu0 0
    %172 = vmatpush1.bf16.msra.mxu0 %v138
    %173 = vmatprep.subr.bf16.mxu0 0
    %174 = vmatpush1.bf16.msra.mxu0 %v139
    %175 = vmatprep.subr.bf16.mxu0 0
    %176 = vmatpush1.bf16.msra.mxu0 %v140
    %177 = vmatprep.subr.bf16.mxu0 0
    %178 = vmatpush1.bf16.msra.mxu0 %v141
    %179 = vmatprep.subr.bf16.mxu0 0
    %180 = vmatpush1.bf16.msra.mxu0 %v142
    %181 = vmatprep.subr.bf16.mxu0 0
    %182 = vmatpush1.bf16.msra.mxu0 %v143
    %183 = vmatprep.subr.bf16.mxu0 0
    %184 = vmatpush1.bf16.msra.mxu0 %v144
    %185 = vmatprep.subr.bf16.mxu0 0
    %186 = vmatpush1.bf16.msra.mxu0 %v145
    %187 = vmatprep.subr.bf16.mxu0 0
    %188 = vmatpush1.bf16.msra.mxu0 %v146
    %189 = vmatprep.subr.bf16.mxu0 0
    %190 = vmatpush1.bf16.msra.mxu0 %v147
    %191 = vmatprep.subr.bf16.mxu0 0
    %192 = vmatpush1.bf16.msra.mxu0 %v148
    %193 = vmatprep.subr.bf16.mxu0 0
    %194 = vmatpush1.bf16.msra.mxu0 %v149
    %195 = vmatprep.subr.bf16.mxu0 0
    %196 = vmatpush1.bf16.msra.mxu0 %v150
    %197 = vmatprep.subr.bf16.mxu0 0
    %198 = vmatpush1.bf16.msra.mxu0 %v151
    %199 = vmatprep.subr.bf16.mxu0 0
    %200 = vmatpush1.bf16.msra.mxu0 %v152
    %201 = vmatprep.mubr.bf16.mxu0 %v70
    %202 = vmatmul.mubr.bf16.gmra.mrb[0].mxu0 %v69
    %v203 = vpop.f32.mrb[0].mxu0
    %v204 = vadd.f32 %v60, %v203
    %v205 = vpop.f32.mrb[0].mxu0
    %v206 = vpop.f32.mrb[0].mxu0
    %v207 = vpop.f32.mrb[0].mxu0
    %208 = vdwg.mxu0
    %v209 = vmax.f32 %v204, 0.0
    %v210 = vpack.c.bf16 %v209, %v209
    %v211 = vld [vmem:[%s3] sm:$0xf]
    %v212 = vld [vmem:[%s3 + $0x4] sm:$0xf]
    %v213 = vld [vmem:[%s3 + $0x8] sm:$0xf]
    %v214 = vld [vmem:[%s3 + $0xc] sm:$0xf]
    %v215 = vld [vmem:[%s3 + $0x10] sm:$0xf]
    %v216 = vld [vmem:[%s3 + $0x14] sm:$0xf]
    %v217 = vld [vmem:[%s3 + $0x18] sm:$0xf]
    %v218 = vld [vmem:[%s3 + $0x1c] sm:$0xf]
    %v219 = vld [vmem:[%s4] sm:$0x1]
    %v221 = vlaneseq
    %v222 = vshrl.u32 %v221, 7
    %v223 = vsub.s32 0, %v222
    %v224 = vrot.slane %v219, %v223
    %v234 = vunpack.c.l.b16 %v211
    %v235 = vunpack.c.l.b16 %v212
    %v236 = vunpack.c.l.b16 %v213
    %v237 = vunpack.c.l.b16 %v214
    %v238 = vunpack.c.l.b16 %v215
    %v239 = vunpack.c.l.b16 %v216
    %v240 = vunpack.c.l.b16 %v217
    %v241 = vunpack.c.l.b16 %v218
    %v242 = vpack.c.b16 %v235, %v234
    %v243 = vpack.c.b16 %v237, %v236
    %v244 = vpack.c.b16 %v239, %v238
    %v245 = vpack.c.b16 %v241, %v240
    %vm250 = vcmask 523264
    %v252 = vsel %vm250, %v210, 0
    %254 = vmatprep.subr.bf16.mxu0 0
    %255 = vmatpush1.bf16.msra.mxu0 %v242
    %256 = vmatprep.subr.bf16.mxu0 0
    %257 = vmatpush1.bf16.msra.mxu0 %v243
    %258 = vmatprep.subr.bf16.mxu0 0
    %259 = vmatpush1.bf16.msra.mxu0 %v244
    %260 = vmatprep.subr.bf16.mxu0 0
    %261 = vmatpush1.bf16.msra.mxu0 %v245
    %262 = vmatprep.subr.bf16.mxu0 0
    %263 = vmatpush1.bf16.msra.mxu0 0
    %264 = vmatprep.subr.bf16.mxu0 0
    %265 = vmatpush1.bf16.msra.mxu0 0
    %266 = vmatprep.subr.bf16.mxu0 0
    %267 = vmatpush1.bf16.msra.mxu0 0
    %268 = vmatprep.subr.bf16.mxu0 0
    %269 = vmatpush1.bf16.msra.mxu0 0
    %270 = vmatprep.subr.bf16.mxu0 0
    %271 = vmatpush1.bf16.msra.mxu0 0
    %272 = vmatprep.subr.bf16.mxu0 0
    %273 = vmatpush1.bf16.msra.mxu0 0
    %274 = vmatprep.subr.bf16.mxu0 0
    %275 = vmatpush1.bf16.msra.mxu0 0
    %276 = vmatprep.subr.bf16.mxu0 0
    %277 = vmatpush1.bf16.msra.mxu0 0
    %278 = vmatprep.subr.bf16.mxu0 0
    %279 = vmatpush1.bf16.msra.mxu0 0
    %280 = vmatprep.subr.bf16.mxu0 0
    %281 = vmatpush1.bf16.msra.mxu0 0
    %282 = vmatprep.subr.bf16.mxu0 0
    %283 = vmatpush1.bf16.msra.mxu0 0
    %284 = vmatprep.subr.bf16.mxu0 0
    %285 = vmatpush1.bf16.msra.mxu0 0
    %286 = vmatprep.mubr.bf16.mxu0 0
    %287 = vmatmul.mubr.bf16.gmra.mrb[0].mxu0 %v252
    %v288 = vpop.f32.mrb[0].mxu0
    %v289 = vadd.f32 %v224, %v288
    %v290 = vpop.f32.mrb[0].mxu0
    %v291 = vpop.f32.mrb[0].mxu0
    %v292 = vpop.f32.mrb[0].mxu0
    %293 = vdwg.mxu0
    %v294 = vmax.f32 %v289, 0.0
    %vm295 = vcmask 257024
    %296 = vst.msk [vmem:[#allocation2] sm:$0xf] %vm295, %v294
    // Predicated region
    $region22: #{img_obs_process.13} parent=1 // pred_check
      _
    $region23: #{img_obs_process.13} parent=1 // pred_check_branch
      %298 = sbr.rel (0) target = $region25
    $region24: #{img_obs_process.13} parent=1 // pred_region
      %s300 = ssub.s32 64, 64
      %301 = vsyncadd [#allocation3], %s300
      %s303 = sshll.u32 [#allocation2], 4
      %s304 = int_to_ptr.vmem [resolvable:$true] %s303
      %306 = dma.vmem_to_hbm [thread:$0]  %s304, 64, %s5, [#allocation3]
    $region25: #{img_obs_process.13} parent=1 // pred_fallthru
      _
    // Predicated region
    $region26: #{img_obs_process.13} parent=1 // pred_check
      _
    $region27: #{img_obs_process.13} parent=1 // pred_check_branch
      %308 = sbr.rel (0) target = $region29
    $region28: #{img_obs_process.13} parent=1 // pred_region
      %309 = dma.done [#allocation3], 64
    $region29: #{img_obs_process.13} parent=1 // pred_fallthru
      _
    %310 = vsyncpa [#allocation3], 1

</llo_original>
